<compile_context>
chip_gen: v7x
topology: tpu7x:2x2x1
jax: 0.10.0
libtpu: 0.0.40
codegen_flags: <defaults>
</compile_context>

<pallas_src>
import functools

import jax
import jax.numpy as jnp
from jax.experimental import pallas as pl
from jax.experimental.pallas import tpu as pltpu


def _lstm_wavefront_kernel(gx0_ref, wih_ref, whh_ref, b_ref, h0_ref, c0_ref,
                           y_ref, hn_ref, cn_ref,
                           h_s, c_s, gx_s, *, seq_len, mask_tail):
    """Fused multi-layer LSTM over one block of T_blk timesteps, wavefront order.

    gx0_ref : (T_blk, B, 4H) f32            layer-0 pre-activations x_t @ W_ih0 + b0 (hoisted)
    wih_ref : (max(L-1,1), H, 4H) bf16      W_ih for layers 1..L-1
    whh_ref : (L, H, 4H) bf16               W_hh (PyTorch gate order i, f, g, o)
    b_ref   : (max(L-1,1), 1, 4H) f32       combined biases for layers 1..L-1
    h0,c0   : (L, B, H)                     initial states
    y_ref   : (T_blk*B, H)                  top-layer output rows for this block
    hn,cn   : (L, B, H)                     final states (written on the last grid step)
    h_s,c_s : VMEM (L, B, H) f32            recurrent state carried across grid steps
    gx_s    : VMEM (max(L-1,1), B, 4H) f32  staged input projections for layers 1..L-1
    """
    step = pl.program_id(0)
    L, B, H = h_s.shape
    T_blk = gx0_ref.shape[0]

    @pl.when(step == 0)
    def _():
        h_s[...] = h0_ref[...].astype(jnp.float32)
        c_s[...] = c0_ref[...].astype(jnp.float32)

    def lstm_cell(gx, h_prev, c_prev, w_hh):
        gates = gx + jnp.dot(h_prev.astype(jnp.bfloat16), w_hh,
                             preferred_element_type=jnp.float32)
        sig = jax.nn.sigmoid(gates)               # one full-width EUP pass over 4H lanes
        i_g = sig[:, 0 * H:1 * H]
        f_g = sig[:, 1 * H:2 * H]
        o_g = sig[:, 3 * H:4 * H]
        g_g = jnp.tanh(gates[:, 2 * H:3 * H])     # narrow tanh only on the g lanes
        c_new = f_g * c_prev + i_g * g_g
        h_new = o_g * jnp.tanh(c_new)
        return h_new, c_new

    # Layer wavefront: at wave w, layer l processes local timestep t = w - l.
    # Layers iterate in DECREASING order within a wave so layer l+1 consumes the staged
    # projection gx_s[l] written on the previous wave before layer l overwrites it.
    for w in range(T_blk + L - 1):
        for l in range(L - 1, -1, -1):
            t = w - l
            if not (0 <= t < T_blk):
                continue
            if l == 0:
                gx = gx0_ref[t].astype(jnp.float32)       # per-t load, no block residency
            else:
                gx = gx_s[l - 1]                          # staged last wave
            h_prev = h_s[l]
            c_prev = c_s[l]
            h_new, c_new = lstm_cell(gx, h_prev, c_prev, whh_ref[l])
            if mask_tail:
                valid = (step * T_blk + t) < seq_len      # freeze state on padded steps
                h_new = jnp.where(valid, h_new, h_prev)
                c_new = jnp.where(valid, c_new, c_prev)
            h_s[l] = h_new
            c_s[l] = c_new
            if l == L - 1:
                # Top layer: lane-contiguous rows of this block's output.
                y_ref[pl.ds(t * B, B), :] = h_new.astype(y_ref.dtype)
            else:
                # Stage layer l+1's input projection for its timestep t (consumed next
                # wave -> off the recurrent critical path by a full wave of slack).
                gx_s[l] = (jnp.dot(h_new.astype(jnp.bfloat16), wih_ref[l],
                                   preferred_element_type=jnp.float32)
                           + b_ref[l])

    @pl.when(step == pl.num_programs(0) - 1)
    def _():
        hn_ref[...] = h_s[...].astype(hn_ref.dtype)
        cn_ref[...] = c_s[...].astype(cn_ref.dtype)


def lstm_forward_pallas(x, h0, c0, params, *, t_blk=8):
    """out, h_n, c_n = LSTM(x, (h0, c0)).

    x  : (B, T, input_size)  [batch_first]
    h0 : (L, B, H), c0 : (L, B, H)
    params: list of per-layer dicts {w_ih: (D_l,4H), w_hh: (H,4H), b: (1,4H)}.
    """
    B, T, D = x.shape
    L, _, H = h0.shape
    dt = x.dtype

    n_steps = (T + t_blk - 1) // t_blk
    t_pad = n_steps * t_blk

    # Hoisted layer-0 input projection: one large MXU-friendly matmul over the whole
    # sequence (bf16 operands, f32 accumulation).  Only the recurrent h @ W_hh dots stay
    # on the sequential critical path inside the kernel.
    x_tm = jnp.transpose(x, (1, 0, 2)).reshape(T * B, D)
    gx0 = (jnp.dot(x_tm.astype(jnp.bfloat16),
                   params[0]["w_ih"].astype(jnp.bfloat16),
                   preferred_element_type=jnp.float32)
           + params[0]["b"].astype(jnp.float32)).reshape(T, B, 4 * H)
    if t_pad != T:
        gx0 = jnp.concatenate(
            [gx0, jnp.zeros((t_pad - T, B, 4 * H), jnp.float32)], axis=0)

    # bf16 weights: 2-3x MXU throughput + halved weight VMEM/DMA. Biases stay f32.
    whh = jnp.stack([p["w_hh"] for p in params]).astype(jnp.bfloat16)        # (L, H, 4H)
    if L > 1:
        wih_r = jnp.stack([params[l]["w_ih"] for l in range(1, L)]).astype(jnp.bfloat16)
        b_r = jnp.stack([params[l]["b"] for l in range(1, L)]).astype(jnp.float32)
    else:
        wih_r = jnp.zeros((1, H, 4 * H), jnp.bfloat16)    # unused dummies
        b_r = jnp.zeros((1, 1, 4 * H), jnp.float32)

    kernel = functools.partial(_lstm_wavefront_kernel,
                               seq_len=T, mask_tail=(t_pad != T))

    y_flat, h_n, c_n = pl.pallas_call(
        kernel,
        out_shape=(
            jax.ShapeDtypeStruct((t_pad * B, H), dt),
            jax.ShapeDtypeStruct((L, B, H), h0.dtype),
            jax.ShapeDtypeStruct((L, B, H), c0.dtype),
        ),
        grid_spec=pltpu.PrefetchScalarGridSpec(
            num_scalar_prefetch=0,
            grid=(n_steps,),
            in_specs=[
                pl.BlockSpec((t_blk, B, 4 * H), lambda i: (i, 0, 0)),           # gx0
                pl.BlockSpec((wih_r.shape[0], H, 4 * H), lambda i: (0, 0, 0)),  # W_ih 1..L-1
                pl.BlockSpec((L, H, 4 * H), lambda i: (0, 0, 0)),               # W_hh
                pl.BlockSpec((b_r.shape[0], 1, 4 * H), lambda i: (0, 0, 0)),    # b   1..L-1
                pl.BlockSpec((L, B, H), lambda i: (0, 0, 0)),                   # h0
                pl.BlockSpec((L, B, H), lambda i: (0, 0, 0)),                   # c0
            ],
            out_specs=(
                pl.BlockSpec((t_blk * B, H), lambda i: (i, 0)),                 # y rows
                pl.BlockSpec((L, B, H), lambda i: (0, 0, 0)),                   # h_n
                pl.BlockSpec((L, B, H), lambda i: (0, 0, 0)),                   # c_n
            ),
            scratch_shapes=[
                pltpu.VMEM((L, B, H), jnp.float32),                   # h carry
                pltpu.VMEM((L, B, H), jnp.float32),                   # c carry
                pltpu.VMEM((max(L - 1, 1), B, 4 * H), jnp.float32),   # staged projections
            ],
        ),
        compiler_params=pltpu.CompilerParams(
            dimension_semantics=("arbitrary",),          # time recurrence is sequential
            vmem_limit_bytes=64 * 1024 * 1024,
        ),
    )(gx0, wih_r, whh, b_r, h0, c0)

    y = y_flat.reshape(t_pad, B, H)[:T]
    out = jnp.transpose(y, (1, 0, 2))                    # back to (B, T, H)
    return out, h_n, c_n


@jax.jit
def lstm_forward(x, h0, c0, params):
    return lstm_forward_pallas(x, h0, c0, params)


def init_lstm_params(key, input_size, hidden_size, num_layers, dtype=jnp.float32):
    """Params matching torch.nn.LSTM shapes (unidirectional), pre-transposed:
       w_ih: (D_l, 4H), w_hh: (H, 4H), b: (1, 4H) = bias_ih + bias_hh."""
    params = []
    bound = 1.0 / (hidden_size ** 0.5)
    for layer in range(num_layers):
        d_in = input_size if layer == 0 else hidden_size
        key, k1, k2, k3, k4 = jax.random.split(key, 5)
        w_ih = jax.random.uniform(k1, (4 * hidden_size, d_in), dtype, -bound, bound)
        w_hh = jax.random.uniform(k2, (4 * hidden_size, hidden_size), dtype, -bound, bound)
        b_ih = jax.random.uniform(k3, (4 * hidden_size,), dtype, -bound, bound)
        b_hh = jax.random.uniform(k4, (4 * hidden_size,), dtype, -bound, bound)
        params.append(dict(
            w_ih=jnp.transpose(w_ih),          # (D_l, 4H)
            w_hh=jnp.transpose(w_hh),          # (H, 4H)
            b=(b_ih + b_hh)[None, :],          # (1, 4H)
        ))
    return params


def lstm_reference(x, h0, c0, params):
    """Pure-JAX f32 reference (lax.scan) with identical semantics, for validation."""
    x_tm = jnp.transpose(x, (1, 0, 2))
    h_finals, c_finals = [], []
    H = h0.shape[-1]
    for layer, p in enumerate(params):
        def step(carry, x_t, p=p):
            h, c = carry
            gates = x_t @ p["w_ih"] + h @ p["w_hh"] + p["b"]
            i_g = jax.nn.sigmoid(gates[:, 0 * H:1 * H])
            f_g = jax.nn.sigmoid(gates[:, 1 * H:2 * H])
            g_g = jnp.tanh(gates[:, 2 * H:3 * H])
            o_g = jax.nn.sigmoid(gates[:, 3 * H:4 * H])
            c_new = f_g * c + i_g * g_g
            h_new = o_g * jnp.tanh(c_new)
            return (h_new, c_new), h_new

        (h_n, c_n), y_tm = jax.lax.scan(step, (h0[layer], c0[layer]), x_tm)
        x_tm = y_tm
        h_finals.append(h_n)
        c_finals.append(c_n)
    return jnp.transpose(x_tm, (1, 0, 2)), jnp.stack(h_finals), jnp.stack(c_finals)


if __name__ == "__main__":
    # Small shapes consistent with the module (scaled down from 128/784/64/10).
    # seq_len=12 deliberately exercises both the multi-block state carry and the
    # padded-tail masking path.
    batch_size = 8
    seq_len = 12
    input_size = 64
    hidden_size = 32
    num_layers = 3

    key = jax.random.PRNGKey(0)
    k_x, k_h, k_c, k_p = jax.random.split(key, 4)

    x = jax.random.normal(k_x, (batch_size, seq_len, input_size), jnp.float32)
    # The PyTorch module uses torch.rand for the initial hidden/cell state.
    h0 = jax.random.uniform(k_h, (num_layers, batch_size, hidden_size), jnp.float32)
    c0 = jax.random.uniform(k_c, (num_layers, batch_size, hidden_size), jnp.float32)

    params = init_lstm_params(k_p, input_size, hidden_size, num_layers)

    out, h_n, c_n = lstm_forward(x, h0, c0, params)
    jax.block_until_ready((out, h_n, c_n))

    # Sanity check against the pure-JAX f32 reference (kernel uses bf16 MXU operands
    # with f32 accumulation, hence the looser tolerance).
    out_ref, h_ref, c_ref = lstm_reference(x, h0, c0, params)
    assert out.shape == (batch_size, seq_len, hidden_size)
    assert h_n.shape == (num_layers, batch_size, hidden_size)
    assert c_n.shape == (num_layers, batch_size, hidden_size)
    assert jnp.allclose(out, out_ref, rtol=3e-2, atol=3e-2)
    assert jnp.allclose(h_n, h_ref, rtol=3e-2, atol=3e-2)
    assert jnp.allclose(c_n, c_ref, rtol=3e-2, atol=3e-2)

    print("KERNEL_OK")
</pallas_src>

<mosaic_0001>
module attributes {stable_mosaic.version = 11 : i64} {
  func.func @_lstm_wavefront_kernel(%arg0: i32, %arg1: memref<8x8x128xf32, #tpu.memory_space<vmem>>, %arg2: memref<2x32x128xbf16, #tpu.memory_space<vmem>>, %arg3: memref<3x32x128xbf16, #tpu.memory_space<vmem>>, %arg4: memref<2x1x128xf32, #tpu.memory_space<vmem>>, %arg5: memref<3x8x32xf32, #tpu.memory_space<vmem>>, %arg6: memref<3x8x32xf32, #tpu.memory_space<vmem>>, %arg7: memref<64x32xf32, #tpu.memory_space<vmem>>, %arg8: memref<3x8x32xf32, #tpu.memory_space<vmem>>, %arg9: memref<3x8x32xf32, #tpu.memory_space<vmem>>, %arg10: memref<3x8x32xf32, #tpu.memory_space<vmem>>, %arg11: memref<3x8x32xf32, #tpu.memory_space<vmem>>, %arg12: memref<2x8x128xf32, #tpu.memory_space<vmem>>) attributes {dimension_semantics = [#tpu.dimension_semantics<arbitrary>], iteration_bounds = array<i64: 2>, scalar_prefetch = 0 : i64, scratch_operands = 3 : i64, tpu.core_type = #tpu.core_type<tc>, window_params = [{transform_indices = @transform_0, window_bounds = array<i64: 8, 8, 128>}, {pipeline_mode = #tpu.pipeline_mode<synchronous>, transform_indices = @transform_1, window_bounds = array<i64: 2, 32, 128>}, {pipeline_mode = #tpu.pipeline_mode<synchronous>, transform_indices = @transform_2, window_bounds = array<i64: 3, 32, 128>}, {pipeline_mode = #tpu.pipeline_mode<synchronous>, transform_indices = @transform_3, window_bounds = array<i64: 2, 1, 128>}, {pipeline_mode = #tpu.pipeline_mode<synchronous>, transform_indices = @transform_4, window_bounds = array<i64: 3, 8, 32>}, {pipeline_mode = #tpu.pipeline_mode<synchronous>, transform_indices = @transform_5, window_bounds = array<i64: 3, 8, 32>}, {transform_indices = @transform_6, window_bounds = array<i64: 64, 32>}, {pipeline_mode = #tpu.pipeline_mode<synchronous>, transform_indices = @transform_7, window_bounds = array<i64: 3, 8, 32>}, {pipeline_mode = #tpu.pipeline_mode<synchronous>, transform_indices = @transform_8, window_bounds = array<i64: 3, 8, 32>}]} {
    %c0_i32 = arith.constant 0 : i32
    %0 = arith.cmpi eq, %arg0, %c0_i32 : i32
    %1 = arith.extui %0 : i1 to i32
    %c0_i32_0 = arith.constant 0 : i32
    %2 = arith.cmpi ne, %1, %c0_i32_0 : i32
    scf.if %2 {
      %c0_706 = arith.constant 0 : index
      %c0_707 = arith.constant 0 : index
      %c0_708 = arith.constant 0 : index
      %1078 = vector.load %arg5[%c0_706, %c0_707, %c0_708] : memref<3x8x32xf32, #tpu.memory_space<vmem>>, vector<3x8x32xf32>
      %c0_709 = arith.constant 0 : index
      %c0_710 = arith.constant 0 : index
      %c0_711 = arith.constant 0 : index
      %1079 = vector.load %arg10[%c0_709, %c0_710, %c0_711] : memref<3x8x32xf32, #tpu.memory_space<vmem>>, vector<3x8x32xf32>
      tpu.vector_store %arg10[%c0_709, %c0_710, %c0_711], %1078 {strides = array<i32>} : memref<3x8x32xf32, #tpu.memory_space<vmem>>, vector<3x8x32xf32>,
      %c0_712 = arith.constant 0 : index
      %c0_713 = arith.constant 0 : index
      %c0_714 = arith.constant 0 : index
      %1080 = vector.load %arg6[%c0_712, %c0_713, %c0_714] : memref<3x8x32xf32, #tpu.memory_space<vmem>>, vector<3x8x32xf32>
      %c0_715 = arith.constant 0 : index
      %c0_716 = arith.constant 0 : index
      %c0_717 = arith.constant 0 : index
      %1081 = vector.load %arg11[%c0_715, %c0_716, %c0_717] : memref<3x8x32xf32, #tpu.memory_space<vmem>>, vector<3x8x32xf32>
      tpu.vector_store %arg11[%c0_715, %c0_716, %c0_717], %1080 {strides = array<i32>} : memref<3x8x32xf32, #tpu.memory_space<vmem>>, vector<3x8x32xf32>,
    } else {
    }
    %c0 = arith.constant 0 : index
    %c0_1 = arith.constant 0 : index
    %c0_2 = arith.constant 0 : index
    %3 = vector.load %arg1[%c0, %c0_1, %c0_2] : memref<8x8x128xf32, #tpu.memory_space<vmem>>, vector<1x8x128xf32>
    %4 = vector.shape_cast %3 : vector<1x8x128xf32> to vector<8x128xf32>
    %c0_3 = arith.constant 0 : index
    %c0_4 = arith.constant 0 : index
    %c0_5 = arith.constant 0 : index
    %5 = vector.load %arg10[%c0_3, %c0_4, %c0_5] : memref<3x8x32xf32, #tpu.memory_space<vmem>>, vector<1x8x32xf32>
    %6 = vector.shape_cast %5 : vector<1x8x32xf32> to vector<8x32xf32>
    %c0_6 = arith.constant 0 : index
    %c0_7 = arith.constant 0 : index
    %c0_8 = arith.constant 0 : index
    %7 = vector.load %arg11[%c0_6, %c0_7, %c0_8] : memref<3x8x32xf32, #tpu.memory_space<vmem>>, vector<1x8x32xf32>
    %8 = vector.shape_cast %7 : vector<1x8x32xf32> to vector<8x32xf32>
    %c0_9 = arith.constant 0 : index
    %c0_10 = arith.constant 0 : index
    %c0_11 = arith.constant 0 : index
    %9 = vector.load %arg3[%c0_9, %c0_10, %c0_11] : memref<3x32x128xbf16, #tpu.memory_space<vmem>>, vector<1x32x128xbf16>
    %10 = vector.shape_cast %9 : vector<1x32x128xbf16> to vector<32x128xbf16>
    %11 = arith.truncf %6 : vector<8x32xf32> to vector<8x32xbf16>
    %cst = arith.constant dense<0.000000e+00> : vector<8x128xf32>
    %12 = tpu.matmul %11, %10, %cst {dimension_numbers = #tpu.dot_dimension_numbers<[1], [0], [0], [1], [0, 0, 1, 1], [], []>} : vector<8x32xbf16>, vector<32x128xbf16>, vector<8x128xf32> -> vector<8x128xf32>
    %13 = arith.addf %4, %12 : vector<8x128xf32>
    %14 = arith.negf %13 : vector<8x128xf32>
    %15 = math.exp %14 : vector<8x128xf32>
    %cst_12 = arith.constant 1.000000e+00 : f32
    %16 = vector.broadcast %cst_12 : f32 to vector<8x128xf32>
    %17 = arith.addf %16, %15 : vector<8x128xf32>
    %18 = arith.divf %16, %17 : vector<8x128xf32>
    %19 = vector.extract_strided_slice %18 {offsets = [0, 0], sizes = [8, 32], strides = [1, 1]} : vector<8x128xf32> to vector<8x32xf32>
    %20 = vector.extract_strided_slice %18 {offsets = [0, 32], sizes = [8, 32], strides = [1, 1]} : vector<8x128xf32> to vector<8x32xf32>
    %21 = vector.extract_strided_slice %18 {offsets = [0, 96], sizes = [8, 32], strides = [1, 1]} : vector<8x128xf32> to vector<8x32xf32>
    %22 = vector.extract_strided_slice %13 {offsets = [0, 64], sizes = [8, 32], strides = [1, 1]} : vector<8x128xf32> to vector<8x32xf32>
    %23 = math.tanh %22 : vector<8x32xf32>
    %24 = arith.mulf %20, %8 : vector<8x32xf32>
    %25 = arith.mulf %19, %23 : vector<8x32xf32>
    %26 = arith.addf %24, %25 : vector<8x32xf32>
    %27 = math.tanh %26 : vector<8x32xf32>
    %28 = arith.mulf %21, %27 : vector<8x32xf32>
    %c8_i32 = arith.constant 8 : i32
    %29 = arith.muli %arg0, %c8_i32 : i32
    %c0_i32_13 = arith.constant 0 : i32
    %30 = arith.addi %29, %c0_i32_13 : i32
    %c12_i32 = arith.constant 12 : i32
    %31 = arith.cmpi slt, %30, %c12_i32 : i32
    %32 = arith.select %31, %28, %6 : vector<8x32xf32>
    %33 = arith.select %31, %26, %8 : vector<8x32xf32>
    %c0_14 = arith.constant 0 : index
    %c0_15 = arith.constant 0 : index
    %c0_16 = arith.constant 0 : index
    %34 = vector.load %arg10[%c0_14, %c0_15, %c0_16] : memref<3x8x32xf32, #tpu.memory_space<vmem>>, vector<1x8x32xf32>
    %35 = vector.shape_cast %34 : vector<1x8x32xf32> to vector<8x32xf32>
    %36 = vector.shape_cast %32 : vector<8x32xf32> to vector<1x8x32xf32>
    tpu.vector_store %arg10[%c0_14, %c0_15, %c0_16], %36 {strides = array<i32>} : memref<3x8x32xf32, #tpu.memory_space<vmem>>, vector<1x8x32xf32>,
    %c0_17 = arith.constant 0 : index
    %c0_18 = arith.constant 0 : index
    %c0_19 = arith.constant 0 : index
    %37 = vector.load %arg11[%c0_17, %c0_18, %c0_19] : memref<3x8x32xf32, #tpu.memory_space<vmem>>, vector<1x8x32xf32>
    %38 = vector.shape_cast %37 : vector<1x8x32xf32> to vector<8x32xf32>
    %39 = vector.shape_cast %33 : vector<8x32xf32> to vector<1x8x32xf32>
    tpu.vector_store %arg11[%c0_17, %c0_18, %c0_19], %39 {strides = array<i32>} : memref<3x8x32xf32, #tpu.memory_space<vmem>>, vector<1x8x32xf32>,
    %40 = arith.truncf %32 : vector<8x32xf32> to vector<8x32xbf16>
    %c0_20 = arith.constant 0 : index
    %c0_21 = arith.constant 0 : index
    %c0_22 = arith.constant 0 : index
    %41 = vector.load %arg2[%c0_20, %c0_21, %c0_22] : memref<2x32x128xbf16, #tpu.memory_space<vmem>>, vector<1x32x128xbf16>
    %42 = vector.shape_cast %41 : vector<1x32x128xbf16> to vector<32x128xbf16>
    %cst_23 = arith.constant dense<0.000000e+00> : vector<8x128xf32>
    %43 = tpu.matmul %40, %42, %cst_23 {dimension_numbers = #tpu.dot_dimension_numbers<[1], [0], [0], [1], [0, 0, 1, 1], [], []>} : vector<8x32xbf16>, vector<32x128xbf16>, vector<8x128xf32> -> vector<8x128xf32>
    %c0_24 = arith.constant 0 : index
    %c0_25 = arith.constant 0 : index
    %c0_26 = arith.constant 0 : index
    %44 = vector.load %arg4[%c0_24, %c0_25, %c0_26] : memref<2x1x128xf32, #tpu.memory_space<vmem>>, vector<1x1x128xf32>
    %45 = vector.shape_cast %44 : vector<1x1x128xf32> to vector<1x128xf32>
    %46 = vector.broadcast %45 : vector<1x128xf32> to vector<8x128xf32>
    %47 = arith.addf %43, %46 : vector<8x128xf32>
    %c0_27 = arith.constant 0 : index
    %c0_28 = arith.constant 0 : index
    %c0_29 = arith.constant 0 : index
    %48 = vector.load %arg12[%c0_27, %c0_28, %c0_29] : memref<2x8x128xf32, #tpu.memory_space<vmem>>, vector<1x8x128xf32>
    %49 = vector.shape_cast %48 : vector<1x8x128xf32> to vector<8x128xf32>
    %50 = vector.shape_cast %47 : vector<8x128xf32> to vector<1x8x128xf32>
    tpu.vector_store %arg12[%c0_27, %c0_28, %c0_29], %50 {strides = array<i32>} : memref<2x8x128xf32, #tpu.memory_space<vmem>>, vector<1x8x128xf32>,
    %c0_30 = arith.constant 0 : index
    %c0_31 = arith.constant 0 : index
    %c0_32 = arith.constant 0 : index
    %51 = vector.load %arg12[%c0_30, %c0_31, %c0_32] : memref<2x8x128xf32, #tpu.memory_space<vmem>>, vector<1x8x128xf32>
    %52 = vector.shape_cast %51 : vector<1x8x128xf32> to vector<8x128xf32>
    %c1 = arith.constant 1 : index
    %c0_33 = arith.constant 0 : index
    %c0_34 = arith.constant 0 : index
    %53 = vector.load %arg10[%c1, %c0_33, %c0_34] : memref<3x8x32xf32, #tpu.memory_space<vmem>>, vector<1x8x32xf32>
    %54 = vector.shape_cast %53 : vector<1x8x32xf32> to vector<8x32xf32>
    %c1_35 = arith.constant 1 : index
    %c0_36 = arith.constant 0 : index
    %c0_37 = arith.constant 0 : index
    %55 = vector.load %arg11[%c1_35, %c0_36, %c0_37] : memref<3x8x32xf32, #tpu.memory_space<vmem>>, vector<1x8x32xf32>
    %56 = vector.shape_cast %55 : vector<1x8x32xf32> to vector<8x32xf32>
    %c1_38 = arith.constant 1 : index
    %c0_39 = arith.constant 0 : index
    %c0_40 = arith.constant 0 : index
    %57 = vector.load %arg3[%c1_38, %c0_39, %c0_40] : memref<3x32x128xbf16, #tpu.memory_space<vmem>>, vector<1x32x128xbf16>
    %58 = vector.shape_cast %57 : vector<1x32x128xbf16> to vector<32x128xbf16>
    %59 = arith.truncf %54 : vector<8x32xf32> to vector<8x32xbf16>
    %cst_41 = arith.constant dense<0.000000e+00> : vector<8x128xf32>
    %60 = tpu.matmul %59, %58, %cst_41 {dimension_numbers = #tpu.dot_dimension_numbers<[1], [0], [0], [1], [0, 0, 1, 1], [], []>} : vector<8x32xbf16>, vector<32x128xbf16>, vector<8x128xf32> -> vector<8x128xf32>
    %61 = arith.addf %52, %60 : vector<8x128xf32>
    %62 = arith.negf %61 : vector<8x128xf32>
    %63 = math.exp %62 : vector<8x128xf32>
    %cst_42 = arith.constant 1.000000e+00 : f32
    %64 = vector.broadcast %cst_42 : f32 to vector<8x128xf32>
    %65 = arith.addf %64, %63 : vector<8x128xf32>
    %66 = arith.divf %64, %65 : vector<8x128xf32>
    %67 = vector.extract_strided_slice %66 {offsets = [0, 0], sizes = [8, 32], strides = [1, 1]} : vector<8x128xf32> to vector<8x32xf32>
    %68 = vector.extract_strided_slice %66 {offsets = [0, 32], sizes = [8, 32], strides = [1, 1]} : vector<8x128xf32> to vector<8x32xf32>
    %69 = vector.extract_strided_slice %66 {offsets = [0, 96], sizes = [8, 32], strides = [1, 1]} : vector<8x128xf32> to vector<8x32xf32>
    %70 = vector.extract_strided_slice %61 {offsets = [0, 64], sizes = [8, 32], strides = [1, 1]} : vector<8x128xf32> to vector<8x32xf32>
    %71 = math.tanh %70 : vector<8x32xf32>
    %72 = arith.mulf %68, %56 : vector<8x32xf32>
    %73 = arith.mulf %67, %71 : vector<8x32xf32>
    %74 = arith.addf %72, %73 : vector<8x32xf32>
    %75 = math.tanh %74 : vector<8x32xf32>
    %76 = arith.mulf %69, %75 : vector<8x32xf32>
    %c8_i32_43 = arith.constant 8 : i32
    %77 = arith.muli %arg0, %c8_i32_43 : i32
    %c0_i32_44 = arith.constant 0 : i32
    %78 = arith.addi %77, %c0_i32_44 : i32
    %c12_i32_45 = arith.constant 12 : i32
    %79 = arith.cmpi slt, %78, %c12_i32_45 : i32
    %80 = arith.select %79, %76, %54 : vector<8x32xf32>
    %81 = arith.select %79, %74, %56 : vector<8x32xf32>
    %c1_46 = arith.constant 1 : index
    %c0_47 = arith.constant 0 : index
    %c0_48 = arith.constant 0 : index
    %82 = vector.load %arg10[%c1_46, %c0_47, %c0_48] : memref<3x8x32xf32, #tpu.memory_space<vmem>>, vector<1x8x32xf32>
    %83 = vector.shape_cast %82 : vector<1x8x32xf32> to vector<8x32xf32>
    %84 = vector.shape_cast %80 : vector<8x32xf32> to vector<1x8x32xf32>
    tpu.vector_store %arg10[%c1_46, %c0_47, %c0_48], %84 {strides = array<i32>} : memref<3x8x32xf32, #tpu.memory_space<vmem>>, vector<1x8x32xf32>,
    %c1_49 = arith.constant 1 : index
    %c0_50 = arith.constant 0 : index
    %c0_51 = arith.constant 0 : index
    %85 = vector.load %arg11[%c1_49, %c0_50, %c0_51] : memref<3x8x32xf32, #tpu.memory_space<vmem>>, vector<1x8x32xf32>
    %86 = vector.shape_cast %85 : vector<1x8x32xf32> to vector<8x32xf32>
    %87 = vector.shape_cast %81 : vector<8x32xf32> to vector<1x8x32xf32>
    tpu.vector_store %arg11[%c1_49, %c0_50, %c0_51], %87 {strides = array<i32>} : memref<3x8x32xf32, #tpu.memory_space<vmem>>, vector<1x8x32xf32>,
    %88 = arith.truncf %80 : vector<8x32xf32> to vector<8x32xbf16>
    %c1_52 = arith.constant 1 : index
    %c0_53 = arith.constant 0 : index
    %c0_54 = arith.constant 0 : index
    %89 = vector.load %arg2[%c1_52, %c0_53, %c0_54] : memref<2x32x128xbf16, #tpu.memory_space<vmem>>, vector<1x32x128xbf16>
    %90 = vector.shape_cast %89 : vector<1x32x128xbf16> to vector<32x128xbf16>
    %cst_55 = arith.constant dense<0.000000e+00> : vector<8x128xf32>
    %91 = tpu.matmul %88, %90, %cst_55 {dimension_numbers = #tpu.dot_dimension_numbers<[1], [0], [0], [1], [0, 0, 1, 1], [], []>} : vector<8x32xbf16>, vector<32x128xbf16>, vector<8x128xf32> -> vector<8x128xf32>
    %c1_56 = arith.constant 1 : index
    %c0_57 = arith.constant 0 : index
    %c0_58 = arith.constant 0 : index
    %92 = vector.load %arg4[%c1_56, %c0_57, %c0_58] : memref<2x1x128xf32, #tpu.memory_space<vmem>>, vector<1x1x128xf32>
    %93 = vector.shape_cast %92 : vector<1x1x128xf32> to vector<1x128xf32>
    %94 = vector.broadcast %93 : vector<1x128xf32> to vector<8x128xf32>
    %95 = arith.addf %91, %94 : vector<8x128xf32>
    %c1_59 = arith.constant 1 : index
    %c0_60 = arith.constant 0 : index
    %c0_61 = arith.constant 0 : index
    %96 = vector.load %arg12[%c1_59, %c0_60, %c0_61] : memref<2x8x128xf32, #tpu.memory_space<vmem>>, vector<1x8x128xf32>
    %97 = vector.shape_cast %96 : vector<1x8x128xf32> to vector<8x128xf32>
    %98 = vector.shape_cast %95 : vector<8x128xf32> to vector<1x8x128xf32>
    tpu.vector_store %arg12[%c1_59, %c0_60, %c0_61], %98 {strides = array<i32>} : memref<2x8x128xf32, #tpu.memory_space<vmem>>, vector<1x8x128xf32>,
    %c1_62 = arith.constant 1 : index
    %c0_63 = arith.constant 0 : index
    %c0_64 = arith.constant 0 : index
    %99 = vector.load %arg1[%c1_62, %c0_63, %c0_64] : memref<8x8x128xf32, #tpu.memory_space<vmem>>, vector<1x8x128xf32>
    %100 = vector.shape_cast %99 : vector<1x8x128xf32> to vector<8x128xf32>
    %c0_65 = arith.constant 0 : index
    %c0_66 = arith.constant 0 : index
    %c0_67 = arith.constant 0 : index
    %101 = vector.load %arg10[%c0_65, %c0_66, %c0_67] : memref<3x8x32xf32, #tpu.memory_space<vmem>>, vector<1x8x32xf32>
    %102 = vector.shape_cast %101 : vector<1x8x32xf32> to vector<8x32xf32>
    %c0_68 = arith.constant 0 : index
    %c0_69 = arith.constant 0 : index
    %c0_70 = arith.constant 0 : index
    %103 = vector.load %arg11[%c0_68, %c0_69, %c0_70] : memref<3x8x32xf32, #tpu.memory_space<vmem>>, vector<1x8x32xf32>
    %104 = vector.shape_cast %103 : vector<1x8x32xf32> to vector<8x32xf32>
    %c0_71 = arith.constant 0 : index
    %c0_72 = arith.constant 0 : index
    %c0_73 = arith.constant 0 : index
    %105 = vector.load %arg3[%c0_71, %c0_72, %c0_73] : memref<3x32x128xbf16, #tpu.memory_space<vmem>>, vector<1x32x128xbf16>
    %106 = vector.shape_cast %105 : vector<1x32x128xbf16> to vector<32x128xbf16>
    %107 = arith.truncf %102 : vector<8x32xf32> to vector<8x32xbf16>
    %cst_74 = arith.constant dense<0.000000e+00> : vector<8x128xf32>
    %108 = tpu.matmul %107, %106, %cst_74 {dimension_numbers = #tpu.dot_dimension_numbers<[1], [0], [0], [1], [0, 0, 1, 1], [], []>} : vector<8x32xbf16>, vector<32x128xbf16>, vector<8x128xf32> -> vector<8x128xf32>
    %109 = arith.addf %100, %108 : vector<8x128xf32>
    %110 = arith.negf %109 : vector<8x128xf32>
    %111 = math.exp %110 : vector<8x128xf32>
    %cst_75 = arith.constant 1.000000e+00 : f32
    %112 = vector.broadcast %cst_75 : f32 to vector<8x128xf32>
    %113 = arith.addf %112, %111 : vector<8x128xf32>
    %114 = arith.divf %112, %113 : vector<8x128xf32>
    %115 = vector.extract_strided_slice %114 {offsets = [0, 0], sizes = [8, 32], strides = [1, 1]} : vector<8x128xf32> to vector<8x32xf32>
    %116 = vector.extract_strided_slice %114 {offsets = [0, 32], sizes = [8, 32], strides = [1, 1]} : vector<8x128xf32> to vector<8x32xf32>
    %117 = vector.extract_strided_slice %114 {offsets = [0, 96], sizes = [8, 32], strides = [1, 1]} : vector<8x128xf32> to vector<8x32xf32>
    %118 = vector.extract_strided_slice %109 {offsets = [0, 64], sizes = [8, 32], strides = [1, 1]} : vector<8x128xf32> to vector<8x32xf32>
    %119 = math.tanh %118 : vector<8x32xf32>
    %120 = arith.mulf %116, %104 : vector<8x32xf32>
    %121 = arith.mulf %115, %119 : vector<8x32xf32>
    %122 = arith.addf %120, %121 : vector<8x32xf32>
    %123 = math.tanh %122 : vector<8x32xf32>
    %124 = arith.mulf %117, %123 : vector<8x32xf32>
    %c8_i32_76 = arith.constant 8 : i32
    %125 = arith.muli %arg0, %c8_i32_76 : i32
    %c1_i32 = arith.constant 1 : i32
    %126 = arith.addi %125, %c1_i32 : i32
    %c12_i32_77 = arith.constant 12 : i32
    %127 = arith.cmpi slt, %126, %c12_i32_77 : i32
    %128 = arith.select %127, %124, %102 : vector<8x32xf32>
    %129 = arith.select %127, %122, %104 : vector<8x32xf32>
    %c0_78 = arith.constant 0 : index
    %c0_79 = arith.constant 0 : index
    %c0_80 = arith.constant 0 : index
    %130 = vector.load %arg10[%c0_78, %c0_79, %c0_80] : memref<3x8x32xf32, #tpu.memory_space<vmem>>, vector<1x8x32xf32>
    %131 = vector.shape_cast %130 : vector<1x8x32xf32> to vector<8x32xf32>
    %132 = vector.shape_cast %128 : vector<8x32xf32> to vector<1x8x32xf32>
    tpu.vector_store %arg10[%c0_78, %c0_79, %c0_80], %132 {strides = array<i32>} : memref<3x8x32xf32, #tpu.memory_space<vmem>>, vector<1x8x32xf32>,
    %c0_81 = arith.constant 0 : index
    %c0_82 = arith.constant 0 : index
    %c0_83 = arith.constant 0 : index
    %133 = vector.load %arg11[%c0_81, %c0_82, %c0_83] : memref<3x8x32xf32, #tpu.memory_space<vmem>>, vector<1x8x32xf32>
    %134 = vector.shape_cast %133 : vector<1x8x32xf32> to vector<8x32xf32>
    %135 = vector.shape_cast %129 : vector<8x32xf32> to vector<1x8x32xf32>
    tpu.vector_store %arg11[%c0_81, %c0_82, %c0_83], %135 {strides = array<i32>} : memref<3x8x32xf32, #tpu.memory_space<vmem>>, vector<1x8x32xf32>,
    %136 = arith.truncf %128 : vector<8x32xf32> to vector<8x32xbf16>
    %c0_84 = arith.constant 0 : index
    %c0_85 = arith.constant 0 : index
    %c0_86 = arith.constant 0 : index
    %137 = vector.load %arg2[%c0_84, %c0_85, %c0_86] : memref<2x32x128xbf16, #tpu.memory_space<vmem>>, vector<1x32x128xbf16>
    %138 = vector.shape_cast %137 : vector<1x32x128xbf16> to vector<32x128xbf16>
    %cst_87 = arith.constant dense<0.000000e+00> : vector<8x128xf32>
    %139 = tpu.matmul %136, %138, %cst_87 {dimension_numbers = #tpu.dot_dimension_numbers<[1], [0], [0], [1], [0, 0, 1, 1], [], []>} : vector<8x32xbf16>, vector<32x128xbf16>, vector<8x128xf32> -> vector<8x128xf32>
    %c0_88 = arith.constant 0 : index
    %c0_89 = arith.constant 0 : index
    %c0_90 = arith.constant 0 : index
    %140 = vector.load %arg4[%c0_88, %c0_89, %c0_90] : memref<2x1x128xf32, #tpu.memory_space<vmem>>, vector<1x1x128xf32>
    %141 = vector.shape_cast %140 : vector<1x1x128xf32> to vector<1x128xf32>
    %142 = vector.broadcast %141 : vector<1x128xf32> to vector<8x128xf32>
    %143 = arith.addf %139, %142 : vector<8x128xf32>
    %c0_91 = arith.constant 0 : index
    %c0_92 = arith.constant 0 : index
    %c0_93 = arith.constant 0 : index
    %144 = vector.load %arg12[%c0_91, %c0_92, %c0_93] : memref<2x8x128xf32, #tpu.memory_space<vmem>>, vector<1x8x128xf32>
    %145 = vector.shape_cast %144 : vector<1x8x128xf32> to vector<8x128xf32>
    %146 = vector.shape_cast %143 : vector<8x128xf32> to vector<1x8x128xf32>
    tpu.vector_store %arg12[%c0_91, %c0_92, %c0_93], %146 {strides = array<i32>} : memref<2x8x128xf32, #tpu.memory_space<vmem>>, vector<1x8x128xf32>,
    %c1_94 = arith.constant 1 : index
    %c0_95 = arith.constant 0 : index
    %c0_96 = arith.constant 0 : index
    %147 = vector.load %arg12[%c1_94, %c0_95, %c0_96] : memref<2x8x128xf32, #tpu.memory_space<vmem>>, vector<1x8x128xf32>
    %148 = vector.shape_cast %147 : vector<1x8x128xf32> to vector<8x128xf32>
    %c2 = arith.constant 2 : index
    %c0_97 = arith.constant 0 : index
    %c0_98 = arith.constant 0 : index
    %149 = vector.load %arg10[%c2, %c0_97, %c0_98] : memref<3x8x32xf32, #tpu.memory_space<vmem>>, vector<1x8x32xf32>
    %150 = vector.shape_cast %149 : vector<1x8x32xf32> to vector<8x32xf32>
    %c2_99 = arith.constant 2 : index
    %c0_100 = arith.constant 0 : index
    %c0_101 = arith.constant 0 : index
    %151 = vector.load %arg11[%c2_99, %c0_100, %c0_101] : memref<3x8x32xf32, #tpu.memory_space<vmem>>, vector<1x8x32xf32>
    %152 = vector.shape_cast %151 : vector<1x8x32xf32> to vector<8x32xf32>
    %c2_102 = arith.constant 2 : index
    %c0_103 = arith.constant 0 : index
    %c0_104 = arith.constant 0 : index
    %153 = vector.load %arg3[%c2_102, %c0_103, %c0_104] : memref<3x32x128xbf16, #tpu.memory_space<vmem>>, vector<1x32x128xbf16>
    %154 = vector.shape_cast %153 : vector<1x32x128xbf16> to vector<32x128xbf16>
    %155 = arith.truncf %150 : vector<8x32xf32> to vector<8x32xbf16>
    %cst_105 = arith.constant dense<0.000000e+00> : vector<8x128xf32>
    %156 = tpu.matmul %155, %154, %cst_105 {dimension_numbers = #tpu.dot_dimension_numbers<[1], [0], [0], [1], [0, 0, 1, 1], [], []>} : vector<8x32xbf16>, vector<32x128xbf16>, vector<8x128xf32> -> vector<8x128xf32>
    %157 = arith.addf %148, %156 : vector<8x128xf32>
    %158 = arith.negf %157 : vector<8x128xf32>
    %159 = math.exp %158 : vector<8x128xf32>
    %cst_106 = arith.constant 1.000000e+00 : f32
    %160 = vector.broadcast %cst_106 : f32 to vector<8x128xf32>
    %161 = arith.addf %160, %159 : vector<8x128xf32>
    %162 = arith.divf %160, %161 : vector<8x128xf32>
    %163 = vector.extract_strided_slice %162 {offsets = [0, 0], sizes = [8, 32], strides = [1, 1]} : vector<8x128xf32> to vector<8x32xf32>
    %164 = vector.extract_strided_slice %162 {offsets = [0, 32], sizes = [8, 32], strides = [1, 1]} : vector<8x128xf32> to vector<8x32xf32>
    %165 = vector.extract_strided_slice %162 {offsets = [0, 96], sizes = [8, 32], strides = [1, 1]} : vector<8x128xf32> to vector<8x32xf32>
    %166 = vector.extract_strided_slice %157 {offsets = [0, 64], sizes = [8, 32], strides = [1, 1]} : vector<8x128xf32> to vector<8x32xf32>
    %167 = math.tanh %166 : vector<8x32xf32>
    %168 = arith.mulf %164, %152 : vector<8x32xf32>
    %169 = arith.mulf %163, %167 : vector<8x32xf32>
    %170 = arith.addf %168, %169 : vector<8x32xf32>
    %171 = math.tanh %170 : vector<8x32xf32>
    %172 = arith.mulf %165, %171 : vector<8x32xf32>
    %c8_i32_107 = arith.constant 8 : i32
    %173 = arith.muli %arg0, %c8_i32_107 : i32
    %c0_i32_108 = arith.constant 0 : i32
    %174 = arith.addi %173, %c0_i32_108 : i32
    %c12_i32_109 = arith.constant 12 : i32
    %175 = arith.cmpi slt, %174, %c12_i32_109 : i32
    %176 = arith.select %175, %172, %150 : vector<8x32xf32>
    %177 = arith.select %175, %170, %152 : vector<8x32xf32>
    %c2_110 = arith.constant 2 : index
    %c0_111 = arith.constant 0 : index
    %c0_112 = arith.constant 0 : index
    %178 = vector.load %arg10[%c2_110, %c0_111, %c0_112] : memref<3x8x32xf32, #tpu.memory_space<vmem>>, vector<1x8x32xf32>
    %179 = vector.shape_cast %178 : vector<1x8x32xf32> to vector<8x32xf32>
    %180 = vector.shape_cast %176 : vector<8x32xf32> to vector<1x8x32xf32>
    tpu.vector_store %arg10[%c2_110, %c0_111, %c0_112], %180 {strides = array<i32>} : memref<3x8x32xf32, #tpu.memory_space<vmem>>, vector<1x8x32xf32>,
    %c2_113 = arith.constant 2 : index
    %c0_114 = arith.constant 0 : index
    %c0_115 = arith.constant 0 : index
    %181 = vector.load %arg11[%c2_113, %c0_114, %c0_115] : memref<3x8x32xf32, #tpu.memory_space<vmem>>, vector<1x8x32xf32>
    %182 = vector.shape_cast %181 : vector<1x8x32xf32> to vector<8x32xf32>
    %183 = vector.shape_cast %177 : vector<8x32xf32> to vector<1x8x32xf32>
    tpu.vector_store %arg11[%c2_113, %c0_114, %c0_115], %183 {strides = array<i32>} : memref<3x8x32xf32, #tpu.memory_space<vmem>>, vector<1x8x32xf32>,
    %c0_116 = arith.constant 0 : index
    %c0_117 = arith.constant 0 : index
    %184 = vector.load %arg7[%c0_116, %c0_117] : memref<64x32xf32, #tpu.memory_space<vmem>>, vector<8x32xf32>
    tpu.vector_store %arg7[%c0_116, %c0_117], %176 {strides = array<i32>} : memref<64x32xf32, #tpu.memory_space<vmem>>, vector<8x32xf32>,
    %c0_118 = arith.constant 0 : index
    %c0_119 = arith.constant 0 : index
    %c0_120 = arith.constant 0 : index
    %185 = vector.load %arg12[%c0_118, %c0_119, %c0_120] : memref<2x8x128xf32, #tpu.memory_space<vmem>>, vector<1x8x128xf32>
    %186 = vector.shape_cast %185 : vector<1x8x128xf32> to vector<8x128xf32>
    %c1_121 = arith.constant 1 : index
    %c0_122 = arith.constant 0 : index
    %c0_123 = arith.constant 0 : index
    %187 = vector.load %arg10[%c1_121, %c0_122, %c0_123] : memref<3x8x32xf32, #tpu.memory_space<vmem>>, vector<1x8x32xf32>
    %188 = vector.shape_cast %187 : vector<1x8x32xf32> to vector<8x32xf32>
    %c1_124 = arith.constant 1 : index
    %c0_125 = arith.constant 0 : index
    %c0_126 = arith.constant 0 : index
    %189 = vector.load %arg11[%c1_124, %c0_125, %c0_126] : memref<3x8x32xf32, #tpu.memory_space<vmem>>, vector<1x8x32xf32>
    %190 = vector.shape_cast %189 : vector<1x8x32xf32> to vector<8x32xf32>
    %c1_127 = arith.constant 1 : index
    %c0_128 = arith.constant 0 : index
    %c0_129 = arith.constant 0 : index
    %191 = vector.load %arg3[%c1_127, %c0_128, %c0_129] : memref<3x32x128xbf16, #tpu.memory_space<vmem>>, vector<1x32x128xbf16>
    %192 = vector.shape_cast %191 : vector<1x32x128xbf16> to vector<32x128xbf16>
    %193 = arith.truncf %188 : vector<8x32xf32> to vector<8x32xbf16>
    %cst_130 = arith.constant dense<0.000000e+00> : vector<8x128xf32>
    %194 = tpu.matmul %193, %192, %cst_130 {dimension_numbers = #tpu.dot_dimension_numbers<[1], [0], [0], [1], [0, 0, 1, 1], [], []>} : vector<8x32xbf16>, vector<32x128xbf16>, vector<8x128xf32> -> vector<8x128xf32>
    %195 = arith.addf %186, %194 : vector<8x128xf32>
    %196 = arith.negf %195 : vector<8x128xf32>
    %197 = math.exp %196 : vector<8x128xf32>
    %cst_131 = arith.constant 1.000000e+00 : f32
    %198 = vector.broadcast %cst_131 : f32 to vector<8x128xf32>
    %199 = arith.addf %198, %197 : vector<8x128xf32>
    %200 = arith.divf %198, %199 : vector<8x128xf32>
    %201 = vector.extract_strided_slice %200 {offsets = [0, 0], sizes = [8, 32], strides = [1, 1]} : vector<8x128xf32> to vector<8x32xf32>
    %202 = vector.extract_strided_slice %200 {offsets = [0, 32], sizes = [8, 32], strides = [1, 1]} : vector<8x128xf32> to vector<8x32xf32>
    %203 = vector.extract_strided_slice %200 {offsets = [0, 96], sizes = [8, 32], strides = [1, 1]} : vector<8x128xf32> to vector<8x32xf32>
    %204 = vector.extract_strided_slice %195 {offsets = [0, 64], sizes = [8, 32], strides = [1, 1]} : vector<8x128xf32> to vector<8x32xf32>
    %205 = math.tanh %204 : vector<8x32xf32>
    %206 = arith.mulf %202, %190 : vector<8x32xf32>
    %207 = arith.mulf %201, %205 : vector<8x32xf32>
    %208 = arith.addf %206, %207 : vector<8x32xf32>
    %209 = math.tanh %208 : vector<8x32xf32>
    %210 = arith.mulf %203, %209 : vector<8x32xf32>
    %c8_i32_132 = arith.constant 8 : i32
    %211 = arith.muli %arg0, %c8_i32_132 : i32
    %c1_i32_133 = arith.constant 1 : i32
    %212 = arith.addi %211, %c1_i32_133 : i32
    %c12_i32_134 = arith.constant 12 : i32
    %213 = arith.cmpi slt, %212, %c12_i32_134 : i32
    %214 = arith.select %213, %210, %188 : vector<8x32xf32>
    %215 = arith.select %213, %208, %190 : vector<8x32xf32>
    %c1_135 = arith.constant 1 : index
    %c0_136 = arith.constant 0 : index
    %c0_137 = arith.constant 0 : index
    %216 = vector.load %arg10[%c1_135, %c0_136, %c0_137] : memref<3x8x32xf32, #tpu.memory_space<vmem>>, vector<1x8x32xf32>
    %217 = vector.shape_cast %216 : vector<1x8x32xf32> to vector<8x32xf32>
    %218 = vector.shape_cast %214 : vector<8x32xf32> to vector<1x8x32xf32>
    tpu.vector_store %arg10[%c1_135, %c0_136, %c0_137], %218 {strides = array<i32>} : memref<3x8x32xf32, #tpu.memory_space<vmem>>, vector<1x8x32xf32>,
    %c1_138 = arith.constant 1 : index
    %c0_139 = arith.constant 0 : index
    %c0_140 = arith.constant 0 : index
    %219 = vector.load %arg11[%c1_138, %c0_139, %c0_140] : memref<3x8x32xf32, #tpu.memory_space<vmem>>, vector<1x8x32xf32>
    %220 = vector.shape_cast %219 : vector<1x8x32xf32> to vector<8x32xf32>
    %221 = vector.shape_cast %215 : vector<8x32xf32> to vector<1x8x32xf32>
    tpu.vector_store %arg11[%c1_138, %c0_139, %c0_140], %221 {strides = array<i32>} : memref<3x8x32xf32, #tpu.memory_space<vmem>>, vector<1x8x32xf32>,
    %222 = arith.truncf %214 : vector<8x32xf32> to vector<8x32xbf16>
    %c1_141 = arith.constant 1 : index
    %c0_142 = arith.constant 0 : index
    %c0_143 = arith.constant 0 : index
    %223 = vector.load %arg2[%c1_141, %c0_142, %c0_143] : memref<2x32x128xbf16, #tpu.memory_space<vmem>>, vector<1x32x128xbf16>
    %224 = vector.shape_cast %223 : vector<1x32x128xbf16> to vector<32x128xbf16>
    %cst_144 = arith.constant dense<0.000000e+00> : vector<8x128xf32>
    %225 = tpu.matmul %222, %224, %cst_144 {dimension_numbers = #tpu.dot_dimension_numbers<[1], [0], [0], [1], [0, 0, 1, 1], [], []>} : vector<8x32xbf16>, vector<32x128xbf16>, vector<8x128xf32> -> vector<8x128xf32>
    %c1_145 = arith.constant 1 : index
    %c0_146 = arith.constant 0 : index
    %c0_147 = arith.constant 0 : index
    %226 = vector.load %arg4[%c1_145, %c0_146, %c0_147] : memref<2x1x128xf32, #tpu.memory_space<vmem>>, vector<1x1x128xf32>
    %227 = vector.shape_cast %226 : vector<1x1x128xf32> to vector<1x128xf32>
    %228 = vector.broadcast %227 : vector<1x128xf32> to vector<8x128xf32>
    %229 = arith.addf %225, %228 : vector<8x128xf32>
    %c1_148 = arith.constant 1 : index
    %c0_149 = arith.constant 0 : index
    %c0_150 = arith.constant 0 : index
    %230 = vector.load %arg12[%c1_148, %c0_149, %c0_150] : memref<2x8x128xf32, #tpu.memory_space<vmem>>, vector<1x8x128xf32>
    %231 = vector.shape_cast %230 : vector<1x8x128xf32> to vector<8x128xf32>
    %232 = vector.shape_cast %229 : vector<8x128xf32> to vector<1x8x128xf32>
    tpu.vector_store %arg12[%c1_148, %c0_149, %c0_150], %232 {strides = array<i32>} : memref<2x8x128xf32, #tpu.memory_space<vmem>>, vector<1x8x128xf32>,
    %c2_151 = arith.constant 2 : index
    %c0_152 = arith.constant 0 : index
    %c0_153 = arith.constant 0 : index
    %233 = vector.load %arg1[%c2_151, %c0_152, %c0_153] : memref<8x8x128xf32, #tpu.memory_space<vmem>>, vector<1x8x128xf32>
    %234 = vector.shape_cast %233 : vector<1x8x128xf32> to vector<8x128xf32>
    %c0_154 = arith.constant 0 : index
    %c0_155 = arith.constant 0 : index
    %c0_156 = arith.constant 0 : index
    %235 = vector.load %arg10[%c0_154, %c0_155, %c0_156] : memref<3x8x32xf32, #tpu.memory_space<vmem>>, vector<1x8x32xf32>
    %236 = vector.shape_cast %235 : vector<1x8x32xf32> to vector<8x32xf32>
    %c0_157 = arith.constant 0 : index
    %c0_158 = arith.constant 0 : index
    %c0_159 = arith.constant 0 : index
    %237 = vector.load %arg11[%c0_157, %c0_158, %c0_159] : memref<3x8x32xf32, #tpu.memory_space<vmem>>, vector<1x8x32xf32>
    %238 = vector.shape_cast %237 : vector<1x8x32xf32> to vector<8x32xf32>
    %c0_160 = arith.constant 0 : index
    %c0_161 = arith.constant 0 : index
    %c0_162 = arith.constant 0 : index
    %239 = vector.load %arg3[%c0_160, %c0_161, %c0_162] : memref<3x32x128xbf16, #tpu.memory_space<vmem>>, vector<1x32x128xbf16>
    %240 = vector.shape_cast %239 : vector<1x32x128xbf16> to vector<32x128xbf16>
    %241 = arith.truncf %236 : vector<8x32xf32> to vector<8x32xbf16>
    %cst_163 = arith.constant dense<0.000000e+00> : vector<8x128xf32>
    %242 = tpu.matmul %241, %240, %cst_163 {dimension_numbers = #tpu.dot_dimension_numbers<[1], [0], [0], [1], [0, 0, 1, 1], [], []>} : vector<8x32xbf16>, vector<32x128xbf16>, vector<8x128xf32> -> vector<8x128xf32>
    %243 = arith.addf %234, %242 : vector<8x128xf32>
    %244 = arith.negf %243 : vector<8x128xf32>
    %245 = math.exp %244 : vector<8x128xf32>
    %cst_164 = arith.constant 1.000000e+00 : f32
    %246 = vector.broadcast %cst_164 : f32 to vector<8x128xf32>
    %247 = arith.addf %246, %245 : vector<8x128xf32>
    %248 = arith.divf %246, %247 : vector<8x128xf32>
    %249 = vector.extract_strided_slice %248 {offsets = [0, 0], sizes = [8, 32], strides = [1, 1]} : vector<8x128xf32> to vector<8x32xf32>
    %250 = vector.extract_strided_slice %248 {offsets = [0, 32], sizes = [8, 32], strides = [1, 1]} : vector<8x128xf32> to vector<8x32xf32>
    %251 = vector.extract_strided_slice %248 {offsets = [0, 96], sizes = [8, 32], strides = [1, 1]} : vector<8x128xf32> to vector<8x32xf32>
    %252 = vector.extract_strided_slice %243 {offsets = [0, 64], sizes = [8, 32], strides = [1, 1]} : vector<8x128xf32> to vector<8x32xf32>
    %253 = math.tanh %252 : vector<8x32xf32>
    %254 = arith.mulf %250, %238 : vector<8x32xf32>
    %255 = arith.mulf %249, %253 : vector<8x32xf32>
    %256 = arith.addf %254, %255 : vector<8x32xf32>
    %257 = math.tanh %256 : vector<8x32xf32>
    %258 = arith.mulf %251, %257 : vector<8x32xf32>
    %c8_i32_165 = arith.constant 8 : i32
    %259 = arith.muli %arg0, %c8_i32_165 : i32
    %c2_i32 = arith.constant 2 : i32
    %260 = arith.addi %259, %c2_i32 : i32
    %c12_i32_166 = arith.constant 12 : i32
    %261 = arith.cmpi slt, %260, %c12_i32_166 : i32
    %262 = arith.select %261, %258, %236 : vector<8x32xf32>
    %263 = arith.select %261, %256, %238 : vector<8x32xf32>
    %c0_167 = arith.constant 0 : index
    %c0_168 = arith.constant 0 : index
    %c0_169 = arith.constant 0 : index
    %264 = vector.load %arg10[%c0_167, %c0_168, %c0_169] : memref<3x8x32xf32, #tpu.memory_space<vmem>>, vector<1x8x32xf32>
    %265 = vector.shape_cast %264 : vector<1x8x32xf32> to vector<8x32xf32>
    %266 = vector.shape_cast %262 : vector<8x32xf32> to vector<1x8x32xf32>
    tpu.vector_store %arg10[%c0_167, %c0_168, %c0_169], %266 {strides = array<i32>} : memref<3x8x32xf32, #tpu.memory_space<vmem>>, vector<1x8x32xf32>,
    %c0_170 = arith.constant 0 : index
    %c0_171 = arith.constant 0 : index
    %c0_172 = arith.constant 0 : index
    %267 = vector.load %arg11[%c0_170, %c0_171, %c0_172] : memref<3x8x32xf32, #tpu.memory_space<vmem>>, vector<1x8x32xf32>
    %268 = vector.shape_cast %267 : vector<1x8x32xf32> to vector<8x32xf32>
    %269 = vector.shape_cast %263 : vector<8x32xf32> to vector<1x8x32xf32>
    tpu.vector_store %arg11[%c0_170, %c0_171, %c0_172], %269 {strides = array<i32>} : memref<3x8x32xf32, #tpu.memory_space<vmem>>, vector<1x8x32xf32>,
    %270 = arith.truncf %262 : vector<8x32xf32> to vector<8x32xbf16>
    %c0_173 = arith.constant 0 : index
    %c0_174 = arith.constant 0 : index
    %c0_175 = arith.constant 0 : index
    %271 = vector.load %arg2[%c0_173, %c0_174, %c0_175] : memref<2x32x128xbf16, #tpu.memory_space<vmem>>, vector<1x32x128xbf16>
    %272 = vector.shape_cast %271 : vector<1x32x128xbf16> to vector<32x128xbf16>
    %cst_176 = arith.constant dense<0.000000e+00> : vector<8x128xf32>
    %273 = tpu.matmul %270, %272, %cst_176 {dimension_numbers = #tpu.dot_dimension_numbers<[1], [0], [0], [1], [0, 0, 1, 1], [], []>} : vector<8x32xbf16>, vector<32x128xbf16>, vector<8x128xf32> -> vector<8x128xf32>
    %c0_177 = arith.constant 0 : index
    %c0_178 = arith.constant 0 : index
    %c0_179 = arith.constant 0 : index
    %274 = vector.load %arg4[%c0_177, %c0_178, %c0_179] : memref<2x1x128xf32, #tpu.memory_space<vmem>>, vector<1x1x128xf32>
    %275 = vector.shape_cast %274 : vector<1x1x128xf32> to vector<1x128xf32>
    %276 = vector.broadcast %275 : vector<1x128xf32> to vector<8x128xf32>
    %277 = arith.addf %273, %276 : vector<8x128xf32>
    %c0_180 = arith.constant 0 : index
    %c0_181 = arith.constant 0 : index
    %c0_182 = arith.constant 0 : index
    %278 = vector.load %arg12[%c0_180, %c0_181, %c0_182] : memref<2x8x128xf32, #tpu.memory_space<vmem>>, vector<1x8x128xf32>
    %279 = vector.shape_cast %278 : vector<1x8x128xf32> to vector<8x128xf32>
    %280 = vector.shape_cast %277 : vector<8x128xf32> to vector<1x8x128xf32>
    tpu.vector_store %arg12[%c0_180, %c0_181, %c0_182], %280 {strides = array<i32>} : memref<2x8x128xf32, #tpu.memory_space<vmem>>, vector<1x8x128xf32>,
    %c1_183 = arith.constant 1 : index
    %c0_184 = arith.constant 0 : index
    %c0_185 = arith.constant 0 : index
    %281 = vector.load %arg12[%c1_183, %c0_184, %c0_185] : memref<2x8x128xf32, #tpu.memory_space<vmem>>, vector<1x8x128xf32>
    %282 = vector.shape_cast %281 : vector<1x8x128xf32> to vector<8x128xf32>
    %c2_186 = arith.constant 2 : index
    %c0_187 = arith.constant 0 : index
    %c0_188 = arith.constant 0 : index
    %283 = vector.load %arg10[%c2_186, %c0_187, %c0_188] : memref<3x8x32xf32, #tpu.memory_space<vmem>>, vector<1x8x32xf32>
    %284 = vector.shape_cast %283 : vector<1x8x32xf32> to vector<8x32xf32>
    %c2_189 = arith.constant 2 : index
    %c0_190 = arith.constant 0 : index
    %c0_191 = arith.constant 0 : index
    %285 = vector.load %arg11[%c2_189, %c0_190, %c0_191] : memref<3x8x32xf32, #tpu.memory_space<vmem>>, vector<1x8x32xf32>
    %286 = vector.shape_cast %285 : vector<1x8x32xf32> to vector<8x32xf32>
    %c2_192 = arith.constant 2 : index
    %c0_193 = arith.constant 0 : index
    %c0_194 = arith.constant 0 : index
    %287 = vector.load %arg3[%c2_192, %c0_193, %c0_194] : memref<3x32x128xbf16, #tpu.memory_space<vmem>>, vector<1x32x128xbf16>
    %288 = vector.shape_cast %287 : vector<1x32x128xbf16> to vector<32x128xbf16>
    %289 = arith.truncf %284 : vector<8x32xf32> to vector<8x32xbf16>
    %cst_195 = arith.constant dense<0.000000e+00> : vector<8x128xf32>
    %290 = tpu.matmul %289, %288, %cst_195 {dimension_numbers = #tpu.dot_dimension_numbers<[1], [0], [0], [1], [0, 0, 1, 1], [], []>} : vector<8x32xbf16>, vector<32x128xbf16>, vector<8x128xf32> -> vector<8x128xf32>
    %291 = arith.addf %282, %290 : vector<8x128xf32>
    %292 = arith.negf %291 : vector<8x128xf32>
    %293 = math.exp %292 : vector<8x128xf32>
    %cst_196 = arith.constant 1.000000e+00 : f32
    %294 = vector.broadcast %cst_196 : f32 to vector<8x128xf32>
    %295 = arith.addf %294, %293 : vector<8x128xf32>
    %296 = arith.divf %294, %295 : vector<8x128xf32>
    %297 = vector.extract_strided_slice %296 {offsets = [0, 0], sizes = [8, 32], strides = [1, 1]} : vector<8x128xf32> to vector<8x32xf32>
    %298 = vector.extract_strided_slice %296 {offsets = [0, 32], sizes = [8, 32], strides = [1, 1]} : vector<8x128xf32> to vector<8x32xf32>
    %299 = vector.extract_strided_slice %296 {offsets = [0, 96], sizes = [8, 32], strides = [1, 1]} : vector<8x128xf32> to vector<8x32xf32>
    %300 = vector.extract_strided_slice %291 {offsets = [0, 64], sizes = [8, 32], strides = [1, 1]} : vector<8x128xf32> to vector<8x32xf32>
    %301 = math.tanh %300 : vector<8x32xf32>
    %302 = arith.mulf %298, %286 : vector<8x32xf32>
    %303 = arith.mulf %297, %301 : vector<8x32xf32>
    %304 = arith.addf %302, %303 : vector<8x32xf32>
    %305 = math.tanh %304 : vector<8x32xf32>
    %306 = arith.mulf %299, %305 : vector<8x32xf32>
    %c8_i32_197 = arith.constant 8 : i32
    %307 = arith.muli %arg0, %c8_i32_197 : i32
    %c1_i32_198 = arith.constant 1 : i32
    %308 = arith.addi %307, %c1_i32_198 : i32
    %c12_i32_199 = arith.constant 12 : i32
    %309 = arith.cmpi slt, %308, %c12_i32_199 : i32
    %310 = arith.select %309, %306, %284 : vector<8x32xf32>
    %311 = arith.select %309, %304, %286 : vector<8x32xf32>
    %c2_200 = arith.constant 2 : index
    %c0_201 = arith.constant 0 : index
    %c0_202 = arith.constant 0 : index
    %312 = vector.load %arg10[%c2_200, %c0_201, %c0_202] : memref<3x8x32xf32, #tpu.memory_space<vmem>>, vector<1x8x32xf32>
    %313 = vector.shape_cast %312 : vector<1x8x32xf32> to vector<8x32xf32>
    %314 = vector.shape_cast %310 : vector<8x32xf32> to vector<1x8x32xf32>
    tpu.vector_store %arg10[%c2_200, %c0_201, %c0_202], %314 {strides = array<i32>} : memref<3x8x32xf32, #tpu.memory_space<vmem>>, vector<1x8x32xf32>,
    %c2_203 = arith.constant 2 : index
    %c0_204 = arith.constant 0 : index
    %c0_205 = arith.constant 0 : index
    %315 = vector.load %arg11[%c2_203, %c0_204, %c0_205] : memref<3x8x32xf32, #tpu.memory_space<vmem>>, vector<1x8x32xf32>
    %316 = vector.shape_cast %315 : vector<1x8x32xf32> to vector<8x32xf32>
    %317 = vector.shape_cast %311 : vector<8x32xf32> to vector<1x8x32xf32>
    tpu.vector_store %arg11[%c2_203, %c0_204, %c0_205], %317 {strides = array<i32>} : memref<3x8x32xf32, #tpu.memory_space<vmem>>, vector<1x8x32xf32>,
    %c8 = arith.constant 8 : index
    %c0_206 = arith.constant 0 : index
    %318 = vector.load %arg7[%c8, %c0_206] : memref<64x32xf32, #tpu.memory_space<vmem>>, vector<8x32xf32>
    tpu.vector_store %arg7[%c8, %c0_206], %310 {strides = array<i32>} : memref<64x32xf32, #tpu.memory_space<vmem>>, vector<8x32xf32>,
    %c0_207 = arith.constant 0 : index
    %c0_208 = arith.constant 0 : index
    %c0_209 = arith.constant 0 : index
    %319 = vector.load %arg12[%c0_207, %c0_208, %c0_209] : memref<2x8x128xf32, #tpu.memory_space<vmem>>, vector<1x8x128xf32>
    %320 = vector.shape_cast %319 : vector<1x8x128xf32> to vector<8x128xf32>
    %c1_210 = arith.constant 1 : index
    %c0_211 = arith.constant 0 : index
    %c0_212 = arith.constant 0 : index
    %321 = vector.load %arg10[%c1_210, %c0_211, %c0_212] : memref<3x8x32xf32, #tpu.memory_space<vmem>>, vector<1x8x32xf32>
    %322 = vector.shape_cast %321 : vector<1x8x32xf32> to vector<8x32xf32>
    %c1_213 = arith.constant 1 : index
    %c0_214 = arith.constant 0 : index
    %c0_215 = arith.constant 0 : index
    %323 = vector.load %arg11[%c1_213, %c0_214, %c0_215] : memref<3x8x32xf32, #tpu.memory_space<vmem>>, vector<1x8x32xf32>
    %324 = vector.shape_cast %323 : vector<1x8x32xf32> to vector<8x32xf32>
    %c1_216 = arith.constant 1 : index
    %c0_217 = arith.constant 0 : index
    %c0_218 = arith.constant 0 : index
    %325 = vector.load %arg3[%c1_216, %c0_217, %c0_218] : memref<3x32x128xbf16, #tpu.memory_space<vmem>>, vector<1x32x128xbf16>
    %326 = vector.shape_cast %325 : vector<1x32x128xbf16> to vector<32x128xbf16>
    %327 = arith.truncf %322 : vector<8x32xf32> to vector<8x32xbf16>
    %cst_219 = arith.constant dense<0.000000e+00> : vector<8x128xf32>
    %328 = tpu.matmul %327, %326, %cst_219 {dimension_numbers = #tpu.dot_dimension_numbers<[1], [0], [0], [1], [0, 0, 1, 1], [], []>} : vector<8x32xbf16>, vector<32x128xbf16>, vector<8x128xf32> -> vector<8x128xf32>
    %329 = arith.addf %320, %328 : vector<8x128xf32>
    %330 = arith.negf %329 : vector<8x128xf32>
    %331 = math.exp %330 : vector<8x128xf32>
    %cst_220 = arith.constant 1.000000e+00 : f32
    %332 = vector.broadcast %cst_220 : f32 to vector<8x128xf32>
    %333 = arith.addf %332, %331 : vector<8x128xf32>
    %334 = arith.divf %332, %333 : vector<8x128xf32>
    %335 = vector.extract_strided_slice %334 {offsets = [0, 0], sizes = [8, 32], strides = [1, 1]} : vector<8x128xf32> to vector<8x32xf32>
    %336 = vector.extract_strided_slice %334 {offsets = [0, 32], sizes = [8, 32], strides = [1, 1]} : vector<8x128xf32> to vector<8x32xf32>
    %337 = vector.extract_strided_slice %334 {offsets = [0, 96], sizes = [8, 32], strides = [1, 1]} : vector<8x128xf32> to vector<8x32xf32>
    %338 = vector.extract_strided_slice %329 {offsets = [0, 64], sizes = [8, 32], strides = [1, 1]} : vector<8x128xf32> to vector<8x32xf32>
    %339 = math.tanh %338 : vector<8x32xf32>
    %340 = arith.mulf %336, %324 : vector<8x32xf32>
    %341 = arith.mulf %335, %339 : vector<8x32xf32>
    %342 = arith.addf %340, %341 : vector<8x32xf32>
    %343 = math.tanh %342 : vector<8x32xf32>
    %344 = arith.mulf %337, %343 : vector<8x32xf32>
    %c8_i32_221 = arith.constant 8 : i32
    %345 = arith.muli %arg0, %c8_i32_221 : i32
    %c2_i32_222 = arith.constant 2 : i32
    %346 = arith.addi %345, %c2_i32_222 : i32
    %c12_i32_223 = arith.constant 12 : i32
    %347 = arith.cmpi slt, %346, %c12_i32_223 : i32
    %348 = arith.select %347, %344, %322 : vector<8x32xf32>
    %349 = arith.select %347, %342, %324 : vector<8x32xf32>
    %c1_224 = arith.constant 1 : index
    %c0_225 = arith.constant 0 : index
    %c0_226 = arith.constant 0 : index
    %350 = vector.load %arg10[%c1_224, %c0_225, %c0_226] : memref<3x8x32xf32, #tpu.memory_space<vmem>>, vector<1x8x32xf32>
    %351 = vector.shape_cast %350 : vector<1x8x32xf32> to vector<8x32xf32>
    %352 = vector.shape_cast %348 : vector<8x32xf32> to vector<1x8x32xf32>
    tpu.vector_store %arg10[%c1_224, %c0_225, %c0_226], %352 {strides = array<i32>} : memref<3x8x32xf32, #tpu.memory_space<vmem>>, vector<1x8x32xf32>,
    %c1_227 = arith.constant 1 : index
    %c0_228 = arith.constant 0 : index
    %c0_229 = arith.constant 0 : index
    %353 = vector.load %arg11[%c1_227, %c0_228, %c0_229] : memref<3x8x32xf32, #tpu.memory_space<vmem>>, vector<1x8x32xf32>
    %354 = vector.shape_cast %353 : vector<1x8x32xf32> to vector<8x32xf32>
    %355 = vector.shape_cast %349 : vector<8x32xf32> to vector<1x8x32xf32>
    tpu.vector_store %arg11[%c1_227, %c0_228, %c0_229], %355 {strides = array<i32>} : memref<3x8x32xf32, #tpu.memory_space<vmem>>, vector<1x8x32xf32>,
    %356 = arith.truncf %348 : vector<8x32xf32> to vector<8x32xbf16>
    %c1_230 = arith.constant 1 : index
    %c0_231 = arith.constant 0 : index
    %c0_232 = arith.constant 0 : index
    %357 = vector.load %arg2[%c1_230, %c0_231, %c0_232] : memref<2x32x128xbf16, #tpu.memory_space<vmem>>, vector<1x32x128xbf16>
    %358 = vector.shape_cast %357 : vector<1x32x128xbf16> to vector<32x128xbf16>
    %cst_233 = arith.constant dense<0.000000e+00> : vector<8x128xf32>
    %359 = tpu.matmul %356, %358, %cst_233 {dimension_numbers = #tpu.dot_dimension_numbers<[1], [0], [0], [1], [0, 0, 1, 1], [], []>} : vector<8x32xbf16>, vector<32x128xbf16>, vector<8x128xf32> -> vector<8x128xf32>
    %c1_234 = arith.constant 1 : index
    %c0_235 = arith.constant 0 : index
    %c0_236 = arith.constant 0 : index
    %360 = vector.load %arg4[%c1_234, %c0_235, %c0_236] : memref<2x1x128xf32, #tpu.memory_space<vmem>>, vector<1x1x128xf32>
    %361 = vector.shape_cast %360 : vector<1x1x128xf32> to vector<1x128xf32>
    %362 = vector.broadcast %361 : vector<1x128xf32> to vector<8x128xf32>
    %363 = arith.addf %359, %362 : vector<8x128xf32>
    %c1_237 = arith.constant 1 : index
    %c0_238 = arith.constant 0 : index
    %c0_239 = arith.constant 0 : index
    %364 = vector.load %arg12[%c1_237, %c0_238, %c0_239] : memref<2x8x128xf32, #tpu.memory_space<vmem>>, vector<1x8x128xf32>
    %365 = vector.shape_cast %364 : vector<1x8x128xf32> to vector<8x128xf32>
    %366 = vector.shape_cast %363 : vector<8x128xf32> to vector<1x8x128xf32>
    tpu.vector_store %arg12[%c1_237, %c0_238, %c0_239], %366 {strides = array<i32>} : memref<2x8x128xf32, #tpu.memory_space<vmem>>, vector<1x8x128xf32>,
    %c3 = arith.constant 3 : index
    %c0_240 = arith.constant 0 : index
    %c0_241 = arith.constant 0 : index
    %367 = vector.load %arg1[%c3, %c0_240, %c0_241] : memref<8x8x128xf32, #tpu.memory_space<vmem>>, vector<1x8x128xf32>
    %368 = vector.shape_cast %367 : vector<1x8x128xf32> to vector<8x128xf32>
    %c0_242 = arith.constant 0 : index
    %c0_243 = arith.constant 0 : index
    %c0_244 = arith.constant 0 : index
    %369 = vector.load %arg10[%c0_242, %c0_243, %c0_244] : memref<3x8x32xf32, #tpu.memory_space<vmem>>, vector<1x8x32xf32>
    %370 = vector.shape_cast %369 : vector<1x8x32xf32> to vector<8x32xf32>
    %c0_245 = arith.constant 0 : index
    %c0_246 = arith.constant 0 : index
    %c0_247 = arith.constant 0 : index
    %371 = vector.load %arg11[%c0_245, %c0_246, %c0_247] : memref<3x8x32xf32, #tpu.memory_space<vmem>>, vector<1x8x32xf32>
    %372 = vector.shape_cast %371 : vector<1x8x32xf32> to vector<8x32xf32>
    %c0_248 = arith.constant 0 : index
    %c0_249 = arith.constant 0 : index
    %c0_250 = arith.constant 0 : index
    %373 = vector.load %arg3[%c0_248, %c0_249, %c0_250] : memref<3x32x128xbf16, #tpu.memory_space<vmem>>, vector<1x32x128xbf16>
    %374 = vector.shape_cast %373 : vector<1x32x128xbf16> to vector<32x128xbf16>
    %375 = arith.truncf %370 : vector<8x32xf32> to vector<8x32xbf16>
    %cst_251 = arith.constant dense<0.000000e+00> : vector<8x128xf32>
    %376 = tpu.matmul %375, %374, %cst_251 {dimension_numbers = #tpu.dot_dimension_numbers<[1], [0], [0], [1], [0, 0, 1, 1], [], []>} : vector<8x32xbf16>, vector<32x128xbf16>, vector<8x128xf32> -> vector<8x128xf32>
    %377 = arith.addf %368, %376 : vector<8x128xf32>
    %378 = arith.negf %377 : vector<8x128xf32>
    %379 = math.exp %378 : vector<8x128xf32>
    %cst_252 = arith.constant 1.000000e+00 : f32
    %380 = vector.broadcast %cst_252 : f32 to vector<8x128xf32>
    %381 = arith.addf %380, %379 : vector<8x128xf32>
    %382 = arith.divf %380, %381 : vector<8x128xf32>
    %383 = vector.extract_strided_slice %382 {offsets = [0, 0], sizes = [8, 32], strides = [1, 1]} : vector<8x128xf32> to vector<8x32xf32>
    %384 = vector.extract_strided_slice %382 {offsets = [0, 32], sizes = [8, 32], strides = [1, 1]} : vector<8x128xf32> to vector<8x32xf32>
    %385 = vector.extract_strided_slice %382 {offsets = [0, 96], sizes = [8, 32], strides = [1, 1]} : vector<8x128xf32> to vector<8x32xf32>
    %386 = vector.extract_strided_slice %377 {offsets = [0, 64], sizes = [8, 32], strides = [1, 1]} : vector<8x128xf32> to vector<8x32xf32>
    %387 = math.tanh %386 : vector<8x32xf32>
    %388 = arith.mulf %384, %372 : vector<8x32xf32>
    %389 = arith.mulf %383, %387 : vector<8x32xf32>
    %390 = arith.addf %388, %389 : vector<8x32xf32>
    %391 = math.tanh %390 : vector<8x32xf32>
    %392 = arith.mulf %385, %391 : vector<8x32xf32>
    %c8_i32_253 = arith.constant 8 : i32
    %393 = arith.muli %arg0, %c8_i32_253 : i32
    %c3_i32 = arith.constant 3 : i32
    %394 = arith.addi %393, %c3_i32 : i32
    %c12_i32_254 = arith.constant 12 : i32
    %395 = arith.cmpi slt, %394, %c12_i32_254 : i32
    %396 = arith.select %395, %392, %370 : vector<8x32xf32>
    %397 = arith.select %395, %390, %372 : vector<8x32xf32>
    %c0_255 = arith.constant 0 : index
    %c0_256 = arith.constant 0 : index
    %c0_257 = arith.constant 0 : index
    %398 = vector.load %arg10[%c0_255, %c0_256, %c0_257] : memref<3x8x32xf32, #tpu.memory_space<vmem>>, vector<1x8x32xf32>
    %399 = vector.shape_cast %398 : vector<1x8x32xf32> to vector<8x32xf32>
    %400 = vector.shape_cast %396 : vector<8x32xf32> to vector<1x8x32xf32>
    tpu.vector_store %arg10[%c0_255, %c0_256, %c0_257], %400 {strides = array<i32>} : memref<3x8x32xf32, #tpu.memory_space<vmem>>, vector<1x8x32xf32>,
    %c0_258 = arith.constant 0 : index
    %c0_259 = arith.constant 0 : index
    %c0_260 = arith.constant 0 : index
    %401 = vector.load %arg11[%c0_258, %c0_259, %c0_260] : memref<3x8x32xf32, #tpu.memory_space<vmem>>, vector<1x8x32xf32>
    %402 = vector.shape_cast %401 : vector<1x8x32xf32> to vector<8x32xf32>
    %403 = vector.shape_cast %397 : vector<8x32xf32> to vector<1x8x32xf32>
    tpu.vector_store %arg11[%c0_258, %c0_259, %c0_260], %403 {strides = array<i32>} : memref<3x8x32xf32, #tpu.memory_space<vmem>>, vector<1x8x32xf32>,
    %404 = arith.truncf %396 : vector<8x32xf32> to vector<8x32xbf16>
    %c0_261 = arith.constant 0 : index
    %c0_262 = arith.constant 0 : index
    %c0_263 = arith.constant 0 : index
    %405 = vector.load %arg2[%c0_261, %c0_262, %c0_263] : memref<2x32x128xbf16, #tpu.memory_space<vmem>>, vector<1x32x128xbf16>
    %406 = vector.shape_cast %405 : vector<1x32x128xbf16> to vector<32x128xbf16>
    %cst_264 = arith.constant dense<0.000000e+00> : vector<8x128xf32>
    %407 = tpu.matmul %404, %406, %cst_264 {dimension_numbers = #tpu.dot_dimension_numbers<[1], [0], [0], [1], [0, 0, 1, 1], [], []>} : vector<8x32xbf16>, vector<32x128xbf16>, vector<8x128xf32> -> vector<8x128xf32>
    %c0_265 = arith.constant 0 : index
    %c0_266 = arith.constant 0 : index
    %c0_267 = arith.constant 0 : index
    %408 = vector.load %arg4[%c0_265, %c0_266, %c0_267] : memref<2x1x128xf32, #tpu.memory_space<vmem>>, vector<1x1x128xf32>
    %409 = vector.shape_cast %408 : vector<1x1x128xf32> to vector<1x128xf32>
    %410 = vector.broadcast %409 : vector<1x128xf32> to vector<8x128xf32>
    %411 = arith.addf %407, %410 : vector<8x128xf32>
    %c0_268 = arith.constant 0 : index
    %c0_269 = arith.constant 0 : index
    %c0_270 = arith.constant 0 : index
    %412 = vector.load %arg12[%c0_268, %c0_269, %c0_270] : memref<2x8x128xf32, #tpu.memory_space<vmem>>, vector<1x8x128xf32>
    %413 = vector.shape_cast %412 : vector<1x8x128xf32> to vector<8x128xf32>
    %414 = vector.shape_cast %411 : vector<8x128xf32> to vector<1x8x128xf32>
    tpu.vector_store %arg12[%c0_268, %c0_269, %c0_270], %414 {strides = array<i32>} : memref<2x8x128xf32, #tpu.memory_space<vmem>>, vector<1x8x128xf32>,
    %c1_271 = arith.constant 1 : index
    %c0_272 = arith.constant 0 : index
    %c0_273 = arith.constant 0 : index
    %415 = vector.load %arg12[%c1_271, %c0_272, %c0_273] : memref<2x8x128xf32, #tpu.memory_space<vmem>>, vector<1x8x128xf32>
    %416 = vector.shape_cast %415 : vector<1x8x128xf32> to vector<8x128xf32>
    %c2_274 = arith.constant 2 : index
    %c0_275 = arith.constant 0 : index
    %c0_276 = arith.constant 0 : index
    %417 = vector.load %arg10[%c2_274, %c0_275, %c0_276] : memref<3x8x32xf32, #tpu.memory_space<vmem>>, vector<1x8x32xf32>
    %418 = vector.shape_cast %417 : vector<1x8x32xf32> to vector<8x32xf32>
    %c2_277 = arith.constant 2 : index
    %c0_278 = arith.constant 0 : index
    %c0_279 = arith.constant 0 : index
    %419 = vector.load %arg11[%c2_277, %c0_278, %c0_279] : memref<3x8x32xf32, #tpu.memory_space<vmem>>, vector<1x8x32xf32>
    %420 = vector.shape_cast %419 : vector<1x8x32xf32> to vector<8x32xf32>
    %c2_280 = arith.constant 2 : index
    %c0_281 = arith.constant 0 : index
    %c0_282 = arith.constant 0 : index
    %421 = vector.load %arg3[%c2_280, %c0_281, %c0_282] : memref<3x32x128xbf16, #tpu.memory_space<vmem>>, vector<1x32x128xbf16>
    %422 = vector.shape_cast %421 : vector<1x32x128xbf16> to vector<32x128xbf16>
    %423 = arith.truncf %418 : vector<8x32xf32> to vector<8x32xbf16>
    %cst_283 = arith.constant dense<0.000000e+00> : vector<8x128xf32>
    %424 = tpu.matmul %423, %422, %cst_283 {dimension_numbers = #tpu.dot_dimension_numbers<[1], [0], [0], [1], [0, 0, 1, 1], [], []>} : vector<8x32xbf16>, vector<32x128xbf16>, vector<8x128xf32> -> vector<8x128xf32>
    %425 = arith.addf %416, %424 : vector<8x128xf32>
    %426 = arith.negf %425 : vector<8x128xf32>
    %427 = math.exp %426 : vector<8x128xf32>
    %cst_284 = arith.constant 1.000000e+00 : f32
    %428 = vector.broadcast %cst_284 : f32 to vector<8x128xf32>
    %429 = arith.addf %428, %427 : vector<8x128xf32>
    %430 = arith.divf %428, %429 : vector<8x128xf32>
    %431 = vector.extract_strided_slice %430 {offsets = [0, 0], sizes = [8, 32], strides = [1, 1]} : vector<8x128xf32> to vector<8x32xf32>
    %432 = vector.extract_strided_slice %430 {offsets = [0, 32], sizes = [8, 32], strides = [1, 1]} : vector<8x128xf32> to vector<8x32xf32>
    %433 = vector.extract_strided_slice %430 {offsets = [0, 96], sizes = [8, 32], strides = [1, 1]} : vector<8x128xf32> to vector<8x32xf32>
    %434 = vector.extract_strided_slice %425 {offsets = [0, 64], sizes = [8, 32], strides = [1, 1]} : vector<8x128xf32> to vector<8x32xf32>
    %435 = math.tanh %434 : vector<8x32xf32>
    %436 = arith.mulf %432, %420 : vector<8x32xf32>
    %437 = arith.mulf %431, %435 : vector<8x32xf32>
    %438 = arith.addf %436, %437 : vector<8x32xf32>
    %439 = math.tanh %438 : vector<8x32xf32>
    %440 = arith.mulf %433, %439 : vector<8x32xf32>
    %c8_i32_285 = arith.constant 8 : i32
    %441 = arith.muli %arg0, %c8_i32_285 : i32
    %c2_i32_286 = arith.constant 2 : i32
    %442 = arith.addi %441, %c2_i32_286 : i32
    %c12_i32_287 = arith.constant 12 : i32
    %443 = arith.cmpi slt, %442, %c12_i32_287 : i32
    %444 = arith.select %443, %440, %418 : vector<8x32xf32>
    %445 = arith.select %443, %438, %420 : vector<8x32xf32>
    %c2_288 = arith.constant 2 : index
    %c0_289 = arith.constant 0 : index
    %c0_290 = arith.constant 0 : index
    %446 = vector.load %arg10[%c2_288, %c0_289, %c0_290] : memref<3x8x32xf32, #tpu.memory_space<vmem>>, vector<1x8x32xf32>
    %447 = vector.shape_cast %446 : vector<1x8x32xf32> to vector<8x32xf32>
    %448 = vector.shape_cast %444 : vector<8x32xf32> to vector<1x8x32xf32>
    tpu.vector_store %arg10[%c2_288, %c0_289, %c0_290], %448 {strides = array<i32>} : memref<3x8x32xf32, #tpu.memory_space<vmem>>, vector<1x8x32xf32>,
    %c2_291 = arith.constant 2 : index
    %c0_292 = arith.constant 0 : index
    %c0_293 = arith.constant 0 : index
    %449 = vector.load %arg11[%c2_291, %c0_292, %c0_293] : memref<3x8x32xf32, #tpu.memory_space<vmem>>, vector<1x8x32xf32>
    %450 = vector.shape_cast %449 : vector<1x8x32xf32> to vector<8x32xf32>
    %451 = vector.shape_cast %445 : vector<8x32xf32> to vector<1x8x32xf32>
    tpu.vector_store %arg11[%c2_291, %c0_292, %c0_293], %451 {strides = array<i32>} : memref<3x8x32xf32, #tpu.memory_space<vmem>>, vector<1x8x32xf32>,
    %c16 = arith.constant 16 : index
    %c0_294 = arith.constant 0 : index
    %452 = vector.load %arg7[%c16, %c0_294] : memref<64x32xf32, #tpu.memory_space<vmem>>, vector<8x32xf32>
    tpu.vector_store %arg7[%c16, %c0_294], %444 {strides = array<i32>} : memref<64x32xf32, #tpu.memory_space<vmem>>, vector<8x32xf32>,
    %c0_295 = arith.constant 0 : index
    %c0_296 = arith.constant 0 : index
    %c0_297 = arith.constant 0 : index
    %453 = vector.load %arg12[%c0_295, %c0_296, %c0_297] : memref<2x8x128xf32, #tpu.memory_space<vmem>>, vector<1x8x128xf32>
    %454 = vector.shape_cast %453 : vector<1x8x128xf32> to vector<8x128xf32>
    %c1_298 = arith.constant 1 : index
    %c0_299 = arith.constant 0 : index
    %c0_300 = arith.constant 0 : index
    %455 = vector.load %arg10[%c1_298, %c0_299, %c0_300] : memref<3x8x32xf32, #tpu.memory_space<vmem>>, vector<1x8x32xf32>
    %456 = vector.shape_cast %455 : vector<1x8x32xf32> to vector<8x32xf32>
    %c1_301 = arith.constant 1 : index
    %c0_302 = arith.constant 0 : index
    %c0_303 = arith.constant 0 : index
    %457 = vector.load %arg11[%c1_301, %c0_302, %c0_303] : memref<3x8x32xf32, #tpu.memory_space<vmem>>, vector<1x8x32xf32>
    %458 = vector.shape_cast %457 : vector<1x8x32xf32> to vector<8x32xf32>
    %c1_304 = arith.constant 1 : index
    %c0_305 = arith.constant 0 : index
    %c0_306 = arith.constant 0 : index
    %459 = vector.load %arg3[%c1_304, %c0_305, %c0_306] : memref<3x32x128xbf16, #tpu.memory_space<vmem>>, vector<1x32x128xbf16>
    %460 = vector.shape_cast %459 : vector<1x32x128xbf16> to vector<32x128xbf16>
    %461 = arith.truncf %456 : vector<8x32xf32> to vector<8x32xbf16>
    %cst_307 = arith.constant dense<0.000000e+00> : vector<8x128xf32>
    %462 = tpu.matmul %461, %460, %cst_307 {dimension_numbers = #tpu.dot_dimension_numbers<[1], [0], [0], [1], [0, 0, 1, 1], [], []>} : vector<8x32xbf16>, vector<32x128xbf16>, vector<8x128xf32> -> vector<8x128xf32>
    %463 = arith.addf %454, %462 : vector<8x128xf32>
    %464 = arith.negf %463 : vector<8x128xf32>
    %465 = math.exp %464 : vector<8x128xf32>
    %cst_308 = arith.constant 1.000000e+00 : f32
    %466 = vector.broadcast %cst_308 : f32 to vector<8x128xf32>
    %467 = arith.addf %466, %465 : vector<8x128xf32>
    %468 = arith.divf %466, %467 : vector<8x128xf32>
    %469 = vector.extract_strided_slice %468 {offsets = [0, 0], sizes = [8, 32], strides = [1, 1]} : vector<8x128xf32> to vector<8x32xf32>
    %470 = vector.extract_strided_slice %468 {offsets = [0, 32], sizes = [8, 32], strides = [1, 1]} : vector<8x128xf32> to vector<8x32xf32>
    %471 = vector.extract_strided_slice %468 {offsets = [0, 96], sizes = [8, 32], strides = [1, 1]} : vector<8x128xf32> to vector<8x32xf32>
    %472 = vector.extract_strided_slice %463 {offsets = [0, 64], sizes = [8, 32], strides = [1, 1]} : vector<8x128xf32> to vector<8x32xf32>
    %473 = math.tanh %472 : vector<8x32xf32>
    %474 = arith.mulf %470, %458 : vector<8x32xf32>
    %475 = arith.mulf %469, %473 : vector<8x32xf32>
    %476 = arith.addf %474, %475 : vector<8x32xf32>
    %477 = math.tanh %476 : vector<8x32xf32>
    %478 = arith.mulf %471, %477 : vector<8x32xf32>
    %c8_i32_309 = arith.constant 8 : i32
    %479 = arith.muli %arg0, %c8_i32_309 : i32
    %c3_i32_310 = arith.constant 3 : i32
    %480 = arith.addi %479, %c3_i32_310 : i32
    %c12_i32_311 = arith.constant 12 : i32
    %481 = arith.cmpi slt, %480, %c12_i32_311 : i32
    %482 = arith.select %481, %478, %456 : vector<8x32xf32>
    %483 = arith.select %481, %476, %458 : vector<8x32xf32>
    %c1_312 = arith.constant 1 : index
    %c0_313 = arith.constant 0 : index
    %c0_314 = arith.constant 0 : index
    %484 = vector.load %arg10[%c1_312, %c0_313, %c0_314] : memref<3x8x32xf32, #tpu.memory_space<vmem>>, vector<1x8x32xf32>
    %485 = vector.shape_cast %484 : vector<1x8x32xf32> to vector<8x32xf32>
    %486 = vector.shape_cast %482 : vector<8x32xf32> to vector<1x8x32xf32>
    tpu.vector_store %arg10[%c1_312, %c0_313, %c0_314], %486 {strides = array<i32>} : memref<3x8x32xf32, #tpu.memory_space<vmem>>, vector<1x8x32xf32>,
    %c1_315 = arith.constant 1 : index
    %c0_316 = arith.constant 0 : index
    %c0_317 = arith.constant 0 : index
    %487 = vector.load %arg11[%c1_315, %c0_316, %c0_317] : memref<3x8x32xf32, #tpu.memory_space<vmem>>, vector<1x8x32xf32>
    %488 = vector.shape_cast %487 : vector<1x8x32xf32> to vector<8x32xf32>
    %489 = vector.shape_cast %483 : vector<8x32xf32> to vector<1x8x32xf32>
    tpu.vector_store %arg11[%c1_315, %c0_316, %c0_317], %489 {strides = array<i32>} : memref<3x8x32xf32, #tpu.memory_space<vmem>>, vector<1x8x32xf32>,
    %490 = arith.truncf %482 : vector<8x32xf32> to vector<8x32xbf16>
    %c1_318 = arith.constant 1 : index
    %c0_319 = arith.constant 0 : index
    %c0_320 = arith.constant 0 : index
    %491 = vector.load %arg2[%c1_318, %c0_319, %c0_320] : memref<2x32x128xbf16, #tpu.memory_space<vmem>>, vector<1x32x128xbf16>
    %492 = vector.shape_cast %491 : vector<1x32x128xbf16> to vector<32x128xbf16>
    %cst_321 = arith.constant dense<0.000000e+00> : vector<8x128xf32>
    %493 = tpu.matmul %490, %492, %cst_321 {dimension_numbers = #tpu.dot_dimension_numbers<[1], [0], [0], [1], [0, 0, 1, 1], [], []>} : vector<8x32xbf16>, vector<32x128xbf16>, vector<8x128xf32> -> vector<8x128xf32>
    %c1_322 = arith.constant 1 : index
    %c0_323 = arith.constant 0 : index
    %c0_324 = arith.constant 0 : index
    %494 = vector.load %arg4[%c1_322, %c0_323, %c0_324] : memref<2x1x128xf32, #tpu.memory_space<vmem>>, vector<1x1x128xf32>
    %495 = vector.shape_cast %494 : vector<1x1x128xf32> to vector<1x128xf32>
    %496 = vector.broadcast %495 : vector<1x128xf32> to vector<8x128xf32>
    %497 = arith.addf %493, %496 : vector<8x128xf32>
    %c1_325 = arith.constant 1 : index
    %c0_326 = arith.constant 0 : index
    %c0_327 = arith.constant 0 : index
    %498 = vector.load %arg12[%c1_325, %c0_326, %c0_327] : memref<2x8x128xf32, #tpu.memory_space<vmem>>, vector<1x8x128xf32>
    %499 = vector.shape_cast %498 : vector<1x8x128xf32> to vector<8x128xf32>
    %500 = vector.shape_cast %497 : vector<8x128xf32> to vector<1x8x128xf32>
    tpu.vector_store %arg12[%c1_325, %c0_326, %c0_327], %500 {strides = array<i32>} : memref<2x8x128xf32, #tpu.memory_space<vmem>>, vector<1x8x128xf32>,
    %c4 = arith.constant 4 : index
    %c0_328 = arith.constant 0 : index
    %c0_329 = arith.constant 0 : index
    %501 = vector.load %arg1[%c4, %c0_328, %c0_329] : memref<8x8x128xf32, #tpu.memory_space<vmem>>, vector<1x8x128xf32>
    %502 = vector.shape_cast %501 : vector<1x8x128xf32> to vector<8x128xf32>
    %c0_330 = arith.constant 0 : index
    %c0_331 = arith.constant 0 : index
    %c0_332 = arith.constant 0 : index
    %503 = vector.load %arg10[%c0_330, %c0_331, %c0_332] : memref<3x8x32xf32, #tpu.memory_space<vmem>>, vector<1x8x32xf32>
    %504 = vector.shape_cast %503 : vector<1x8x32xf32> to vector<8x32xf32>
    %c0_333 = arith.constant 0 : index
    %c0_334 = arith.constant 0 : index
    %c0_335 = arith.constant 0 : index
    %505 = vector.load %arg11[%c0_333, %c0_334, %c0_335] : memref<3x8x32xf32, #tpu.memory_space<vmem>>, vector<1x8x32xf32>
    %506 = vector.shape_cast %505 : vector<1x8x32xf32> to vector<8x32xf32>
    %c0_336 = arith.constant 0 : index
    %c0_337 = arith.constant 0 : index
    %c0_338 = arith.constant 0 : index
    %507 = vector.load %arg3[%c0_336, %c0_337, %c0_338] : memref<3x32x128xbf16, #tpu.memory_space<vmem>>, vector<1x32x128xbf16>
    %508 = vector.shape_cast %507 : vector<1x32x128xbf16> to vector<32x128xbf16>
    %509 = arith.truncf %504 : vector<8x32xf32> to vector<8x32xbf16>
    %cst_339 = arith.constant dense<0.000000e+00> : vector<8x128xf32>
    %510 = tpu.matmul %509, %508, %cst_339 {dimension_numbers = #tpu.dot_dimension_numbers<[1], [0], [0], [1], [0, 0, 1, 1], [], []>} : vector<8x32xbf16>, vector<32x128xbf16>, vector<8x128xf32> -> vector<8x128xf32>
    %511 = arith.addf %502, %510 : vector<8x128xf32>
    %512 = arith.negf %511 : vector<8x128xf32>
    %513 = math.exp %512 : vector<8x128xf32>
    %cst_340 = arith.constant 1.000000e+00 : f32
    %514 = vector.broadcast %cst_340 : f32 to vector<8x128xf32>
    %515 = arith.addf %514, %513 : vector<8x128xf32>
    %516 = arith.divf %514, %515 : vector<8x128xf32>
    %517 = vector.extract_strided_slice %516 {offsets = [0, 0], sizes = [8, 32], strides = [1, 1]} : vector<8x128xf32> to vector<8x32xf32>
    %518 = vector.extract_strided_slice %516 {offsets = [0, 32], sizes = [8, 32], strides = [1, 1]} : vector<8x128xf32> to vector<8x32xf32>
    %519 = vector.extract_strided_slice %516 {offsets = [0, 96], sizes = [8, 32], strides = [1, 1]} : vector<8x128xf32> to vector<8x32xf32>
    %520 = vector.extract_strided_slice %511 {offsets = [0, 64], sizes = [8, 32], strides = [1, 1]} : vector<8x128xf32> to vector<8x32xf32>
    %521 = math.tanh %520 : vector<8x32xf32>
    %522 = arith.mulf %518, %506 : vector<8x32xf32>
    %523 = arith.mulf %517, %521 : vector<8x32xf32>
    %524 = arith.addf %522, %523 : vector<8x32xf32>
    %525 = math.tanh %524 : vector<8x32xf32>
    %526 = arith.mulf %519, %525 : vector<8x32xf32>
    %c8_i32_341 = arith.constant 8 : i32
    %527 = arith.muli %arg0, %c8_i32_341 : i32
    %c4_i32 = arith.constant 4 : i32
    %528 = arith.addi %527, %c4_i32 : i32
    %c12_i32_342 = arith.constant 12 : i32
    %529 = arith.cmpi slt, %528, %c12_i32_342 : i32
    %530 = arith.select %529, %526, %504 : vector<8x32xf32>
    %531 = arith.select %529, %524, %506 : vector<8x32xf32>
    %c0_343 = arith.constant 0 : index
    %c0_344 = arith.constant 0 : index
    %c0_345 = arith.constant 0 : index
    %532 = vector.load %arg10[%c0_343, %c0_344, %c0_345] : memref<3x8x32xf32, #tpu.memory_space<vmem>>, vector<1x8x32xf32>
    %533 = vector.shape_cast %532 : vector<1x8x32xf32> to vector<8x32xf32>
    %534 = vector.shape_cast %530 : vector<8x32xf32> to vector<1x8x32xf32>
    tpu.vector_store %arg10[%c0_343, %c0_344, %c0_345], %534 {strides = array<i32>} : memref<3x8x32xf32, #tpu.memory_space<vmem>>, vector<1x8x32xf32>,
    %c0_346 = arith.constant 0 : index
    %c0_347 = arith.constant 0 : index
    %c0_348 = arith.constant 0 : index
    %535 = vector.load %arg11[%c0_346, %c0_347, %c0_348] : memref<3x8x32xf32, #tpu.memory_space<vmem>>, vector<1x8x32xf32>
    %536 = vector.shape_cast %535 : vector<1x8x32xf32> to vector<8x32xf32>
    %537 = vector.shape_cast %531 : vector<8x32xf32> to vector<1x8x32xf32>
    tpu.vector_store %arg11[%c0_346, %c0_347, %c0_348], %537 {strides = array<i32>} : memref<3x8x32xf32, #tpu.memory_space<vmem>>, vector<1x8x32xf32>,
    %538 = arith.truncf %530 : vector<8x32xf32> to vector<8x32xbf16>
    %c0_349 = arith.constant 0 : index
    %c0_350 = arith.constant 0 : index
    %c0_351 = arith.constant 0 : index
    %539 = vector.load %arg2[%c0_349, %c0_350, %c0_351] : memref<2x32x128xbf16, #tpu.memory_space<vmem>>, vector<1x32x128xbf16>
    %540 = vector.shape_cast %539 : vector<1x32x128xbf16> to vector<32x128xbf16>
    %cst_352 = arith.constant dense<0.000000e+00> : vector<8x128xf32>
    %541 = tpu.matmul %538, %540, %cst_352 {dimension_numbers = #tpu.dot_dimension_numbers<[1], [0], [0], [1], [0, 0, 1, 1], [], []>} : vector<8x32xbf16>, vector<32x128xbf16>, vector<8x128xf32> -> vector<8x128xf32>
    %c0_353 = arith.constant 0 : index
    %c0_354 = arith.constant 0 : index
    %c0_355 = arith.constant 0 : index
    %542 = vector.load %arg4[%c0_353, %c0_354, %c0_355] : memref<2x1x128xf32, #tpu.memory_space<vmem>>, vector<1x1x128xf32>
    %543 = vector.shape_cast %542 : vector<1x1x128xf32> to vector<1x128xf32>
    %544 = vector.broadcast %543 : vector<1x128xf32> to vector<8x128xf32>
    %545 = arith.addf %541, %544 : vector<8x128xf32>
    %c0_356 = arith.constant 0 : index
    %c0_357 = arith.constant 0 : index
    %c0_358 = arith.constant 0 : index
    %546 = vector.load %arg12[%c0_356, %c0_357, %c0_358] : memref<2x8x128xf32, #tpu.memory_space<vmem>>, vector<1x8x128xf32>
    %547 = vector.shape_cast %546 : vector<1x8x128xf32> to vector<8x128xf32>
    %548 = vector.shape_cast %545 : vector<8x128xf32> to vector<1x8x128xf32>
    tpu.vector_store %arg12[%c0_356, %c0_357, %c0_358], %548 {strides = array<i32>} : memref<2x8x128xf32, #tpu.memory_space<vmem>>, vector<1x8x128xf32>,
    %c1_359 = arith.constant 1 : index
    %c0_360 = arith.constant 0 : index
    %c0_361 = arith.constant 0 : index
    %549 = vector.load %arg12[%c1_359, %c0_360, %c0_361] : memref<2x8x128xf32, #tpu.memory_space<vmem>>, vector<1x8x128xf32>
    %550 = vector.shape_cast %549 : vector<1x8x128xf32> to vector<8x128xf32>
    %c2_362 = arith.constant 2 : index
    %c0_363 = arith.constant 0 : index
    %c0_364 = arith.constant 0 : index
    %551 = vector.load %arg10[%c2_362, %c0_363, %c0_364] : memref<3x8x32xf32, #tpu.memory_space<vmem>>, vector<1x8x32xf32>
    %552 = vector.shape_cast %551 : vector<1x8x32xf32> to vector<8x32xf32>
    %c2_365 = arith.constant 2 : index
    %c0_366 = arith.constant 0 : index
    %c0_367 = arith.constant 0 : index
    %553 = vector.load %arg11[%c2_365, %c0_366, %c0_367] : memref<3x8x32xf32, #tpu.memory_space<vmem>>, vector<1x8x32xf32>
    %554 = vector.shape_cast %553 : vector<1x8x32xf32> to vector<8x32xf32>
    %c2_368 = arith.constant 2 : index
    %c0_369 = arith.constant 0 : index
    %c0_370 = arith.constant 0 : index
    %555 = vector.load %arg3[%c2_368, %c0_369, %c0_370] : memref<3x32x128xbf16, #tpu.memory_space<vmem>>, vector<1x32x128xbf16>
    %556 = vector.shape_cast %555 : vector<1x32x128xbf16> to vector<32x128xbf16>
    %557 = arith.truncf %552 : vector<8x32xf32> to vector<8x32xbf16>
    %cst_371 = arith.constant dense<0.000000e+00> : vector<8x128xf32>
    %558 = tpu.matmul %557, %556, %cst_371 {dimension_numbers = #tpu.dot_dimension_numbers<[1], [0], [0], [1], [0, 0, 1, 1], [], []>} : vector<8x32xbf16>, vector<32x128xbf16>, vector<8x128xf32> -> vector<8x128xf32>
    %559 = arith.addf %550, %558 : vector<8x128xf32>
    %560 = arith.negf %559 : vector<8x128xf32>
    %561 = math.exp %560 : vector<8x128xf32>
    %cst_372 = arith.constant 1.000000e+00 : f32
    %562 = vector.broadcast %cst_372 : f32 to vector<8x128xf32>
    %563 = arith.addf %562, %561 : vector<8x128xf32>
    %564 = arith.divf %562, %563 : vector<8x128xf32>
    %565 = vector.extract_strided_slice %564 {offsets = [0, 0], sizes = [8, 32], strides = [1, 1]} : vector<8x128xf32> to vector<8x32xf32>
    %566 = vector.extract_strided_slice %564 {offsets = [0, 32], sizes = [8, 32], strides = [1, 1]} : vector<8x128xf32> to vector<8x32xf32>
    %567 = vector.extract_strided_slice %564 {offsets = [0, 96], sizes = [8, 32], strides = [1, 1]} : vector<8x128xf32> to vector<8x32xf32>
    %568 = vector.extract_strided_slice %559 {offsets = [0, 64], sizes = [8, 32], strides = [1, 1]} : vector<8x128xf32> to vector<8x32xf32>
    %569 = math.tanh %568 : vector<8x32xf32>
    %570 = arith.mulf %566, %554 : vector<8x32xf32>
    %571 = arith.mulf %565, %569 : vector<8x32xf32>
    %572 = arith.addf %570, %571 : vector<8x32xf32>
    %573 = math.tanh %572 : vector<8x32xf32>
    %574 = arith.mulf %567, %573 : vector<8x32xf32>
    %c8_i32_373 = arith.constant 8 : i32
    %575 = arith.muli %arg0, %c8_i32_373 : i32
    %c3_i32_374 = arith.constant 3 : i32
    %576 = arith.addi %575, %c3_i32_374 : i32
    %c12_i32_375 = arith.constant 12 : i32
    %577 = arith.cmpi slt, %576, %c12_i32_375 : i32
    %578 = arith.select %577, %574, %552 : vector<8x32xf32>
    %579 = arith.select %577, %572, %554 : vector<8x32xf32>
    %c2_376 = arith.constant 2 : index
    %c0_377 = arith.constant 0 : index
    %c0_378 = arith.constant 0 : index
    %580 = vector.load %arg10[%c2_376, %c0_377, %c0_378] : memref<3x8x32xf32, #tpu.memory_space<vmem>>, vector<1x8x32xf32>
    %581 = vector.shape_cast %580 : vector<1x8x32xf32> to vector<8x32xf32>
    %582 = vector.shape_cast %578 : vector<8x32xf32> to vector<1x8x32xf32>
    tpu.vector_store %arg10[%c2_376, %c0_377, %c0_378], %582 {strides = array<i32>} : memref<3x8x32xf32, #tpu.memory_space<vmem>>, vector<1x8x32xf32>,
    %c2_379 = arith.constant 2 : index
    %c0_380 = arith.constant 0 : index
    %c0_381 = arith.constant 0 : index
    %583 = vector.load %arg11[%c2_379, %c0_380, %c0_381] : memref<3x8x32xf32, #tpu.memory_space<vmem>>, vector<1x8x32xf32>
    %584 = vector.shape_cast %583 : vector<1x8x32xf32> to vector<8x32xf32>
    %585 = vector.shape_cast %579 : vector<8x32xf32> to vector<1x8x32xf32>
    tpu.vector_store %arg11[%c2_379, %c0_380, %c0_381], %585 {strides = array<i32>} : memref<3x8x32xf32, #tpu.memory_space<vmem>>, vector<1x8x32xf32>,
    %c24 = arith.constant 24 : index
    %c0_382 = arith.constant 0 : index
    %586 = vector.load %arg7[%c24, %c0_382] : memref<64x32xf32, #tpu.memory_space<vmem>>, vector<8x32xf32>
    tpu.vector_store %arg7[%c24, %c0_382], %578 {strides = array<i32>} : memref<64x32xf32, #tpu.memory_space<vmem>>, vector<8x32xf32>,
    %c0_383 = arith.constant 0 : index
    %c0_384 = arith.constant 0 : index
    %c0_385 = arith.constant 0 : index
    %587 = vector.load %arg12[%c0_383, %c0_384, %c0_385] : memref<2x8x128xf32, #tpu.memory_space<vmem>>, vector<1x8x128xf32>
    %588 = vector.shape_cast %587 : vector<1x8x128xf32> to vector<8x128xf32>
    %c1_386 = arith.constant 1 : index
    %c0_387 = arith.constant 0 : index
    %c0_388 = arith.constant 0 : index
    %589 = vector.load %arg10[%c1_386, %c0_387, %c0_388] : memref<3x8x32xf32, #tpu.memory_space<vmem>>, vector<1x8x32xf32>
    %590 = vector.shape_cast %589 : vector<1x8x32xf32> to vector<8x32xf32>
    %c1_389 = arith.constant 1 : index
    %c0_390 = arith.constant 0 : index
    %c0_391 = arith.constant 0 : index
    %591 = vector.load %arg11[%c1_389, %c0_390, %c0_391] : memref<3x8x32xf32, #tpu.memory_space<vmem>>, vector<1x8x32xf32>
    %592 = vector.shape_cast %591 : vector<1x8x32xf32> to vector<8x32xf32>
    %c1_392 = arith.constant 1 : index
    %c0_393 = arith.constant 0 : index
    %c0_394 = arith.constant 0 : index
    %593 = vector.load %arg3[%c1_392, %c0_393, %c0_394] : memref<3x32x128xbf16, #tpu.memory_space<vmem>>, vector<1x32x128xbf16>
    %594 = vector.shape_cast %593 : vector<1x32x128xbf16> to vector<32x128xbf16>
    %595 = arith.truncf %590 : vector<8x32xf32> to vector<8x32xbf16>
    %cst_395 = arith.constant dense<0.000000e+00> : vector<8x128xf32>
    %596 = tpu.matmul %595, %594, %cst_395 {dimension_numbers = #tpu.dot_dimension_numbers<[1], [0], [0], [1], [0, 0, 1, 1], [], []>} : vector<8x32xbf16>, vector<32x128xbf16>, vector<8x128xf32> -> vector<8x128xf32>
    %597 = arith.addf %588, %596 : vector<8x128xf32>
    %598 = arith.negf %597 : vector<8x128xf32>
    %599 = math.exp %598 : vector<8x128xf32>
    %cst_396 = arith.constant 1.000000e+00 : f32
    %600 = vector.broadcast %cst_396 : f32 to vector<8x128xf32>
    %601 = arith.addf %600, %599 : vector<8x128xf32>
    %602 = arith.divf %600, %601 : vector<8x128xf32>
    %603 = vector.extract_strided_slice %602 {offsets = [0, 0], sizes = [8, 32], strides = [1, 1]} : vector<8x128xf32> to vector<8x32xf32>
    %604 = vector.extract_strided_slice %602 {offsets = [0, 32], sizes = [8, 32], strides = [1, 1]} : vector<8x128xf32> to vector<8x32xf32>
    %605 = vector.extract_strided_slice %602 {offsets = [0, 96], sizes = [8, 32], strides = [1, 1]} : vector<8x128xf32> to vector<8x32xf32>
    %606 = vector.extract_strided_slice %597 {offsets = [0, 64], sizes = [8, 32], strides = [1, 1]} : vector<8x128xf32> to vector<8x32xf32>
    %607 = math.tanh %606 : vector<8x32xf32>
    %608 = arith.mulf %604, %592 : vector<8x32xf32>
    %609 = arith.mulf %603, %607 : vector<8x32xf32>
    %610 = arith.addf %608, %609 : vector<8x32xf32>
    %611 = math.tanh %610 : vector<8x32xf32>
    %612 = arith.mulf %605, %611 : vector<8x32xf32>
    %c8_i32_397 = arith.constant 8 : i32
    %613 = arith.muli %arg0, %c8_i32_397 : i32
    %c4_i32_398 = arith.constant 4 : i32
    %614 = arith.addi %613, %c4_i32_398 : i32
    %c12_i32_399 = arith.constant 12 : i32
    %615 = arith.cmpi slt, %614, %c12_i32_399 : i32
    %616 = arith.select %615, %612, %590 : vector<8x32xf32>
    %617 = arith.select %615, %610, %592 : vector<8x32xf32>
    %c1_400 = arith.constant 1 : index
    %c0_401 = arith.constant 0 : index
    %c0_402 = arith.constant 0 : index
    %618 = vector.load %arg10[%c1_400, %c0_401, %c0_402] : memref<3x8x32xf32, #tpu.memory_space<vmem>>, vector<1x8x32xf32>
    %619 = vector.shape_cast %618 : vector<1x8x32xf32> to vector<8x32xf32>
    %620 = vector.shape_cast %616 : vector<8x32xf32> to vector<1x8x32xf32>
    tpu.vector_store %arg10[%c1_400, %c0_401, %c0_402], %620 {strides = array<i32>} : memref<3x8x32xf32, #tpu.memory_space<vmem>>, vector<1x8x32xf32>,
    %c1_403 = arith.constant 1 : index
    %c0_404 = arith.constant 0 : index
    %c0_405 = arith.constant 0 : index
    %621 = vector.load %arg11[%c1_403, %c0_404, %c0_405] : memref<3x8x32xf32, #tpu.memory_space<vmem>>, vector<1x8x32xf32>
    %622 = vector.shape_cast %621 : vector<1x8x32xf32> to vector<8x32xf32>
    %623 = vector.shape_cast %617 : vector<8x32xf32> to vector<1x8x32xf32>
    tpu.vector_store %arg11[%c1_403, %c0_404, %c0_405], %623 {strides = array<i32>} : memref<3x8x32xf32, #tpu.memory_space<vmem>>, vector<1x8x32xf32>,
    %624 = arith.truncf %616 : vector<8x32xf32> to vector<8x32xbf16>
    %c1_406 = arith.constant 1 : index
    %c0_407 = arith.constant 0 : index
    %c0_408 = arith.constant 0 : index
    %625 = vector.load %arg2[%c1_406, %c0_407, %c0_408] : memref<2x32x128xbf16, #tpu.memory_space<vmem>>, vector<1x32x128xbf16>
    %626 = vector.shape_cast %625 : vector<1x32x128xbf16> to vector<32x128xbf16>
    %cst_409 = arith.constant dense<0.000000e+00> : vector<8x128xf32>
    %627 = tpu.matmul %624, %626, %cst_409 {dimension_numbers = #tpu.dot_dimension_numbers<[1], [0], [0], [1], [0, 0, 1, 1], [], []>} : vector<8x32xbf16>, vector<32x128xbf16>, vector<8x128xf32> -> vector<8x128xf32>
    %c1_410 = arith.constant 1 : index
    %c0_411 = arith.constant 0 : index
    %c0_412 = arith.constant 0 : index
    %628 = vector.load %arg4[%c1_410, %c0_411, %c0_412] : memref<2x1x128xf32, #tpu.memory_space<vmem>>, vector<1x1x128xf32>
    %629 = vector.shape_cast %628 : vector<1x1x128xf32> to vector<1x128xf32>
    %630 = vector.broadcast %629 : vector<1x128xf32> to vector<8x128xf32>
    %631 = arith.addf %627, %630 : vector<8x128xf32>
    %c1_413 = arith.constant 1 : index
    %c0_414 = arith.constant 0 : index
    %c0_415 = arith.constant 0 : index
    %632 = vector.load %arg12[%c1_413, %c0_414, %c0_415] : memref<2x8x128xf32, #tpu.memory_space<vmem>>, vector<1x8x128xf32>
    %633 = vector.shape_cast %632 : vector<1x8x128xf32> to vector<8x128xf32>
    %634 = vector.shape_cast %631 : vector<8x128xf32> to vector<1x8x128xf32>
    tpu.vector_store %arg12[%c1_413, %c0_414, %c0_415], %634 {strides = array<i32>} : memref<2x8x128xf32, #tpu.memory_space<vmem>>, vector<1x8x128xf32>,
    %c5 = arith.constant 5 : index
    %c0_416 = arith.constant 0 : index
    %c0_417 = arith.constant 0 : index
    %635 = vector.load %arg1[%c5, %c0_416, %c0_417] : memref<8x8x128xf32, #tpu.memory_space<vmem>>, vector<1x8x128xf32>
    %636 = vector.shape_cast %635 : vector<1x8x128xf32> to vector<8x128xf32>
    %c0_418 = arith.constant 0 : index
    %c0_419 = arith.constant 0 : index
    %c0_420 = arith.constant 0 : index
    %637 = vector.load %arg10[%c0_418, %c0_419, %c0_420] : memref<3x8x32xf32, #tpu.memory_space<vmem>>, vector<1x8x32xf32>
    %638 = vector.shape_cast %637 : vector<1x8x32xf32> to vector<8x32xf32>
    %c0_421 = arith.constant 0 : index
    %c0_422 = arith.constant 0 : index
    %c0_423 = arith.constant 0 : index
    %639 = vector.load %arg11[%c0_421, %c0_422, %c0_423] : memref<3x8x32xf32, #tpu.memory_space<vmem>>, vector<1x8x32xf32>
    %640 = vector.shape_cast %639 : vector<1x8x32xf32> to vector<8x32xf32>
    %c0_424 = arith.constant 0 : index
    %c0_425 = arith.constant 0 : index
    %c0_426 = arith.constant 0 : index
    %641 = vector.load %arg3[%c0_424, %c0_425, %c0_426] : memref<3x32x128xbf16, #tpu.memory_space<vmem>>, vector<1x32x128xbf16>
    %642 = vector.shape_cast %641 : vector<1x32x128xbf16> to vector<32x128xbf16>
    %643 = arith.truncf %638 : vector<8x32xf32> to vector<8x32xbf16>
    %cst_427 = arith.constant dense<0.000000e+00> : vector<8x128xf32>
    %644 = tpu.matmul %643, %642, %cst_427 {dimension_numbers = #tpu.dot_dimension_numbers<[1], [0], [0], [1], [0, 0, 1, 1], [], []>} : vector<8x32xbf16>, vector<32x128xbf16>, vector<8x128xf32> -> vector<8x128xf32>
    %645 = arith.addf %636, %644 : vector<8x128xf32>
    %646 = arith.negf %645 : vector<8x128xf32>
    %647 = math.exp %646 : vector<8x128xf32>
    %cst_428 = arith.constant 1.000000e+00 : f32
    %648 = vector.broadcast %cst_428 : f32 to vector<8x128xf32>
    %649 = arith.addf %648, %647 : vector<8x128xf32>
    %650 = arith.divf %648, %649 : vector<8x128xf32>
    %651 = vector.extract_strided_slice %650 {offsets = [0, 0], sizes = [8, 32], strides = [1, 1]} : vector<8x128xf32> to vector<8x32xf32>
    %652 = vector.extract_strided_slice %650 {offsets = [0, 32], sizes = [8, 32], strides = [1, 1]} : vector<8x128xf32> to vector<8x32xf32>
    %653 = vector.extract_strided_slice %650 {offsets = [0, 96], sizes = [8, 32], strides = [1, 1]} : vector<8x128xf32> to vector<8x32xf32>
    %654 = vector.extract_strided_slice %645 {offsets = [0, 64], sizes = [8, 32], strides = [1, 1]} : vector<8x128xf32> to vector<8x32xf32>
    %655 = math.tanh %654 : vector<8x32xf32>
    %656 = arith.mulf %652, %640 : vector<8x32xf32>
    %657 = arith.mulf %651, %655 : vector<8x32xf32>
    %658 = arith.addf %656, %657 : vector<8x32xf32>
    %659 = math.tanh %658 : vector<8x32xf32>
    %660 = arith.mulf %653, %659 : vector<8x32xf32>
    %c8_i32_429 = arith.constant 8 : i32
    %661 = arith.muli %arg0, %c8_i32_429 : i32
    %c5_i32 = arith.constant 5 : i32
    %662 = arith.addi %661, %c5_i32 : i32
    %c12_i32_430 = arith.constant 12 : i32
    %663 = arith.cmpi slt, %662, %c12_i32_430 : i32
    %664 = arith.select %663, %660, %638 : vector<8x32xf32>
    %665 = arith.select %663, %658, %640 : vector<8x32xf32>
    %c0_431 = arith.constant 0 : index
    %c0_432 = arith.constant 0 : index
    %c0_433 = arith.constant 0 : index
    %666 = vector.load %arg10[%c0_431, %c0_432, %c0_433] : memref<3x8x32xf32, #tpu.memory_space<vmem>>, vector<1x8x32xf32>
    %667 = vector.shape_cast %666 : vector<1x8x32xf32> to vector<8x32xf32>
    %668 = vector.shape_cast %664 : vector<8x32xf32> to vector<1x8x32xf32>
    tpu.vector_store %arg10[%c0_431, %c0_432, %c0_433], %668 {strides = array<i32>} : memref<3x8x32xf32, #tpu.memory_space<vmem>>, vector<1x8x32xf32>,
    %c0_434 = arith.constant 0 : index
    %c0_435 = arith.constant 0 : index
    %c0_436 = arith.constant 0 : index
    %669 = vector.load %arg11[%c0_434, %c0_435, %c0_436] : memref<3x8x32xf32, #tpu.memory_space<vmem>>, vector<1x8x32xf32>
    %670 = vector.shape_cast %669 : vector<1x8x32xf32> to vector<8x32xf32>
    %671 = vector.shape_cast %665 : vector<8x32xf32> to vector<1x8x32xf32>
    tpu.vector_store %arg11[%c0_434, %c0_435, %c0_436], %671 {strides = array<i32>} : memref<3x8x32xf32, #tpu.memory_space<vmem>>, vector<1x8x32xf32>,
    %672 = arith.truncf %664 : vector<8x32xf32> to vector<8x32xbf16>
    %c0_437 = arith.constant 0 : index
    %c0_438 = arith.constant 0 : index
    %c0_439 = arith.constant 0 : index
    %673 = vector.load %arg2[%c0_437, %c0_438, %c0_439] : memref<2x32x128xbf16, #tpu.memory_space<vmem>>, vector<1x32x128xbf16>
    %674 = vector.shape_cast %673 : vector<1x32x128xbf16> to vector<32x128xbf16>
    %cst_440 = arith.constant dense<0.000000e+00> : vector<8x128xf32>
    %675 = tpu.matmul %672, %674, %cst_440 {dimension_numbers = #tpu.dot_dimension_numbers<[1], [0], [0], [1], [0, 0, 1, 1], [], []>} : vector<8x32xbf16>, vector<32x128xbf16>, vector<8x128xf32> -> vector<8x128xf32>
    %c0_441 = arith.constant 0 : index
    %c0_442 = arith.constant 0 : index
    %c0_443 = arith.constant 0 : index
    %676 = vector.load %arg4[%c0_441, %c0_442, %c0_443] : memref<2x1x128xf32, #tpu.memory_space<vmem>>, vector<1x1x128xf32>
    %677 = vector.shape_cast %676 : vector<1x1x128xf32> to vector<1x128xf32>
    %678 = vector.broadcast %677 : vector<1x128xf32> to vector<8x128xf32>
    %679 = arith.addf %675, %678 : vector<8x128xf32>
    %c0_444 = arith.constant 0 : index
    %c0_445 = arith.constant 0 : index
    %c0_446 = arith.constant 0 : index
    %680 = vector.load %arg12[%c0_444, %c0_445, %c0_446] : memref<2x8x128xf32, #tpu.memory_space<vmem>>, vector<1x8x128xf32>
    %681 = vector.shape_cast %680 : vector<1x8x128xf32> to vector<8x128xf32>
    %682 = vector.shape_cast %679 : vector<8x128xf32> to vector<1x8x128xf32>
    tpu.vector_store %arg12[%c0_444, %c0_445, %c0_446], %682 {strides = array<i32>} : memref<2x8x128xf32, #tpu.memory_space<vmem>>, vector<1x8x128xf32>,
    %c1_447 = arith.constant 1 : index
    %c0_448 = arith.constant 0 : index
    %c0_449 = arith.constant 0 : index
    %683 = vector.load %arg12[%c1_447, %c0_448, %c0_449] : memref<2x8x128xf32, #tpu.memory_space<vmem>>, vector<1x8x128xf32>
    %684 = vector.shape_cast %683 : vector<1x8x128xf32> to vector<8x128xf32>
    %c2_450 = arith.constant 2 : index
    %c0_451 = arith.constant 0 : index
    %c0_452 = arith.constant 0 : index
    %685 = vector.load %arg10[%c2_450, %c0_451, %c0_452] : memref<3x8x32xf32, #tpu.memory_space<vmem>>, vector<1x8x32xf32>
    %686 = vector.shape_cast %685 : vector<1x8x32xf32> to vector<8x32xf32>
    %c2_453 = arith.constant 2 : index
    %c0_454 = arith.constant 0 : index
    %c0_455 = arith.constant 0 : index
    %687 = vector.load %arg11[%c2_453, %c0_454, %c0_455] : memref<3x8x32xf32, #tpu.memory_space<vmem>>, vector<1x8x32xf32>
    %688 = vector.shape_cast %687 : vector<1x8x32xf32> to vector<8x32xf32>
    %c2_456 = arith.constant 2 : index
    %c0_457 = arith.constant 0 : index
    %c0_458 = arith.constant 0 : index
    %689 = vector.load %arg3[%c2_456, %c0_457, %c0_458] : memref<3x32x128xbf16, #tpu.memory_space<vmem>>, vector<1x32x128xbf16>
    %690 = vector.shape_cast %689 : vector<1x32x128xbf16> to vector<32x128xbf16>
    %691 = arith.truncf %686 : vector<8x32xf32> to vector<8x32xbf16>
    %cst_459 = arith.constant dense<0.000000e+00> : vector<8x128xf32>
    %692 = tpu.matmul %691, %690, %cst_459 {dimension_numbers = #tpu.dot_dimension_numbers<[1], [0], [0], [1], [0, 0, 1, 1], [], []>} : vector<8x32xbf16>, vector<32x128xbf16>, vector<8x128xf32> -> vector<8x128xf32>
    %693 = arith.addf %684, %692 : vector<8x128xf32>
    %694 = arith.negf %693 : vector<8x128xf32>
    %695 = math.exp %694 : vector<8x128xf32>
    %cst_460 = arith.constant 1.000000e+00 : f32
    %696 = vector.broadcast %cst_460 : f32 to vector<8x128xf32>
    %697 = arith.addf %696, %695 : vector<8x128xf32>
    %698 = arith.divf %696, %697 : vector<8x128xf32>
    %699 = vector.extract_strided_slice %698 {offsets = [0, 0], sizes = [8, 32], strides = [1, 1]} : vector<8x128xf32> to vector<8x32xf32>
    %700 = vector.extract_strided_slice %698 {offsets = [0, 32], sizes = [8, 32], strides = [1, 1]} : vector<8x128xf32> to vector<8x32xf32>
    %701 = vector.extract_strided_slice %698 {offsets = [0, 96], sizes = [8, 32], strides = [1, 1]} : vector<8x128xf32> to vector<8x32xf32>
    %702 = vector.extract_strided_slice %693 {offsets = [0, 64], sizes = [8, 32], strides = [1, 1]} : vector<8x128xf32> to vector<8x32xf32>
    %703 = math.tanh %702 : vector<8x32xf32>
    %704 = arith.mulf %700, %688 : vector<8x32xf32>
    %705 = arith.mulf %699, %703 : vector<8x32xf32>
    %706 = arith.addf %704, %705 : vector<8x32xf32>
    %707 = math.tanh %706 : vector<8x32xf32>
    %708 = arith.mulf %701, %707 : vector<8x32xf32>
    %c8_i32_461 = arith.constant 8 : i32
    %709 = arith.muli %arg0, %c8_i32_461 : i32
    %c4_i32_462 = arith.constant 4 : i32
    %710 = arith.addi %709, %c4_i32_462 : i32
    %c12_i32_463 = arith.constant 12 : i32
    %711 = arith.cmpi slt, %710, %c12_i32_463 : i32
    %712 = arith.select %711, %708, %686 : vector<8x32xf32>
    %713 = arith.select %711, %706, %688 : vector<8x32xf32>
    %c2_464 = arith.constant 2 : index
    %c0_465 = arith.constant 0 : index
    %c0_466 = arith.constant 0 : index
    %714 = vector.load %arg10[%c2_464, %c0_465, %c0_466] : memref<3x8x32xf32, #tpu.memory_space<vmem>>, vector<1x8x32xf32>
    %715 = vector.shape_cast %714 : vector<1x8x32xf32> to vector<8x32xf32>
    %716 = vector.shape_cast %712 : vector<8x32xf32> to vector<1x8x32xf32>
    tpu.vector_store %arg10[%c2_464, %c0_465, %c0_466], %716 {strides = array<i32>} : memref<3x8x32xf32, #tpu.memory_space<vmem>>, vector<1x8x32xf32>,
    %c2_467 = arith.constant 2 : index
    %c0_468 = arith.constant 0 : index
    %c0_469 = arith.constant 0 : index
    %717 = vector.load %arg11[%c2_467, %c0_468, %c0_469] : memref<3x8x32xf32, #tpu.memory_space<vmem>>, vector<1x8x32xf32>
    %718 = vector.shape_cast %717 : vector<1x8x32xf32> to vector<8x32xf32>
    %719 = vector.shape_cast %713 : vector<8x32xf32> to vector<1x8x32xf32>
    tpu.vector_store %arg11[%c2_467, %c0_468, %c0_469], %719 {strides = array<i32>} : memref<3x8x32xf32, #tpu.memory_space<vmem>>, vector<1x8x32xf32>,
    %c32 = arith.constant 32 : index
    %c0_470 = arith.constant 0 : index
    %720 = vector.load %arg7[%c32, %c0_470] : memref<64x32xf32, #tpu.memory_space<vmem>>, vector<8x32xf32>
    tpu.vector_store %arg7[%c32, %c0_470], %712 {strides = array<i32>} : memref<64x32xf32, #tpu.memory_space<vmem>>, vector<8x32xf32>,
    %c0_471 = arith.constant 0 : index
    %c0_472 = arith.constant 0 : index
    %c0_473 = arith.constant 0 : index
    %721 = vector.load %arg12[%c0_471, %c0_472, %c0_473] : memref<2x8x128xf32, #tpu.memory_space<vmem>>, vector<1x8x128xf32>
    %722 = vector.shape_cast %721 : vector<1x8x128xf32> to vector<8x128xf32>
    %c1_474 = arith.constant 1 : index
    %c0_475 = arith.constant 0 : index
    %c0_476 = arith.constant 0 : index
    %723 = vector.load %arg10[%c1_474, %c0_475, %c0_476] : memref<3x8x32xf32, #tpu.memory_space<vmem>>, vector<1x8x32xf32>
    %724 = vector.shape_cast %723 : vector<1x8x32xf32> to vector<8x32xf32>
    %c1_477 = arith.constant 1 : index
    %c0_478 = arith.constant 0 : index
    %c0_479 = arith.constant 0 : index
    %725 = vector.load %arg11[%c1_477, %c0_478, %c0_479] : memref<3x8x32xf32, #tpu.memory_space<vmem>>, vector<1x8x32xf32>
    %726 = vector.shape_cast %725 : vector<1x8x32xf32> to vector<8x32xf32>
    %c1_480 = arith.constant 1 : index
    %c0_481 = arith.constant 0 : index
    %c0_482 = arith.constant 0 : index
    %727 = vector.load %arg3[%c1_480, %c0_481, %c0_482] : memref<3x32x128xbf16, #tpu.memory_space<vmem>>, vector<1x32x128xbf16>
    %728 = vector.shape_cast %727 : vector<1x32x128xbf16> to vector<32x128xbf16>
    %729 = arith.truncf %724 : vector<8x32xf32> to vector<8x32xbf16>
    %cst_483 = arith.constant dense<0.000000e+00> : vector<8x128xf32>
    %730 = tpu.matmul %729, %728, %cst_483 {dimension_numbers = #tpu.dot_dimension_numbers<[1], [0], [0], [1], [0, 0, 1, 1], [], []>} : vector<8x32xbf16>, vector<32x128xbf16>, vector<8x128xf32> -> vector<8x128xf32>
    %731 = arith.addf %722, %730 : vector<8x128xf32>
    %732 = arith.negf %731 : vector<8x128xf32>
    %733 = math.exp %732 : vector<8x128xf32>
    %cst_484 = arith.constant 1.000000e+00 : f32
    %734 = vector.broadcast %cst_484 : f32 to vector<8x128xf32>
    %735 = arith.addf %734, %733 : vector<8x128xf32>
    %736 = arith.divf %734, %735 : vector<8x128xf32>
    %737 = vector.extract_strided_slice %736 {offsets = [0, 0], sizes = [8, 32], strides = [1, 1]} : vector<8x128xf32> to vector<8x32xf32>
    %738 = vector.extract_strided_slice %736 {offsets = [0, 32], sizes = [8, 32], strides = [1, 1]} : vector<8x128xf32> to vector<8x32xf32>
    %739 = vector.extract_strided_slice %736 {offsets = [0, 96], sizes = [8, 32], strides = [1, 1]} : vector<8x128xf32> to vector<8x32xf32>
    %740 = vector.extract_strided_slice %731 {offsets = [0, 64], sizes = [8, 32], strides = [1, 1]} : vector<8x128xf32> to vector<8x32xf32>
    %741 = math.tanh %740 : vector<8x32xf32>
    %742 = arith.mulf %738, %726 : vector<8x32xf32>
    %743 = arith.mulf %737, %741 : vector<8x32xf32>
    %744 = arith.addf %742, %743 : vector<8x32xf32>
    %745 = math.tanh %744 : vector<8x32xf32>
    %746 = arith.mulf %739, %745 : vector<8x32xf32>
    %c8_i32_485 = arith.constant 8 : i32
    %747 = arith.muli %arg0, %c8_i32_485 : i32
    %c5_i32_486 = arith.constant 5 : i32
    %748 = arith.addi %747, %c5_i32_486 : i32
    %c12_i32_487 = arith.constant 12 : i32
    %749 = arith.cmpi slt, %748, %c12_i32_487 : i32
    %750 = arith.select %749, %746, %724 : vector<8x32xf32>
    %751 = arith.select %749, %744, %726 : vector<8x32xf32>
    %c1_488 = arith.constant 1 : index
    %c0_489 = arith.constant 0 : index
    %c0_490 = arith.constant 0 : index
    %752 = vector.load %arg10[%c1_488, %c0_489, %c0_490] : memref<3x8x32xf32, #tpu.memory_space<vmem>>, vector<1x8x32xf32>
    %753 = vector.shape_cast %752 : vector<1x8x32xf32> to vector<8x32xf32>
    %754 = vector.shape_cast %750 : vector<8x32xf32> to vector<1x8x32xf32>
    tpu.vector_store %arg10[%c1_488, %c0_489, %c0_490], %754 {strides = array<i32>} : memref<3x8x32xf32, #tpu.memory_space<vmem>>, vector<1x8x32xf32>,
    %c1_491 = arith.constant 1 : index
    %c0_492 = arith.constant 0 : index
    %c0_493 = arith.constant 0 : index
    %755 = vector.load %arg11[%c1_491, %c0_492, %c0_493] : memref<3x8x32xf32, #tpu.memory_space<vmem>>, vector<1x8x32xf32>
    %756 = vector.shape_cast %755 : vector<1x8x32xf32> to vector<8x32xf32>
    %757 = vector.shape_cast %751 : vector<8x32xf32> to vector<1x8x32xf32>
    tpu.vector_store %arg11[%c1_491, %c0_492, %c0_493], %757 {strides = array<i32>} : memref<3x8x32xf32, #tpu.memory_space<vmem>>, vector<1x8x32xf32>,
    %758 = arith.truncf %750 : vector<8x32xf32> to vector<8x32xbf16>
    %c1_494 = arith.constant 1 : index
    %c0_495 = arith.constant 0 : index
    %c0_496 = arith.constant 0 : index
    %759 = vector.load %arg2[%c1_494, %c0_495, %c0_496] : memref<2x32x128xbf16, #tpu.memory_space<vmem>>, vector<1x32x128xbf16>
    %760 = vector.shape_cast %759 : vector<1x32x128xbf16> to vector<32x128xbf16>
    %cst_497 = arith.constant dense<0.000000e+00> : vector<8x128xf32>
    %761 = tpu.matmul %758, %760, %cst_497 {dimension_numbers = #tpu.dot_dimension_numbers<[1], [0], [0], [1], [0, 0, 1, 1], [], []>} : vector<8x32xbf16>, vector<32x128xbf16>, vector<8x128xf32> -> vector<8x128xf32>
    %c1_498 = arith.constant 1 : index
    %c0_499 = arith.constant 0 : index
    %c0_500 = arith.constant 0 : index
    %762 = vector.load %arg4[%c1_498, %c0_499, %c0_500] : memref<2x1x128xf32, #tpu.memory_space<vmem>>, vector<1x1x128xf32>
    %763 = vector.shape_cast %762 : vector<1x1x128xf32> to vector<1x128xf32>
    %764 = vector.broadcast %763 : vector<1x128xf32> to vector<8x128xf32>
    %765 = arith.addf %761, %764 : vector<8x128xf32>
    %c1_501 = arith.constant 1 : index
    %c0_502 = arith.constant 0 : index
    %c0_503 = arith.constant 0 : index
    %766 = vector.load %arg12[%c1_501, %c0_502, %c0_503] : memref<2x8x128xf32, #tpu.memory_space<vmem>>, vector<1x8x128xf32>
    %767 = vector.shape_cast %766 : vector<1x8x128xf32> to vector<8x128xf32>
    %768 = vector.shape_cast %765 : vector<8x128xf32> to vector<1x8x128xf32>
    tpu.vector_store %arg12[%c1_501, %c0_502, %c0_503], %768 {strides = array<i32>} : memref<2x8x128xf32, #tpu.memory_space<vmem>>, vector<1x8x128xf32>,
    %c6 = arith.constant 6 : index
    %c0_504 = arith.constant 0 : index
    %c0_505 = arith.constant 0 : index
    %769 = vector.load %arg1[%c6, %c0_504, %c0_505] : memref<8x8x128xf32, #tpu.memory_space<vmem>>, vector<1x8x128xf32>
    %770 = vector.shape_cast %769 : vector<1x8x128xf32> to vector<8x128xf32>
    %c0_506 = arith.constant 0 : index
    %c0_507 = arith.constant 0 : index
    %c0_508 = arith.constant 0 : index
    %771 = vector.load %arg10[%c0_506, %c0_507, %c0_508] : memref<3x8x32xf32, #tpu.memory_space<vmem>>, vector<1x8x32xf32>
    %772 = vector.shape_cast %771 : vector<1x8x32xf32> to vector<8x32xf32>
    %c0_509 = arith.constant 0 : index
    %c0_510 = arith.constant 0 : index
    %c0_511 = arith.constant 0 : index
    %773 = vector.load %arg11[%c0_509, %c0_510, %c0_511] : memref<3x8x32xf32, #tpu.memory_space<vmem>>, vector<1x8x32xf32>
    %774 = vector.shape_cast %773 : vector<1x8x32xf32> to vector<8x32xf32>
    %c0_512 = arith.constant 0 : index
    %c0_513 = arith.constant 0 : index
    %c0_514 = arith.constant 0 : index
    %775 = vector.load %arg3[%c0_512, %c0_513, %c0_514] : memref<3x32x128xbf16, #tpu.memory_space<vmem>>, vector<1x32x128xbf16>
    %776 = vector.shape_cast %775 : vector<1x32x128xbf16> to vector<32x128xbf16>
    %777 = arith.truncf %772 : vector<8x32xf32> to vector<8x32xbf16>
    %cst_515 = arith.constant dense<0.000000e+00> : vector<8x128xf32>
    %778 = tpu.matmul %777, %776, %cst_515 {dimension_numbers = #tpu.dot_dimension_numbers<[1], [0], [0], [1], [0, 0, 1, 1], [], []>} : vector<8x32xbf16>, vector<32x128xbf16>, vector<8x128xf32> -> vector<8x128xf32>
    %779 = arith.addf %770, %778 : vector<8x128xf32>
    %780 = arith.negf %779 : vector<8x128xf32>
    %781 = math.exp %780 : vector<8x128xf32>
    %cst_516 = arith.constant 1.000000e+00 : f32
    %782 = vector.broadcast %cst_516 : f32 to vector<8x128xf32>
    %783 = arith.addf %782, %781 : vector<8x128xf32>
    %784 = arith.divf %782, %783 : vector<8x128xf32>
    %785 = vector.extract_strided_slice %784 {offsets = [0, 0], sizes = [8, 32], strides = [1, 1]} : vector<8x128xf32> to vector<8x32xf32>
    %786 = vector.extract_strided_slice %784 {offsets = [0, 32], sizes = [8, 32], strides = [1, 1]} : vector<8x128xf32> to vector<8x32xf32>
    %787 = vector.extract_strided_slice %784 {offsets = [0, 96], sizes = [8, 32], strides = [1, 1]} : vector<8x128xf32> to vector<8x32xf32>
    %788 = vector.extract_strided_slice %779 {offsets = [0, 64], sizes = [8, 32], strides = [1, 1]} : vector<8x128xf32> to vector<8x32xf32>
    %789 = math.tanh %788 : vector<8x32xf32>
    %790 = arith.mulf %786, %774 : vector<8x32xf32>
    %791 = arith.mulf %785, %789 : vector<8x32xf32>
    %792 = arith.addf %790, %791 : vector<8x32xf32>
    %793 = math.tanh %792 : vector<8x32xf32>
    %794 = arith.mulf %787, %793 : vector<8x32xf32>
    %c8_i32_517 = arith.constant 8 : i32
    %795 = arith.muli %arg0, %c8_i32_517 : i32
    %c6_i32 = arith.constant 6 : i32
    %796 = arith.addi %795, %c6_i32 : i32
    %c12_i32_518 = arith.constant 12 : i32
    %797 = arith.cmpi slt, %796, %c12_i32_518 : i32
    %798 = arith.select %797, %794, %772 : vector<8x32xf32>
    %799 = arith.select %797, %792, %774 : vector<8x32xf32>
    %c0_519 = arith.constant 0 : index
    %c0_520 = arith.constant 0 : index
    %c0_521 = arith.constant 0 : index
    %800 = vector.load %arg10[%c0_519, %c0_520, %c0_521] : memref<3x8x32xf32, #tpu.memory_space<vmem>>, vector<1x8x32xf32>
    %801 = vector.shape_cast %800 : vector<1x8x32xf32> to vector<8x32xf32>
    %802 = vector.shape_cast %798 : vector<8x32xf32> to vector<1x8x32xf32>
    tpu.vector_store %arg10[%c0_519, %c0_520, %c0_521], %802 {strides = array<i32>} : memref<3x8x32xf32, #tpu.memory_space<vmem>>, vector<1x8x32xf32>,
    %c0_522 = arith.constant 0 : index
    %c0_523 = arith.constant 0 : index
    %c0_524 = arith.constant 0 : index
    %803 = vector.load %arg11[%c0_522, %c0_523, %c0_524] : memref<3x8x32xf32, #tpu.memory_space<vmem>>, vector<1x8x32xf32>
    %804 = vector.shape_cast %803 : vector<1x8x32xf32> to vector<8x32xf32>
    %805 = vector.shape_cast %799 : vector<8x32xf32> to vector<1x8x32xf32>
    tpu.vector_store %arg11[%c0_522, %c0_523, %c0_524], %805 {strides = array<i32>} : memref<3x8x32xf32, #tpu.memory_space<vmem>>, vector<1x8x32xf32>,
    %806 = arith.truncf %798 : vector<8x32xf32> to vector<8x32xbf16>
    %c0_525 = arith.constant 0 : index
    %c0_526 = arith.constant 0 : index
    %c0_527 = arith.constant 0 : index
    %807 = vector.load %arg2[%c0_525, %c0_526, %c0_527] : memref<2x32x128xbf16, #tpu.memory_space<vmem>>, vector<1x32x128xbf16>
    %808 = vector.shape_cast %807 : vector<1x32x128xbf16> to vector<32x128xbf16>
    %cst_528 = arith.constant dense<0.000000e+00> : vector<8x128xf32>
    %809 = tpu.matmul %806, %808, %cst_528 {dimension_numbers = #tpu.dot_dimension_numbers<[1], [0], [0], [1], [0, 0, 1, 1], [], []>} : vector<8x32xbf16>, vector<32x128xbf16>, vector<8x128xf32> -> vector<8x128xf32>
    %c0_529 = arith.constant 0 : index
    %c0_530 = arith.constant 0 : index
    %c0_531 = arith.constant 0 : index
    %810 = vector.load %arg4[%c0_529, %c0_530, %c0_531] : memref<2x1x128xf32, #tpu.memory_space<vmem>>, vector<1x1x128xf32>
    %811 = vector.shape_cast %810 : vector<1x1x128xf32> to vector<1x128xf32>
    %812 = vector.broadcast %811 : vector<1x128xf32> to vector<8x128xf32>
    %813 = arith.addf %809, %812 : vector<8x128xf32>
    %c0_532 = arith.constant 0 : index
    %c0_533 = arith.constant 0 : index
    %c0_534 = arith.constant 0 : index
    %814 = vector.load %arg12[%c0_532, %c0_533, %c0_534] : memref<2x8x128xf32, #tpu.memory_space<vmem>>, vector<1x8x128xf32>
    %815 = vector.shape_cast %814 : vector<1x8x128xf32> to vector<8x128xf32>
    %816 = vector.shape_cast %813 : vector<8x128xf32> to vector<1x8x128xf32>
    tpu.vector_store %arg12[%c0_532, %c0_533, %c0_534], %816 {strides = array<i32>} : memref<2x8x128xf32, #tpu.memory_space<vmem>>, vector<1x8x128xf32>,
    %c1_535 = arith.constant 1 : index
    %c0_536 = arith.constant 0 : index
    %c0_537 = arith.constant 0 : index
    %817 = vector.load %arg12[%c1_535, %c0_536, %c0_537] : memref<2x8x128xf32, #tpu.memory_space<vmem>>, vector<1x8x128xf32>
    %818 = vector.shape_cast %817 : vector<1x8x128xf32> to vector<8x128xf32>
    %c2_538 = arith.constant 2 : index
    %c0_539 = arith.constant 0 : index
    %c0_540 = arith.constant 0 : index
    %819 = vector.load %arg10[%c2_538, %c0_539, %c0_540] : memref<3x8x32xf32, #tpu.memory_space<vmem>>, vector<1x8x32xf32>
    %820 = vector.shape_cast %819 : vector<1x8x32xf32> to vector<8x32xf32>
    %c2_541 = arith.constant 2 : index
    %c0_542 = arith.constant 0 : index
    %c0_543 = arith.constant 0 : index
    %821 = vector.load %arg11[%c2_541, %c0_542, %c0_543] : memref<3x8x32xf32, #tpu.memory_space<vmem>>, vector<1x8x32xf32>
    %822 = vector.shape_cast %821 : vector<1x8x32xf32> to vector<8x32xf32>
    %c2_544 = arith.constant 2 : index
    %c0_545 = arith.constant 0 : index
    %c0_546 = arith.constant 0 : index
    %823 = vector.load %arg3[%c2_544, %c0_545, %c0_546] : memref<3x32x128xbf16, #tpu.memory_space<vmem>>, vector<1x32x128xbf16>
    %824 = vector.shape_cast %823 : vector<1x32x128xbf16> to vector<32x128xbf16>
    %825 = arith.truncf %820 : vector<8x32xf32> to vector<8x32xbf16>
    %cst_547 = arith.constant dense<0.000000e+00> : vector<8x128xf32>
    %826 = tpu.matmul %825, %824, %cst_547 {dimension_numbers = #tpu.dot_dimension_numbers<[1], [0], [0], [1], [0, 0, 1, 1], [], []>} : vector<8x32xbf16>, vector<32x128xbf16>, vector<8x128xf32> -> vector<8x128xf32>
    %827 = arith.addf %818, %826 : vector<8x128xf32>
    %828 = arith.negf %827 : vector<8x128xf32>
    %829 = math.exp %828 : vector<8x128xf32>
    %cst_548 = arith.constant 1.000000e+00 : f32
    %830 = vector.broadcast %cst_548 : f32 to vector<8x128xf32>
    %831 = arith.addf %830, %829 : vector<8x128xf32>
    %832 = arith.divf %830, %831 : vector<8x128xf32>
    %833 = vector.extract_strided_slice %832 {offsets = [0, 0], sizes = [8, 32], strides = [1, 1]} : vector<8x128xf32> to vector<8x32xf32>
    %834 = vector.extract_strided_slice %832 {offsets = [0, 32], sizes = [8, 32], strides = [1, 1]} : vector<8x128xf32> to vector<8x32xf32>
    %835 = vector.extract_strided_slice %832 {offsets = [0, 96], sizes = [8, 32], strides = [1, 1]} : vector<8x128xf32> to vector<8x32xf32>
    %836 = vector.extract_strided_slice %827 {offsets = [0, 64], sizes = [8, 32], strides = [1, 1]} : vector<8x128xf32> to vector<8x32xf32>
    %837 = math.tanh %836 : vector<8x32xf32>
    %838 = arith.mulf %834, %822 : vector<8x32xf32>
    %839 = arith.mulf %833, %837 : vector<8x32xf32>
    %840 = arith.addf %838, %839 : vector<8x32xf32>
    %841 = math.tanh %840 : vector<8x32xf32>
    %842 = arith.mulf %835, %841 : vector<8x32xf32>
    %c8_i32_549 = arith.constant 8 : i32
    %843 = arith.muli %arg0, %c8_i32_549 : i32
    %c5_i32_550 = arith.constant 5 : i32
    %844 = arith.addi %843, %c5_i32_550 : i32
    %c12_i32_551 = arith.constant 12 : i32
    %845 = arith.cmpi slt, %844, %c12_i32_551 : i32
    %846 = arith.select %845, %842, %820 : vector<8x32xf32>
    %847 = arith.select %845, %840, %822 : vector<8x32xf32>
    %c2_552 = arith.constant 2 : index
    %c0_553 = arith.constant 0 : index
    %c0_554 = arith.constant 0 : index
    %848 = vector.load %arg10[%c2_552, %c0_553, %c0_554] : memref<3x8x32xf32, #tpu.memory_space<vmem>>, vector<1x8x32xf32>
    %849 = vector.shape_cast %848 : vector<1x8x32xf32> to vector<8x32xf32>
    %850 = vector.shape_cast %846 : vector<8x32xf32> to vector<1x8x32xf32>
    tpu.vector_store %arg10[%c2_552, %c0_553, %c0_554], %850 {strides = array<i32>} : memref<3x8x32xf32, #tpu.memory_space<vmem>>, vector<1x8x32xf32>,
    %c2_555 = arith.constant 2 : index
    %c0_556 = arith.constant 0 : index
    %c0_557 = arith.constant 0 : index
    %851 = vector.load %arg11[%c2_555, %c0_556, %c0_557] : memref<3x8x32xf32, #tpu.memory_space<vmem>>, vector<1x8x32xf32>
    %852 = vector.shape_cast %851 : vector<1x8x32xf32> to vector<8x32xf32>
    %853 = vector.shape_cast %847 : vector<8x32xf32> to vector<1x8x32xf32>
    tpu.vector_store %arg11[%c2_555, %c0_556, %c0_557], %853 {strides = array<i32>} : memref<3x8x32xf32, #tpu.memory_space<vmem>>, vector<1x8x32xf32>,
    %c40 = arith.constant 40 : index
    %c0_558 = arith.constant 0 : index
    %854 = vector.load %arg7[%c40, %c0_558] : memref<64x32xf32, #tpu.memory_space<vmem>>, vector<8x32xf32>
    tpu.vector_store %arg7[%c40, %c0_558], %846 {strides = array<i32>} : memref<64x32xf32, #tpu.memory_space<vmem>>, vector<8x32xf32>,
    %c0_559 = arith.constant 0 : index
    %c0_560 = arith.constant 0 : index
    %c0_561 = arith.constant 0 : index
    %855 = vector.load %arg12[%c0_559, %c0_560, %c0_561] : memref<2x8x128xf32, #tpu.memory_space<vmem>>, vector<1x8x128xf32>
    %856 = vector.shape_cast %855 : vector<1x8x128xf32> to vector<8x128xf32>
    %c1_562 = arith.constant 1 : index
    %c0_563 = arith.constant 0 : index
    %c0_564 = arith.constant 0 : index
    %857 = vector.load %arg10[%c1_562, %c0_563, %c0_564] : memref<3x8x32xf32, #tpu.memory_space<vmem>>, vector<1x8x32xf32>
    %858 = vector.shape_cast %857 : vector<1x8x32xf32> to vector<8x32xf32>
    %c1_565 = arith.constant 1 : index
    %c0_566 = arith.constant 0 : index
    %c0_567 = arith.constant 0 : index
    %859 = vector.load %arg11[%c1_565, %c0_566, %c0_567] : memref<3x8x32xf32, #tpu.memory_space<vmem>>, vector<1x8x32xf32>
    %860 = vector.shape_cast %859 : vector<1x8x32xf32> to vector<8x32xf32>
    %c1_568 = arith.constant 1 : index
    %c0_569 = arith.constant 0 : index
    %c0_570 = arith.constant 0 : index
    %861 = vector.load %arg3[%c1_568, %c0_569, %c0_570] : memref<3x32x128xbf16, #tpu.memory_space<vmem>>, vector<1x32x128xbf16>
    %862 = vector.shape_cast %861 : vector<1x32x128xbf16> to vector<32x128xbf16>
    %863 = arith.truncf %858 : vector<8x32xf32> to vector<8x32xbf16>
    %cst_571 = arith.constant dense<0.000000e+00> : vector<8x128xf32>
    %864 = tpu.matmul %863, %862, %cst_571 {dimension_numbers = #tpu.dot_dimension_numbers<[1], [0], [0], [1], [0, 0, 1, 1], [], []>} : vector<8x32xbf16>, vector<32x128xbf16>, vector<8x128xf32> -> vector<8x128xf32>
    %865 = arith.addf %856, %864 : vector<8x128xf32>
    %866 = arith.negf %865 : vector<8x128xf32>
    %867 = math.exp %866 : vector<8x128xf32>
    %cst_572 = arith.constant 1.000000e+00 : f32
    %868 = vector.broadcast %cst_572 : f32 to vector<8x128xf32>
    %869 = arith.addf %868, %867 : vector<8x128xf32>
    %870 = arith.divf %868, %869 : vector<8x128xf32>
    %871 = vector.extract_strided_slice %870 {offsets = [0, 0], sizes = [8, 32], strides = [1, 1]} : vector<8x128xf32> to vector<8x32xf32>
    %872 = vector.extract_strided_slice %870 {offsets = [0, 32], sizes = [8, 32], strides = [1, 1]} : vector<8x128xf32> to vector<8x32xf32>
    %873 = vector.extract_strided_slice %870 {offsets = [0, 96], sizes = [8, 32], strides = [1, 1]} : vector<8x128xf32> to vector<8x32xf32>
    %874 = vector.extract_strided_slice %865 {offsets = [0, 64], sizes = [8, 32], strides = [1, 1]} : vector<8x128xf32> to vector<8x32xf32>
    %875 = math.tanh %874 : vector<8x32xf32>
    %876 = arith.mulf %872, %860 : vector<8x32xf32>
    %877 = arith.mulf %871, %875 : vector<8x32xf32>
    %878 = arith.addf %876, %877 : vector<8x32xf32>
    %879 = math.tanh %878 : vector<8x32xf32>
    %880 = arith.mulf %873, %879 : vector<8x32xf32>
    %c8_i32_573 = arith.constant 8 : i32
    %881 = arith.muli %arg0, %c8_i32_573 : i32
    %c6_i32_574 = arith.constant 6 : i32
    %882 = arith.addi %881, %c6_i32_574 : i32
    %c12_i32_575 = arith.constant 12 : i32
    %883 = arith.cmpi slt, %882, %c12_i32_575 : i32
    %884 = arith.select %883, %880, %858 : vector<8x32xf32>
    %885 = arith.select %883, %878, %860 : vector<8x32xf32>
    %c1_576 = arith.constant 1 : index
    %c0_577 = arith.constant 0 : index
    %c0_578 = arith.constant 0 : index
    %886 = vector.load %arg10[%c1_576, %c0_577, %c0_578] : memref<3x8x32xf32, #tpu.memory_space<vmem>>, vector<1x8x32xf32>
    %887 = vector.shape_cast %886 : vector<1x8x32xf32> to vector<8x32xf32>
    %888 = vector.shape_cast %884 : vector<8x32xf32> to vector<1x8x32xf32>
    tpu.vector_store %arg10[%c1_576, %c0_577, %c0_578], %888 {strides = array<i32>} : memref<3x8x32xf32, #tpu.memory_space<vmem>>, vector<1x8x32xf32>,
    %c1_579 = arith.constant 1 : index
    %c0_580 = arith.constant 0 : index
    %c0_581 = arith.constant 0 : index
    %889 = vector.load %arg11[%c1_579, %c0_580, %c0_581] : memref<3x8x32xf32, #tpu.memory_space<vmem>>, vector<1x8x32xf32>
    %890 = vector.shape_cast %889 : vector<1x8x32xf32> to vector<8x32xf32>
    %891 = vector.shape_cast %885 : vector<8x32xf32> to vector<1x8x32xf32>
    tpu.vector_store %arg11[%c1_579, %c0_580, %c0_581], %891 {strides = array<i32>} : memref<3x8x32xf32, #tpu.memory_space<vmem>>, vector<1x8x32xf32>,
    %892 = arith.truncf %884 : vector<8x32xf32> to vector<8x32xbf16>
    %c1_582 = arith.constant 1 : index
    %c0_583 = arith.constant 0 : index
    %c0_584 = arith.constant 0 : index
    %893 = vector.load %arg2[%c1_582, %c0_583, %c0_584] : memref<2x32x128xbf16, #tpu.memory_space<vmem>>, vector<1x32x128xbf16>
    %894 = vector.shape_cast %893 : vector<1x32x128xbf16> to vector<32x128xbf16>
    %cst_585 = arith.constant dense<0.000000e+00> : vector<8x128xf32>
    %895 = tpu.matmul %892, %894, %cst_585 {dimension_numbers = #tpu.dot_dimension_numbers<[1], [0], [0], [1], [0, 0, 1, 1], [], []>} : vector<8x32xbf16>, vector<32x128xbf16>, vector<8x128xf32> -> vector<8x128xf32>
    %c1_586 = arith.constant 1 : index
    %c0_587 = arith.constant 0 : index
    %c0_588 = arith.constant 0 : index
    %896 = vector.load %arg4[%c1_586, %c0_587, %c0_588] : memref<2x1x128xf32, #tpu.memory_space<vmem>>, vector<1x1x128xf32>
    %897 = vector.shape_cast %896 : vector<1x1x128xf32> to vector<1x128xf32>
    %898 = vector.broadcast %897 : vector<1x128xf32> to vector<8x128xf32>
    %899 = arith.addf %895, %898 : vector<8x128xf32>
    %c1_589 = arith.constant 1 : index
    %c0_590 = arith.constant 0 : index
    %c0_591 = arith.constant 0 : index
    %900 = vector.load %arg12[%c1_589, %c0_590, %c0_591] : memref<2x8x128xf32, #tpu.memory_space<vmem>>, vector<1x8x128xf32>
    %901 = vector.shape_cast %900 : vector<1x8x128xf32> to vector<8x128xf32>
    %902 = vector.shape_cast %899 : vector<8x128xf32> to vector<1x8x128xf32>
    tpu.vector_store %arg12[%c1_589, %c0_590, %c0_591], %902 {strides = array<i32>} : memref<2x8x128xf32, #tpu.memory_space<vmem>>, vector<1x8x128xf32>,
    %c7 = arith.constant 7 : index
    %c0_592 = arith.constant 0 : index
    %c0_593 = arith.constant 0 : index
    %903 = vector.load %arg1[%c7, %c0_592, %c0_593] : memref<8x8x128xf32, #tpu.memory_space<vmem>>, vector<1x8x128xf32>
    %904 = vector.shape_cast %903 : vector<1x8x128xf32> to vector<8x128xf32>
    %c0_594 = arith.constant 0 : index
    %c0_595 = arith.constant 0 : index
    %c0_596 = arith.constant 0 : index
    %905 = vector.load %arg10[%c0_594, %c0_595, %c0_596] : memref<3x8x32xf32, #tpu.memory_space<vmem>>, vector<1x8x32xf32>
    %906 = vector.shape_cast %905 : vector<1x8x32xf32> to vector<8x32xf32>
    %c0_597 = arith.constant 0 : index
    %c0_598 = arith.constant 0 : index
    %c0_599 = arith.constant 0 : index
    %907 = vector.load %arg11[%c0_597, %c0_598, %c0_599] : memref<3x8x32xf32, #tpu.memory_space<vmem>>, vector<1x8x32xf32>
    %908 = vector.shape_cast %907 : vector<1x8x32xf32> to vector<8x32xf32>
    %c0_600 = arith.constant 0 : index
    %c0_601 = arith.constant 0 : index
    %c0_602 = arith.constant 0 : index
    %909 = vector.load %arg3[%c0_600, %c0_601, %c0_602] : memref<3x32x128xbf16, #tpu.memory_space<vmem>>, vector<1x32x128xbf16>
    %910 = vector.shape_cast %909 : vector<1x32x128xbf16> to vector<32x128xbf16>
    %911 = arith.truncf %906 : vector<8x32xf32> to vector<8x32xbf16>
    %cst_603 = arith.constant dense<0.000000e+00> : vector<8x128xf32>
    %912 = tpu.matmul %911, %910, %cst_603 {dimension_numbers = #tpu.dot_dimension_numbers<[1], [0], [0], [1], [0, 0, 1, 1], [], []>} : vector<8x32xbf16>, vector<32x128xbf16>, vector<8x128xf32> -> vector<8x128xf32>
    %913 = arith.addf %904, %912 : vector<8x128xf32>
    %914 = arith.negf %913 : vector<8x128xf32>
    %915 = math.exp %914 : vector<8x128xf32>
    %cst_604 = arith.constant 1.000000e+00 : f32
    %916 = vector.broadcast %cst_604 : f32 to vector<8x128xf32>
    %917 = arith.addf %916, %915 : vector<8x128xf32>
    %918 = arith.divf %916, %917 : vector<8x128xf32>
    %919 = vector.extract_strided_slice %918 {offsets = [0, 0], sizes = [8, 32], strides = [1, 1]} : vector<8x128xf32> to vector<8x32xf32>
    %920 = vector.extract_strided_slice %918 {offsets = [0, 32], sizes = [8, 32], strides = [1, 1]} : vector<8x128xf32> to vector<8x32xf32>
    %921 = vector.extract_strided_slice %918 {offsets = [0, 96], sizes = [8, 32], strides = [1, 1]} : vector<8x128xf32> to vector<8x32xf32>
    %922 = vector.extract_strided_slice %913 {offsets = [0, 64], sizes = [8, 32], strides = [1, 1]} : vector<8x128xf32> to vector<8x32xf32>
    %923 = math.tanh %922 : vector<8x32xf32>
    %924 = arith.mulf %920, %908 : vector<8x32xf32>
    %925 = arith.mulf %919, %923 : vector<8x32xf32>
    %926 = arith.addf %924, %925 : vector<8x32xf32>
    %927 = math.tanh %926 : vector<8x32xf32>
    %928 = arith.mulf %921, %927 : vector<8x32xf32>
    %c8_i32_605 = arith.constant 8 : i32
    %929 = arith.muli %arg0, %c8_i32_605 : i32
    %c7_i32 = arith.constant 7 : i32
    %930 = arith.addi %929, %c7_i32 : i32
    %c12_i32_606 = arith.constant 12 : i32
    %931 = arith.cmpi slt, %930, %c12_i32_606 : i32
    %932 = arith.select %931, %928, %906 : vector<8x32xf32>
    %933 = arith.select %931, %926, %908 : vector<8x32xf32>
    %c0_607 = arith.constant 0 : index
    %c0_608 = arith.constant 0 : index
    %c0_609 = arith.constant 0 : index
    %934 = vector.load %arg10[%c0_607, %c0_608, %c0_609] : memref<3x8x32xf32, #tpu.memory_space<vmem>>, vector<1x8x32xf32>
    %935 = vector.shape_cast %934 : vector<1x8x32xf32> to vector<8x32xf32>
    %936 = vector.shape_cast %932 : vector<8x32xf32> to vector<1x8x32xf32>
    tpu.vector_store %arg10[%c0_607, %c0_608, %c0_609], %936 {strides = array<i32>} : memref<3x8x32xf32, #tpu.memory_space<vmem>>, vector<1x8x32xf32>,
    %c0_610 = arith.constant 0 : index
    %c0_611 = arith.constant 0 : index
    %c0_612 = arith.constant 0 : index
    %937 = vector.load %arg11[%c0_610, %c0_611, %c0_612] : memref<3x8x32xf32, #tpu.memory_space<vmem>>, vector<1x8x32xf32>
    %938 = vector.shape_cast %937 : vector<1x8x32xf32> to vector<8x32xf32>
    %939 = vector.shape_cast %933 : vector<8x32xf32> to vector<1x8x32xf32>
    tpu.vector_store %arg11[%c0_610, %c0_611, %c0_612], %939 {strides = array<i32>} : memref<3x8x32xf32, #tpu.memory_space<vmem>>, vector<1x8x32xf32>,
    %940 = arith.truncf %932 : vector<8x32xf32> to vector<8x32xbf16>
    %c0_613 = arith.constant 0 : index
    %c0_614 = arith.constant 0 : index
    %c0_615 = arith.constant 0 : index
    %941 = vector.load %arg2[%c0_613, %c0_614, %c0_615] : memref<2x32x128xbf16, #tpu.memory_space<vmem>>, vector<1x32x128xbf16>
    %942 = vector.shape_cast %941 : vector<1x32x128xbf16> to vector<32x128xbf16>
    %cst_616 = arith.constant dense<0.000000e+00> : vector<8x128xf32>
    %943 = tpu.matmul %940, %942, %cst_616 {dimension_numbers = #tpu.dot_dimension_numbers<[1], [0], [0], [1], [0, 0, 1, 1], [], []>} : vector<8x32xbf16>, vector<32x128xbf16>, vector<8x128xf32> -> vector<8x128xf32>
    %c0_617 = arith.constant 0 : index
    %c0_618 = arith.constant 0 : index
    %c0_619 = arith.constant 0 : index
    %944 = vector.load %arg4[%c0_617, %c0_618, %c0_619] : memref<2x1x128xf32, #tpu.memory_space<vmem>>, vector<1x1x128xf32>
    %945 = vector.shape_cast %944 : vector<1x1x128xf32> to vector<1x128xf32>
    %946 = vector.broadcast %945 : vector<1x128xf32> to vector<8x128xf32>
    %947 = arith.addf %943, %946 : vector<8x128xf32>
    %c0_620 = arith.constant 0 : index
    %c0_621 = arith.constant 0 : index
    %c0_622 = arith.constant 0 : index
    %948 = vector.load %arg12[%c0_620, %c0_621, %c0_622] : memref<2x8x128xf32, #tpu.memory_space<vmem>>, vector<1x8x128xf32>
    %949 = vector.shape_cast %948 : vector<1x8x128xf32> to vector<8x128xf32>
    %950 = vector.shape_cast %947 : vector<8x128xf32> to vector<1x8x128xf32>
    tpu.vector_store %arg12[%c0_620, %c0_621, %c0_622], %950 {strides = array<i32>} : memref<2x8x128xf32, #tpu.memory_space<vmem>>, vector<1x8x128xf32>,
    %c1_623 = arith.constant 1 : index
    %c0_624 = arith.constant 0 : index
    %c0_625 = arith.constant 0 : index
    %951 = vector.load %arg12[%c1_623, %c0_624, %c0_625] : memref<2x8x128xf32, #tpu.memory_space<vmem>>, vector<1x8x128xf32>
    %952 = vector.shape_cast %951 : vector<1x8x128xf32> to vector<8x128xf32>
    %c2_626 = arith.constant 2 : index
    %c0_627 = arith.constant 0 : index
    %c0_628 = arith.constant 0 : index
    %953 = vector.load %arg10[%c2_626, %c0_627, %c0_628] : memref<3x8x32xf32, #tpu.memory_space<vmem>>, vector<1x8x32xf32>
    %954 = vector.shape_cast %953 : vector<1x8x32xf32> to vector<8x32xf32>
    %c2_629 = arith.constant 2 : index
    %c0_630 = arith.constant 0 : index
    %c0_631 = arith.constant 0 : index
    %955 = vector.load %arg11[%c2_629, %c0_630, %c0_631] : memref<3x8x32xf32, #tpu.memory_space<vmem>>, vector<1x8x32xf32>
    %956 = vector.shape_cast %955 : vector<1x8x32xf32> to vector<8x32xf32>
    %c2_632 = arith.constant 2 : index
    %c0_633 = arith.constant 0 : index
    %c0_634 = arith.constant 0 : index
    %957 = vector.load %arg3[%c2_632, %c0_633, %c0_634] : memref<3x32x128xbf16, #tpu.memory_space<vmem>>, vector<1x32x128xbf16>
    %958 = vector.shape_cast %957 : vector<1x32x128xbf16> to vector<32x128xbf16>
    %959 = arith.truncf %954 : vector<8x32xf32> to vector<8x32xbf16>
    %cst_635 = arith.constant dense<0.000000e+00> : vector<8x128xf32>
    %960 = tpu.matmul %959, %958, %cst_635 {dimension_numbers = #tpu.dot_dimension_numbers<[1], [0], [0], [1], [0, 0, 1, 1], [], []>} : vector<8x32xbf16>, vector<32x128xbf16>, vector<8x128xf32> -> vector<8x128xf32>
    %961 = arith.addf %952, %960 : vector<8x128xf32>
    %962 = arith.negf %961 : vector<8x128xf32>
    %963 = math.exp %962 : vector<8x128xf32>
    %cst_636 = arith.constant 1.000000e+00 : f32
    %964 = vector.broadcast %cst_636 : f32 to vector<8x128xf32>
    %965 = arith.addf %964, %963 : vector<8x128xf32>
    %966 = arith.divf %964, %965 : vector<8x128xf32>
    %967 = vector.extract_strided_slice %966 {offsets = [0, 0], sizes = [8, 32], strides = [1, 1]} : vector<8x128xf32> to vector<8x32xf32>
    %968 = vector.extract_strided_slice %966 {offsets = [0, 32], sizes = [8, 32], strides = [1, 1]} : vector<8x128xf32> to vector<8x32xf32>
    %969 = vector.extract_strided_slice %966 {offsets = [0, 96], sizes = [8, 32], strides = [1, 1]} : vector<8x128xf32> to vector<8x32xf32>
    %970 = vector.extract_strided_slice %961 {offsets = [0, 64], sizes = [8, 32], strides = [1, 1]} : vector<8x128xf32> to vector<8x32xf32>
    %971 = math.tanh %970 : vector<8x32xf32>
    %972 = arith.mulf %968, %956 : vector<8x32xf32>
    %973 = arith.mulf %967, %971 : vector<8x32xf32>
    %974 = arith.addf %972, %973 : vector<8x32xf32>
    %975 = math.tanh %974 : vector<8x32xf32>
    %976 = arith.mulf %969, %975 : vector<8x32xf32>
    %c8_i32_637 = arith.constant 8 : i32
    %977 = arith.muli %arg0, %c8_i32_637 : i32
    %c6_i32_638 = arith.constant 6 : i32
    %978 = arith.addi %977, %c6_i32_638 : i32
    %c12_i32_639 = arith.constant 12 : i32
    %979 = arith.cmpi slt, %978, %c12_i32_639 : i32
    %980 = arith.select %979, %976, %954 : vector<8x32xf32>
    %981 = arith.select %979, %974, %956 : vector<8x32xf32>
    %c2_640 = arith.constant 2 : index
    %c0_641 = arith.constant 0 : index
    %c0_642 = arith.constant 0 : index
    %982 = vector.load %arg10[%c2_640, %c0_641, %c0_642] : memref<3x8x32xf32, #tpu.memory_space<vmem>>, vector<1x8x32xf32>
    %983 = vector.shape_cast %982 : vector<1x8x32xf32> to vector<8x32xf32>
    %984 = vector.shape_cast %980 : vector<8x32xf32> to vector<1x8x32xf32>
    tpu.vector_store %arg10[%c2_640, %c0_641, %c0_642], %984 {strides = array<i32>} : memref<3x8x32xf32, #tpu.memory_space<vmem>>, vector<1x8x32xf32>,
    %c2_643 = arith.constant 2 : index
    %c0_644 = arith.constant 0 : index
    %c0_645 = arith.constant 0 : index
    %985 = vector.load %arg11[%c2_643, %c0_644, %c0_645] : memref<3x8x32xf32, #tpu.memory_space<vmem>>, vector<1x8x32xf32>
    %986 = vector.shape_cast %985 : vector<1x8x32xf32> to vector<8x32xf32>
    %987 = vector.shape_cast %981 : vector<8x32xf32> to vector<1x8x32xf32>
    tpu.vector_store %arg11[%c2_643, %c0_644, %c0_645], %987 {strides = array<i32>} : memref<3x8x32xf32, #tpu.memory_space<vmem>>, vector<1x8x32xf32>,
    %c48 = arith.constant 48 : index
    %c0_646 = arith.constant 0 : index
    %988 = vector.load %arg7[%c48, %c0_646] : memref<64x32xf32, #tpu.memory_space<vmem>>, vector<8x32xf32>
    tpu.vector_store %arg7[%c48, %c0_646], %980 {strides = array<i32>} : memref<64x32xf32, #tpu.memory_space<vmem>>, vector<8x32xf32>,
    %c0_647 = arith.constant 0 : index
    %c0_648 = arith.constant 0 : index
    %c0_649 = arith.constant 0 : index
    %989 = vector.load %arg12[%c0_647, %c0_648, %c0_649] : memref<2x8x128xf32, #tpu.memory_space<vmem>>, vector<1x8x128xf32>
    %990 = vector.shape_cast %989 : vector<1x8x128xf32> to vector<8x128xf32>
    %c1_650 = arith.constant 1 : index
    %c0_651 = arith.constant 0 : index
    %c0_652 = arith.constant 0 : index
    %991 = vector.load %arg10[%c1_650, %c0_651, %c0_652] : memref<3x8x32xf32, #tpu.memory_space<vmem>>, vector<1x8x32xf32>
    %992 = vector.shape_cast %991 : vector<1x8x32xf32> to vector<8x32xf32>
    %c1_653 = arith.constant 1 : index
    %c0_654 = arith.constant 0 : index
    %c0_655 = arith.constant 0 : index
    %993 = vector.load %arg11[%c1_653, %c0_654, %c0_655] : memref<3x8x32xf32, #tpu.memory_space<vmem>>, vector<1x8x32xf32>
    %994 = vector.shape_cast %993 : vector<1x8x32xf32> to vector<8x32xf32>
    %c1_656 = arith.constant 1 : index
    %c0_657 = arith.constant 0 : index
    %c0_658 = arith.constant 0 : index
    %995 = vector.load %arg3[%c1_656, %c0_657, %c0_658] : memref<3x32x128xbf16, #tpu.memory_space<vmem>>, vector<1x32x128xbf16>
    %996 = vector.shape_cast %995 : vector<1x32x128xbf16> to vector<32x128xbf16>
    %997 = arith.truncf %992 : vector<8x32xf32> to vector<8x32xbf16>
    %cst_659 = arith.constant dense<0.000000e+00> : vector<8x128xf32>
    %998 = tpu.matmul %997, %996, %cst_659 {dimension_numbers = #tpu.dot_dimension_numbers<[1], [0], [0], [1], [0, 0, 1, 1], [], []>} : vector<8x32xbf16>, vector<32x128xbf16>, vector<8x128xf32> -> vector<8x128xf32>
    %999 = arith.addf %990, %998 : vector<8x128xf32>
    %1000 = arith.negf %999 : vector<8x128xf32>
    %1001 = math.exp %1000 : vector<8x128xf32>
    %cst_660 = arith.constant 1.000000e+00 : f32
    %1002 = vector.broadcast %cst_660 : f32 to vector<8x128xf32>
    %1003 = arith.addf %1002, %1001 : vector<8x128xf32>
    %1004 = arith.divf %1002, %1003 : vector<8x128xf32>
    %1005 = vector.extract_strided_slice %1004 {offsets = [0, 0], sizes = [8, 32], strides = [1, 1]} : vector<8x128xf32> to vector<8x32xf32>
    %1006 = vector.extract_strided_slice %1004 {offsets = [0, 32], sizes = [8, 32], strides = [1, 1]} : vector<8x128xf32> to vector<8x32xf32>
    %1007 = vector.extract_strided_slice %1004 {offsets = [0, 96], sizes = [8, 32], strides = [1, 1]} : vector<8x128xf32> to vector<8x32xf32>
    %1008 = vector.extract_strided_slice %999 {offsets = [0, 64], sizes = [8, 32], strides = [1, 1]} : vector<8x128xf32> to vector<8x32xf32>
    %1009 = math.tanh %1008 : vector<8x32xf32>
    %1010 = arith.mulf %1006, %994 : vector<8x32xf32>
    %1011 = arith.mulf %1005, %1009 : vector<8x32xf32>
    %1012 = arith.addf %1010, %1011 : vector<8x32xf32>
    %1013 = math.tanh %1012 : vector<8x32xf32>
    %1014 = arith.mulf %1007, %1013 : vector<8x32xf32>
    %c8_i32_661 = arith.constant 8 : i32
    %1015 = arith.muli %arg0, %c8_i32_661 : i32
    %c7_i32_662 = arith.constant 7 : i32
    %1016 = arith.addi %1015, %c7_i32_662 : i32
    %c12_i32_663 = arith.constant 12 : i32
    %1017 = arith.cmpi slt, %1016, %c12_i32_663 : i32
    %1018 = arith.select %1017, %1014, %992 : vector<8x32xf32>
    %1019 = arith.select %1017, %1012, %994 : vector<8x32xf32>
    %c1_664 = arith.constant 1 : index
    %c0_665 = arith.constant 0 : index
    %c0_666 = arith.constant 0 : index
    %1020 = vector.load %arg10[%c1_664, %c0_665, %c0_666] : memref<3x8x32xf32, #tpu.memory_space<vmem>>, vector<1x8x32xf32>
    %1021 = vector.shape_cast %1020 : vector<1x8x32xf32> to vector<8x32xf32>
    %1022 = vector.shape_cast %1018 : vector<8x32xf32> to vector<1x8x32xf32>
    tpu.vector_store %arg10[%c1_664, %c0_665, %c0_666], %1022 {strides = array<i32>} : memref<3x8x32xf32, #tpu.memory_space<vmem>>, vector<1x8x32xf32>,
    %c1_667 = arith.constant 1 : index
    %c0_668 = arith.constant 0 : index
    %c0_669 = arith.constant 0 : index
    %1023 = vector.load %arg11[%c1_667, %c0_668, %c0_669] : memref<3x8x32xf32, #tpu.memory_space<vmem>>, vector<1x8x32xf32>
    %1024 = vector.shape_cast %1023 : vector<1x8x32xf32> to vector<8x32xf32>
    %1025 = vector.shape_cast %1019 : vector<8x32xf32> to vector<1x8x32xf32>
    tpu.vector_store %arg11[%c1_667, %c0_668, %c0_669], %1025 {strides = array<i32>} : memref<3x8x32xf32, #tpu.memory_space<vmem>>, vector<1x8x32xf32>,
    %1026 = arith.truncf %1018 : vector<8x32xf32> to vector<8x32xbf16>
    %c1_670 = arith.constant 1 : index
    %c0_671 = arith.constant 0 : index
    %c0_672 = arith.constant 0 : index
    %1027 = vector.load %arg2[%c1_670, %c0_671, %c0_672] : memref<2x32x128xbf16, #tpu.memory_space<vmem>>, vector<1x32x128xbf16>
    %1028 = vector.shape_cast %1027 : vector<1x32x128xbf16> to vector<32x128xbf16>
    %cst_673 = arith.constant dense<0.000000e+00> : vector<8x128xf32>
    %1029 = tpu.matmul %1026, %1028, %cst_673 {dimension_numbers = #tpu.dot_dimension_numbers<[1], [0], [0], [1], [0, 0, 1, 1], [], []>} : vector<8x32xbf16>, vector<32x128xbf16>, vector<8x128xf32> -> vector<8x128xf32>
    %c1_674 = arith.constant 1 : index
    %c0_675 = arith.constant 0 : index
    %c0_676 = arith.constant 0 : index
    %1030 = vector.load %arg4[%c1_674, %c0_675, %c0_676] : memref<2x1x128xf32, #tpu.memory_space<vmem>>, vector<1x1x128xf32>
    %1031 = vector.shape_cast %1030 : vector<1x1x128xf32> to vector<1x128xf32>
    %1032 = vector.broadcast %1031 : vector<1x128xf32> to vector<8x128xf32>
    %1033 = arith.addf %1029, %1032 : vector<8x128xf32>
    %c1_677 = arith.constant 1 : index
    %c0_678 = arith.constant 0 : index
    %c0_679 = arith.constant 0 : index
    %1034 = vector.load %arg12[%c1_677, %c0_678, %c0_679] : memref<2x8x128xf32, #tpu.memory_space<vmem>>, vector<1x8x128xf32>
    %1035 = vector.shape_cast %1034 : vector<1x8x128xf32> to vector<8x128xf32>
    %1036 = vector.shape_cast %1033 : vector<8x128xf32> to vector<1x8x128xf32>
    tpu.vector_store %arg12[%c1_677, %c0_678, %c0_679], %1036 {strides = array<i32>} : memref<2x8x128xf32, #tpu.memory_space<vmem>>, vector<1x8x128xf32>,
    %c1_680 = arith.constant 1 : index
    %c0_681 = arith.constant 0 : index
    %c0_682 = arith.constant 0 : index
    %1037 = vector.load %arg12[%c1_680, %c0_681, %c0_682] : memref<2x8x128xf32, #tpu.memory_space<vmem>>, vector<1x8x128xf32>
    %1038 = vector.shape_cast %1037 : vector<1x8x128xf32> to vector<8x128xf32>
    %c2_683 = arith.constant 2 : index
    %c0_684 = arith.constant 0 : index
    %c0_685 = arith.constant 0 : index
    %1039 = vector.load %arg10[%c2_683, %c0_684, %c0_685] : memref<3x8x32xf32, #tpu.memory_space<vmem>>, vector<1x8x32xf32>
    %1040 = vector.shape_cast %1039 : vector<1x8x32xf32> to vector<8x32xf32>
    %c2_686 = arith.constant 2 : index
    %c0_687 = arith.constant 0 : index
    %c0_688 = arith.constant 0 : index
    %1041 = vector.load %arg11[%c2_686, %c0_687, %c0_688] : memref<3x8x32xf32, #tpu.memory_space<vmem>>, vector<1x8x32xf32>
    %1042 = vector.shape_cast %1041 : vector<1x8x32xf32> to vector<8x32xf32>
    %c2_689 = arith.constant 2 : index
    %c0_690 = arith.constant 0 : index
    %c0_691 = arith.constant 0 : index
    %1043 = vector.load %arg3[%c2_689, %c0_690, %c0_691] : memref<3x32x128xbf16, #tpu.memory_space<vmem>>, vector<1x32x128xbf16>
    %1044 = vector.shape_cast %1043 : vector<1x32x128xbf16> to vector<32x128xbf16>
    %1045 = arith.truncf %1040 : vector<8x32xf32> to vector<8x32xbf16>
    %cst_692 = arith.constant dense<0.000000e+00> : vector<8x128xf32>
    %1046 = tpu.matmul %1045, %1044, %cst_692 {dimension_numbers = #tpu.dot_dimension_numbers<[1], [0], [0], [1], [0, 0, 1, 1], [], []>} : vector<8x32xbf16>, vector<32x128xbf16>, vector<8x128xf32> -> vector<8x128xf32>
    %1047 = arith.addf %1038, %1046 : vector<8x128xf32>
    %1048 = arith.negf %1047 : vector<8x128xf32>
    %1049 = math.exp %1048 : vector<8x128xf32>
    %cst_693 = arith.constant 1.000000e+00 : f32
    %1050 = vector.broadcast %cst_693 : f32 to vector<8x128xf32>
    %1051 = arith.addf %1050, %1049 : vector<8x128xf32>
    %1052 = arith.divf %1050, %1051 : vector<8x128xf32>
    %1053 = vector.extract_strided_slice %1052 {offsets = [0, 0], sizes = [8, 32], strides = [1, 1]} : vector<8x128xf32> to vector<8x32xf32>
    %1054 = vector.extract_strided_slice %1052 {offsets = [0, 32], sizes = [8, 32], strides = [1, 1]} : vector<8x128xf32> to vector<8x32xf32>
    %1055 = vector.extract_strided_slice %1052 {offsets = [0, 96], sizes = [8, 32], strides = [1, 1]} : vector<8x128xf32> to vector<8x32xf32>
    %1056 = vector.extract_strided_slice %1047 {offsets = [0, 64], sizes = [8, 32], strides = [1, 1]} : vector<8x128xf32> to vector<8x32xf32>
    %1057 = math.tanh %1056 : vector<8x32xf32>
    %1058 = arith.mulf %1054, %1042 : vector<8x32xf32>
    %1059 = arith.mulf %1053, %1057 : vector<8x32xf32>
    %1060 = arith.addf %1058, %1059 : vector<8x32xf32>
    %1061 = math.tanh %1060 : vector<8x32xf32>
    %1062 = arith.mulf %1055, %1061 : vector<8x32xf32>
    %c8_i32_694 = arith.constant 8 : i32
    %1063 = arith.muli %arg0, %c8_i32_694 : i32
    %c7_i32_695 = arith.constant 7 : i32
    %1064 = arith.addi %1063, %c7_i32_695 : i32
    %c12_i32_696 = arith.constant 12 : i32
    %1065 = arith.cmpi slt, %1064, %c12_i32_696 : i32
    %1066 = arith.select %1065, %1062, %1040 : vector<8x32xf32>
    %1067 = arith.select %1065, %1060, %1042 : vector<8x32xf32>
    %c2_697 = arith.constant 2 : index
    %c0_698 = arith.constant 0 : index
    %c0_699 = arith.constant 0 : index
    %1068 = vector.load %arg10[%c2_697, %c0_698, %c0_699] : memref<3x8x32xf32, #tpu.memory_space<vmem>>, vector<1x8x32xf32>
    %1069 = vector.shape_cast %1068 : vector<1x8x32xf32> to vector<8x32xf32>
    %1070 = vector.shape_cast %1066 : vector<8x32xf32> to vector<1x8x32xf32>
    tpu.vector_store %arg10[%c2_697, %c0_698, %c0_699], %1070 {strides = array<i32>} : memref<3x8x32xf32, #tpu.memory_space<vmem>>, vector<1x8x32xf32>,
    %c2_700 = arith.constant 2 : index
    %c0_701 = arith.constant 0 : index
    %c0_702 = arith.constant 0 : index
    %1071 = vector.load %arg11[%c2_700, %c0_701, %c0_702] : memref<3x8x32xf32, #tpu.memory_space<vmem>>, vector<1x8x32xf32>
    %1072 = vector.shape_cast %1071 : vector<1x8x32xf32> to vector<8x32xf32>
    %1073 = vector.shape_cast %1067 : vector<8x32xf32> to vector<1x8x32xf32>
    tpu.vector_store %arg11[%c2_700, %c0_701, %c0_702], %1073 {strides = array<i32>} : memref<3x8x32xf32, #tpu.memory_space<vmem>>, vector<1x8x32xf32>,
    %c56 = arith.constant 56 : index
    %c0_703 = arith.constant 0 : index
    %1074 = vector.load %arg7[%c56, %c0_703] : memref<64x32xf32, #tpu.memory_space<vmem>>, vector<8x32xf32>
    tpu.vector_store %arg7[%c56, %c0_703], %1066 {strides = array<i32>} : memref<64x32xf32, #tpu.memory_space<vmem>>, vector<8x32xf32>,
    %c1_i32_704 = arith.constant 1 : i32
    %1075 = arith.cmpi eq, %arg0, %c1_i32_704 : i32
    %1076 = arith.extui %1075 : i1 to i32
    %c0_i32_705 = arith.constant 0 : i32
    %1077 = arith.cmpi ne, %1076, %c0_i32_705 : i32
    scf.if %1077 {
      %c0_706 = arith.constant 0 : index
      %c0_707 = arith.constant 0 : index
      %c0_708 = arith.constant 0 : index
      %1078 = vector.load %arg10[%c0_706, %c0_707, %c0_708] : memref<3x8x32xf32, #tpu.memory_space<vmem>>, vector<3x8x32xf32>
      %c0_709 = arith.constant 0 : index
      %c0_710 = arith.constant 0 : index
      %c0_711 = arith.constant 0 : index
      %1079 = vector.load %arg8[%c0_709, %c0_710, %c0_711] : memref<3x8x32xf32, #tpu.memory_space<vmem>>, vector<3x8x32xf32>
      tpu.vector_store %arg8[%c0_709, %c0_710, %c0_711], %1078 {strides = array<i32>} : memref<3x8x32xf32, #tpu.memory_space<vmem>>, vector<3x8x32xf32>,
      %c0_712 = arith.constant 0 : index
      %c0_713 = arith.constant 0 : index
      %c0_714 = arith.constant 0 : index
      %1080 = vector.load %arg11[%c0_712, %c0_713, %c0_714] : memref<3x8x32xf32, #tpu.memory_space<vmem>>, vector<3x8x32xf32>
      %c0_715 = arith.constant 0 : index
      %c0_716 = arith.constant 0 : index
      %c0_717 = arith.constant 0 : index
      %1081 = vector.load %arg9[%c0_715, %c0_716, %c0_717] : memref<3x8x32xf32, #tpu.memory_space<vmem>>, vector<3x8x32xf32>
      tpu.vector_store %arg9[%c0_715, %c0_716, %c0_717], %1080 {strides = array<i32>} : memref<3x8x32xf32, #tpu.memory_space<vmem>>, vector<3x8x32xf32>,
    } else {
    }
    return
  }
  func.func @transform_0(%arg0: i32) -> (i32, i32, i32) {
    %c0_i32 = arith.constant 0 : i32
    %c0_i32_0 = arith.constant 0 : i32
    %c0_i32_1 = arith.constant 0 : i32
    return %arg0, %c0_i32, %c0_i32_0 : i32, i32, i32
  }
  func.func @transform_1(%arg0: i32) -> (i32, i32, i32) {
    %c0_i32 = arith.constant 0 : i32
    %c0_i32_0 = arith.constant 0 : i32
    %c0_i32_1 = arith.constant 0 : i32
    %c0_i32_2 = arith.constant 0 : i32
    return %c0_i32, %c0_i32_0, %c0_i32_1 : i32, i32, i32
  }
  func.func @transform_2(%arg0: i32) -> (i32, i32, i32) {
    %c0_i32 = arith.constant 0 : i32
    %c0_i32_0 = arith.constant 0 : i32
    %c0_i32_1 = arith.constant 0 : i32
    %c0_i32_2 = arith.constant 0 : i32
    return %c0_i32, %c0_i32_0, %c0_i32_1 : i32, i32, i32
  }
  func.func @transform_3(%arg0: i32) -> (i32, i32, i32) {
    %c0_i32 = arith.constant 0 : i32
    %c0_i32_0 = arith.constant 0 : i32
    %c0_i32_1 = arith.constant 0 : i32
    %c0_i32_2 = arith.constant 0 : i32
    return %c0_i32, %c0_i32_0, %c0_i32_1 : i32, i32, i32
  }
  func.func @transform_4(%arg0: i32) -> (i32, i32, i32) {
    %c0_i32 = arith.constant 0 : i32
    %c0_i32_0 = arith.constant 0 : i32
    %c0_i32_1 = arith.constant 0 : i32
    %c0_i32_2 = arith.constant 0 : i32
    return %c0_i32, %c0_i32_0, %c0_i32_1 : i32, i32, i32
  }
  func.func @transform_5(%arg0: i32) -> (i32, i32, i32) {
    %c0_i32 = arith.constant 0 : i32
    %c0_i32_0 = arith.constant 0 : i32
    %c0_i32_1 = arith.constant 0 : i32
    %c0_i32_2 = arith.constant 0 : i32
    return %c0_i32, %c0_i32_0, %c0_i32_1 : i32, i32, i32
  }
  func.func @transform_6(%arg0: i32) -> (i32, i32) {
    %c0_i32 = arith.constant 0 : i32
    %c0_i32_0 = arith.constant 0 : i32
    return %arg0, %c0_i32 : i32, i32
  }
  func.func @transform_7(%arg0: i32) -> (i32, i32, i32) {
    %c0_i32 = arith.constant 0 : i32
    %c0_i32_0 = arith.constant 0 : i32
    %c0_i32_1 = arith.constant 0 : i32
    %c0_i32_2 = arith.constant 0 : i32
    return %c0_i32, %c0_i32_0, %c0_i32_1 : i32, i32, i32
  }
  func.func @transform_8(%arg0: i32) -> (i32, i32, i32) {
    %c0_i32 = arith.constant 0 : i32
    %c0_i32_0 = arith.constant 0 : i32
    %c0_i32_1 = arith.constant 0 : i32
    %c0_i32_2 = arith.constant 0 : i32
    return %c0_i32, %c0_i32_0, %c0_i32_1 : i32, i32, i32
  }
}

</mosaic_0001>

<llo_original>
// kernel: lstm_forward.1
$region0: #{lstm_forward.1}
  #allocation0 [shape = 'u32[]', space=smem, size = 0x4, offset = 0x4, fixed_abs, tag = 'smem constant byte address 0x4 - core index']
  #allocation1 [shape = 'u32[144,128]{1,0:T(1,128)}', space=vmem, size = 0x12000, scoped, tag = 'internal scratch']
  #allocation2 [shape = 'f32[3,8,32]{2,1,0:T(8,128)}', space=vmem, size = 0x3000, scoped, tag = 'scratch operand']
  #allocation3 [shape = 'f32[3,8,32]{2,1,0:T(8,128)}', space=vmem, size = 0x3000, scoped, tag = 'scratch operand']
  #allocation4 [shape = 'f32[2,8,128]{2,1,0:T(8,128)}', space=vmem, size = 0x2000, scoped, tag = 'scratch operand']
  %s0 = inlined_call_operand.hbm [shape: f32[16,8,128], index: 0, kind: input, shape index: {}]
  %s1 = inlined_call_operand.hbm [shape: bf16[2,32,128], index: 1, kind: input, shape index: {}]
  %s2 = inlined_call_operand.hbm [shape: bf16[3,32,128], index: 2, kind: input, shape index: {}]
  %s3 = inlined_call_operand.hbm [shape: f32[2,1,128], index: 3, kind: input, shape index: {}]
  %s4 = inlined_call_operand.hbm [shape: f32[3,8,32], index: 4, kind: input, shape index: {}]
  %s5 = inlined_call_operand.hbm [shape: f32[3,8,32], index: 5, kind: input, shape index: {}]
  %s6 = inlined_call_operand.hbm [shape: f32[128,32], index: 6, kind: output, shape index: {0}]
  %s7 = inlined_call_operand.hbm [shape: f32[3,8,32], index: 7, kind: output, shape index: {1}]
  %s8 = inlined_call_operand.hbm [shape: f32[3,8,32], index: 8, kind: output, shape index: {2}]
  %9 = xla_tuple %s6, %s7, %s8
  %s10 = sld [smem:[#allocation0]]
  $region105: #{lstm_forward.1} parent=0
    _
  %s12 = ssub.s32 1, %s10
  %s13 = scalar_select 0, %s12, %s10
  $region1: #{lstm_forward.1} parent=0
    #allocation5 [shape = 'u8[65536]{0}', space=vmem, size = 0x10000, scoped, tag = 'input window, operand 0']
    #allocation6 [shape = 's32[2]{0}', space=sflag, size = 0x8, scoped, tag = 'scoped memory for lstm_forward.1']
    #allocation7 [shape = 's32[2]{0}', space=sflag, size = 0x8, scoped, tag = 'scoped memory for lstm_forward.1']
    #allocation8 [shape = 'u8[16384]{0}', space=vmem, size = 0x4000, scoped, tag = 'input window, operand 1, single buffered']
    #allocation9 [shape = 's32[1]{0}', space=sflag, size = 0x4, scoped, tag = 'scoped memory for lstm_forward.1']
    #allocation10 [shape = 'u8[24576]{0}', space=vmem, size = 0x6000, scoped, tag = 'input window, operand 2, single buffered']
    #allocation11 [shape = 'u8[1024]{0}', space=vmem, size = 0x400, scoped, tag = 'input window, operand 3, single buffered']
    #allocation12 [shape = 's32[1]{0}', space=sflag, size = 0x4, scoped, tag = 'scoped memory for lstm_forward.1']
    #allocation13 [shape = 'u8[12288]{0}', space=vmem, size = 0x3000, scoped, tag = 'input window, operand 4, single buffered']
    #allocation14 [shape = 'u8[12288]{0}', space=vmem, size = 0x3000, scoped, tag = 'input window, operand 5, single buffered']
    #allocation15 [shape = 's32[1]{0}', space=sflag, size = 0x4, scoped, tag = 'scoped memory for lstm_forward.1']
    #allocation16 [shape = 'u8[65536]{0}', space=vmem, size = 0x10000, scoped, tag = 'output window, operand 0']
    #allocation17 [shape = 'u8[12288]{0}', space=vmem, size = 0x3000, scoped, tag = 'output window, operand 1, single buffered']
    #allocation18 [shape = 's32[1]{0}', space=sflag, size = 0x4, scoped, tag = 'scoped memory for lstm_forward.1']
    #allocation19 [shape = 'u8[12288]{0}', space=vmem, size = 0x3000, scoped, tag = 'output window, operand 2, single buffered']
    %14 = vsyncpa [#allocation6], 0
    %s15 = scalar_lea.sflag [#allocation6], 1
    %16 = vsyncpa %s15, 0
    %17 = vsyncpa [#allocation9], 0
    %18 = vsyncpa [#allocation12], 0
    %19 = vsyncpa [#allocation15], 0
    %20 = vsyncpa [#allocation7], 0
    %s21 = scalar_lea.sflag [#allocation7], 1
    %22 = vsyncpa %s21, 0
    %23 = vsyncpa [#allocation18], 0
    loop: start=0, step=1, limit=4
    $region2: #{lstm_forward.1} parent=1 // loop_pre_header
      _
    $region3: #{lstm_forward.1} parent=1 // loop_header
      %s25 = sphi 0, %s29
      %p26 = scmp.ge.s32.totalorder %s25, 4
      %s35 = sphi 0, %s37
      %s38 = sphi 0, %s35
      %s39 = sphi 0, %s38
      %s55 = sphi 0, %s39
      %s59 = sphi 0, %s59
      %s61 = sphi 0, %s59
      %s62 = sphi 0, %s61
      %s76 = sphi 0, %s62
      %s80 = sphi 0, %s80
      %s82 = sphi 0, %s80
      %s83 = sphi 0, %s82
      %s97 = sphi 0, %s83
      %s101 = sphi 0, %s101
      %s103 = sphi 0, %s101
      %s104 = sphi 0, %s103
      %s118 = sphi 0, %s104
      %s122 = sphi 0, %s122
      %s124 = sphi 0, %s122
      %s125 = sphi 0, %s124
      %s139 = sphi 0, %s125
      %s143 = sphi 0, %s143
      %s145 = sphi 0, %s143
      %s146 = sphi 0, %s145
      %s160 = sphi 0, %s146
      %s166 = sphi 0, %s168
      %s169 = sphi 0, %s166
      %s170 = sphi 0, %s169
      %s186 = sphi 0, %s170
      %s190 = sphi 0, %s190
      %s192 = sphi 0, %s190
      %s193 = sphi 0, %s192
      %s207 = sphi 0, %s193
      %s211 = sphi 0, %s211
      %s213 = sphi 0, %s211
      %s214 = sphi 0, %s213
      %s228 = sphi 0, %s214
    $region4: #{lstm_forward.1} parent=1 // loop_header_branch
      %28 = sbr.rel (%p26) target = $region8
    $region5: #{lstm_forward.1} parent=1 // loop_body
      %s30 = ssub.s32 %s25, 1
      %s31 = ssub.s32 %s25, 2
      %s32 = sadd.s32 %s25, 1
      %s33 = ssub.s32 %s25, %s32
      %p34 = scmp.eq.s32.totalorder %s33, 0
      %s36 = sadd.s32 %s35, 1
      %s37 = scalar_select %p34, %s35, %s36
      %p40 = pneg %p34
      %p41 = scmp.eq.s32.totalorder %s25, 1
      %p42 = por %p40, %p41
      %p43 = scmp.ne.s32.totalorder %s35, %s38
      %p44 = scmp.eq.s32.totalorder %s25, 0
      %p45 = por %p43, %p44
      %p46 = scmp.ne.s32.totalorder %s35, %s38
      %p47 = scmp.eq.s32.totalorder %s30, 1
      %p48 = por %p46, %p47
      %p49 = scmp.ne.s32.totalorder %s38, %s39
      %p50 = scmp.eq.s32.totalorder %s30, 0
      %p51 = por %p49, %p50
      %p52 = scmp.ne.s32.totalorder %s38, %s39
      %p53 = scmp.eq.s32.totalorder %s31, 1
      %p54 = por %p52, %p53
      %p56 = scmp.ne.s32.totalorder %s39, %s55
      %p57 = scmp.eq.s32.totalorder %s31, 0
      %p58 = por %p56, %p57
      %s60 = sadd.s32 %s59, 1
      %p63 = scmp.eq.s32.totalorder %s25, 1
      %p64 = scmp.ne.s32.totalorder %s59, %s61
      %p65 = scmp.eq.s32.totalorder %s25, 0
      %p66 = por %p64, %p65
      %p67 = scmp.ne.s32.totalorder %s59, %s61
      %p68 = scmp.eq.s32.totalorder %s30, 1
      %p69 = por %p67, %p68
      %p70 = scmp.ne.s32.totalorder %s61, %s62
      %p71 = scmp.eq.s32.totalorder %s30, 0
      %p72 = por %p70, %p71
      %p73 = scmp.ne.s32.totalorder %s61, %s62
      %p74 = scmp.eq.s32.totalorder %s31, 1
      %p75 = por %p73, %p74
      %p77 = scmp.ne.s32.totalorder %s62, %s76
      %p78 = scmp.eq.s32.totalorder %s31, 0
      %p79 = por %p77, %p78
      %s81 = sadd.s32 %s80, 1
      %p84 = scmp.eq.s32.totalorder %s25, 1
      %p85 = scmp.ne.s32.totalorder %s80, %s82
      %p86 = scmp.eq.s32.totalorder %s25, 0
      %p87 = por %p85, %p86
      %p88 = scmp.ne.s32.totalorder %s80, %s82
      %p89 = scmp.eq.s32.totalorder %s30, 1
      %p90 = por %p88, %p89
      %p91 = scmp.ne.s32.totalorder %s82, %s83
      %p92 = scmp.eq.s32.totalorder %s30, 0
      %p93 = por %p91, %p92
      %p94 = scmp.ne.s32.totalorder %s82, %s83
      %p95 = scmp.eq.s32.totalorder %s31, 1
      %p96 = por %p94, %p95
      %p98 = scmp.ne.s32.totalorder %s83, %s97
      %p99 = scmp.eq.s32.totalorder %s31, 0
      %p100 = por %p98, %p99
      %s102 = sadd.s32 %s101, 1
      %p105 = scmp.eq.s32.totalorder %s25, 1
      %p106 = scmp.ne.s32.totalorder %s101, %s103
      %p107 = scmp.eq.s32.totalorder %s25, 0
      %p108 = por %p106, %p107
      %p109 = scmp.ne.s32.totalorder %s101, %s103
      %p110 = scmp.eq.s32.totalorder %s30, 1
      %p111 = por %p109, %p110
      %p112 = scmp.ne.s32.totalorder %s103, %s104
      %p113 = scmp.eq.s32.totalorder %s30, 0
      %p114 = por %p112, %p113
      %p115 = scmp.ne.s32.totalorder %s103, %s104
      %p116 = scmp.eq.s32.totalorder %s31, 1
      %p117 = por %p115, %p116
      %p119 = scmp.ne.s32.totalorder %s104, %s118
      %p120 = scmp.eq.s32.totalorder %s31, 0
      %p121 = por %p119, %p120
      %s123 = sadd.s32 %s122, 1
      %p126 = scmp.eq.s32.totalorder %s25, 1
      %p127 = scmp.ne.s32.totalorder %s122, %s124
      %p128 = scmp.eq.s32.totalorder %s25, 0
      %p129 = por %p127, %p128
      %p130 = scmp.ne.s32.totalorder %s122, %s124
      %p131 = scmp.eq.s32.totalorder %s30, 1
      %p132 = por %p130, %p131
      %p133 = scmp.ne.s32.totalorder %s124, %s125
      %p134 = scmp.eq.s32.totalorder %s30, 0
      %p135 = por %p133, %p134
      %p136 = scmp.ne.s32.totalorder %s124, %s125
      %p137 = scmp.eq.s32.totalorder %s31, 1
      %p138 = por %p136, %p137
      %p140 = scmp.ne.s32.totalorder %s125, %s139
      %p141 = scmp.eq.s32.totalorder %s31, 0
      %p142 = por %p140, %p141
      %s144 = sadd.s32 %s143, 1
      %p147 = scmp.eq.s32.totalorder %s25, 1
      %p148 = scmp.ne.s32.totalorder %s143, %s145
      %p149 = scmp.eq.s32.totalorder %s25, 0
      %p150 = por %p148, %p149
      %p151 = scmp.ne.s32.totalorder %s143, %s145
      %p152 = scmp.eq.s32.totalorder %s30, 1
      %p153 = por %p151, %p152
      %p154 = scmp.ne.s32.totalorder %s145, %s146
      %p155 = scmp.eq.s32.totalorder %s30, 0
      %p156 = por %p154, %p155
      %p157 = scmp.ne.s32.totalorder %s145, %s146
      %p158 = scmp.eq.s32.totalorder %s31, 1
      %p159 = por %p157, %p158
      %p161 = scmp.ne.s32.totalorder %s146, %s160
      %p162 = scmp.eq.s32.totalorder %s31, 0
      %p163 = por %p161, %p162
      %s164 = ssub.s32 %s25, %s32
      %p165 = scmp.eq.s32.totalorder %s164, 0
      %s167 = sadd.s32 %s166, 1
      %s168 = scalar_select %p165, %s166, %s167
      %p171 = pneg %p165
      %p172 = scmp.eq.s32.totalorder %s25, 1
      %p173 = por %p171, %p172
      %p174 = scmp.ne.s32.totalorder %s166, %s169
      %p175 = scmp.eq.s32.totalorder %s25, 0
      %p176 = por %p174, %p175
      %p177 = scmp.ne.s32.totalorder %s166, %s169
      %p178 = scmp.eq.s32.totalorder %s30, 1
      %p179 = por %p177, %p178
      %p180 = scmp.ne.s32.totalorder %s169, %s170
      %p181 = scmp.eq.s32.totalorder %s30, 0
      %p182 = por %p180, %p181
      %p183 = scmp.ne.s32.totalorder %s169, %s170
      %p184 = scmp.eq.s32.totalorder %s31, 1
      %p185 = por %p183, %p184
      %p187 = scmp.ne.s32.totalorder %s170, %s186
      %p188 = scmp.eq.s32.totalorder %s31, 0
      %p189 = por %p187, %p188
      %s191 = sadd.s32 %s190, 1
      %p194 = scmp.eq.s32.totalorder %s25, 1
      %p195 = scmp.ne.s32.totalorder %s190, %s192
      %p196 = scmp.eq.s32.totalorder %s25, 0
      %p197 = por %p195, %p196
      %p198 = scmp.ne.s32.totalorder %s190, %s192
      %p199 = scmp.eq.s32.totalorder %s30, 1
      %p200 = por %p198, %p199
      %p201 = scmp.ne.s32.totalorder %s192, %s193
      %p202 = scmp.eq.s32.totalorder %s30, 0
      %p203 = por %p201, %p202
      %p204 = scmp.ne.s32.totalorder %s192, %s193
      %p205 = scmp.eq.s32.totalorder %s31, 1
      %p206 = por %p204, %p205
      %p208 = scmp.ne.s32.totalorder %s193, %s207
      %p209 = scmp.eq.s32.totalorder %s31, 0
      %p210 = por %p208, %p209
      %s212 = sadd.s32 %s211, 1
      %p215 = scmp.eq.s32.totalorder %s25, 1
      %p216 = scmp.ne.s32.totalorder %s211, %s213
      %p217 = scmp.eq.s32.totalorder %s25, 0
      %p218 = por %p216, %p217
      %p219 = scmp.ne.s32.totalorder %s211, %s213
      %p220 = scmp.eq.s32.totalorder %s30, 1
      %p221 = por %p219, %p220
      %p222 = scmp.ne.s32.totalorder %s213, %s214
      %p223 = scmp.eq.s32.totalorder %s30, 0
      %p224 = por %p222, %p223
      %p225 = scmp.ne.s32.totalorder %s213, %s214
      %p226 = scmp.eq.s32.totalorder %s31, 1
      %p227 = por %p225, %p226
      %p229 = scmp.ne.s32.totalorder %s214, %s228
      %p230 = scmp.eq.s32.totalorder %s31, 0
      %p231 = por %p229, %p230
      %p232 = scmp.le.s32.totalorder 1, %s25
      %p233 = scmp.lt.s32.totalorder %s25, 3
      %p234 = pnand %p232, %p233
      %p235 = pneg %p234
      // Predicated region
      $region9: #{lstm_forward.1} parent=5 // pred_check
        _
      $region10: #{lstm_forward.1} parent=5 // pred_check_branch
        %237 = sbr.rel (%p234) target = $region12
      $region11: #{lstm_forward.1} parent=5 // pred_region
        %s238 = ssub.s32 %s25, 1
        // Predicated region
        $region13: #{lstm_forward.1} parent=11 // pred_check
          %p239 = pneg %p72
        $region14: #{lstm_forward.1} parent=11 // pred_check_branch
          %241 = sbr.rel (%p239) target = $region16
        $region15: #{lstm_forward.1} parent=11 // pred_region
          %s243 = ssub.s32 512, 512
          %244 = vsyncadd [#allocation9], %s243
          %s245 = sshll.u32 [#allocation8], 4
          %s246 = int_to_ptr.vmem [resolvable:$true] %s245
          %251 = dma.hbm_to_vmem [thread:$0]  %s1, 512, %s246, [#allocation9], 64, 64, 4
        $region16: #{lstm_forward.1} parent=11 // pred_fallthru
          _
        // Predicated region
        $region17: #{lstm_forward.1} parent=11 // pred_check
          %p252 = pneg %p93
        $region18: #{lstm_forward.1} parent=11 // pred_check_branch
          %254 = sbr.rel (%p252) target = $region20
        $region19: #{lstm_forward.1} parent=11 // pred_region
          %s256 = ssub.s32 768, 768
          %257 = vsyncadd [#allocation9], %s256
          %s258 = sshll.u32 [#allocation10], 4
          %s259 = int_to_ptr.vmem [resolvable:$true] %s258
          %264 = dma.hbm_to_vmem [thread:$0]  %s2, 768, %s259, [#allocation9], 64, 64, 4
        $region20: #{lstm_forward.1} parent=11 // pred_fallthru
          _
        // Predicated region
        $region21: #{lstm_forward.1} parent=11 // pred_check
          %p265 = pneg %p114
        $region22: #{lstm_forward.1} parent=11 // pred_check_branch
          %267 = sbr.rel (%p265) target = $region24
        $region23: #{lstm_forward.1} parent=11 // pred_region
          %s269 = ssub.s32 32, 32
          %270 = vsyncadd [#allocation12], %s269
          %s271 = sshll.u32 [#allocation11], 4
          %s272 = int_to_ptr.vmem [resolvable:$true] %s271
          %277 = dma.hbm_to_vmem [thread:$0]  %s3, 32, %s272, [#allocation12], 16, 16, 1
        $region24: #{lstm_forward.1} parent=11 // pred_fallthru
          _
        // Predicated region
        $region25: #{lstm_forward.1} parent=11 // pred_check
          %p278 = pneg %p135
        $region26: #{lstm_forward.1} parent=11 // pred_check_branch
          %280 = sbr.rel (%p278) target = $region28
        $region27: #{lstm_forward.1} parent=11 // pred_region
          %s282 = ssub.s32 384, 384
          %283 = vsyncadd [#allocation12], %s282
          %s284 = sshll.u32 [#allocation13], 4
          %s285 = int_to_ptr.vmem [resolvable:$true] %s284
          %290 = dma.hbm_to_vmem [thread:$0]  %s4, 384, %s285, [#allocation12], 128, 128, 8
        $region28: #{lstm_forward.1} parent=11 // pred_fallthru
          _
        // Predicated region
        $region29: #{lstm_forward.1} parent=11 // pred_check
          %p291 = pneg %p156
        $region30: #{lstm_forward.1} parent=11 // pred_check_branch
          %293 = sbr.rel (%p291) target = $region32
        $region31: #{lstm_forward.1} parent=11 // pred_region
          %s295 = ssub.s32 384, 384
          %296 = vsyncadd [#allocation15], %s295
          %s297 = sshll.u32 [#allocation14], 4
          %s298 = int_to_ptr.vmem [resolvable:$true] %s297
          %303 = dma.hbm_to_vmem [thread:$0]  %s5, 384, %s298, [#allocation15], 128, 128, 8
        $region32: #{lstm_forward.1} parent=11 // pred_fallthru
          _
      $region12: #{lstm_forward.1} parent=5 // pred_fallthru
        _
      %p304 = scmp.lt.s32.totalorder %s25, 2
      // Predicated region
      $region33: #{lstm_forward.1} parent=5 // pred_check
        %p305 = pneg %p304
      $region34: #{lstm_forward.1} parent=5 // pred_check_branch
        %307 = sbr.rel (%p305) target = $region36
      $region35: #{lstm_forward.1} parent=5 // pred_region
        // Predicated region
        $region37: #{lstm_forward.1} parent=35 // pred_check
          %p308 = pneg %p45
        $region38: #{lstm_forward.1} parent=35 // pred_check_branch
          %310 = sbr.rel (%p308) target = $region40
        $region39: #{lstm_forward.1} parent=35 // pred_region
          %s311 = sand.u32 %s35, 1
          %s312 = scalar_lea.sflag [#allocation6], %s311
          %s313 = sand.u32 %s35, 1
          %s314 = smul.addr %s313, 64
          %s315 = scalar_lea.vmem [#allocation5], %s314
          %s316 = smul.u32 8, %s25
          %s318 = ssub.s32 1024, 1024
          %319 = vsyncadd %s312, %s318
          %s320 = smul.addr %s316, 128
          %s321 = scalar_lea.hbm %s0, %s320
          %s322 = sshll.u32 %s315, 4
          %s323 = int_to_ptr.vmem [resolvable:$true] %s322
          %328 = dma.hbm_to_vmem [thread:$0]  %s321, 1024, %s323, %s312, 128, 128, 8
        $region40: #{lstm_forward.1} parent=35 // pred_fallthru
          _
      $region36: #{lstm_forward.1} parent=5 // pred_fallthru
        _
      %p329 = scmp.le.s32.totalorder 1, %s25
      %p330 = scmp.lt.s32.totalorder %s25, 3
      %p331 = pnand %p329, %p330
      %p332 = pneg %p331
      // Predicated region
      $region41: #{lstm_forward.1} parent=5 // pred_check
        _
      $region42: #{lstm_forward.1} parent=5 // pred_check_branch
        %334 = sbr.rel (%p331) target = $region44
      $region43: #{lstm_forward.1} parent=5 // pred_region
        %s335 = ssub.s32 %s25, 1
        %s336 = sand.u32 %s38, 1
        %s337 = scalar_lea.sflag [#allocation6], %s336
        %s338 = sand.u32 %s38, 1
        %s339 = smul.addr %s338, 64
        %s340 = scalar_lea.vmem [#allocation5], %s339
        // Predicated region
        $region45: #{lstm_forward.1} parent=43 // pred_check
          %p341 = pneg %p51
        $region46: #{lstm_forward.1} parent=43 // pred_check_branch
          %343 = sbr.rel (%p341) target = $region48
        $region47: #{lstm_forward.1} parent=43 // pred_region
          %344 = dma.done %s337, 1024
        $region48: #{lstm_forward.1} parent=43 // pred_fallthru
          _
        // Predicated region
        $region49: #{lstm_forward.1} parent=43 // pred_check
          %p345 = pneg %p72
        $region50: #{lstm_forward.1} parent=43 // pred_check_branch
          %347 = sbr.rel (%p345) target = $region52
        $region51: #{lstm_forward.1} parent=43 // pred_region
          %348 = dma.done [#allocation9], 512
        $region52: #{lstm_forward.1} parent=43 // pred_fallthru
          _
        // Predicated region
        $region53: #{lstm_forward.1} parent=43 // pred_check
          %p349 = pneg %p93
        $region54: #{lstm_forward.1} parent=43 // pred_check_branch
          %351 = sbr.rel (%p349) target = $region56
        $region55: #{lstm_forward.1} parent=43 // pred_region
          %352 = dma.done [#allocation9], 768
        $region56: #{lstm_forward.1} parent=43 // pred_fallthru
          _
        // Predicated region
        $region57: #{lstm_forward.1} parent=43 // pred_check
          %p353 = pneg %p114
        $region58: #{lstm_forward.1} parent=43 // pred_check_branch
          %355 = sbr.rel (%p353) target = $region60
        $region59: #{lstm_forward.1} parent=43 // pred_region
          %356 = dma.done [#allocation12], 32
        $region60: #{lstm_forward.1} parent=43 // pred_fallthru
          _
        // Predicated region
        $region61: #{lstm_forward.1} parent=43 // pred_check
          %p357 = pneg %p135
        $region62: #{lstm_forward.1} parent=43 // pred_check_branch
          %359 = sbr.rel (%p357) target = $region64
        $region63: #{lstm_forward.1} parent=43 // pred_region
          %360 = dma.done [#allocation12], 384
        $region64: #{lstm_forward.1} parent=43 // pred_fallthru
          _
        // Predicated region
        $region65: #{lstm_forward.1} parent=43 // pred_check
          %p361 = pneg %p156
        $region66: #{lstm_forward.1} parent=43 // pred_check_branch
          %363 = sbr.rel (%p361) target = $region68
        $region67: #{lstm_forward.1} parent=43 // pred_region
          %364 = dma.done [#allocation15], 384
        $region68: #{lstm_forward.1} parent=43 // pred_fallthru
          _
        %s365 = sand.u32 %s38, 1
        %s366 = scalar_lea.sflag [#allocation6], %s365
        %s367 = sand.u32 %s38, 1
        %s368 = smul.addr %s367, 64
        %s369 = scalar_lea.vmem [#allocation5], %s368
        %p370 = pneg %p51
        %p371 = pneg %p48
        %p372 = pneg %p72
        %p373 = pneg %p69
        %p374 = pneg %p93
        %p375 = pneg %p90
        %p376 = pneg %p114
        %p377 = pneg %p111
        %p378 = pneg %p135
        %p379 = pneg %p132
        %p380 = pneg %p156
        %p381 = pneg %p153
        %p382 = pneg %p182
        %p383 = pneg %p179
        %s384 = sand.u32 %s169, 1
        %s385 = scalar_lea.sflag [#allocation7], %s384
        %s386 = sand.u32 %s169, 1
        %s387 = smul.addr %s386, 64
        %s388 = scalar_lea.vmem [#allocation16], %s387
        %p389 = pneg %p203
        %p390 = pneg %p200
        %p391 = pneg %p224
        %p392 = pneg %p221
        %s393 = smul.u32 8, %s30
        %s394 = smul.u32 8, %s30
        %p396 = scmp.eq.s32.totalorder %s30, 0
        // Predicated region
        $region69: #{lstm_forward.1} parent=43 // pred_check
          %p397 = pneg %p396
        $region70: #{lstm_forward.1} parent=43 // pred_check_branch
          %399 = sbr.rel (%p397) target = $region72
        $region71: #{lstm_forward.1} parent=43 // pred_region
          %v400 = vld [vmem:[#allocation13] sm:$0xff]
          %v401 = vld [vmem:[#allocation13 + $0x8] sm:$0xff]
          %v402 = vld [vmem:[#allocation13 + $0x10] sm:$0xff]
          %vm403 = vcmask 261120
          %404 = vst.msk [vmem:[#allocation2] sm:$0xff] %vm403, %v400
          %405 = vst.msk [vmem:[#allocation2 + $0x8] sm:$0xff] %vm403, %v401
          %406 = vst.msk [vmem:[#allocation2 + $0x10] sm:$0xff] %vm403, %v402
          %v407 = vld [vmem:[#allocation14] sm:$0xff]
          %v408 = vld [vmem:[#allocation14 + $0x8] sm:$0xff]
          %v409 = vld [vmem:[#allocation14 + $0x10] sm:$0xff]
          %410 = vst.msk [vmem:[#allocation3] sm:$0xff] %vm403, %v407
          %411 = vst.msk [vmem:[#allocation3 + $0x8] sm:$0xff] %vm403, %v408
          %412 = vst.msk [vmem:[#allocation3 + $0x10] sm:$0xff] %vm403, %v409
        $region72: #{lstm_forward.1} parent=43 // pred_fallthru
          _
        %v413 = vld [vmem:[%s340] sm:$0xff]
        %v414 = vld [vmem:[#allocation2] sm:$0xff]
        %v415 = vld [vmem:[#allocation3] sm:$0xff]
        %v416 = vld [vmem:[#allocation10] sm:$0xf]
        %v417 = vld [vmem:[#allocation10 + $0x4] sm:$0xf]
        %v418 = vld [vmem:[#allocation10 + $0x8] sm:$0xf]
        %v419 = vld [vmem:[#allocation10 + $0xc] sm:$0xf]
        %v420 = vpack.c.bf16 %v414, %v414
        %v425 = vunpack.c.l.b16 %v416
        %v426 = vunpack.c.l.b16 %v417
        %v427 = vunpack.c.l.b16 %v418
        %v428 = vunpack.c.l.b16 %v419
        %v429 = vpack.c.b16 %v426, %v425
        %v430 = vpack.c.b16 %v428, %v427
        %vm433 = vcmask 261120
        %v435 = vsel %vm433, %v420, 0
        %437 = vmatprep.subr.bf16.mxu0 0
        %438 = vmatpush1.bf16.msra.mxu0 %v429
        %439 = vmatprep.subr.bf16.mxu0 0
        %440 = vmatpush1.bf16.msra.mxu0 %v430
        %441 = vmatprep.subr.bf16.mxu0 0
        %442 = vmatpush1.bf16.msra.mxu0 0
        %443 = vmatprep.subr.bf16.mxu0 0
        %444 = vmatpush1.bf16.msra.mxu0 0
        %445 = vmatprep.subr.bf16.mxu0 0
        %446 = vmatpush1.bf16.msra.mxu0 0
        %447 = vmatprep.subr.bf16.mxu0 0
        %448 = vmatpush1.bf16.msra.mxu0 0
        %449 = vmatprep.subr.bf16.mxu0 0
        %450 = vmatpush1.bf16.msra.mxu0 0
        %451 = vmatprep.subr.bf16.mxu0 0
        %452 = vmatpush1.bf16.msra.mxu0 0
        %453 = vmatprep.subr.bf16.mxu0 0
        %454 = vmatpush1.bf16.msra.mxu0 0
        %455 = vmatprep.subr.bf16.mxu0 0
        %456 = vmatpush1.bf16.msra.mxu0 0
        %457 = vmatprep.subr.bf16.mxu0 0
        %458 = vmatpush1.bf16.msra.mxu0 0
        %459 = vmatprep.subr.bf16.mxu0 0
        %460 = vmatpush1.bf16.msra.mxu0 0
        %461 = vmatprep.subr.bf16.mxu0 0
        %462 = vmatpush1.bf16.msra.mxu0 0
        %463 = vmatprep.subr.bf16.mxu0 0
        %464 = vmatpush1.bf16.msra.mxu0 0
        %465 = vmatprep.subr.bf16.mxu0 0
        %466 = vmatpush1.bf16.msra.mxu0 0
        %467 = vmatprep.subr.bf16.mxu0 0
        %468 = vmatpush1.bf16.msra.mxu0 0
        %469 = vmatprep.mubr.bf16.mxu0 0
        %470 = vmatmul.mubr.bf16.gmra.mrb[0].mxu0 %v435
        %v471 = vpop.f32.mrb[0].mxu0
        %v472 = vadd.f32 0.0, %v471
        %v473 = vpop.f32.mrb[0].mxu0
        %v474 = vpop.f32.mrb[0].mxu0
        %v475 = vpop.f32.mrb[0].mxu0
        %476 = vdwg.mxu0
        %v477 = vadd.f32 %v413, %v472
        %v478 = vxor.u32 %v477, 2147483648
        %v479 = vmul.f32 %v478, 1.442695
        %v480 = vpow.pop %v479
        %v481 = vadd.f32 %v480, 1.0
        %v482 = vrcp.pop %v481
        %v483 = vmul.f32 1.0, %v482
        %v484 = vtanh.pop %v477
        %486 = vrot.lane.b32.xlu0 %v415, 32
        %v487 = vpop.permute.xlu0 %486
        %v489 = vmul.f32 %v483, %v487
        %491 = vrot.lane.b32.xlu0 %v484, 64
        %v492 = vpop.permute.xlu0 %491
        %v494 = vmul.f32 %v483, %v492
        %496 = vrot.lane.b32.xlu0 %v494, 32
        %v497 = vpop.permute.xlu0 %496
        %v499 = vadd.f32 %v489, %v497
        %v500 = vtanh.pop %v499
        %502 = vrot.lane.b32.xlu0 %v500, 64
        %v503 = vpop.permute.xlu0 %502
        %v505 = vmul.f32 %v483, %v503
        %s506 = smul.u32 %s30, 8
        %p507 = scmp.lt.s32.totalorder %s506, 12
        %s508 = scalar_select %p507, 1, 0
        %v509 = vstv %s508
        %vm510 = vcmp.eq.s32.totalorder %v509, 1
        %512 = vrot.lane.b32.xlu0 %v414, 96
        %v513 = vpop.permute.xlu0 %512
        %v515 = vsel %vm510, %v505, %v513
        %v516 = vsel %vm510, %v499, %v487
        %518 = vrot.lane.b32.xlu0 %v515, 32
        %v519 = vpop.permute.xlu0 %518
        %521 = vst.msk [vmem:[#allocation2] sm:$0xff] %vm433, %v519
        %523 = vrot.lane.b32.xlu0 %v516, 96
        %v524 = vpop.permute.xlu0 %523
        %526 = vst.msk [vmem:[#allocation3] sm:$0xff] %vm433, %v524
        %v527 = vpack.c.bf16 %v515, %v515
        %v528 = vld [vmem:[#allocation8] sm:$0xf]
        %v529 = vld [vmem:[#allocation8 + $0x4] sm:$0xf]
        %v530 = vld [vmem:[#allocation8 + $0x8] sm:$0xf]
        %v531 = vld [vmem:[#allocation8 + $0xc] sm:$0xf]
        %v532 = vld [vmem:[#allocation11] sm:$0x1]
        %v534 = vlaneseq
        %v535 = vshrl.u32 %v534, 7
        %v536 = vsub.s32 0, %v535
        %v537 = vrot.slane %v532, %v536
        %540 = vrot.lane.b32.xlu0 %v527, 32
        %v541 = vpop.permute.xlu0 %540
        %v546 = vunpack.c.l.b16 %v528
        %v547 = vunpack.c.l.b16 %v529
        %v548 = vunpack.c.l.b16 %v530
        %v549 = vunpack.c.l.b16 %v531
        %v550 = vpack.c.b16 %v547, %v546
        %v551 = vpack.c.b16 %v549, %v548
        %v555 = vsel %vm433, %v541, 0
        %557 = vmatprep.subr.bf16.mxu0 0
        %558 = vmatpush1.bf16.msra.mxu0 %v550
        %559 = vmatprep.subr.bf16.mxu0 0
        %560 = vmatpush1.bf16.msra.mxu0 %v551
        %561 = vmatprep.subr.bf16.mxu0 0
        %562 = vmatpush1.bf16.msra.mxu0 0
        %563 = vmatprep.subr.bf16.mxu0 0
        %564 = vmatpush1.bf16.msra.mxu0 0
        %565 = vmatprep.subr.bf16.mxu0 0
        %566 = vmatpush1.bf16.msra.mxu0 0
        %567 = vmatprep.subr.bf16.mxu0 0
        %568 = vmatpush1.bf16.msra.mxu0 0
        %569 = vmatprep.subr.bf16.mxu0 0
        %570 = vmatpush1.bf16.msra.mxu0 0
        %571 = vmatprep.subr.bf16.mxu0 0
        %572 = vmatpush1.bf16.msra.mxu0 0
        %573 = vmatprep.subr.bf16.mxu0 0
        %574 = vmatpush1.bf16.msra.mxu0 0
        %575 = vmatprep.subr.bf16.mxu0 0
        %576 = vmatpush1.bf16.msra.mxu0 0
        %577 = vmatprep.subr.bf16.mxu0 0
        %578 = vmatpush1.bf16.msra.mxu0 0
        %579 = vmatprep.subr.bf16.mxu0 0
        %580 = vmatpush1.bf16.msra.mxu0 0
        %581 = vmatprep.subr.bf16.mxu0 0
        %582 = vmatpush1.bf16.msra.mxu0 0
        %583 = vmatprep.subr.bf16.mxu0 0
        %584 = vmatpush1.bf16.msra.mxu0 0
        %585 = vmatprep.subr.bf16.mxu0 0
        %586 = vmatpush1.bf16.msra.mxu0 0
        %587 = vmatprep.subr.bf16.mxu0 0
        %588 = vmatpush1.bf16.msra.mxu0 0
        %589 = vmatprep.mubr.bf16.mxu0 0
        %590 = vmatmul.mubr.bf16.gmra.mrb[0].mxu0 %v555
        %v591 = vpop.f32.mrb[0].mxu0
        %v592 = vadd.f32 %v537, %v591
        %v593 = vpop.f32.mrb[0].mxu0
        %v594 = vpop.f32.mrb[0].mxu0
        %v595 = vpop.f32.mrb[0].mxu0
        %596 = vdwg.mxu0
        %597 = vst [vmem:[#allocation4] sm:$0xff] %v592
        %v598 = vld [vmem:[#allocation4] sm:$0xff]
        %s599 = scalar_lea.vmem [#allocation2], 8
        %v600 = vld [vmem:[%s599] sm:$0xff]
        %s601 = scalar_lea.vmem [#allocation3], 8
        %v602 = vld [vmem:[%s601] sm:$0xff]
        %s603 = scalar_lea.vmem [#allocation10], 16
        %v604 = vld [vmem:[%s603] sm:$0xf]
        %v605 = vld [vmem:[%s603 + $0x4] sm:$0xf]
        %v606 = vld [vmem:[%s603 + $0x8] sm:$0xf]
        %v607 = vld [vmem:[%s603 + $0xc] sm:$0xf]
        %v608 = vpack.c.bf16 %v600, %v600
        %v613 = vunpack.c.l.b16 %v604
        %v614 = vunpack.c.l.b16 %v605
        %v615 = vunpack.c.l.b16 %v606
        %v616 = vunpack.c.l.b16 %v607
        %v617 = vpack.c.b16 %v614, %v613
        %v618 = vpack.c.b16 %v616, %v615
        %v622 = vsel %vm433, %v608, 0
        %624 = vmatprep.subr.bf16.mxu0 0
        %625 = vmatpush1.bf16.msra.mxu0 %v617
        %626 = vmatprep.subr.bf16.mxu0 0
        %627 = vmatpush1.bf16.msra.mxu0 %v618
        %628 = vmatprep.subr.bf16.mxu0 0
        %629 = vmatpush1.bf16.msra.mxu0 0
        %630 = vmatprep.subr.bf16.mxu0 0
        %631 = vmatpush1.bf16.msra.mxu0 0
        %632 = vmatprep.subr.bf16.mxu0 0
        %633 = vmatpush1.bf16.msra.mxu0 0
        %634 = vmatprep.subr.bf16.mxu0 0
        %635 = vmatpush1.bf16.msra.mxu0 0
        %636 = vmatprep.subr.bf16.mxu0 0
        %637 = vmatpush1.bf16.msra.mxu0 0
        %638 = vmatprep.subr.bf16.mxu0 0
        %639 = vmatpush1.bf16.msra.mxu0 0
        %640 = vmatprep.subr.bf16.mxu0 0
        %641 = vmatpush1.bf16.msra.mxu0 0
        %642 = vmatprep.subr.bf16.mxu0 0
        %643 = vmatpush1.bf16.msra.mxu0 0
        %644 = vmatprep.subr.bf16.mxu0 0
        %645 = vmatpush1.bf16.msra.mxu0 0
        %646 = vmatprep.subr.bf16.mxu0 0
        %647 = vmatpush1.bf16.msra.mxu0 0
        %648 = vmatprep.subr.bf16.mxu0 0
        %649 = vmatpush1.bf16.msra.mxu0 0
        %650 = vmatprep.subr.bf16.mxu0 0
        %651 = vmatpush1.bf16.msra.mxu0 0
        %652 = vmatprep.subr.bf16.mxu0 0
        %653 = vmatpush1.bf16.msra.mxu0 0
        %654 = vmatprep.subr.bf16.mxu0 0
        %655 = vmatpush1.bf16.msra.mxu0 0
        %656 = vmatprep.mubr.bf16.mxu0 0
        %657 = vmatmul.mubr.bf16.gmra.mrb[0].mxu0 %v622
        %v658 = vpop.f32.mrb[0].mxu0
        %v659 = vadd.f32 0.0, %v658
        %v660 = vpop.f32.mrb[0].mxu0
        %v661 = vpop.f32.mrb[0].mxu0
        %v662 = vpop.f32.mrb[0].mxu0
        %663 = vdwg.mxu0
        %v664 = vadd.f32 %v598, %v659
        %v665 = vxor.u32 %v664, 2147483648
        %v666 = vmul.f32 %v665, 1.442695
        %v667 = vpow.pop %v666
        %v668 = vadd.f32 %v667, 1.0
        %v669 = vrcp.pop %v668
        %v670 = vmul.f32 1.0, %v669
        %v671 = vtanh.pop %v664
        %673 = vrot.lane.b32.xlu0 %v602, 32
        %v674 = vpop.permute.xlu0 %673
        %v676 = vmul.f32 %v670, %v674
        %678 = vrot.lane.b32.xlu0 %v671, 64
        %v679 = vpop.permute.xlu0 %678
        %v681 = vmul.f32 %v670, %v679
        %683 = vrot.lane.b32.xlu0 %v681, 32
        %v684 = vpop.permute.xlu0 %683
        %v686 = vadd.f32 %v676, %v684
        %v687 = vtanh.pop %v686
        %689 = vrot.lane.b32.xlu0 %v687, 64
        %v690 = vpop.permute.xlu0 %689
        %v692 = vmul.f32 %v670, %v690
        %694 = vrot.lane.b32.xlu0 %v600, 96
        %v695 = vpop.permute.xlu0 %694
        %v697 = vsel %vm510, %v692, %v695
        %v698 = vsel %vm510, %v686, %v674
        %700 = vrot.lane.b32.xlu0 %v697, 32
        %v701 = vpop.permute.xlu0 %700
        %703 = vst.msk [vmem:[%s599] sm:$0xff] %vm433, %v701
        %705 = vrot.lane.b32.xlu0 %v698, 96
        %v706 = vpop.permute.xlu0 %705
        %708 = vst.msk [vmem:[%s601] sm:$0xff] %vm433, %v706
        %v709 = vpack.c.bf16 %v697, %v697
        %s710 = scalar_lea.vmem [#allocation8], 16
        %v711 = vld [vmem:[%s710] sm:$0xf]
        %v712 = vld [vmem:[%s710 + $0x4] sm:$0xf]
        %v713 = vld [vmem:[%s710 + $0x8] sm:$0xf]
        %v714 = vld [vmem:[%s710 + $0xc] sm:$0xf]
        %s715 = scalar_lea.vmem [#allocation11], 1
        %v716 = vld [vmem:[%s715] sm:$0x1]
        %v718 = vlaneseq
        %v719 = vshrl.u32 %v718, 7
        %v720 = vsub.s32 0, %v719
        %v721 = vrot.slane %v716, %v720
        %724 = vrot.lane.b32.xlu0 %v709, 32
        %v725 = vpop.permute.xlu0 %724
        %v730 = vunpack.c.l.b16 %v711
        %v731 = vunpack.c.l.b16 %v712
        %v732 = vunpack.c.l.b16 %v713
        %v733 = vunpack.c.l.b16 %v714
        %v734 = vpack.c.b16 %v731, %v730
        %v735 = vpack.c.b16 %v733, %v732
        %v739 = vsel %vm433, %v725, 0
        %741 = vmatprep.subr.bf16.mxu0 0
        %742 = vmatpush1.bf16.msra.mxu0 %v734
        %743 = vmatprep.subr.bf16.mxu0 0
        %744 = vmatpush1.bf16.msra.mxu0 %v735
        %745 = vmatprep.subr.bf16.mxu0 0
        %746 = vmatpush1.bf16.msra.mxu0 0
        %747 = vmatprep.subr.bf16.mxu0 0
        %748 = vmatpush1.bf16.msra.mxu0 0
        %749 = vmatprep.subr.bf16.mxu0 0
        %750 = vmatpush1.bf16.msra.mxu0 0
        %751 = vmatprep.subr.bf16.mxu0 0
        %752 = vmatpush1.bf16.msra.mxu0 0
        %753 = vmatprep.subr.bf16.mxu0 0
        %754 = vmatpush1.bf16.msra.mxu0 0
        %755 = vmatprep.subr.bf16.mxu0 0
        %756 = vmatpush1.bf16.msra.mxu0 0
        %757 = vmatprep.subr.bf16.mxu0 0
        %758 = vmatpush1.bf16.msra.mxu0 0
        %759 = vmatprep.subr.bf16.mxu0 0
        %760 = vmatpush1.bf16.msra.mxu0 0
        %761 = vmatprep.subr.bf16.mxu0 0
        %762 = vmatpush1.bf16.msra.mxu0 0
        %763 = vmatprep.subr.bf16.mxu0 0
        %764 = vmatpush1.bf16.msra.mxu0 0
        %765 = vmatprep.subr.bf16.mxu0 0
        %766 = vmatpush1.bf16.msra.mxu0 0
        %767 = vmatprep.subr.bf16.mxu0 0
        %768 = vmatpush1.bf16.msra.mxu0 0
        %769 = vmatprep.subr.bf16.mxu0 0
        %770 = vmatpush1.bf16.msra.mxu0 0
        %771 = vmatprep.subr.bf16.mxu0 0
        %772 = vmatpush1.bf16.msra.mxu0 0
        %773 = vmatprep.mubr.bf16.mxu0 0
        %774 = vmatmul.mubr.bf16.gmra.mrb[0].mxu0 %v739
        %v775 = vpop.f32.mrb[0].mxu0
        %v776 = vadd.f32 %v721, %v775
        %v777 = vpop.f32.mrb[0].mxu0
        %v778 = vpop.f32.mrb[0].mxu0
        %v779 = vpop.f32.mrb[0].mxu0
        %780 = vdwg.mxu0
        %s781 = scalar_lea.vmem [#allocation4], 8
        %782 = vst [vmem:[%s781] sm:$0xff] %v776
        %s783 = scalar_lea.vmem %s340, 8 [#allocation5]
        %v784 = vld [vmem:[%s783] sm:$0xff]
        %v785 = vld [vmem:[#allocation2] sm:$0xff]
        %v786 = vld [vmem:[#allocation3] sm:$0xff]
        %v787 = vld [vmem:[#allocation10] sm:$0xf]
        %v788 = vld [vmem:[#allocation10 + $0x4] sm:$0xf]
        %v789 = vld [vmem:[#allocation10 + $0x8] sm:$0xf]
        %v790 = vld [vmem:[#allocation10 + $0xc] sm:$0xf]
        %v791 = vpack.c.bf16 %v785, %v785
        %v796 = vunpack.c.l.b16 %v787
        %v797 = vunpack.c.l.b16 %v788
        %v798 = vunpack.c.l.b16 %v789
        %v799 = vunpack.c.l.b16 %v790
        %v800 = vpack.c.b16 %v797, %v796
        %v801 = vpack.c.b16 %v799, %v798
        %v805 = vsel %vm433, %v791, 0
        %807 = vmatprep.subr.bf16.mxu0 0
        %808 = vmatpush1.bf16.msra.mxu0 %v800
        %809 = vmatprep.subr.bf16.mxu0 0
        %810 = vmatpush1.bf16.msra.mxu0 %v801
        %811 = vmatprep.subr.bf16.mxu0 0
        %812 = vmatpush1.bf16.msra.mxu0 0
        %813 = vmatprep.subr.bf16.mxu0 0
        %814 = vmatpush1.bf16.msra.mxu0 0
        %815 = vmatprep.subr.bf16.mxu0 0
        %816 = vmatpush1.bf16.msra.mxu0 0
        %817 = vmatprep.subr.bf16.mxu0 0
        %818 = vmatpush1.bf16.msra.mxu0 0
        %819 = vmatprep.subr.bf16.mxu0 0
        %820 = vmatpush1.bf16.msra.mxu0 0
        %821 = vmatprep.subr.bf16.mxu0 0
        %822 = vmatpush1.bf16.msra.mxu0 0
        %823 = vmatprep.subr.bf16.mxu0 0
        %824 = vmatpush1.bf16.msra.mxu0 0
        %825 = vmatprep.subr.bf16.mxu0 0
        %826 = vmatpush1.bf16.msra.mxu0 0
        %827 = vmatprep.subr.bf16.mxu0 0
        %828 = vmatpush1.bf16.msra.mxu0 0
        %829 = vmatprep.subr.bf16.mxu0 0
        %830 = vmatpush1.bf16.msra.mxu0 0
        %831 = vmatprep.subr.bf16.mxu0 0
        %832 = vmatpush1.bf16.msra.mxu0 0
        %833 = vmatprep.subr.bf16.mxu0 0
        %834 = vmatpush1.bf16.msra.mxu0 0
        %835 = vmatprep.subr.bf16.mxu0 0
        %836 = vmatpush1.bf16.msra.mxu0 0
        %837 = vmatprep.subr.bf16.mxu0 0
        %838 = vmatpush1.bf16.msra.mxu0 0
        %839 = vmatprep.mubr.bf16.mxu0 0
        %840 = vmatmul.mubr.bf16.gmra.mrb[0].mxu0 %v805
        %v841 = vpop.f32.mrb[0].mxu0
        %v842 = vadd.f32 0.0, %v841
        %v843 = vpop.f32.mrb[0].mxu0
        %v844 = vpop.f32.mrb[0].mxu0
        %v845 = vpop.f32.mrb[0].mxu0
        %846 = vdwg.mxu0
        %v847 = vadd.f32 %v784, %v842
        %v848 = vxor.u32 %v847, 2147483648
        %v849 = vmul.f32 %v848, 1.442695
        %v850 = vpow.pop %v849
        %v851 = vadd.f32 %v850, 1.0
        %v852 = vrcp.pop %v851
        %v853 = vmul.f32 1.0, %v852
        %v854 = vtanh.pop %v847
        %856 = vrot.lane.b32.xlu0 %v786, 32
        %v857 = vpop.permute.xlu0 %856
        %v859 = vmul.f32 %v853, %v857
        %861 = vrot.lane.b32.xlu0 %v854, 64
        %v862 = vpop.permute.xlu0 %861
        %v864 = vmul.f32 %v853, %v862
        %866 = vrot.lane.b32.xlu0 %v864, 32
        %v867 = vpop.permute.xlu0 %866
        %v869 = vadd.f32 %v859, %v867
        %v870 = vtanh.pop %v869
        %872 = vrot.lane.b32.xlu0 %v870, 64
        %v873 = vpop.permute.xlu0 %872
        %v875 = vmul.f32 %v853, %v873
        %s876 = sadd.s32 %s506, 1
        %p877 = scmp.lt.s32.totalorder %s876, 12
        %s878 = scalar_select %p877, 1, 0
        %v879 = vstv %s878
        %vm880 = vcmp.eq.s32.totalorder %v879, 1
        %882 = vrot.lane.b32.xlu0 %v785, 96
        %v883 = vpop.permute.xlu0 %882
        %v885 = vsel %vm880, %v875, %v883
        %v886 = vsel %vm880, %v869, %v857
        %888 = vrot.lane.b32.xlu0 %v885, 32
        %v889 = vpop.permute.xlu0 %888
        %891 = vst.msk [vmem:[#allocation2] sm:$0xff] %vm433, %v889
        %893 = vrot.lane.b32.xlu0 %v886, 96
        %v894 = vpop.permute.xlu0 %893
        %896 = vst.msk [vmem:[#allocation3] sm:$0xff] %vm433, %v894
        %v897 = vpack.c.bf16 %v885, %v885
        %v898 = vld [vmem:[#allocation8] sm:$0xf]
        %v899 = vld [vmem:[#allocation8 + $0x4] sm:$0xf]
        %v900 = vld [vmem:[#allocation8 + $0x8] sm:$0xf]
        %v901 = vld [vmem:[#allocation8 + $0xc] sm:$0xf]
        %v902 = vld [vmem:[#allocation11] sm:$0x1]
        %v904 = vlaneseq
        %v905 = vshrl.u32 %v904, 7
        %v906 = vsub.s32 0, %v905
        %v907 = vrot.slane %v902, %v906
        %910 = vrot.lane.b32.xlu0 %v897, 32
        %v911 = vpop.permute.xlu0 %910
        %v916 = vunpack.c.l.b16 %v898
        %v917 = vunpack.c.l.b16 %v899
        %v918 = vunpack.c.l.b16 %v900
        %v919 = vunpack.c.l.b16 %v901
        %v920 = vpack.c.b16 %v917, %v916
        %v921 = vpack.c.b16 %v919, %v918
        %v925 = vsel %vm433, %v911, 0
        %927 = vmatprep.subr.bf16.mxu0 0
        %928 = vmatpush1.bf16.msra.mxu0 %v920
        %929 = vmatprep.subr.bf16.mxu0 0
        %930 = vmatpush1.bf16.msra.mxu0 %v921
        %931 = vmatprep.subr.bf16.mxu0 0
        %932 = vmatpush1.bf16.msra.mxu0 0
        %933 = vmatprep.subr.bf16.mxu0 0
        %934 = vmatpush1.bf16.msra.mxu0 0
        %935 = vmatprep.subr.bf16.mxu0 0
        %936 = vmatpush1.bf16.msra.mxu0 0
        %937 = vmatprep.subr.bf16.mxu0 0
        %938 = vmatpush1.bf16.msra.mxu0 0
        %939 = vmatprep.subr.bf16.mxu0 0
        %940 = vmatpush1.bf16.msra.mxu0 0
        %941 = vmatprep.subr.bf16.mxu0 0
        %942 = vmatpush1.bf16.msra.mxu0 0
        %943 = vmatprep.subr.bf16.mxu0 0
        %944 = vmatpush1.bf16.msra.mxu0 0
        %945 = vmatprep.subr.bf16.mxu0 0
        %946 = vmatpush1.bf16.msra.mxu0 0
        %947 = vmatprep.subr.bf16.mxu0 0
        %948 = vmatpush1.bf16.msra.mxu0 0
        %949 = vmatprep.subr.bf16.mxu0 0
        %950 = vmatpush1.bf16.msra.mxu0 0
        %951 = vmatprep.subr.bf16.mxu0 0
        %952 = vmatpush1.bf16.msra.mxu0 0
        %953 = vmatprep.subr.bf16.mxu0 0
        %954 = vmatpush1.bf16.msra.mxu0 0
        %955 = vmatprep.subr.bf16.mxu0 0
        %956 = vmatpush1.bf16.msra.mxu0 0
        %957 = vmatprep.subr.bf16.mxu0 0
        %958 = vmatpush1.bf16.msra.mxu0 0
        %959 = vmatprep.mubr.bf16.mxu0 0
        %960 = vmatmul.mubr.bf16.gmra.mrb[0].mxu0 %v925
        %v961 = vpop.f32.mrb[0].mxu0
        %v962 = vadd.f32 %v907, %v961
        %v963 = vpop.f32.mrb[0].mxu0
        %v964 = vpop.f32.mrb[0].mxu0
        %v965 = vpop.f32.mrb[0].mxu0
        %966 = vdwg.mxu0
        %967 = vst [vmem:[#allocation4] sm:$0xff] %v962
        %v968 = vld [vmem:[%s781] sm:$0xff]
        %s969 = scalar_lea.vmem [#allocation2], 16
        %v970 = vld [vmem:[%s969] sm:$0xff]
        %s971 = scalar_lea.vmem [#allocation3], 16
        %v972 = vld [vmem:[%s971] sm:$0xff]
        %s973 = scalar_lea.vmem [#allocation10], 32
        %v974 = vld [vmem:[%s973] sm:$0xf]
        %v975 = vld [vmem:[%s973 + $0x4] sm:$0xf]
        %v976 = vld [vmem:[%s973 + $0x8] sm:$0xf]
        %v977 = vld [vmem:[%s973 + $0xc] sm:$0xf]
        %v978 = vpack.c.bf16 %v970, %v970
        %v983 = vunpack.c.l.b16 %v974
        %v984 = vunpack.c.l.b16 %v975
        %v985 = vunpack.c.l.b16 %v976
        %v986 = vunpack.c.l.b16 %v977
        %v987 = vpack.c.b16 %v984, %v983
        %v988 = vpack.c.b16 %v986, %v985
        %v992 = vsel %vm433, %v978, 0
        %994 = vmatprep.subr.bf16.mxu0 0
        %995 = vmatpush1.bf16.msra.mxu0 %v987
        %996 = vmatprep.subr.bf16.mxu0 0
        %997 = vmatpush1.bf16.msra.mxu0 %v988
        %998 = vmatprep.subr.bf16.mxu0 0
        %999 = vmatpush1.bf16.msra.mxu0 0
        %1000 = vmatprep.subr.bf16.mxu0 0
        %1001 = vmatpush1.bf16.msra.mxu0 0
        %1002 = vmatprep.subr.bf16.mxu0 0
        %1003 = vmatpush1.bf16.msra.mxu0 0
        %1004 = vmatprep.subr.bf16.mxu0 0
        %1005 = vmatpush1.bf16.msra.mxu0 0
        %1006 = vmatprep.subr.bf16.mxu0 0
        %1007 = vmatpush1.bf16.msra.mxu0 0
        %1008 = vmatprep.subr.bf16.mxu0 0
        %1009 = vmatpush1.bf16.msra.mxu0 0
        %1010 = vmatprep.subr.bf16.mxu0 0
        %1011 = vmatpush1.bf16.msra.mxu0 0
        %1012 = vmatprep.subr.bf16.mxu0 0
        %1013 = vmatpush1.bf16.msra.mxu0 0
        %1014 = vmatprep.subr.bf16.mxu0 0
        %1015 = vmatpush1.bf16.msra.mxu0 0
        %1016 = vmatprep.subr.bf16.mxu0 0
        %1017 = vmatpush1.bf16.msra.mxu0 0
        %1018 = vmatprep.subr.bf16.mxu0 0
        %1019 = vmatpush1.bf16.msra.mxu0 0
        %1020 = vmatprep.subr.bf16.mxu0 0
        %1021 = vmatpush1.bf16.msra.mxu0 0
        %1022 = vmatprep.subr.bf16.mxu0 0
        %1023 = vmatpush1.bf16.msra.mxu0 0
        %1024 = vmatprep.subr.bf16.mxu0 0
        %1025 = vmatpush1.bf16.msra.mxu0 0
        %1026 = vmatprep.mubr.bf16.mxu0 0
        %1027 = vmatmul.mubr.bf16.gmra.mrb[0].mxu0 %v992
        %v1028 = vpop.f32.mrb[0].mxu0
        %v1029 = vadd.f32 0.0, %v1028
        %v1030 = vpop.f32.mrb[0].mxu0
        %v1031 = vpop.f32.mrb[0].mxu0
        %v1032 = vpop.f32.mrb[0].mxu0
        %1033 = vdwg.mxu0
        %v1034 = vadd.f32 %v968, %v1029
        %v1035 = vxor.u32 %v1034, 2147483648
        %v1036 = vmul.f32 %v1035, 1.442695
        %v1037 = vpow.pop %v1036
        %v1038 = vadd.f32 %v1037, 1.0
        %v1039 = vrcp.pop %v1038
        %v1040 = vmul.f32 1.0, %v1039
        %v1041 = vtanh.pop %v1034
        %1043 = vrot.lane.b32.xlu0 %v972, 32
        %v1044 = vpop.permute.xlu0 %1043
        %v1046 = vmul.f32 %v1040, %v1044
        %1048 = vrot.lane.b32.xlu0 %v1041, 64
        %v1049 = vpop.permute.xlu0 %1048
        %v1051 = vmul.f32 %v1040, %v1049
        %1053 = vrot.lane.b32.xlu0 %v1051, 32
        %v1054 = vpop.permute.xlu0 %1053
        %v1056 = vadd.f32 %v1046, %v1054
        %v1057 = vtanh.pop %v1056
        %1059 = vrot.lane.b32.xlu0 %v1057, 64
        %v1060 = vpop.permute.xlu0 %1059
        %v1062 = vmul.f32 %v1040, %v1060
        %1064 = vrot.lane.b32.xlu0 %v970, 96
        %v1065 = vpop.permute.xlu0 %1064
        %v1067 = vsel %vm510, %v1062, %v1065
        %v1068 = vsel %vm510, %v1056, %v1044
        %1070 = vrot.lane.b32.xlu0 %v1067, 32
        %v1071 = vpop.permute.xlu0 %1070
        %1073 = vst.msk [vmem:[%s969] sm:$0xff] %vm433, %v1071
        %1075 = vrot.lane.b32.xlu0 %v1068, 96
        %v1076 = vpop.permute.xlu0 %1075
        %1078 = vst.msk [vmem:[%s971] sm:$0xff] %vm433, %v1076
        %1079 = vst.msk [vmem:[%s388] sm:$0xff] %vm433, %v1071
        %v1080 = vld [vmem:[#allocation4] sm:$0xff]
        %v1081 = vld [vmem:[%s599] sm:$0xff]
        %v1082 = vld [vmem:[%s601] sm:$0xff]
        %v1083 = vld [vmem:[%s603] sm:$0xf]
        %v1084 = vld [vmem:[%s603 + $0x4] sm:$0xf]
        %v1085 = vld [vmem:[%s603 + $0x8] sm:$0xf]
        %v1086 = vld [vmem:[%s603 + $0xc] sm:$0xf]
        %v1087 = vpack.c.bf16 %v1081, %v1081
        %v1092 = vunpack.c.l.b16 %v1083
        %v1093 = vunpack.c.l.b16 %v1084
        %v1094 = vunpack.c.l.b16 %v1085
        %v1095 = vunpack.c.l.b16 %v1086
        %v1096 = vpack.c.b16 %v1093, %v1092
        %v1097 = vpack.c.b16 %v1095, %v1094
        %v1101 = vsel %vm433, %v1087, 0
        %1103 = vmatprep.subr.bf16.mxu0 0
        %1104 = vmatpush1.bf16.msra.mxu0 %v1096
        %1105 = vmatprep.subr.bf16.mxu0 0
        %1106 = vmatpush1.bf16.msra.mxu0 %v1097
        %1107 = vmatprep.subr.bf16.mxu0 0
        %1108 = vmatpush1.bf16.msra.mxu0 0
        %1109 = vmatprep.subr.bf16.mxu0 0
        %1110 = vmatpush1.bf16.msra.mxu0 0
        %1111 = vmatprep.subr.bf16.mxu0 0
        %1112 = vmatpush1.bf16.msra.mxu0 0
        %1113 = vmatprep.subr.bf16.mxu0 0
        %1114 = vmatpush1.bf16.msra.mxu0 0
        %1115 = vmatprep.subr.bf16.mxu0 0
        %1116 = vmatpush1.bf16.msra.mxu0 0
        %1117 = vmatprep.subr.bf16.mxu0 0
        %1118 = vmatpush1.bf16.msra.mxu0 0
        %1119 = vmatprep.subr.bf16.mxu0 0
        %1120 = vmatpush1.bf16.msra.mxu0 0
        %1121 = vmatprep.subr.bf16.mxu0 0
        %1122 = vmatpush1.bf16.msra.mxu0 0
        %1123 = vmatprep.subr.bf16.mxu0 0
        %1124 = vmatpush1.bf16.msra.mxu0 0
        %1125 = vmatprep.subr.bf16.mxu0 0
        %1126 = vmatpush1.bf16.msra.mxu0 0
        %1127 = vmatprep.subr.bf16.mxu0 0
        %1128 = vmatpush1.bf16.msra.mxu0 0
        %1129 = vmatprep.subr.bf16.mxu0 0
        %1130 = vmatpush1.bf16.msra.mxu0 0
        %1131 = vmatprep.subr.bf16.mxu0 0
        %1132 = vmatpush1.bf16.msra.mxu0 0
        %1133 = vmatprep.subr.bf16.mxu0 0
        %1134 = vmatpush1.bf16.msra.mxu0 0
        %1135 = vmatprep.mubr.bf16.mxu0 0
        %1136 = vmatmul.mubr.bf16.gmra.mrb[0].mxu0 %v1101
        %v1137 = vpop.f32.mrb[0].mxu0
        %v1138 = vadd.f32 0.0, %v1137
        %v1139 = vpop.f32.mrb[0].mxu0
        %v1140 = vpop.f32.mrb[0].mxu0
        %v1141 = vpop.f32.mrb[0].mxu0
        %1142 = vdwg.mxu0
        %v1143 = vadd.f32 %v1080, %v1138
        %v1144 = vxor.u32 %v1143, 2147483648
        %v1145 = vmul.f32 %v1144, 1.442695
        %v1146 = vpow.pop %v1145
        %v1147 = vadd.f32 %v1146, 1.0
        %v1148 = vrcp.pop %v1147
        %v1149 = vmul.f32 1.0, %v1148
        %v1150 = vtanh.pop %v1143
        %1152 = vrot.lane.b32.xlu0 %v1082, 32
        %v1153 = vpop.permute.xlu0 %1152
        %v1155 = vmul.f32 %v1149, %v1153
        %1157 = vrot.lane.b32.xlu0 %v1150, 64
        %v1158 = vpop.permute.xlu0 %1157
        %v1160 = vmul.f32 %v1149, %v1158
        %1162 = vrot.lane.b32.xlu0 %v1160, 32
        %v1163 = vpop.permute.xlu0 %1162
        %v1165 = vadd.f32 %v1155, %v1163
        %v1166 = vtanh.pop %v1165
        %1168 = vrot.lane.b32.xlu0 %v1166, 64
        %v1169 = vpop.permute.xlu0 %1168
        %v1171 = vmul.f32 %v1149, %v1169
        %1173 = vrot.lane.b32.xlu0 %v1081, 96
        %v1174 = vpop.permute.xlu0 %1173
        %v1176 = vsel %vm880, %v1171, %v1174
        %v1177 = vsel %vm880, %v1165, %v1153
        %1179 = vrot.lane.b32.xlu0 %v1176, 32
        %v1180 = vpop.permute.xlu0 %1179
        %1182 = vst.msk [vmem:[%s599] sm:$0xff] %vm433, %v1180
        %1184 = vrot.lane.b32.xlu0 %v1177, 96
        %v1185 = vpop.permute.xlu0 %1184
        %1187 = vst.msk [vmem:[%s601] sm:$0xff] %vm433, %v1185
        %v1188 = vpack.c.bf16 %v1176, %v1176
        %v1189 = vld [vmem:[%s710] sm:$0xf]
        %v1190 = vld [vmem:[%s710 + $0x4] sm:$0xf]
        %v1191 = vld [vmem:[%s710 + $0x8] sm:$0xf]
        %v1192 = vld [vmem:[%s710 + $0xc] sm:$0xf]
        %v1193 = vld [vmem:[%s715] sm:$0x1]
        %v1195 = vlaneseq
        %v1196 = vshrl.u32 %v1195, 7
        %v1197 = vsub.s32 0, %v1196
        %v1198 = vrot.slane %v1193, %v1197
        %1201 = vrot.lane.b32.xlu0 %v1188, 32
        %v1202 = vpop.permute.xlu0 %1201
        %v1207 = vunpack.c.l.b16 %v1189
        %v1208 = vunpack.c.l.b16 %v1190
        %v1209 = vunpack.c.l.b16 %v1191
        %v1210 = vunpack.c.l.b16 %v1192
        %v1211 = vpack.c.b16 %v1208, %v1207
        %v1212 = vpack.c.b16 %v1210, %v1209
        %v1216 = vsel %vm433, %v1202, 0
        %1218 = vmatprep.subr.bf16.mxu0 0
        %1219 = vmatpush1.bf16.msra.mxu0 %v1211
        %1220 = vmatprep.subr.bf16.mxu0 0
        %1221 = vmatpush1.bf16.msra.mxu0 %v1212
        %1222 = vmatprep.subr.bf16.mxu0 0
        %1223 = vmatpush1.bf16.msra.mxu0 0
        %1224 = vmatprep.subr.bf16.mxu0 0
        %1225 = vmatpush1.bf16.msra.mxu0 0
        %1226 = vmatprep.subr.bf16.mxu0 0
        %1227 = vmatpush1.bf16.msra.mxu0 0
        %1228 = vmatprep.subr.bf16.mxu0 0
        %1229 = vmatpush1.bf16.msra.mxu0 0
        %1230 = vmatprep.subr.bf16.mxu0 0
        %1231 = vmatpush1.bf16.msra.mxu0 0
        %1232 = vmatprep.subr.bf16.mxu0 0
        %1233 = vmatpush1.bf16.msra.mxu0 0
        %1234 = vmatprep.subr.bf16.mxu0 0
        %1235 = vmatpush1.bf16.msra.mxu0 0
        %1236 = vmatprep.subr.bf16.mxu0 0
        %1237 = vmatpush1.bf16.msra.mxu0 0
        %1238 = vmatprep.subr.bf16.mxu0 0
        %1239 = vmatpush1.bf16.msra.mxu0 0
        %1240 = vmatprep.subr.bf16.mxu0 0
        %1241 = vmatpush1.bf16.msra.mxu0 0
        %1242 = vmatprep.subr.bf16.mxu0 0
        %1243 = vmatpush1.bf16.msra.mxu0 0
        %1244 = vmatprep.subr.bf16.mxu0 0
        %1245 = vmatpush1.bf16.msra.mxu0 0
        %1246 = vmatprep.subr.bf16.mxu0 0
        %1247 = vmatpush1.bf16.msra.mxu0 0
        %1248 = vmatprep.subr.bf16.mxu0 0
        %1249 = vmatpush1.bf16.msra.mxu0 0
        %1250 = vmatprep.mubr.bf16.mxu0 0
        %1251 = vmatmul.mubr.bf16.gmra.mrb[0].mxu0 %v1216
        %v1252 = vpop.f32.mrb[0].mxu0
        %v1253 = vadd.f32 %v1198, %v1252
        %v1254 = vpop.f32.mrb[0].mxu0
        %v1255 = vpop.f32.mrb[0].mxu0
        %v1256 = vpop.f32.mrb[0].mxu0
        %1257 = vdwg.mxu0
        %1258 = vst [vmem:[%s781] sm:$0xff] %v1253
        %s1259 = scalar_lea.vmem %s340, 16 [#allocation5]
        %v1260 = vld [vmem:[%s1259] sm:$0xff]
        %v1261 = vld [vmem:[#allocation2] sm:$0xff]
        %v1262 = vld [vmem:[#allocation3] sm:$0xff]
        %v1263 = vld [vmem:[#allocation10] sm:$0xf]
        %v1264 = vld [vmem:[#allocation10 + $0x4] sm:$0xf]
        %v1265 = vld [vmem:[#allocation10 + $0x8] sm:$0xf]
        %v1266 = vld [vmem:[#allocation10 + $0xc] sm:$0xf]
        %v1267 = vpack.c.bf16 %v1261, %v1261
        %v1272 = vunpack.c.l.b16 %v1263
        %v1273 = vunpack.c.l.b16 %v1264
        %v1274 = vunpack.c.l.b16 %v1265
        %v1275 = vunpack.c.l.b16 %v1266
        %v1276 = vpack.c.b16 %v1273, %v1272
        %v1277 = vpack.c.b16 %v1275, %v1274
        %v1281 = vsel %vm433, %v1267, 0
        %1283 = vmatprep.subr.bf16.mxu0 0
        %1284 = vmatpush1.bf16.msra.mxu0 %v1276
        %1285 = vmatprep.subr.bf16.mxu0 0
        %1286 = vmatpush1.bf16.msra.mxu0 %v1277
        %1287 = vmatprep.subr.bf16.mxu0 0
        %1288 = vmatpush1.bf16.msra.mxu0 0
        %1289 = vmatprep.subr.bf16.mxu0 0
        %1290 = vmatpush1.bf16.msra.mxu0 0
        %1291 = vmatprep.subr.bf16.mxu0 0
        %1292 = vmatpush1.bf16.msra.mxu0 0
        %1293 = vmatprep.subr.bf16.mxu0 0
        %1294 = vmatpush1.bf16.msra.mxu0 0
        %1295 = vmatprep.subr.bf16.mxu0 0
        %1296 = vmatpush1.bf16.msra.mxu0 0
        %1297 = vmatprep.subr.bf16.mxu0 0
        %1298 = vmatpush1.bf16.msra.mxu0 0
        %1299 = vmatprep.subr.bf16.mxu0 0
        %1300 = vmatpush1.bf16.msra.mxu0 0
        %1301 = vmatprep.subr.bf16.mxu0 0
        %1302 = vmatpush1.bf16.msra.mxu0 0
        %1303 = vmatprep.subr.bf16.mxu0 0
        %1304 = vmatpush1.bf16.msra.mxu0 0
        %1305 = vmatprep.subr.bf16.mxu0 0
        %1306 = vmatpush1.bf16.msra.mxu0 0
        %1307 = vmatprep.subr.bf16.mxu0 0
        %1308 = vmatpush1.bf16.msra.mxu0 0
        %1309 = vmatprep.subr.bf16.mxu0 0
        %1310 = vmatpush1.bf16.msra.mxu0 0
        %1311 = vmatprep.subr.bf16.mxu0 0
        %1312 = vmatpush1.bf16.msra.mxu0 0
        %1313 = vmatprep.subr.bf16.mxu0 0
        %1314 = vmatpush1.bf16.msra.mxu0 0
        %1315 = vmatprep.mubr.bf16.mxu0 0
        %1316 = vmatmul.mubr.bf16.gmra.mrb[0].mxu0 %v1281
        %v1317 = vpop.f32.mrb[0].mxu0
        %v1318 = vadd.f32 0.0, %v1317
        %v1319 = vpop.f32.mrb[0].mxu0
        %v1320 = vpop.f32.mrb[0].mxu0
        %v1321 = vpop.f32.mrb[0].mxu0
        %1322 = vdwg.mxu0
        %v1323 = vadd.f32 %v1260, %v1318
        %v1324 = vxor.u32 %v1323, 2147483648
        %v1325 = vmul.f32 %v1324, 1.442695
        %v1326 = vpow.pop %v1325
        %v1327 = vadd.f32 %v1326, 1.0
        %v1328 = vrcp.pop %v1327
        %v1329 = vmul.f32 1.0, %v1328
        %v1330 = vtanh.pop %v1323
        %1332 = vrot.lane.b32.xlu0 %v1262, 32
        %v1333 = vpop.permute.xlu0 %1332
        %v1335 = vmul.f32 %v1329, %v1333
        %1337 = vrot.lane.b32.xlu0 %v1330, 64
        %v1338 = vpop.permute.xlu0 %1337
        %v1340 = vmul.f32 %v1329, %v1338
        %1342 = vrot.lane.b32.xlu0 %v1340, 32
        %v1343 = vpop.permute.xlu0 %1342
        %v1345 = vadd.f32 %v1335, %v1343
        %v1346 = vtanh.pop %v1345
        %1348 = vrot.lane.b32.xlu0 %v1346, 64
        %v1349 = vpop.permute.xlu0 %1348
        %v1351 = vmul.f32 %v1329, %v1349
        %s1352 = sadd.s32 %s506, 2
        %p1353 = scmp.lt.s32.totalorder %s1352, 12
        %s1354 = scalar_select %p1353, 1, 0
        %v1355 = vstv %s1354
        %vm1356 = vcmp.eq.s32.totalorder %v1355, 1
        %1358 = vrot.lane.b32.xlu0 %v1261, 96
        %v1359 = vpop.permute.xlu0 %1358
        %v1361 = vsel %vm1356, %v1351, %v1359
        %v1362 = vsel %vm1356, %v1345, %v1333
        %1364 = vrot.lane.b32.xlu0 %v1361, 32
        %v1365 = vpop.permute.xlu0 %1364
        %1367 = vst.msk [vmem:[#allocation2] sm:$0xff] %vm433, %v1365
        %1369 = vrot.lane.b32.xlu0 %v1362, 96
        %v1370 = vpop.permute.xlu0 %1369
        %1372 = vst.msk [vmem:[#allocation3] sm:$0xff] %vm433, %v1370
        %v1373 = vpack.c.bf16 %v1361, %v1361
        %v1374 = vld [vmem:[#allocation8] sm:$0xf]
        %v1375 = vld [vmem:[#allocation8 + $0x4] sm:$0xf]
        %v1376 = vld [vmem:[#allocation8 + $0x8] sm:$0xf]
        %v1377 = vld [vmem:[#allocation8 + $0xc] sm:$0xf]
        %v1378 = vld [vmem:[#allocation11] sm:$0x1]
        %v1380 = vlaneseq
        %v1381 = vshrl.u32 %v1380, 7
        %v1382 = vsub.s32 0, %v1381
        %v1383 = vrot.slane %v1378, %v1382
        %1386 = vrot.lane.b32.xlu0 %v1373, 32
        %v1387 = vpop.permute.xlu0 %1386
        %v1392 = vunpack.c.l.b16 %v1374
        %v1393 = vunpack.c.l.b16 %v1375
        %v1394 = vunpack.c.l.b16 %v1376
        %v1395 = vunpack.c.l.b16 %v1377
        %v1396 = vpack.c.b16 %v1393, %v1392
        %v1397 = vpack.c.b16 %v1395, %v1394
        %v1401 = vsel %vm433, %v1387, 0
        %1403 = vmatprep.subr.bf16.mxu0 0
        %1404 = vmatpush1.bf16.msra.mxu0 %v1396
        %1405 = vmatprep.subr.bf16.mxu0 0
        %1406 = vmatpush1.bf16.msra.mxu0 %v1397
        %1407 = vmatprep.subr.bf16.mxu0 0
        %1408 = vmatpush1.bf16.msra.mxu0 0
        %1409 = vmatprep.subr.bf16.mxu0 0
        %1410 = vmatpush1.bf16.msra.mxu0 0
        %1411 = vmatprep.subr.bf16.mxu0 0
        %1412 = vmatpush1.bf16.msra.mxu0 0
        %1413 = vmatprep.subr.bf16.mxu0 0
        %1414 = vmatpush1.bf16.msra.mxu0 0
        %1415 = vmatprep.subr.bf16.mxu0 0
        %1416 = vmatpush1.bf16.msra.mxu0 0
        %1417 = vmatprep.subr.bf16.mxu0 0
        %1418 = vmatpush1.bf16.msra.mxu0 0
        %1419 = vmatprep.subr.bf16.mxu0 0
        %1420 = vmatpush1.bf16.msra.mxu0 0
        %1421 = vmatprep.subr.bf16.mxu0 0
        %1422 = vmatpush1.bf16.msra.mxu0 0
        %1423 = vmatprep.subr.bf16.mxu0 0
        %1424 = vmatpush1.bf16.msra.mxu0 0
        %1425 = vmatprep.subr.bf16.mxu0 0
        %1426 = vmatpush1.bf16.msra.mxu0 0
        %1427 = vmatprep.subr.bf16.mxu0 0
        %1428 = vmatpush1.bf16.msra.mxu0 0
        %1429 = vmatprep.subr.bf16.mxu0 0
        %1430 = vmatpush1.bf16.msra.mxu0 0
        %1431 = vmatprep.subr.bf16.mxu0 0
        %1432 = vmatpush1.bf16.msra.mxu0 0
        %1433 = vmatprep.subr.bf16.mxu0 0
        %1434 = vmatpush1.bf16.msra.mxu0 0
        %1435 = vmatprep.mubr.bf16.mxu0 0
        %1436 = vmatmul.mubr.bf16.gmra.mrb[0].mxu0 %v1401
        %v1437 = vpop.f32.mrb[0].mxu0
        %v1438 = vadd.f32 %v1383, %v1437
        %v1439 = vpop.f32.mrb[0].mxu0
        %v1440 = vpop.f32.mrb[0].mxu0
        %v1441 = vpop.f32.mrb[0].mxu0
        %1442 = vdwg.mxu0
        %1443 = vst [vmem:[#allocation4] sm:$0xff] %v1438
        %v1444 = vld [vmem:[%s781] sm:$0xff]
        %v1445 = vld [vmem:[%s969] sm:$0xff]
        %v1446 = vld [vmem:[%s971] sm:$0xff]
        %v1447 = vld [vmem:[%s973] sm:$0xf]
        %v1448 = vld [vmem:[%s973 + $0x4] sm:$0xf]
        %v1449 = vld [vmem:[%s973 + $0x8] sm:$0xf]
        %v1450 = vld [vmem:[%s973 + $0xc] sm:$0xf]
        %v1451 = vpack.c.bf16 %v1445, %v1445
        %v1456 = vunpack.c.l.b16 %v1447
        %v1457 = vunpack.c.l.b16 %v1448
        %v1458 = vunpack.c.l.b16 %v1449
        %v1459 = vunpack.c.l.b16 %v1450
        %v1460 = vpack.c.b16 %v1457, %v1456
        %v1461 = vpack.c.b16 %v1459, %v1458
        %v1465 = vsel %vm433, %v1451, 0
        %1467 = vmatprep.subr.bf16.mxu0 0
        %1468 = vmatpush1.bf16.msra.mxu0 %v1460
        %1469 = vmatprep.subr.bf16.mxu0 0
        %1470 = vmatpush1.bf16.msra.mxu0 %v1461
        %1471 = vmatprep.subr.bf16.mxu0 0
        %1472 = vmatpush1.bf16.msra.mxu0 0
        %1473 = vmatprep.subr.bf16.mxu0 0
        %1474 = vmatpush1.bf16.msra.mxu0 0
        %1475 = vmatprep.subr.bf16.mxu0 0
        %1476 = vmatpush1.bf16.msra.mxu0 0
        %1477 = vmatprep.subr.bf16.mxu0 0
        %1478 = vmatpush1.bf16.msra.mxu0 0
        %1479 = vmatprep.subr.bf16.mxu0 0
        %1480 = vmatpush1.bf16.msra.mxu0 0
        %1481 = vmatprep.subr.bf16.mxu0 0
        %1482 = vmatpush1.bf16.msra.mxu0 0
        %1483 = vmatprep.subr.bf16.mxu0 0
        %1484 = vmatpush1.bf16.msra.mxu0 0
        %1485 = vmatprep.subr.bf16.mxu0 0
        %1486 = vmatpush1.bf16.msra.mxu0 0
        %1487 = vmatprep.subr.bf16.mxu0 0
        %1488 = vmatpush1.bf16.msra.mxu0 0
        %1489 = vmatprep.subr.bf16.mxu0 0
        %1490 = vmatpush1.bf16.msra.mxu0 0
        %1491 = vmatprep.subr.bf16.mxu0 0
        %1492 = vmatpush1.bf16.msra.mxu0 0
        %1493 = vmatprep.subr.bf16.mxu0 0
        %1494 = vmatpush1.bf16.msra.mxu0 0
        %1495 = vmatprep.subr.bf16.mxu0 0
        %1496 = vmatpush1.bf16.msra.mxu0 0
        %1497 = vmatprep.subr.bf16.mxu0 0
        %1498 = vmatpush1.bf16.msra.mxu0 0
        %1499 = vmatprep.mubr.bf16.mxu0 0
        %1500 = vmatmul.mubr.bf16.gmra.mrb[0].mxu0 %v1465
        %v1501 = vpop.f32.mrb[0].mxu0
        %v1502 = vadd.f32 0.0, %v1501
        %v1503 = vpop.f32.mrb[0].mxu0
        %v1504 = vpop.f32.mrb[0].mxu0
        %v1505 = vpop.f32.mrb[0].mxu0
        %1506 = vdwg.mxu0
        %v1507 = vadd.f32 %v1444, %v1502
        %v1508 = vxor.u32 %v1507, 2147483648
        %v1509 = vmul.f32 %v1508, 1.442695
        %v1510 = vpow.pop %v1509
        %v1511 = vadd.f32 %v1510, 1.0
        %v1512 = vrcp.pop %v1511
        %v1513 = vmul.f32 1.0, %v1512
        %v1514 = vtanh.pop %v1507
        %1516 = vrot.lane.b32.xlu0 %v1446, 32
        %v1517 = vpop.permute.xlu0 %1516
        %v1519 = vmul.f32 %v1513, %v1517
        %1521 = vrot.lane.b32.xlu0 %v1514, 64
        %v1522 = vpop.permute.xlu0 %1521
        %v1524 = vmul.f32 %v1513, %v1522
        %1526 = vrot.lane.b32.xlu0 %v1524, 32
        %v1527 = vpop.permute.xlu0 %1526
        %v1529 = vadd.f32 %v1519, %v1527
        %v1530 = vtanh.pop %v1529
        %1532 = vrot.lane.b32.xlu0 %v1530, 64
        %v1533 = vpop.permute.xlu0 %1532
        %v1535 = vmul.f32 %v1513, %v1533
        %1537 = vrot.lane.b32.xlu0 %v1445, 96
        %v1538 = vpop.permute.xlu0 %1537
        %v1540 = vsel %vm880, %v1535, %v1538
        %v1541 = vsel %vm880, %v1529, %v1517
        %1543 = vrot.lane.b32.xlu0 %v1540, 32
        %v1544 = vpop.permute.xlu0 %1543
        %1546 = vst.msk [vmem:[%s969] sm:$0xff] %vm433, %v1544
        %1548 = vrot.lane.b32.xlu0 %v1541, 96
        %v1549 = vpop.permute.xlu0 %1548
        %1551 = vst.msk [vmem:[%s971] sm:$0xff] %vm433, %v1549
        %1552 = vst.msk [vmem:[%s388 + $0x8] sm:$0xff] %vm433, %v1544
        %v1553 = vld [vmem:[#allocation4] sm:$0xff]
        %v1554 = vld [vmem:[%s599] sm:$0xff]
        %v1555 = vld [vmem:[%s601] sm:$0xff]
        %v1556 = vld [vmem:[%s603] sm:$0xf]
        %v1557 = vld [vmem:[%s603 + $0x4] sm:$0xf]
        %v1558 = vld [vmem:[%s603 + $0x8] sm:$0xf]
        %v1559 = vld [vmem:[%s603 + $0xc] sm:$0xf]
        %v1560 = vpack.c.bf16 %v1554, %v1554
        %v1565 = vunpack.c.l.b16 %v1556
        %v1566 = vunpack.c.l.b16 %v1557
        %v1567 = vunpack.c.l.b16 %v1558
        %v1568 = vunpack.c.l.b16 %v1559
        %v1569 = vpack.c.b16 %v1566, %v1565
        %v1570 = vpack.c.b16 %v1568, %v1567
        %v1574 = vsel %vm433, %v1560, 0
        %1576 = vmatprep.subr.bf16.mxu0 0
        %1577 = vmatpush1.bf16.msra.mxu0 %v1569
        %1578 = vmatprep.subr.bf16.mxu0 0
        %1579 = vmatpush1.bf16.msra.mxu0 %v1570
        %1580 = vmatprep.subr.bf16.mxu0 0
        %1581 = vmatpush1.bf16.msra.mxu0 0
        %1582 = vmatprep.subr.bf16.mxu0 0
        %1583 = vmatpush1.bf16.msra.mxu0 0
        %1584 = vmatprep.subr.bf16.mxu0 0
        %1585 = vmatpush1.bf16.msra.mxu0 0
        %1586 = vmatprep.subr.bf16.mxu0 0
        %1587 = vmatpush1.bf16.msra.mxu0 0
        %1588 = vmatprep.subr.bf16.mxu0 0
        %1589 = vmatpush1.bf16.msra.mxu0 0
        %1590 = vmatprep.subr.bf16.mxu0 0
        %1591 = vmatpush1.bf16.msra.mxu0 0
        %1592 = vmatprep.subr.bf16.mxu0 0
        %1593 = vmatpush1.bf16.msra.mxu0 0
        %1594 = vmatprep.subr.bf16.mxu0 0
        %1595 = vmatpush1.bf16.msra.mxu0 0
        %1596 = vmatprep.subr.bf16.mxu0 0
        %1597 = vmatpush1.bf16.msra.mxu0 0
        %1598 = vmatprep.subr.bf16.mxu0 0
        %1599 = vmatpush1.bf16.msra.mxu0 0
        %1600 = vmatprep.subr.bf16.mxu0 0
        %1601 = vmatpush1.bf16.msra.mxu0 0
        %1602 = vmatprep.subr.bf16.mxu0 0
        %1603 = vmatpush1.bf16.msra.mxu0 0
        %1604 = vmatprep.subr.bf16.mxu0 0
        %1605 = vmatpush1.bf16.msra.mxu0 0
        %1606 = vmatprep.subr.bf16.mxu0 0
        %1607 = vmatpush1.bf16.msra.mxu0 0
        %1608 = vmatprep.mubr.bf16.mxu0 0
        %1609 = vmatmul.mubr.bf16.gmra.mrb[0].mxu0 %v1574
        %v1610 = vpop.f32.mrb[0].mxu0
        %v1611 = vadd.f32 0.0, %v1610
        %v1612 = vpop.f32.mrb[0].mxu0
        %v1613 = vpop.f32.mrb[0].mxu0
        %v1614 = vpop.f32.mrb[0].mxu0
        %1615 = vdwg.mxu0
        %v1616 = vadd.f32 %v1553, %v1611
        %v1617 = vxor.u32 %v1616, 2147483648
        %v1618 = vmul.f32 %v1617, 1.442695
        %v1619 = vpow.pop %v1618
        %v1620 = vadd.f32 %v1619, 1.0
        %v1621 = vrcp.pop %v1620
        %v1622 = vmul.f32 1.0, %v1621
        %v1623 = vtanh.pop %v1616
        %1625 = vrot.lane.b32.xlu0 %v1555, 32
        %v1626 = vpop.permute.xlu0 %1625
        %v1628 = vmul.f32 %v1622, %v1626
        %1630 = vrot.lane.b32.xlu0 %v1623, 64
        %v1631 = vpop.permute.xlu0 %1630
        %v1633 = vmul.f32 %v1622, %v1631
        %1635 = vrot.lane.b32.xlu0 %v1633, 32
        %v1636 = vpop.permute.xlu0 %1635
        %v1638 = vadd.f32 %v1628, %v1636
        %v1639 = vtanh.pop %v1638
        %1641 = vrot.lane.b32.xlu0 %v1639, 64
        %v1642 = vpop.permute.xlu0 %1641
        %v1644 = vmul.f32 %v1622, %v1642
        %1646 = vrot.lane.b32.xlu0 %v1554, 96
        %v1647 = vpop.permute.xlu0 %1646
        %v1649 = vsel %vm1356, %v1644, %v1647
        %v1650 = vsel %vm1356, %v1638, %v1626
        %1652 = vrot.lane.b32.xlu0 %v1649, 32
        %v1653 = vpop.permute.xlu0 %1652
        %1655 = vst.msk [vmem:[%s599] sm:$0xff] %vm433, %v1653
        %1657 = vrot.lane.b32.xlu0 %v1650, 96
        %v1658 = vpop.permute.xlu0 %1657
        %1660 = vst.msk [vmem:[%s601] sm:$0xff] %vm433, %v1658
        %v1661 = vpack.c.bf16 %v1649, %v1649
        %v1662 = vld [vmem:[%s710] sm:$0xf]
        %v1663 = vld [vmem:[%s710 + $0x4] sm:$0xf]
        %v1664 = vld [vmem:[%s710 + $0x8] sm:$0xf]
        %v1665 = vld [vmem:[%s710 + $0xc] sm:$0xf]
        %v1666 = vld [vmem:[%s715] sm:$0x1]
        %v1668 = vlaneseq
        %v1669 = vshrl.u32 %v1668, 7
        %v1670 = vsub.s32 0, %v1669
        %v1671 = vrot.slane %v1666, %v1670
        %1674 = vrot.lane.b32.xlu0 %v1661, 32
        %v1675 = vpop.permute.xlu0 %1674
        %v1680 = vunpack.c.l.b16 %v1662
        %v1681 = vunpack.c.l.b16 %v1663
        %v1682 = vunpack.c.l.b16 %v1664
        %v1683 = vunpack.c.l.b16 %v1665
        %v1684 = vpack.c.b16 %v1681, %v1680
        %v1685 = vpack.c.b16 %v1683, %v1682
        %v1689 = vsel %vm433, %v1675, 0
        %1691 = vmatprep.subr.bf16.mxu0 0
        %1692 = vmatpush1.bf16.msra.mxu0 %v1684
        %1693 = vmatprep.subr.bf16.mxu0 0
        %1694 = vmatpush1.bf16.msra.mxu0 %v1685
        %1695 = vmatprep.subr.bf16.mxu0 0
        %1696 = vmatpush1.bf16.msra.mxu0 0
        %1697 = vmatprep.subr.bf16.mxu0 0
        %1698 = vmatpush1.bf16.msra.mxu0 0
        %1699 = vmatprep.subr.bf16.mxu0 0
        %1700 = vmatpush1.bf16.msra.mxu0 0
        %1701 = vmatprep.subr.bf16.mxu0 0
        %1702 = vmatpush1.bf16.msra.mxu0 0
        %1703 = vmatprep.subr.bf16.mxu0 0
        %1704 = vmatpush1.bf16.msra.mxu0 0
        %1705 = vmatprep.subr.bf16.mxu0 0
        %1706 = vmatpush1.bf16.msra.mxu0 0
        %1707 = vmatprep.subr.bf16.mxu0 0
        %1708 = vmatpush1.bf16.msra.mxu0 0
        %1709 = vmatprep.subr.bf16.mxu0 0
        %1710 = vmatpush1.bf16.msra.mxu0 0
        %1711 = vmatprep.subr.bf16.mxu0 0
        %1712 = vmatpush1.bf16.msra.mxu0 0
        %1713 = vmatprep.subr.bf16.mxu0 0
        %1714 = vmatpush1.bf16.msra.mxu0 0
        %1715 = vmatprep.subr.bf16.mxu0 0
        %1716 = vmatpush1.bf16.msra.mxu0 0
        %1717 = vmatprep.subr.bf16.mxu0 0
        %1718 = vmatpush1.bf16.msra.mxu0 0
        %1719 = vmatprep.subr.bf16.mxu0 0
        %1720 = vmatpush1.bf16.msra.mxu0 0
        %1721 = vmatprep.subr.bf16.mxu0 0
        %1722 = vmatpush1.bf16.msra.mxu0 0
        %1723 = vmatprep.mubr.bf16.mxu0 0
        %1724 = vmatmul.mubr.bf16.gmra.mrb[0].mxu0 %v1689
        %v1725 = vpop.f32.mrb[0].mxu0
        %v1726 = vadd.f32 %v1671, %v1725
        %v1727 = vpop.f32.mrb[0].mxu0
        %v1728 = vpop.f32.mrb[0].mxu0
        %v1729 = vpop.f32.mrb[0].mxu0
        %1730 = vdwg.mxu0
        %1731 = vst [vmem:[%s781] sm:$0xff] %v1726
        %s1732 = scalar_lea.vmem %s340, 24 [#allocation5]
        %v1733 = vld [vmem:[%s1732] sm:$0xff]
        %v1734 = vld [vmem:[#allocation2] sm:$0xff]
        %v1735 = vld [vmem:[#allocation3] sm:$0xff]
        %v1736 = vld [vmem:[#allocation10] sm:$0xf]
        %v1737 = vld [vmem:[#allocation10 + $0x4] sm:$0xf]
        %v1738 = vld [vmem:[#allocation10 + $0x8] sm:$0xf]
        %v1739 = vld [vmem:[#allocation10 + $0xc] sm:$0xf]
        %v1740 = vpack.c.bf16 %v1734, %v1734
        %v1745 = vunpack.c.l.b16 %v1736
        %v1746 = vunpack.c.l.b16 %v1737
        %v1747 = vunpack.c.l.b16 %v1738
        %v1748 = vunpack.c.l.b16 %v1739
        %v1749 = vpack.c.b16 %v1746, %v1745
        %v1750 = vpack.c.b16 %v1748, %v1747
        %v1754 = vsel %vm433, %v1740, 0
        %1756 = vmatprep.subr.bf16.mxu0 0
        %1757 = vmatpush1.bf16.msra.mxu0 %v1749
        %1758 = vmatprep.subr.bf16.mxu0 0
        %1759 = vmatpush1.bf16.msra.mxu0 %v1750
        %1760 = vmatprep.subr.bf16.mxu0 0
        %1761 = vmatpush1.bf16.msra.mxu0 0
        %1762 = vmatprep.subr.bf16.mxu0 0
        %1763 = vmatpush1.bf16.msra.mxu0 0
        %1764 = vmatprep.subr.bf16.mxu0 0
        %1765 = vmatpush1.bf16.msra.mxu0 0
        %1766 = vmatprep.subr.bf16.mxu0 0
        %1767 = vmatpush1.bf16.msra.mxu0 0
        %1768 = vmatprep.subr.bf16.mxu0 0
        %1769 = vmatpush1.bf16.msra.mxu0 0
        %1770 = vmatprep.subr.bf16.mxu0 0
        %1771 = vmatpush1.bf16.msra.mxu0 0
        %1772 = vmatprep.subr.bf16.mxu0 0
        %1773 = vmatpush1.bf16.msra.mxu0 0
        %1774 = vmatprep.subr.bf16.mxu0 0
        %1775 = vmatpush1.bf16.msra.mxu0 0
        %1776 = vmatprep.subr.bf16.mxu0 0
        %1777 = vmatpush1.bf16.msra.mxu0 0
        %1778 = vmatprep.subr.bf16.mxu0 0
        %1779 = vmatpush1.bf16.msra.mxu0 0
        %1780 = vmatprep.subr.bf16.mxu0 0
        %1781 = vmatpush1.bf16.msra.mxu0 0
        %1782 = vmatprep.subr.bf16.mxu0 0
        %1783 = vmatpush1.bf16.msra.mxu0 0
        %1784 = vmatprep.subr.bf16.mxu0 0
        %1785 = vmatpush1.bf16.msra.mxu0 0
        %1786 = vmatprep.subr.bf16.mxu0 0
        %1787 = vmatpush1.bf16.msra.mxu0 0
        %1788 = vmatprep.mubr.bf16.mxu0 0
        %1789 = vmatmul.mubr.bf16.gmra.mrb[0].mxu0 %v1754
        %v1790 = vpop.f32.mrb[0].mxu0
        %v1791 = vadd.f32 0.0, %v1790
        %v1792 = vpop.f32.mrb[0].mxu0
        %v1793 = vpop.f32.mrb[0].mxu0
        %v1794 = vpop.f32.mrb[0].mxu0
        %1795 = vdwg.mxu0
        %v1796 = vadd.f32 %v1733, %v1791
        %v1797 = vxor.u32 %v1796, 2147483648
        %v1798 = vmul.f32 %v1797, 1.442695
        %v1799 = vpow.pop %v1798
        %v1800 = vadd.f32 %v1799, 1.0
        %v1801 = vrcp.pop %v1800
        %v1802 = vmul.f32 1.0, %v1801
        %v1803 = vtanh.pop %v1796
        %1805 = vrot.lane.b32.xlu0 %v1735, 32
        %v1806 = vpop.permute.xlu0 %1805
        %v1808 = vmul.f32 %v1802, %v1806
        %1810 = vrot.lane.b32.xlu0 %v1803, 64
        %v1811 = vpop.permute.xlu0 %1810
        %v1813 = vmul.f32 %v1802, %v1811
        %1815 = vrot.lane.b32.xlu0 %v1813, 32
        %v1816 = vpop.permute.xlu0 %1815
        %v1818 = vadd.f32 %v1808, %v1816
        %v1819 = vtanh.pop %v1818
        %1821 = vrot.lane.b32.xlu0 %v1819, 64
        %v1822 = vpop.permute.xlu0 %1821
        %v1824 = vmul.f32 %v1802, %v1822
        %s1825 = sadd.s32 %s506, 3
        %p1826 = scmp.lt.s32.totalorder %s1825, 12
        %s1827 = scalar_select %p1826, 1, 0
        %v1828 = vstv %s1827
        %vm1829 = vcmp.eq.s32.totalorder %v1828, 1
        %1831 = vrot.lane.b32.xlu0 %v1734, 96
        %v1832 = vpop.permute.xlu0 %1831
        %v1834 = vsel %vm1829, %v1824, %v1832
        %v1835 = vsel %vm1829, %v1818, %v1806
        %1837 = vrot.lane.b32.xlu0 %v1834, 32
        %v1838 = vpop.permute.xlu0 %1837
        %1840 = vst.msk [vmem:[#allocation2] sm:$0xff] %vm433, %v1838
        %1842 = vrot.lane.b32.xlu0 %v1835, 96
        %v1843 = vpop.permute.xlu0 %1842
        %1845 = vst.msk [vmem:[#allocation3] sm:$0xff] %vm433, %v1843
        %v1846 = vpack.c.bf16 %v1834, %v1834
        %v1847 = vld [vmem:[#allocation8] sm:$0xf]
        %v1848 = vld [vmem:[#allocation8 + $0x4] sm:$0xf]
        %v1849 = vld [vmem:[#allocation8 + $0x8] sm:$0xf]
        %v1850 = vld [vmem:[#allocation8 + $0xc] sm:$0xf]
        %v1851 = vld [vmem:[#allocation11] sm:$0x1]
        %v1853 = vlaneseq
        %v1854 = vshrl.u32 %v1853, 7
        %v1855 = vsub.s32 0, %v1854
        %v1856 = vrot.slane %v1851, %v1855
        %1859 = vrot.lane.b32.xlu0 %v1846, 32
        %v1860 = vpop.permute.xlu0 %1859
        %v1865 = vunpack.c.l.b16 %v1847
        %v1866 = vunpack.c.l.b16 %v1848
        %v1867 = vunpack.c.l.b16 %v1849
        %v1868 = vunpack.c.l.b16 %v1850
        %v1869 = vpack.c.b16 %v1866, %v1865
        %v1870 = vpack.c.b16 %v1868, %v1867
        %v1874 = vsel %vm433, %v1860, 0
        %1876 = vmatprep.subr.bf16.mxu0 0
        %1877 = vmatpush1.bf16.msra.mxu0 %v1869
        %1878 = vmatprep.subr.bf16.mxu0 0
        %1879 = vmatpush1.bf16.msra.mxu0 %v1870
        %1880 = vmatprep.subr.bf16.mxu0 0
        %1881 = vmatpush1.bf16.msra.mxu0 0
        %1882 = vmatprep.subr.bf16.mxu0 0
        %1883 = vmatpush1.bf16.msra.mxu0 0
        %1884 = vmatprep.subr.bf16.mxu0 0
        %1885 = vmatpush1.bf16.msra.mxu0 0
        %1886 = vmatprep.subr.bf16.mxu0 0
        %1887 = vmatpush1.bf16.msra.mxu0 0
        %1888 = vmatprep.subr.bf16.mxu0 0
        %1889 = vmatpush1.bf16.msra.mxu0 0
        %1890 = vmatprep.subr.bf16.mxu0 0
        %1891 = vmatpush1.bf16.msra.mxu0 0
        %1892 = vmatprep.subr.bf16.mxu0 0
        %1893 = vmatpush1.bf16.msra.mxu0 0
        %1894 = vmatprep.subr.bf16.mxu0 0
        %1895 = vmatpush1.bf16.msra.mxu0 0
        %1896 = vmatprep.subr.bf16.mxu0 0
        %1897 = vmatpush1.bf16.msra.mxu0 0
        %1898 = vmatprep.subr.bf16.mxu0 0
        %1899 = vmatpush1.bf16.msra.mxu0 0
        %1900 = vmatprep.subr.bf16.mxu0 0
        %1901 = vmatpush1.bf16.msra.mxu0 0
        %1902 = vmatprep.subr.bf16.mxu0 0
        %1903 = vmatpush1.bf16.msra.mxu0 0
        %1904 = vmatprep.subr.bf16.mxu0 0
        %1905 = vmatpush1.bf16.msra.mxu0 0
        %1906 = vmatprep.subr.bf16.mxu0 0
        %1907 = vmatpush1.bf16.msra.mxu0 0
        %1908 = vmatprep.mubr.bf16.mxu0 0
        %1909 = vmatmul.mubr.bf16.gmra.mrb[0].mxu0 %v1874
        %v1910 = vpop.f32.mrb[0].mxu0
        %v1911 = vadd.f32 %v1856, %v1910
        %v1912 = vpop.f32.mrb[0].mxu0
        %v1913 = vpop.f32.mrb[0].mxu0
        %v1914 = vpop.f32.mrb[0].mxu0
        %1915 = vdwg.mxu0
        %1916 = vst [vmem:[#allocation4] sm:$0xff] %v1911
        %v1917 = vld [vmem:[%s781] sm:$0xff]
        %v1918 = vld [vmem:[%s969] sm:$0xff]
        %v1919 = vld [vmem:[%s971] sm:$0xff]
        %v1920 = vld [vmem:[%s973] sm:$0xf]
        %v1921 = vld [vmem:[%s973 + $0x4] sm:$0xf]
        %v1922 = vld [vmem:[%s973 + $0x8] sm:$0xf]
        %v1923 = vld [vmem:[%s973 + $0xc] sm:$0xf]
        %v1924 = vpack.c.bf16 %v1918, %v1918
        %v1929 = vunpack.c.l.b16 %v1920
        %v1930 = vunpack.c.l.b16 %v1921
        %v1931 = vunpack.c.l.b16 %v1922
        %v1932 = vunpack.c.l.b16 %v1923
        %v1933 = vpack.c.b16 %v1930, %v1929
        %v1934 = vpack.c.b16 %v1932, %v1931
        %v1938 = vsel %vm433, %v1924, 0
        %1940 = vmatprep.subr.bf16.mxu0 0
        %1941 = vmatpush1.bf16.msra.mxu0 %v1933
        %1942 = vmatprep.subr.bf16.mxu0 0
        %1943 = vmatpush1.bf16.msra.mxu0 %v1934
        %1944 = vmatprep.subr.bf16.mxu0 0
        %1945 = vmatpush1.bf16.msra.mxu0 0
        %1946 = vmatprep.subr.bf16.mxu0 0
        %1947 = vmatpush1.bf16.msra.mxu0 0
        %1948 = vmatprep.subr.bf16.mxu0 0
        %1949 = vmatpush1.bf16.msra.mxu0 0
        %1950 = vmatprep.subr.bf16.mxu0 0
        %1951 = vmatpush1.bf16.msra.mxu0 0
        %1952 = vmatprep.subr.bf16.mxu0 0
        %1953 = vmatpush1.bf16.msra.mxu0 0
        %1954 = vmatprep.subr.bf16.mxu0 0
        %1955 = vmatpush1.bf16.msra.mxu0 0
        %1956 = vmatprep.subr.bf16.mxu0 0
        %1957 = vmatpush1.bf16.msra.mxu0 0
        %1958 = vmatprep.subr.bf16.mxu0 0
        %1959 = vmatpush1.bf16.msra.mxu0 0
        %1960 = vmatprep.subr.bf16.mxu0 0
        %1961 = vmatpush1.bf16.msra.mxu0 0
        %1962 = vmatprep.subr.bf16.mxu0 0
        %1963 = vmatpush1.bf16.msra.mxu0 0
        %1964 = vmatprep.subr.bf16.mxu0 0
        %1965 = vmatpush1.bf16.msra.mxu0 0
        %1966 = vmatprep.subr.bf16.mxu0 0
        %1967 = vmatpush1.bf16.msra.mxu0 0
        %1968 = vmatprep.subr.bf16.mxu0 0
        %1969 = vmatpush1.bf16.msra.mxu0 0
        %1970 = vmatprep.subr.bf16.mxu0 0
        %1971 = vmatpush1.bf16.msra.mxu0 0
        %1972 = vmatprep.mubr.bf16.mxu0 0
        %1973 = vmatmul.mubr.bf16.gmra.mrb[0].mxu0 %v1938
        %v1974 = vpop.f32.mrb[0].mxu0
        %v1975 = vadd.f32 0.0, %v1974
        %v1976 = vpop.f32.mrb[0].mxu0
        %v1977 = vpop.f32.mrb[0].mxu0
        %v1978 = vpop.f32.mrb[0].mxu0
        %1979 = vdwg.mxu0
        %v1980 = vadd.f32 %v1917, %v1975
        %v1981 = vxor.u32 %v1980, 2147483648
        %v1982 = vmul.f32 %v1981, 1.442695
        %v1983 = vpow.pop %v1982
        %v1984 = vadd.f32 %v1983, 1.0
        %v1985 = vrcp.pop %v1984
        %v1986 = vmul.f32 1.0, %v1985
        %v1987 = vtanh.pop %v1980
        %1989 = vrot.lane.b32.xlu0 %v1919, 32
        %v1990 = vpop.permute.xlu0 %1989
        %v1992 = vmul.f32 %v1986, %v1990
        %1994 = vrot.lane.b32.xlu0 %v1987, 64
        %v1995 = vpop.permute.xlu0 %1994
        %v1997 = vmul.f32 %v1986, %v1995
        %1999 = vrot.lane.b32.xlu0 %v1997, 32
        %v2000 = vpop.permute.xlu0 %1999
        %v2002 = vadd.f32 %v1992, %v2000
        %v2003 = vtanh.pop %v2002
        %2005 = vrot.lane.b32.xlu0 %v2003, 64
        %v2006 = vpop.permute.xlu0 %2005
        %v2008 = vmul.f32 %v1986, %v2006
        %2010 = vrot.lane.b32.xlu0 %v1918, 96
        %v2011 = vpop.permute.xlu0 %2010
        %v2013 = vsel %vm1356, %v2008, %v2011
        %v2014 = vsel %vm1356, %v2002, %v1990
        %2016 = vrot.lane.b32.xlu0 %v2013, 32
        %v2017 = vpop.permute.xlu0 %2016
        %2019 = vst.msk [vmem:[%s969] sm:$0xff] %vm433, %v2017
        %2021 = vrot.lane.b32.xlu0 %v2014, 96
        %v2022 = vpop.permute.xlu0 %2021
        %2024 = vst.msk [vmem:[%s971] sm:$0xff] %vm433, %v2022
        %2025 = vst.msk [vmem:[%s388 + $0x10] sm:$0xff] %vm433, %v2017
        %v2026 = vld [vmem:[#allocation4] sm:$0xff]
        %v2027 = vld [vmem:[%s599] sm:$0xff]
        %v2028 = vld [vmem:[%s601] sm:$0xff]
        %v2029 = vld [vmem:[%s603] sm:$0xf]
        %v2030 = vld [vmem:[%s603 + $0x4] sm:$0xf]
        %v2031 = vld [vmem:[%s603 + $0x8] sm:$0xf]
        %v2032 = vld [vmem:[%s603 + $0xc] sm:$0xf]
        %v2033 = vpack.c.bf16 %v2027, %v2027
        %v2038 = vunpack.c.l.b16 %v2029
        %v2039 = vunpack.c.l.b16 %v2030
        %v2040 = vunpack.c.l.b16 %v2031
        %v2041 = vunpack.c.l.b16 %v2032
        %v2042 = vpack.c.b16 %v2039, %v2038
        %v2043 = vpack.c.b16 %v2041, %v2040
        %v2047 = vsel %vm433, %v2033, 0
        %2049 = vmatprep.subr.bf16.mxu0 0
        %2050 = vmatpush1.bf16.msra.mxu0 %v2042
        %2051 = vmatprep.subr.bf16.mxu0 0
        %2052 = vmatpush1.bf16.msra.mxu0 %v2043
        %2053 = vmatprep.subr.bf16.mxu0 0
        %2054 = vmatpush1.bf16.msra.mxu0 0
        %2055 = vmatprep.subr.bf16.mxu0 0
        %2056 = vmatpush1.bf16.msra.mxu0 0
        %2057 = vmatprep.subr.bf16.mxu0 0
        %2058 = vmatpush1.bf16.msra.mxu0 0
        %2059 = vmatprep.subr.bf16.mxu0 0
        %2060 = vmatpush1.bf16.msra.mxu0 0
        %2061 = vmatprep.subr.bf16.mxu0 0
        %2062 = vmatpush1.bf16.msra.mxu0 0
        %2063 = vmatprep.subr.bf16.mxu0 0
        %2064 = vmatpush1.bf16.msra.mxu0 0
        %2065 = vmatprep.subr.bf16.mxu0 0
        %2066 = vmatpush1.bf16.msra.mxu0 0
        %2067 = vmatprep.subr.bf16.mxu0 0
        %2068 = vmatpush1.bf16.msra.mxu0 0
        %2069 = vmatprep.subr.bf16.mxu0 0
        %2070 = vmatpush1.bf16.msra.mxu0 0
        %2071 = vmatprep.subr.bf16.mxu0 0
        %2072 = vmatpush1.bf16.msra.mxu0 0
        %2073 = vmatprep.subr.bf16.mxu0 0
        %2074 = vmatpush1.bf16.msra.mxu0 0
        %2075 = vmatprep.subr.bf16.mxu0 0
        %2076 = vmatpush1.bf16.msra.mxu0 0
        %2077 = vmatprep.subr.bf16.mxu0 0
        %2078 = vmatpush1.bf16.msra.mxu0 0
        %2079 = vmatprep.subr.bf16.mxu0 0
        %2080 = vmatpush1.bf16.msra.mxu0 0
        %2081 = vmatprep.mubr.bf16.mxu0 0
        %2082 = vmatmul.mubr.bf16.gmra.mrb[0].mxu0 %v2047
        %v2083 = vpop.f32.mrb[0].mxu0
        %v2084 = vadd.f32 0.0, %v2083
        %v2085 = vpop.f32.mrb[0].mxu0
        %v2086 = vpop.f32.mrb[0].mxu0
        %v2087 = vpop.f32.mrb[0].mxu0
        %2088 = vdwg.mxu0
        %v2089 = vadd.f32 %v2026, %v2084
        %v2090 = vxor.u32 %v2089, 2147483648
        %v2091 = vmul.f32 %v2090, 1.442695
        %v2092 = vpow.pop %v2091
        %v2093 = vadd.f32 %v2092, 1.0
        %v2094 = vrcp.pop %v2093
        %v2095 = vmul.f32 1.0, %v2094
        %v2096 = vtanh.pop %v2089
        %2098 = vrot.lane.b32.xlu0 %v2028, 32
        %v2099 = vpop.permute.xlu0 %2098
        %v2101 = vmul.f32 %v2095, %v2099
        %2103 = vrot.lane.b32.xlu0 %v2096, 64
        %v2104 = vpop.permute.xlu0 %2103
        %v2106 = vmul.f32 %v2095, %v2104
        %2108 = vrot.lane.b32.xlu0 %v2106, 32
        %v2109 = vpop.permute.xlu0 %2108
        %v2111 = vadd.f32 %v2101, %v2109
        %v2112 = vtanh.pop %v2111
        %2114 = vrot.lane.b32.xlu0 %v2112, 64
        %v2115 = vpop.permute.xlu0 %2114
        %v2117 = vmul.f32 %v2095, %v2115
        %2119 = vrot.lane.b32.xlu0 %v2027, 96
        %v2120 = vpop.permute.xlu0 %2119
        %v2122 = vsel %vm1829, %v2117, %v2120
        %v2123 = vsel %vm1829, %v2111, %v2099
        %2125 = vrot.lane.b32.xlu0 %v2122, 32
        %v2126 = vpop.permute.xlu0 %2125
        %2128 = vst.msk [vmem:[%s599] sm:$0xff] %vm433, %v2126
        %2130 = vrot.lane.b32.xlu0 %v2123, 96
        %v2131 = vpop.permute.xlu0 %2130
        %2133 = vst.msk [vmem:[%s601] sm:$0xff] %vm433, %v2131
        %v2134 = vpack.c.bf16 %v2122, %v2122
        %v2135 = vld [vmem:[%s710] sm:$0xf]
        %v2136 = vld [vmem:[%s710 + $0x4] sm:$0xf]
        %v2137 = vld [vmem:[%s710 + $0x8] sm:$0xf]
        %v2138 = vld [vmem:[%s710 + $0xc] sm:$0xf]
        %v2139 = vld [vmem:[%s715] sm:$0x1]
        %v2141 = vlaneseq
        %v2142 = vshrl.u32 %v2141, 7
        %v2143 = vsub.s32 0, %v2142
        %v2144 = vrot.slane %v2139, %v2143
        %2147 = vrot.lane.b32.xlu0 %v2134, 32
        %v2148 = vpop.permute.xlu0 %2147
        %v2153 = vunpack.c.l.b16 %v2135
        %v2154 = vunpack.c.l.b16 %v2136
        %v2155 = vunpack.c.l.b16 %v2137
        %v2156 = vunpack.c.l.b16 %v2138
        %v2157 = vpack.c.b16 %v2154, %v2153
        %v2158 = vpack.c.b16 %v2156, %v2155
        %v2162 = vsel %vm433, %v2148, 0
        %2164 = vmatprep.subr.bf16.mxu0 0
        %2165 = vmatpush1.bf16.msra.mxu0 %v2157
        %2166 = vmatprep.subr.bf16.mxu0 0
        %2167 = vmatpush1.bf16.msra.mxu0 %v2158
        %2168 = vmatprep.subr.bf16.mxu0 0
        %2169 = vmatpush1.bf16.msra.mxu0 0
        %2170 = vmatprep.subr.bf16.mxu0 0
        %2171 = vmatpush1.bf16.msra.mxu0 0
        %2172 = vmatprep.subr.bf16.mxu0 0
        %2173 = vmatpush1.bf16.msra.mxu0 0
        %2174 = vmatprep.subr.bf16.mxu0 0
        %2175 = vmatpush1.bf16.msra.mxu0 0
        %2176 = vmatprep.subr.bf16.mxu0 0
        %2177 = vmatpush1.bf16.msra.mxu0 0
        %2178 = vmatprep.subr.bf16.mxu0 0
        %2179 = vmatpush1.bf16.msra.mxu0 0
        %2180 = vmatprep.subr.bf16.mxu0 0
        %2181 = vmatpush1.bf16.msra.mxu0 0
        %2182 = vmatprep.subr.bf16.mxu0 0
        %2183 = vmatpush1.bf16.msra.mxu0 0
        %2184 = vmatprep.subr.bf16.mxu0 0
        %2185 = vmatpush1.bf16.msra.mxu0 0
        %2186 = vmatprep.subr.bf16.mxu0 0
        %2187 = vmatpush1.bf16.msra.mxu0 0
        %2188 = vmatprep.subr.bf16.mxu0 0
        %2189 = vmatpush1.bf16.msra.mxu0 0
        %2190 = vmatprep.subr.bf16.mxu0 0
        %2191 = vmatpush1.bf16.msra.mxu0 0
        %2192 = vmatprep.subr.bf16.mxu0 0
        %2193 = vmatpush1.bf16.msra.mxu0 0
        %2194 = vmatprep.subr.bf16.mxu0 0
        %2195 = vmatpush1.bf16.msra.mxu0 0
        %2196 = vmatprep.mubr.bf16.mxu0 0
        %2197 = vmatmul.mubr.bf16.gmra.mrb[0].mxu0 %v2162
        %v2198 = vpop.f32.mrb[0].mxu0
        %v2199 = vadd.f32 %v2144, %v2198
        %v2200 = vpop.f32.mrb[0].mxu0
        %v2201 = vpop.f32.mrb[0].mxu0
        %v2202 = vpop.f32.mrb[0].mxu0
        %2203 = vdwg.mxu0
        %2204 = vst [vmem:[%s781] sm:$0xff] %v2199
        %s2205 = scalar_lea.vmem %s340, 32 [#allocation5]
        %v2206 = vld [vmem:[%s2205] sm:$0xff]
        %v2207 = vld [vmem:[#allocation2] sm:$0xff]
        %v2208 = vld [vmem:[#allocation3] sm:$0xff]
        %v2209 = vld [vmem:[#allocation10] sm:$0xf]
        %v2210 = vld [vmem:[#allocation10 + $0x4] sm:$0xf]
        %v2211 = vld [vmem:[#allocation10 + $0x8] sm:$0xf]
        %v2212 = vld [vmem:[#allocation10 + $0xc] sm:$0xf]
        %v2213 = vpack.c.bf16 %v2207, %v2207
        %v2218 = vunpack.c.l.b16 %v2209
        %v2219 = vunpack.c.l.b16 %v2210
        %v2220 = vunpack.c.l.b16 %v2211
        %v2221 = vunpack.c.l.b16 %v2212
        %v2222 = vpack.c.b16 %v2219, %v2218
        %v2223 = vpack.c.b16 %v2221, %v2220
        %v2227 = vsel %vm433, %v2213, 0
        %2229 = vmatprep.subr.bf16.mxu0 0
        %2230 = vmatpush1.bf16.msra.mxu0 %v2222
        %2231 = vmatprep.subr.bf16.mxu0 0
        %2232 = vmatpush1.bf16.msra.mxu0 %v2223
        %2233 = vmatprep.subr.bf16.mxu0 0
        %2234 = vmatpush1.bf16.msra.mxu0 0
        %2235 = vmatprep.subr.bf16.mxu0 0
        %2236 = vmatpush1.bf16.msra.mxu0 0
        %2237 = vmatprep.subr.bf16.mxu0 0
        %2238 = vmatpush1.bf16.msra.mxu0 0
        %2239 = vmatprep.subr.bf16.mxu0 0
        %2240 = vmatpush1.bf16.msra.mxu0 0
        %2241 = vmatprep.subr.bf16.mxu0 0
        %2242 = vmatpush1.bf16.msra.mxu0 0
        %2243 = vmatprep.subr.bf16.mxu0 0
        %2244 = vmatpush1.bf16.msra.mxu0 0
        %2245 = vmatprep.subr.bf16.mxu0 0
        %2246 = vmatpush1.bf16.msra.mxu0 0
        %2247 = vmatprep.subr.bf16.mxu0 0
        %2248 = vmatpush1.bf16.msra.mxu0 0
        %2249 = vmatprep.subr.bf16.mxu0 0
        %2250 = vmatpush1.bf16.msra.mxu0 0
        %2251 = vmatprep.subr.bf16.mxu0 0
        %2252 = vmatpush1.bf16.msra.mxu0 0
        %2253 = vmatprep.subr.bf16.mxu0 0
        %2254 = vmatpush1.bf16.msra.mxu0 0
        %2255 = vmatprep.subr.bf16.mxu0 0
        %2256 = vmatpush1.bf16.msra.mxu0 0
        %2257 = vmatprep.subr.bf16.mxu0 0
        %2258 = vmatpush1.bf16.msra.mxu0 0
        %2259 = vmatprep.subr.bf16.mxu0 0
        %2260 = vmatpush1.bf16.msra.mxu0 0
        %2261 = vmatprep.mubr.bf16.mxu0 0
        %2262 = vmatmul.mubr.bf16.gmra.mrb[0].mxu0 %v2227
        %v2263 = vpop.f32.mrb[0].mxu0
        %v2264 = vadd.f32 0.0, %v2263
        %v2265 = vpop.f32.mrb[0].mxu0
        %v2266 = vpop.f32.mrb[0].mxu0
        %v2267 = vpop.f32.mrb[0].mxu0
        %2268 = vdwg.mxu0
        %v2269 = vadd.f32 %v2206, %v2264
        %v2270 = vxor.u32 %v2269, 2147483648
        %v2271 = vmul.f32 %v2270, 1.442695
        %v2272 = vpow.pop %v2271
        %v2273 = vadd.f32 %v2272, 1.0
        %v2274 = vrcp.pop %v2273
        %v2275 = vmul.f32 1.0, %v2274
        %v2276 = vtanh.pop %v2269
        %2278 = vrot.lane.b32.xlu0 %v2208, 32
        %v2279 = vpop.permute.xlu0 %2278
        %v2281 = vmul.f32 %v2275, %v2279
        %2283 = vrot.lane.b32.xlu0 %v2276, 64
        %v2284 = vpop.permute.xlu0 %2283
        %v2286 = vmul.f32 %v2275, %v2284
        %2288 = vrot.lane.b32.xlu0 %v2286, 32
        %v2289 = vpop.permute.xlu0 %2288
        %v2291 = vadd.f32 %v2281, %v2289
        %v2292 = vtanh.pop %v2291
        %2294 = vrot.lane.b32.xlu0 %v2292, 64
        %v2295 = vpop.permute.xlu0 %2294
        %v2297 = vmul.f32 %v2275, %v2295
        %s2298 = sadd.s32 %s506, 4
        %p2299 = scmp.lt.s32.totalorder %s2298, 12
        %s2300 = scalar_select %p2299, 1, 0
        %v2301 = vstv %s2300
        %vm2302 = vcmp.eq.s32.totalorder %v2301, 1
        %2304 = vrot.lane.b32.xlu0 %v2207, 96
        %v2305 = vpop.permute.xlu0 %2304
        %v2307 = vsel %vm2302, %v2297, %v2305
        %v2308 = vsel %vm2302, %v2291, %v2279
        %2310 = vrot.lane.b32.xlu0 %v2307, 32
        %v2311 = vpop.permute.xlu0 %2310
        %2313 = vst.msk [vmem:[#allocation2] sm:$0xff] %vm433, %v2311
        %2315 = vrot.lane.b32.xlu0 %v2308, 96
        %v2316 = vpop.permute.xlu0 %2315
        %2318 = vst.msk [vmem:[#allocation3] sm:$0xff] %vm433, %v2316
        %v2319 = vpack.c.bf16 %v2307, %v2307
        %v2320 = vld [vmem:[#allocation8] sm:$0xf]
        %v2321 = vld [vmem:[#allocation8 + $0x4] sm:$0xf]
        %v2322 = vld [vmem:[#allocation8 + $0x8] sm:$0xf]
        %v2323 = vld [vmem:[#allocation8 + $0xc] sm:$0xf]
        %v2324 = vld [vmem:[#allocation11] sm:$0x1]
        %v2326 = vlaneseq
        %v2327 = vshrl.u32 %v2326, 7
        %v2328 = vsub.s32 0, %v2327
        %v2329 = vrot.slane %v2324, %v2328
        %2332 = vrot.lane.b32.xlu0 %v2319, 32
        %v2333 = vpop.permute.xlu0 %2332
        %v2338 = vunpack.c.l.b16 %v2320
        %v2339 = vunpack.c.l.b16 %v2321
        %v2340 = vunpack.c.l.b16 %v2322
        %v2341 = vunpack.c.l.b16 %v2323
        %v2342 = vpack.c.b16 %v2339, %v2338
        %v2343 = vpack.c.b16 %v2341, %v2340
        %v2347 = vsel %vm433, %v2333, 0
        %2349 = vmatprep.subr.bf16.mxu0 0
        %2350 = vmatpush1.bf16.msra.mxu0 %v2342
        %2351 = vmatprep.subr.bf16.mxu0 0
        %2352 = vmatpush1.bf16.msra.mxu0 %v2343
        %2353 = vmatprep.subr.bf16.mxu0 0
        %2354 = vmatpush1.bf16.msra.mxu0 0
        %2355 = vmatprep.subr.bf16.mxu0 0
        %2356 = vmatpush1.bf16.msra.mxu0 0
        %2357 = vmatprep.subr.bf16.mxu0 0
        %2358 = vmatpush1.bf16.msra.mxu0 0
        %2359 = vmatprep.subr.bf16.mxu0 0
        %2360 = vmatpush1.bf16.msra.mxu0 0
        %2361 = vmatprep.subr.bf16.mxu0 0
        %2362 = vmatpush1.bf16.msra.mxu0 0
        %2363 = vmatprep.subr.bf16.mxu0 0
        %2364 = vmatpush1.bf16.msra.mxu0 0
        %2365 = vmatprep.subr.bf16.mxu0 0
        %2366 = vmatpush1.bf16.msra.mxu0 0
        %2367 = vmatprep.subr.bf16.mxu0 0
        %2368 = vmatpush1.bf16.msra.mxu0 0
        %2369 = vmatprep.subr.bf16.mxu0 0
        %2370 = vmatpush1.bf16.msra.mxu0 0
        %2371 = vmatprep.subr.bf16.mxu0 0
        %2372 = vmatpush1.bf16.msra.mxu0 0
        %2373 = vmatprep.subr.bf16.mxu0 0
        %2374 = vmatpush1.bf16.msra.mxu0 0
        %2375 = vmatprep.subr.bf16.mxu0 0
        %2376 = vmatpush1.bf16.msra.mxu0 0
        %2377 = vmatprep.subr.bf16.mxu0 0
        %2378 = vmatpush1.bf16.msra.mxu0 0
        %2379 = vmatprep.subr.bf16.mxu0 0
        %2380 = vmatpush1.bf16.msra.mxu0 0
        %2381 = vmatprep.mubr.bf16.mxu0 0
        %2382 = vmatmul.mubr.bf16.gmra.mrb[0].mxu0 %v2347
        %v2383 = vpop.f32.mrb[0].mxu0
        %v2384 = vadd.f32 %v2329, %v2383
        %v2385 = vpop.f32.mrb[0].mxu0
        %v2386 = vpop.f32.mrb[0].mxu0
        %v2387 = vpop.f32.mrb[0].mxu0
        %2388 = vdwg.mxu0
        %2389 = vst [vmem:[#allocation4] sm:$0xff] %v2384
        %v2390 = vld [vmem:[%s781] sm:$0xff]
        %v2391 = vld [vmem:[%s969] sm:$0xff]
        %v2392 = vld [vmem:[%s971] sm:$0xff]
        %v2393 = vld [vmem:[%s973] sm:$0xf]
        %v2394 = vld [vmem:[%s973 + $0x4] sm:$0xf]
        %v2395 = vld [vmem:[%s973 + $0x8] sm:$0xf]
        %v2396 = vld [vmem:[%s973 + $0xc] sm:$0xf]
        %v2397 = vpack.c.bf16 %v2391, %v2391
        %v2402 = vunpack.c.l.b16 %v2393
        %v2403 = vunpack.c.l.b16 %v2394
        %v2404 = vunpack.c.l.b16 %v2395
        %v2405 = vunpack.c.l.b16 %v2396
        %v2406 = vpack.c.b16 %v2403, %v2402
        %v2407 = vpack.c.b16 %v2405, %v2404
        %v2411 = vsel %vm433, %v2397, 0
        %2413 = vmatprep.subr.bf16.mxu0 0
        %2414 = vmatpush1.bf16.msra.mxu0 %v2406
        %2415 = vmatprep.subr.bf16.mxu0 0
        %2416 = vmatpush1.bf16.msra.mxu0 %v2407
        %2417 = vmatprep.subr.bf16.mxu0 0
        %2418 = vmatpush1.bf16.msra.mxu0 0
        %2419 = vmatprep.subr.bf16.mxu0 0
        %2420 = vmatpush1.bf16.msra.mxu0 0
        %2421 = vmatprep.subr.bf16.mxu0 0
        %2422 = vmatpush1.bf16.msra.mxu0 0
        %2423 = vmatprep.subr.bf16.mxu0 0
        %2424 = vmatpush1.bf16.msra.mxu0 0
        %2425 = vmatprep.subr.bf16.mxu0 0
        %2426 = vmatpush1.bf16.msra.mxu0 0
        %2427 = vmatprep.subr.bf16.mxu0 0
        %2428 = vmatpush1.bf16.msra.mxu0 0
        %2429 = vmatprep.subr.bf16.mxu0 0
        %2430 = vmatpush1.bf16.msra.mxu0 0
        %2431 = vmatprep.subr.bf16.mxu0 0
        %2432 = vmatpush1.bf16.msra.mxu0 0
        %2433 = vmatprep.subr.bf16.mxu0 0
        %2434 = vmatpush1.bf16.msra.mxu0 0
        %2435 = vmatprep.subr.bf16.mxu0 0
        %2436 = vmatpush1.bf16.msra.mxu0 0
        %2437 = vmatprep.subr.bf16.mxu0 0
        %2438 = vmatpush1.bf16.msra.mxu0 0
        %2439 = vmatprep.subr.bf16.mxu0 0
        %2440 = vmatpush1.bf16.msra.mxu0 0
        %2441 = vmatprep.subr.bf16.mxu0 0
        %2442 = vmatpush1.bf16.msra.mxu0 0
        %2443 = vmatprep.subr.bf16.mxu0 0
        %2444 = vmatpush1.bf16.msra.mxu0 0
        %2445 = vmatprep.mubr.bf16.mxu0 0
        %2446 = vmatmul.mubr.bf16.gmra.mrb[0].mxu0 %v2411
        %v2447 = vpop.f32.mrb[0].mxu0
        %v2448 = vadd.f32 0.0, %v2447
        %v2449 = vpop.f32.mrb[0].mxu0
        %v2450 = vpop.f32.mrb[0].mxu0
        %v2451 = vpop.f32.mrb[0].mxu0
        %2452 = vdwg.mxu0
        %v2453 = vadd.f32 %v2390, %v2448
        %v2454 = vxor.u32 %v2453, 2147483648
        %v2455 = vmul.f32 %v2454, 1.442695
        %v2456 = vpow.pop %v2455
        %v2457 = vadd.f32 %v2456, 1.0
        %v2458 = vrcp.pop %v2457
        %v2459 = vmul.f32 1.0, %v2458
        %v2460 = vtanh.pop %v2453
        %2462 = vrot.lane.b32.xlu0 %v2392, 32
        %v2463 = vpop.permute.xlu0 %2462
        %v2465 = vmul.f32 %v2459, %v2463
        %2467 = vrot.lane.b32.xlu0 %v2460, 64
        %v2468 = vpop.permute.xlu0 %2467
        %v2470 = vmul.f32 %v2459, %v2468
        %2472 = vrot.lane.b32.xlu0 %v2470, 32
        %v2473 = vpop.permute.xlu0 %2472
        %v2475 = vadd.f32 %v2465, %v2473
        %v2476 = vtanh.pop %v2475
        %2478 = vrot.lane.b32.xlu0 %v2476, 64
        %v2479 = vpop.permute.xlu0 %2478
        %v2481 = vmul.f32 %v2459, %v2479
        %2483 = vrot.lane.b32.xlu0 %v2391, 96
        %v2484 = vpop.permute.xlu0 %2483
        %v2486 = vsel %vm1829, %v2481, %v2484
        %v2487 = vsel %vm1829, %v2475, %v2463
        %2489 = vrot.lane.b32.xlu0 %v2486, 32
        %v2490 = vpop.permute.xlu0 %2489
        %2492 = vst.msk [vmem:[%s969] sm:$0xff] %vm433, %v2490
        %2494 = vrot.lane.b32.xlu0 %v2487, 96
        %v2495 = vpop.permute.xlu0 %2494
        %2497 = vst.msk [vmem:[%s971] sm:$0xff] %vm433, %v2495
        %2498 = vst.msk [vmem:[%s388 + $0x18] sm:$0xff] %vm433, %v2490
        %v2499 = vld [vmem:[#allocation4] sm:$0xff]
        %v2500 = vld [vmem:[%s599] sm:$0xff]
        %v2501 = vld [vmem:[%s601] sm:$0xff]
        %v2502 = vld [vmem:[%s603] sm:$0xf]
        %v2503 = vld [vmem:[%s603 + $0x4] sm:$0xf]
        %v2504 = vld [vmem:[%s603 + $0x8] sm:$0xf]
        %v2505 = vld [vmem:[%s603 + $0xc] sm:$0xf]
        %v2506 = vpack.c.bf16 %v2500, %v2500
        %v2511 = vunpack.c.l.b16 %v2502
        %v2512 = vunpack.c.l.b16 %v2503
        %v2513 = vunpack.c.l.b16 %v2504
        %v2514 = vunpack.c.l.b16 %v2505
        %v2515 = vpack.c.b16 %v2512, %v2511
        %v2516 = vpack.c.b16 %v2514, %v2513
        %v2520 = vsel %vm433, %v2506, 0
        %2522 = vmatprep.subr.bf16.mxu0 0
        %2523 = vmatpush1.bf16.msra.mxu0 %v2515
        %2524 = vmatprep.subr.bf16.mxu0 0
        %2525 = vmatpush1.bf16.msra.mxu0 %v2516
        %2526 = vmatprep.subr.bf16.mxu0 0
        %2527 = vmatpush1.bf16.msra.mxu0 0
        %2528 = vmatprep.subr.bf16.mxu0 0
        %2529 = vmatpush1.bf16.msra.mxu0 0
        %2530 = vmatprep.subr.bf16.mxu0 0
        %2531 = vmatpush1.bf16.msra.mxu0 0
        %2532 = vmatprep.subr.bf16.mxu0 0
        %2533 = vmatpush1.bf16.msra.mxu0 0
        %2534 = vmatprep.subr.bf16.mxu0 0
        %2535 = vmatpush1.bf16.msra.mxu0 0
        %2536 = vmatprep.subr.bf16.mxu0 0
        %2537 = vmatpush1.bf16.msra.mxu0 0
        %2538 = vmatprep.subr.bf16.mxu0 0
        %2539 = vmatpush1.bf16.msra.mxu0 0
        %2540 = vmatprep.subr.bf16.mxu0 0
        %2541 = vmatpush1.bf16.msra.mxu0 0
        %2542 = vmatprep.subr.bf16.mxu0 0
        %2543 = vmatpush1.bf16.msra.mxu0 0
        %2544 = vmatprep.subr.bf16.mxu0 0
        %2545 = vmatpush1.bf16.msra.mxu0 0
        %2546 = vmatprep.subr.bf16.mxu0 0
        %2547 = vmatpush1.bf16.msra.mxu0 0
        %2548 = vmatprep.subr.bf16.mxu0 0
        %2549 = vmatpush1.bf16.msra.mxu0 0
        %2550 = vmatprep.subr.bf16.mxu0 0
        %2551 = vmatpush1.bf16.msra.mxu0 0
        %2552 = vmatprep.subr.bf16.mxu0 0
        %2553 = vmatpush1.bf16.msra.mxu0 0
        %2554 = vmatprep.mubr.bf16.mxu0 0
        %2555 = vmatmul.mubr.bf16.gmra.mrb[0].mxu0 %v2520
        %v2556 = vpop.f32.mrb[0].mxu0
        %v2557 = vadd.f32 0.0, %v2556
        %v2558 = vpop.f32.mrb[0].mxu0
        %v2559 = vpop.f32.mrb[0].mxu0
        %v2560 = vpop.f32.mrb[0].mxu0
        %2561 = vdwg.mxu0
        %v2562 = vadd.f32 %v2499, %v2557
        %v2563 = vxor.u32 %v2562, 2147483648
        %v2564 = vmul.f32 %v2563, 1.442695
        %v2565 = vpow.pop %v2564
        %v2566 = vadd.f32 %v2565, 1.0
        %v2567 = vrcp.pop %v2566
        %v2568 = vmul.f32 1.0, %v2567
        %v2569 = vtanh.pop %v2562
        %2571 = vrot.lane.b32.xlu0 %v2501, 32
        %v2572 = vpop.permute.xlu0 %2571
        %v2574 = vmul.f32 %v2568, %v2572
        %2576 = vrot.lane.b32.xlu0 %v2569, 64
        %v2577 = vpop.permute.xlu0 %2576
        %v2579 = vmul.f32 %v2568, %v2577
        %2581 = vrot.lane.b32.xlu0 %v2579, 32
        %v2582 = vpop.permute.xlu0 %2581
        %v2584 = vadd.f32 %v2574, %v2582
        %v2585 = vtanh.pop %v2584
        %2587 = vrot.lane.b32.xlu0 %v2585, 64
        %v2588 = vpop.permute.xlu0 %2587
        %v2590 = vmul.f32 %v2568, %v2588
        %2592 = vrot.lane.b32.xlu0 %v2500, 96
        %v2593 = vpop.permute.xlu0 %2592
        %v2595 = vsel %vm2302, %v2590, %v2593
        %v2596 = vsel %vm2302, %v2584, %v2572
        %2598 = vrot.lane.b32.xlu0 %v2595, 32
        %v2599 = vpop.permute.xlu0 %2598
        %2601 = vst.msk [vmem:[%s599] sm:$0xff] %vm433, %v2599
        %2603 = vrot.lane.b32.xlu0 %v2596, 96
        %v2604 = vpop.permute.xlu0 %2603
        %2606 = vst.msk [vmem:[%s601] sm:$0xff] %vm433, %v2604
        %v2607 = vpack.c.bf16 %v2595, %v2595
        %v2608 = vld [vmem:[%s710] sm:$0xf]
        %v2609 = vld [vmem:[%s710 + $0x4] sm:$0xf]
        %v2610 = vld [vmem:[%s710 + $0x8] sm:$0xf]
        %v2611 = vld [vmem:[%s710 + $0xc] sm:$0xf]
        %v2612 = vld [vmem:[%s715] sm:$0x1]
        %v2614 = vlaneseq
        %v2615 = vshrl.u32 %v2614, 7
        %v2616 = vsub.s32 0, %v2615
        %v2617 = vrot.slane %v2612, %v2616
        %2620 = vrot.lane.b32.xlu0 %v2607, 32
        %v2621 = vpop.permute.xlu0 %2620
        %v2626 = vunpack.c.l.b16 %v2608
        %v2627 = vunpack.c.l.b16 %v2609
        %v2628 = vunpack.c.l.b16 %v2610
        %v2629 = vunpack.c.l.b16 %v2611
        %v2630 = vpack.c.b16 %v2627, %v2626
        %v2631 = vpack.c.b16 %v2629, %v2628
        %v2635 = vsel %vm433, %v2621, 0
        %2637 = vmatprep.subr.bf16.mxu0 0
        %2638 = vmatpush1.bf16.msra.mxu0 %v2630
        %2639 = vmatprep.subr.bf16.mxu0 0
        %2640 = vmatpush1.bf16.msra.mxu0 %v2631
        %2641 = vmatprep.subr.bf16.mxu0 0
        %2642 = vmatpush1.bf16.msra.mxu0 0
        %2643 = vmatprep.subr.bf16.mxu0 0
        %2644 = vmatpush1.bf16.msra.mxu0 0
        %2645 = vmatprep.subr.bf16.mxu0 0
        %2646 = vmatpush1.bf16.msra.mxu0 0
        %2647 = vmatprep.subr.bf16.mxu0 0
        %2648 = vmatpush1.bf16.msra.mxu0 0
        %2649 = vmatprep.subr.bf16.mxu0 0
        %2650 = vmatpush1.bf16.msra.mxu0 0
        %2651 = vmatprep.subr.bf16.mxu0 0
        %2652 = vmatpush1.bf16.msra.mxu0 0
        %2653 = vmatprep.subr.bf16.mxu0 0
        %2654 = vmatpush1.bf16.msra.mxu0 0
        %2655 = vmatprep.subr.bf16.mxu0 0
        %2656 = vmatpush1.bf16.msra.mxu0 0
        %2657 = vmatprep.subr.bf16.mxu0 0
        %2658 = vmatpush1.bf16.msra.mxu0 0
        %2659 = vmatprep.subr.bf16.mxu0 0
        %2660 = vmatpush1.bf16.msra.mxu0 0
        %2661 = vmatprep.subr.bf16.mxu0 0
        %2662 = vmatpush1.bf16.msra.mxu0 0
        %2663 = vmatprep.subr.bf16.mxu0 0
        %2664 = vmatpush1.bf16.msra.mxu0 0
        %2665 = vmatprep.subr.bf16.mxu0 0
        %2666 = vmatpush1.bf16.msra.mxu0 0
        %2667 = vmatprep.subr.bf16.mxu0 0
        %2668 = vmatpush1.bf16.msra.mxu0 0
        %2669 = vmatprep.mubr.bf16.mxu0 0
        %2670 = vmatmul.mubr.bf16.gmra.mrb[0].mxu0 %v2635
        %v2671 = vpop.f32.mrb[0].mxu0
        %v2672 = vadd.f32 %v2617, %v2671
        %v2673 = vpop.f32.mrb[0].mxu0
        %v2674 = vpop.f32.mrb[0].mxu0
        %v2675 = vpop.f32.mrb[0].mxu0
        %2676 = vdwg.mxu0
        %2677 = vst [vmem:[%s781] sm:$0xff] %v2672
        %s2678 = scalar_lea.vmem %s340, 40 [#allocation5]
        %v2679 = vld [vmem:[%s2678] sm:$0xff]
        %v2680 = vld [vmem:[#allocation2] sm:$0xff]
        %v2681 = vld [vmem:[#allocation3] sm:$0xff]
        %v2682 = vld [vmem:[#allocation10] sm:$0xf]
        %v2683 = vld [vmem:[#allocation10 + $0x4] sm:$0xf]
        %v2684 = vld [vmem:[#allocation10 + $0x8] sm:$0xf]
        %v2685 = vld [vmem:[#allocation10 + $0xc] sm:$0xf]
        %v2686 = vpack.c.bf16 %v2680, %v2680
        %v2691 = vunpack.c.l.b16 %v2682
        %v2692 = vunpack.c.l.b16 %v2683
        %v2693 = vunpack.c.l.b16 %v2684
        %v2694 = vunpack.c.l.b16 %v2685
        %v2695 = vpack.c.b16 %v2692, %v2691
        %v2696 = vpack.c.b16 %v2694, %v2693
        %v2700 = vsel %vm433, %v2686, 0
        %2702 = vmatprep.subr.bf16.mxu0 0
        %2703 = vmatpush1.bf16.msra.mxu0 %v2695
        %2704 = vmatprep.subr.bf16.mxu0 0
        %2705 = vmatpush1.bf16.msra.mxu0 %v2696
        %2706 = vmatprep.subr.bf16.mxu0 0
        %2707 = vmatpush1.bf16.msra.mxu0 0
        %2708 = vmatprep.subr.bf16.mxu0 0
        %2709 = vmatpush1.bf16.msra.mxu0 0
        %2710 = vmatprep.subr.bf16.mxu0 0
        %2711 = vmatpush1.bf16.msra.mxu0 0
        %2712 = vmatprep.subr.bf16.mxu0 0
        %2713 = vmatpush1.bf16.msra.mxu0 0
        %2714 = vmatprep.subr.bf16.mxu0 0
        %2715 = vmatpush1.bf16.msra.mxu0 0
        %2716 = vmatprep.subr.bf16.mxu0 0
        %2717 = vmatpush1.bf16.msra.mxu0 0
        %2718 = vmatprep.subr.bf16.mxu0 0
        %2719 = vmatpush1.bf16.msra.mxu0 0
        %2720 = vmatprep.subr.bf16.mxu0 0
        %2721 = vmatpush1.bf16.msra.mxu0 0
        %2722 = vmatprep.subr.bf16.mxu0 0
        %2723 = vmatpush1.bf16.msra.mxu0 0
        %2724 = vmatprep.subr.bf16.mxu0 0
        %2725 = vmatpush1.bf16.msra.mxu0 0
        %2726 = vmatprep.subr.bf16.mxu0 0
        %2727 = vmatpush1.bf16.msra.mxu0 0
        %2728 = vmatprep.subr.bf16.mxu0 0
        %2729 = vmatpush1.bf16.msra.mxu0 0
        %2730 = vmatprep.subr.bf16.mxu0 0
        %2731 = vmatpush1.bf16.msra.mxu0 0
        %2732 = vmatprep.subr.bf16.mxu0 0
        %2733 = vmatpush1.bf16.msra.mxu0 0
        %2734 = vmatprep.mubr.bf16.mxu0 0
        %2735 = vmatmul.mubr.bf16.gmra.mrb[0].mxu0 %v2700
        %v2736 = vpop.f32.mrb[0].mxu0
        %v2737 = vadd.f32 0.0, %v2736
        %v2738 = vpop.f32.mrb[0].mxu0
        %v2739 = vpop.f32.mrb[0].mxu0
        %v2740 = vpop.f32.mrb[0].mxu0
        %2741 = vdwg.mxu0
        %v2742 = vadd.f32 %v2679, %v2737
        %v2743 = vxor.u32 %v2742, 2147483648
        %v2744 = vmul.f32 %v2743, 1.442695
        %v2745 = vpow.pop %v2744
        %v2746 = vadd.f32 %v2745, 1.0
        %v2747 = vrcp.pop %v2746
        %v2748 = vmul.f32 1.0, %v2747
        %v2749 = vtanh.pop %v2742
        %2751 = vrot.lane.b32.xlu0 %v2681, 32
        %v2752 = vpop.permute.xlu0 %2751
        %v2754 = vmul.f32 %v2748, %v2752
        %2756 = vrot.lane.b32.xlu0 %v2749, 64
        %v2757 = vpop.permute.xlu0 %2756
        %v2759 = vmul.f32 %v2748, %v2757
        %2761 = vrot.lane.b32.xlu0 %v2759, 32
        %v2762 = vpop.permute.xlu0 %2761
        %v2764 = vadd.f32 %v2754, %v2762
        %v2765 = vtanh.pop %v2764
        %2767 = vrot.lane.b32.xlu0 %v2765, 64
        %v2768 = vpop.permute.xlu0 %2767
        %v2770 = vmul.f32 %v2748, %v2768
        %s2771 = sadd.s32 %s506, 5
        %p2772 = scmp.lt.s32.totalorder %s2771, 12
        %s2773 = scalar_select %p2772, 1, 0
        %v2774 = vstv %s2773
        %vm2775 = vcmp.eq.s32.totalorder %v2774, 1
        %2777 = vrot.lane.b32.xlu0 %v2680, 96
        %v2778 = vpop.permute.xlu0 %2777
        %v2780 = vsel %vm2775, %v2770, %v2778
        %v2781 = vsel %vm2775, %v2764, %v2752
        %2783 = vrot.lane.b32.xlu0 %v2780, 32
        %v2784 = vpop.permute.xlu0 %2783
        %2786 = vst.msk [vmem:[#allocation2] sm:$0xff] %vm433, %v2784
        %2788 = vrot.lane.b32.xlu0 %v2781, 96
        %v2789 = vpop.permute.xlu0 %2788
        %2791 = vst.msk [vmem:[#allocation3] sm:$0xff] %vm433, %v2789
        %v2792 = vpack.c.bf16 %v2780, %v2780
        %v2793 = vld [vmem:[#allocation8] sm:$0xf]
        %v2794 = vld [vmem:[#allocation8 + $0x4] sm:$0xf]
        %v2795 = vld [vmem:[#allocation8 + $0x8] sm:$0xf]
        %v2796 = vld [vmem:[#allocation8 + $0xc] sm:$0xf]
        %v2797 = vld [vmem:[#allocation11] sm:$0x1]
        %v2799 = vlaneseq
        %v2800 = vshrl.u32 %v2799, 7
        %v2801 = vsub.s32 0, %v2800
        %v2802 = vrot.slane %v2797, %v2801
        %2805 = vrot.lane.b32.xlu0 %v2792, 32
        %v2806 = vpop.permute.xlu0 %2805
        %v2811 = vunpack.c.l.b16 %v2793
        %v2812 = vunpack.c.l.b16 %v2794
        %v2813 = vunpack.c.l.b16 %v2795
        %v2814 = vunpack.c.l.b16 %v2796
        %v2815 = vpack.c.b16 %v2812, %v2811
        %v2816 = vpack.c.b16 %v2814, %v2813
        %v2820 = vsel %vm433, %v2806, 0
        %2822 = vmatprep.subr.bf16.mxu0 0
        %2823 = vmatpush1.bf16.msra.mxu0 %v2815
        %2824 = vmatprep.subr.bf16.mxu0 0
        %2825 = vmatpush1.bf16.msra.mxu0 %v2816
        %2826 = vmatprep.subr.bf16.mxu0 0
        %2827 = vmatpush1.bf16.msra.mxu0 0
        %2828 = vmatprep.subr.bf16.mxu0 0
        %2829 = vmatpush1.bf16.msra.mxu0 0
        %2830 = vmatprep.subr.bf16.mxu0 0
        %2831 = vmatpush1.bf16.msra.mxu0 0
        %2832 = vmatprep.subr.bf16.mxu0 0
        %2833 = vmatpush1.bf16.msra.mxu0 0
        %2834 = vmatprep.subr.bf16.mxu0 0
        %2835 = vmatpush1.bf16.msra.mxu0 0
        %2836 = vmatprep.subr.bf16.mxu0 0
        %2837 = vmatpush1.bf16.msra.mxu0 0
        %2838 = vmatprep.subr.bf16.mxu0 0
        %2839 = vmatpush1.bf16.msra.mxu0 0
        %2840 = vmatprep.subr.bf16.mxu0 0
        %2841 = vmatpush1.bf16.msra.mxu0 0
        %2842 = vmatprep.subr.bf16.mxu0 0
        %2843 = vmatpush1.bf16.msra.mxu0 0
        %2844 = vmatprep.subr.bf16.mxu0 0
        %2845 = vmatpush1.bf16.msra.mxu0 0
        %2846 = vmatprep.subr.bf16.mxu0 0
        %2847 = vmatpush1.bf16.msra.mxu0 0
        %2848 = vmatprep.subr.bf16.mxu0 0
        %2849 = vmatpush1.bf16.msra.mxu0 0
        %2850 = vmatprep.subr.bf16.mxu0 0
        %2851 = vmatpush1.bf16.msra.mxu0 0
        %2852 = vmatprep.subr.bf16.mxu0 0
        %2853 = vmatpush1.bf16.msra.mxu0 0
        %2854 = vmatprep.mubr.bf16.mxu0 0
        %2855 = vmatmul.mubr.bf16.gmra.mrb[0].mxu0 %v2820
        %v2856 = vpop.f32.mrb[0].mxu0
        %v2857 = vadd.f32 %v2802, %v2856
        %v2858 = vpop.f32.mrb[0].mxu0
        %v2859 = vpop.f32.mrb[0].mxu0
        %v2860 = vpop.f32.mrb[0].mxu0
        %2861 = vdwg.mxu0
        %2862 = vst [vmem:[#allocation4] sm:$0xff] %v2857
        %v2863 = vld [vmem:[%s781] sm:$0xff]
        %v2864 = vld [vmem:[%s969] sm:$0xff]
        %v2865 = vld [vmem:[%s971] sm:$0xff]
        %v2866 = vld [vmem:[%s973] sm:$0xf]
        %v2867 = vld [vmem:[%s973 + $0x4] sm:$0xf]
        %v2868 = vld [vmem:[%s973 + $0x8] sm:$0xf]
        %v2869 = vld [vmem:[%s973 + $0xc] sm:$0xf]
        %v2870 = vpack.c.bf16 %v2864, %v2864
        %v2875 = vunpack.c.l.b16 %v2866
        %v2876 = vunpack.c.l.b16 %v2867
        %v2877 = vunpack.c.l.b16 %v2868
        %v2878 = vunpack.c.l.b16 %v2869
        %v2879 = vpack.c.b16 %v2876, %v2875
        %v2880 = vpack.c.b16 %v2878, %v2877
        %v2884 = vsel %vm433, %v2870, 0
        %2886 = vmatprep.subr.bf16.mxu0 0
        %2887 = vmatpush1.bf16.msra.mxu0 %v2879
        %2888 = vmatprep.subr.bf16.mxu0 0
        %2889 = vmatpush1.bf16.msra.mxu0 %v2880
        %2890 = vmatprep.subr.bf16.mxu0 0
        %2891 = vmatpush1.bf16.msra.mxu0 0
        %2892 = vmatprep.subr.bf16.mxu0 0
        %2893 = vmatpush1.bf16.msra.mxu0 0
        %2894 = vmatprep.subr.bf16.mxu0 0
        %2895 = vmatpush1.bf16.msra.mxu0 0
        %2896 = vmatprep.subr.bf16.mxu0 0
        %2897 = vmatpush1.bf16.msra.mxu0 0
        %2898 = vmatprep.subr.bf16.mxu0 0
        %2899 = vmatpush1.bf16.msra.mxu0 0
        %2900 = vmatprep.subr.bf16.mxu0 0
        %2901 = vmatpush1.bf16.msra.mxu0 0
        %2902 = vmatprep.subr.bf16.mxu0 0
        %2903 = vmatpush1.bf16.msra.mxu0 0
        %2904 = vmatprep.subr.bf16.mxu0 0
        %2905 = vmatpush1.bf16.msra.mxu0 0
        %2906 = vmatprep.subr.bf16.mxu0 0
        %2907 = vmatpush1.bf16.msra.mxu0 0
        %2908 = vmatprep.subr.bf16.mxu0 0
        %2909 = vmatpush1.bf16.msra.mxu0 0
        %2910 = vmatprep.subr.bf16.mxu0 0
        %2911 = vmatpush1.bf16.msra.mxu0 0
        %2912 = vmatprep.subr.bf16.mxu0 0
        %2913 = vmatpush1.bf16.msra.mxu0 0
        %2914 = vmatprep.subr.bf16.mxu0 0
        %2915 = vmatpush1.bf16.msra.mxu0 0
        %2916 = vmatprep.subr.bf16.mxu0 0
        %2917 = vmatpush1.bf16.msra.mxu0 0
        %2918 = vmatprep.mubr.bf16.mxu0 0
        %2919 = vmatmul.mubr.bf16.gmra.mrb[0].mxu0 %v2884
        %v2920 = vpop.f32.mrb[0].mxu0
        %v2921 = vadd.f32 0.0, %v2920
        %v2922 = vpop.f32.mrb[0].mxu0
        %v2923 = vpop.f32.mrb[0].mxu0
        %v2924 = vpop.f32.mrb[0].mxu0
        %2925 = vdwg.mxu0
        %v2926 = vadd.f32 %v2863, %v2921
        %v2927 = vxor.u32 %v2926, 2147483648
        %v2928 = vmul.f32 %v2927, 1.442695
        %v2929 = vpow.pop %v2928
        %v2930 = vadd.f32 %v2929, 1.0
        %v2931 = vrcp.pop %v2930
        %v2932 = vmul.f32 1.0, %v2931
        %v2933 = vtanh.pop %v2926
        %2935 = vrot.lane.b32.xlu0 %v2865, 32
        %v2936 = vpop.permute.xlu0 %2935
        %v2938 = vmul.f32 %v2932, %v2936
        %2940 = vrot.lane.b32.xlu0 %v2933, 64
        %v2941 = vpop.permute.xlu0 %2940
        %v2943 = vmul.f32 %v2932, %v2941
        %2945 = vrot.lane.b32.xlu0 %v2943, 32
        %v2946 = vpop.permute.xlu0 %2945
        %v2948 = vadd.f32 %v2938, %v2946
        %v2949 = vtanh.pop %v2948
        %2951 = vrot.lane.b32.xlu0 %v2949, 64
        %v2952 = vpop.permute.xlu0 %2951
        %v2954 = vmul.f32 %v2932, %v2952
        %2956 = vrot.lane.b32.xlu0 %v2864, 96
        %v2957 = vpop.permute.xlu0 %2956
        %v2959 = vsel %vm2302, %v2954, %v2957
        %v2960 = vsel %vm2302, %v2948, %v2936
        %2962 = vrot.lane.b32.xlu0 %v2959, 32
        %v2963 = vpop.permute.xlu0 %2962
        %2965 = vst.msk [vmem:[%s969] sm:$0xff] %vm433, %v2963
        %2967 = vrot.lane.b32.xlu0 %v2960, 96
        %v2968 = vpop.permute.xlu0 %2967
        %2970 = vst.msk [vmem:[%s971] sm:$0xff] %vm433, %v2968
        %2971 = vst.msk [vmem:[%s388 + $0x20] sm:$0xff] %vm433, %v2963
        %v2972 = vld [vmem:[#allocation4] sm:$0xff]
        %v2973 = vld [vmem:[%s599] sm:$0xff]
        %v2974 = vld [vmem:[%s601] sm:$0xff]
        %v2975 = vld [vmem:[%s603] sm:$0xf]
        %v2976 = vld [vmem:[%s603 + $0x4] sm:$0xf]
        %v2977 = vld [vmem:[%s603 + $0x8] sm:$0xf]
        %v2978 = vld [vmem:[%s603 + $0xc] sm:$0xf]
        %v2979 = vpack.c.bf16 %v2973, %v2973
        %v2984 = vunpack.c.l.b16 %v2975
        %v2985 = vunpack.c.l.b16 %v2976
        %v2986 = vunpack.c.l.b16 %v2977
        %v2987 = vunpack.c.l.b16 %v2978
        %v2988 = vpack.c.b16 %v2985, %v2984
        %v2989 = vpack.c.b16 %v2987, %v2986
        %v2993 = vsel %vm433, %v2979, 0
        %2995 = vmatprep.subr.bf16.mxu0 0
        %2996 = vmatpush1.bf16.msra.mxu0 %v2988
        %2997 = vmatprep.subr.bf16.mxu0 0
        %2998 = vmatpush1.bf16.msra.mxu0 %v2989
        %2999 = vmatprep.subr.bf16.mxu0 0
        %3000 = vmatpush1.bf16.msra.mxu0 0
        %3001 = vmatprep.subr.bf16.mxu0 0
        %3002 = vmatpush1.bf16.msra.mxu0 0
        %3003 = vmatprep.subr.bf16.mxu0 0
        %3004 = vmatpush1.bf16.msra.mxu0 0
        %3005 = vmatprep.subr.bf16.mxu0 0
        %3006 = vmatpush1.bf16.msra.mxu0 0
        %3007 = vmatprep.subr.bf16.mxu0 0
        %3008 = vmatpush1.bf16.msra.mxu0 0
        %3009 = vmatprep.subr.bf16.mxu0 0
        %3010 = vmatpush1.bf16.msra.mxu0 0
        %3011 = vmatprep.subr.bf16.mxu0 0
        %3012 = vmatpush1.bf16.msra.mxu0 0
        %3013 = vmatprep.subr.bf16.mxu0 0
        %3014 = vmatpush1.bf16.msra.mxu0 0
        %3015 = vmatprep.subr.bf16.mxu0 0
        %3016 = vmatpush1.bf16.msra.mxu0 0
        %3017 = vmatprep.subr.bf16.mxu0 0
        %3018 = vmatpush1.bf16.msra.mxu0 0
        %3019 = vmatprep.subr.bf16.mxu0 0
        %3020 = vmatpush1.bf16.msra.mxu0 0
        %3021 = vmatprep.subr.bf16.mxu0 0
        %3022 = vmatpush1.bf16.msra.mxu0 0
        %3023 = vmatprep.subr.bf16.mxu0 0
        %3024 = vmatpush1.bf16.msra.mxu0 0
        %3025 = vmatprep.subr.bf16.mxu0 0
        %3026 = vmatpush1.bf16.msra.mxu0 0
        %3027 = vmatprep.mubr.bf16.mxu0 0
        %3028 = vmatmul.mubr.bf16.gmra.mrb[0].mxu0 %v2993
        %v3029 = vpop.f32.mrb[0].mxu0
        %v3030 = vadd.f32 0.0, %v3029
        %v3031 = vpop.f32.mrb[0].mxu0
        %v3032 = vpop.f32.mrb[0].mxu0
        %v3033 = vpop.f32.mrb[0].mxu0
        %3034 = vdwg.mxu0
        %v3035 = vadd.f32 %v2972, %v3030
        %v3036 = vxor.u32 %v3035, 2147483648
        %v3037 = vmul.f32 %v3036, 1.442695
        %v3038 = vpow.pop %v3037
        %v3039 = vadd.f32 %v3038, 1.0
        %v3040 = vrcp.pop %v3039
        %v3041 = vmul.f32 1.0, %v3040
        %v3042 = vtanh.pop %v3035
        %3044 = vrot.lane.b32.xlu0 %v2974, 32
        %v3045 = vpop.permute.xlu0 %3044
        %v3047 = vmul.f32 %v3041, %v3045
        %3049 = vrot.lane.b32.xlu0 %v3042, 64
        %v3050 = vpop.permute.xlu0 %3049
        %v3052 = vmul.f32 %v3041, %v3050
        %3054 = vrot.lane.b32.xlu0 %v3052, 32
        %v3055 = vpop.permute.xlu0 %3054
        %v3057 = vadd.f32 %v3047, %v3055
        %v3058 = vtanh.pop %v3057
        %3060 = vrot.lane.b32.xlu0 %v3058, 64
        %v3061 = vpop.permute.xlu0 %3060
        %v3063 = vmul.f32 %v3041, %v3061
        %3065 = vrot.lane.b32.xlu0 %v2973, 96
        %v3066 = vpop.permute.xlu0 %3065
        %v3068 = vsel %vm2775, %v3063, %v3066
        %v3069 = vsel %vm2775, %v3057, %v3045
        %3071 = vrot.lane.b32.xlu0 %v3068, 32
        %v3072 = vpop.permute.xlu0 %3071
        %3074 = vst.msk [vmem:[%s599] sm:$0xff] %vm433, %v3072
        %3076 = vrot.lane.b32.xlu0 %v3069, 96
        %v3077 = vpop.permute.xlu0 %3076
        %3079 = vst.msk [vmem:[%s601] sm:$0xff] %vm433, %v3077
        %v3080 = vpack.c.bf16 %v3068, %v3068
        %v3081 = vld [vmem:[%s710] sm:$0xf]
        %v3082 = vld [vmem:[%s710 + $0x4] sm:$0xf]
        %v3083 = vld [vmem:[%s710 + $0x8] sm:$0xf]
        %v3084 = vld [vmem:[%s710 + $0xc] sm:$0xf]
        %v3085 = vld [vmem:[%s715] sm:$0x1]
        %v3087 = vlaneseq
        %v3088 = vshrl.u32 %v3087, 7
        %v3089 = vsub.s32 0, %v3088
        %v3090 = vrot.slane %v3085, %v3089
        %3093 = vrot.lane.b32.xlu0 %v3080, 32
        %v3094 = vpop.permute.xlu0 %3093
        %v3099 = vunpack.c.l.b16 %v3081
        %v3100 = vunpack.c.l.b16 %v3082
        %v3101 = vunpack.c.l.b16 %v3083
        %v3102 = vunpack.c.l.b16 %v3084
        %v3103 = vpack.c.b16 %v3100, %v3099
        %v3104 = vpack.c.b16 %v3102, %v3101
        %v3108 = vsel %vm433, %v3094, 0
        %3110 = vmatprep.subr.bf16.mxu0 0
        %3111 = vmatpush1.bf16.msra.mxu0 %v3103
        %3112 = vmatprep.subr.bf16.mxu0 0
        %3113 = vmatpush1.bf16.msra.mxu0 %v3104
        %3114 = vmatprep.subr.bf16.mxu0 0
        %3115 = vmatpush1.bf16.msra.mxu0 0
        %3116 = vmatprep.subr.bf16.mxu0 0
        %3117 = vmatpush1.bf16.msra.mxu0 0
        %3118 = vmatprep.subr.bf16.mxu0 0
        %3119 = vmatpush1.bf16.msra.mxu0 0
        %3120 = vmatprep.subr.bf16.mxu0 0
        %3121 = vmatpush1.bf16.msra.mxu0 0
        %3122 = vmatprep.subr.bf16.mxu0 0
        %3123 = vmatpush1.bf16.msra.mxu0 0
        %3124 = vmatprep.subr.bf16.mxu0 0
        %3125 = vmatpush1.bf16.msra.mxu0 0
        %3126 = vmatprep.subr.bf16.mxu0 0
        %3127 = vmatpush1.bf16.msra.mxu0 0
        %3128 = vmatprep.subr.bf16.mxu0 0
        %3129 = vmatpush1.bf16.msra.mxu0 0
        %3130 = vmatprep.subr.bf16.mxu0 0
        %3131 = vmatpush1.bf16.msra.mxu0 0
        %3132 = vmatprep.subr.bf16.mxu0 0
        %3133 = vmatpush1.bf16.msra.mxu0 0
        %3134 = vmatprep.subr.bf16.mxu0 0
        %3135 = vmatpush1.bf16.msra.mxu0 0
        %3136 = vmatprep.subr.bf16.mxu0 0
        %3137 = vmatpush1.bf16.msra.mxu0 0
        %3138 = vmatprep.subr.bf16.mxu0 0
        %3139 = vmatpush1.bf16.msra.mxu0 0
        %3140 = vmatprep.subr.bf16.mxu0 0
        %3141 = vmatpush1.bf16.msra.mxu0 0
        %3142 = vmatprep.mubr.bf16.mxu0 0
        %3143 = vmatmul.mubr.bf16.gmra.mrb[0].mxu0 %v3108
        %v3144 = vpop.f32.mrb[0].mxu0
        %v3145 = vadd.f32 %v3090, %v3144
        %v3146 = vpop.f32.mrb[0].mxu0
        %v3147 = vpop.f32.mrb[0].mxu0
        %v3148 = vpop.f32.mrb[0].mxu0
        %3149 = vdwg.mxu0
        %3150 = vst [vmem:[%s781] sm:$0xff] %v3145
        %s3151 = scalar_lea.vmem %s340, 48 [#allocation5]
        %v3152 = vld [vmem:[%s3151] sm:$0xff]
        %v3153 = vld [vmem:[#allocation2] sm:$0xff]
        %v3154 = vld [vmem:[#allocation3] sm:$0xff]
        %v3155 = vld [vmem:[#allocation10] sm:$0xf]
        %v3156 = vld [vmem:[#allocation10 + $0x4] sm:$0xf]
        %v3157 = vld [vmem:[#allocation10 + $0x8] sm:$0xf]
        %v3158 = vld [vmem:[#allocation10 + $0xc] sm:$0xf]
        %v3159 = vpack.c.bf16 %v3153, %v3153
        %v3164 = vunpack.c.l.b16 %v3155
        %v3165 = vunpack.c.l.b16 %v3156
        %v3166 = vunpack.c.l.b16 %v3157
        %v3167 = vunpack.c.l.b16 %v3158
        %v3168 = vpack.c.b16 %v3165, %v3164
        %v3169 = vpack.c.b16 %v3167, %v3166
        %v3173 = vsel %vm433, %v3159, 0
        %3175 = vmatprep.subr.bf16.mxu0 0
        %3176 = vmatpush1.bf16.msra.mxu0 %v3168
        %3177 = vmatprep.subr.bf16.mxu0 0
        %3178 = vmatpush1.bf16.msra.mxu0 %v3169
        %3179 = vmatprep.subr.bf16.mxu0 0
        %3180 = vmatpush1.bf16.msra.mxu0 0
        %3181 = vmatprep.subr.bf16.mxu0 0
        %3182 = vmatpush1.bf16.msra.mxu0 0
        %3183 = vmatprep.subr.bf16.mxu0 0
        %3184 = vmatpush1.bf16.msra.mxu0 0
        %3185 = vmatprep.subr.bf16.mxu0 0
        %3186 = vmatpush1.bf16.msra.mxu0 0
        %3187 = vmatprep.subr.bf16.mxu0 0
        %3188 = vmatpush1.bf16.msra.mxu0 0
        %3189 = vmatprep.subr.bf16.mxu0 0
        %3190 = vmatpush1.bf16.msra.mxu0 0
        %3191 = vmatprep.subr.bf16.mxu0 0
        %3192 = vmatpush1.bf16.msra.mxu0 0
        %3193 = vmatprep.subr.bf16.mxu0 0
        %3194 = vmatpush1.bf16.msra.mxu0 0
        %3195 = vmatprep.subr.bf16.mxu0 0
        %3196 = vmatpush1.bf16.msra.mxu0 0
        %3197 = vmatprep.subr.bf16.mxu0 0
        %3198 = vmatpush1.bf16.msra.mxu0 0
        %3199 = vmatprep.subr.bf16.mxu0 0
        %3200 = vmatpush1.bf16.msra.mxu0 0
        %3201 = vmatprep.subr.bf16.mxu0 0
        %3202 = vmatpush1.bf16.msra.mxu0 0
        %3203 = vmatprep.subr.bf16.mxu0 0
        %3204 = vmatpush1.bf16.msra.mxu0 0
        %3205 = vmatprep.subr.bf16.mxu0 0
        %3206 = vmatpush1.bf16.msra.mxu0 0
        %3207 = vmatprep.mubr.bf16.mxu0 0
        %3208 = vmatmul.mubr.bf16.gmra.mrb[0].mxu0 %v3173
        %v3209 = vpop.f32.mrb[0].mxu0
        %v3210 = vadd.f32 0.0, %v3209
        %v3211 = vpop.f32.mrb[0].mxu0
        %v3212 = vpop.f32.mrb[0].mxu0
        %v3213 = vpop.f32.mrb[0].mxu0
        %3214 = vdwg.mxu0
        %v3215 = vadd.f32 %v3152, %v3210
        %v3216 = vxor.u32 %v3215, 2147483648
        %v3217 = vmul.f32 %v3216, 1.442695
        %v3218 = vpow.pop %v3217
        %v3219 = vadd.f32 %v3218, 1.0
        %v3220 = vrcp.pop %v3219
        %v3221 = vmul.f32 1.0, %v3220
        %v3222 = vtanh.pop %v3215
        %3224 = vrot.lane.b32.xlu0 %v3154, 32
        %v3225 = vpop.permute.xlu0 %3224
        %v3227 = vmul.f32 %v3221, %v3225
        %3229 = vrot.lane.b32.xlu0 %v3222, 64
        %v3230 = vpop.permute.xlu0 %3229
        %v3232 = vmul.f32 %v3221, %v3230
        %3234 = vrot.lane.b32.xlu0 %v3232, 32
        %v3235 = vpop.permute.xlu0 %3234
        %v3237 = vadd.f32 %v3227, %v3235
        %v3238 = vtanh.pop %v3237
        %3240 = vrot.lane.b32.xlu0 %v3238, 64
        %v3241 = vpop.permute.xlu0 %3240
        %v3243 = vmul.f32 %v3221, %v3241
        %s3244 = sadd.s32 %s506, 6
        %p3245 = scmp.lt.s32.totalorder %s3244, 12
        %s3246 = scalar_select %p3245, 1, 0
        %v3247 = vstv %s3246
        %vm3248 = vcmp.eq.s32.totalorder %v3247, 1
        %3250 = vrot.lane.b32.xlu0 %v3153, 96
        %v3251 = vpop.permute.xlu0 %3250
        %v3253 = vsel %vm3248, %v3243, %v3251
        %v3254 = vsel %vm3248, %v3237, %v3225
        %3256 = vrot.lane.b32.xlu0 %v3253, 32
        %v3257 = vpop.permute.xlu0 %3256
        %3259 = vst.msk [vmem:[#allocation2] sm:$0xff] %vm433, %v3257
        %3261 = vrot.lane.b32.xlu0 %v3254, 96
        %v3262 = vpop.permute.xlu0 %3261
        %3264 = vst.msk [vmem:[#allocation3] sm:$0xff] %vm433, %v3262
        %v3265 = vpack.c.bf16 %v3253, %v3253
        %v3266 = vld [vmem:[#allocation8] sm:$0xf]
        %v3267 = vld [vmem:[#allocation8 + $0x4] sm:$0xf]
        %v3268 = vld [vmem:[#allocation8 + $0x8] sm:$0xf]
        %v3269 = vld [vmem:[#allocation8 + $0xc] sm:$0xf]
        %v3270 = vld [vmem:[#allocation11] sm:$0x1]
        %v3272 = vlaneseq
        %v3273 = vshrl.u32 %v3272, 7
        %v3274 = vsub.s32 0, %v3273
        %v3275 = vrot.slane %v3270, %v3274
        %3278 = vrot.lane.b32.xlu0 %v3265, 32
        %v3279 = vpop.permute.xlu0 %3278
        %v3284 = vunpack.c.l.b16 %v3266
        %v3285 = vunpack.c.l.b16 %v3267
        %v3286 = vunpack.c.l.b16 %v3268
        %v3287 = vunpack.c.l.b16 %v3269
        %v3288 = vpack.c.b16 %v3285, %v3284
        %v3289 = vpack.c.b16 %v3287, %v3286
        %v3293 = vsel %vm433, %v3279, 0
        %3295 = vmatprep.subr.bf16.mxu0 0
        %3296 = vmatpush1.bf16.msra.mxu0 %v3288
        %3297 = vmatprep.subr.bf16.mxu0 0
        %3298 = vmatpush1.bf16.msra.mxu0 %v3289
        %3299 = vmatprep.subr.bf16.mxu0 0
        %3300 = vmatpush1.bf16.msra.mxu0 0
        %3301 = vmatprep.subr.bf16.mxu0 0
        %3302 = vmatpush1.bf16.msra.mxu0 0
        %3303 = vmatprep.subr.bf16.mxu0 0
        %3304 = vmatpush1.bf16.msra.mxu0 0
        %3305 = vmatprep.subr.bf16.mxu0 0
        %3306 = vmatpush1.bf16.msra.mxu0 0
        %3307 = vmatprep.subr.bf16.mxu0 0
        %3308 = vmatpush1.bf16.msra.mxu0 0
        %3309 = vmatprep.subr.bf16.mxu0 0
        %3310 = vmatpush1.bf16.msra.mxu0 0
        %3311 = vmatprep.subr.bf16.mxu0 0
        %3312 = vmatpush1.bf16.msra.mxu0 0
        %3313 = vmatprep.subr.bf16.mxu0 0
        %3314 = vmatpush1.bf16.msra.mxu0 0
        %3315 = vmatprep.subr.bf16.mxu0 0
        %3316 = vmatpush1.bf16.msra.mxu0 0
        %3317 = vmatprep.subr.bf16.mxu0 0
        %3318 = vmatpush1.bf16.msra.mxu0 0
        %3319 = vmatprep.subr.bf16.mxu0 0
        %3320 = vmatpush1.bf16.msra.mxu0 0
        %3321 = vmatprep.subr.bf16.mxu0 0
        %3322 = vmatpush1.bf16.msra.mxu0 0
        %3323 = vmatprep.subr.bf16.mxu0 0
        %3324 = vmatpush1.bf16.msra.mxu0 0
        %3325 = vmatprep.subr.bf16.mxu0 0
        %3326 = vmatpush1.bf16.msra.mxu0 0
        %3327 = vmatprep.mubr.bf16.mxu0 0
        %3328 = vmatmul.mubr.bf16.gmra.mrb[0].mxu0 %v3293
        %v3329 = vpop.f32.mrb[0].mxu0
        %v3330 = vadd.f32 %v3275, %v3329
        %v3331 = vpop.f32.mrb[0].mxu0
        %v3332 = vpop.f32.mrb[0].mxu0
        %v3333 = vpop.f32.mrb[0].mxu0
        %3334 = vdwg.mxu0
        %3335 = vst [vmem:[#allocation4] sm:$0xff] %v3330
        %v3336 = vld [vmem:[%s781] sm:$0xff]
        %v3337 = vld [vmem:[%s969] sm:$0xff]
        %v3338 = vld [vmem:[%s971] sm:$0xff]
        %v3339 = vld [vmem:[%s973] sm:$0xf]
        %v3340 = vld [vmem:[%s973 + $0x4] sm:$0xf]
        %v3341 = vld [vmem:[%s973 + $0x8] sm:$0xf]
        %v3342 = vld [vmem:[%s973 + $0xc] sm:$0xf]
        %v3343 = vpack.c.bf16 %v3337, %v3337
        %v3348 = vunpack.c.l.b16 %v3339
        %v3349 = vunpack.c.l.b16 %v3340
        %v3350 = vunpack.c.l.b16 %v3341
        %v3351 = vunpack.c.l.b16 %v3342
        %v3352 = vpack.c.b16 %v3349, %v3348
        %v3353 = vpack.c.b16 %v3351, %v3350
        %v3357 = vsel %vm433, %v3343, 0
        %3359 = vmatprep.subr.bf16.mxu0 0
        %3360 = vmatpush1.bf16.msra.mxu0 %v3352
        %3361 = vmatprep.subr.bf16.mxu0 0
        %3362 = vmatpush1.bf16.msra.mxu0 %v3353
        %3363 = vmatprep.subr.bf16.mxu0 0
        %3364 = vmatpush1.bf16.msra.mxu0 0
        %3365 = vmatprep.subr.bf16.mxu0 0
        %3366 = vmatpush1.bf16.msra.mxu0 0
        %3367 = vmatprep.subr.bf16.mxu0 0
        %3368 = vmatpush1.bf16.msra.mxu0 0
        %3369 = vmatprep.subr.bf16.mxu0 0
        %3370 = vmatpush1.bf16.msra.mxu0 0
        %3371 = vmatprep.subr.bf16.mxu0 0
        %3372 = vmatpush1.bf16.msra.mxu0 0
        %3373 = vmatprep.subr.bf16.mxu0 0
        %3374 = vmatpush1.bf16.msra.mxu0 0
        %3375 = vmatprep.subr.bf16.mxu0 0
        %3376 = vmatpush1.bf16.msra.mxu0 0
        %3377 = vmatprep.subr.bf16.mxu0 0
        %3378 = vmatpush1.bf16.msra.mxu0 0
        %3379 = vmatprep.subr.bf16.mxu0 0
        %3380 = vmatpush1.bf16.msra.mxu0 0
        %3381 = vmatprep.subr.bf16.mxu0 0
        %3382 = vmatpush1.bf16.msra.mxu0 0
        %3383 = vmatprep.subr.bf16.mxu0 0
        %3384 = vmatpush1.bf16.msra.mxu0 0
        %3385 = vmatprep.subr.bf16.mxu0 0
        %3386 = vmatpush1.bf16.msra.mxu0 0
        %3387 = vmatprep.subr.bf16.mxu0 0
        %3388 = vmatpush1.bf16.msra.mxu0 0
        %3389 = vmatprep.subr.bf16.mxu0 0
        %3390 = vmatpush1.bf16.msra.mxu0 0
        %3391 = vmatprep.mubr.bf16.mxu0 0
        %3392 = vmatmul.mubr.bf16.gmra.mrb[0].mxu0 %v3357
        %v3393 = vpop.f32.mrb[0].mxu0
        %v3394 = vadd.f32 0.0, %v3393
        %v3395 = vpop.f32.mrb[0].mxu0
        %v3396 = vpop.f32.mrb[0].mxu0
        %v3397 = vpop.f32.mrb[0].mxu0
        %3398 = vdwg.mxu0
        %v3399 = vadd.f32 %v3336, %v3394
        %v3400 = vxor.u32 %v3399, 2147483648
        %v3401 = vmul.f32 %v3400, 1.442695
        %v3402 = vpow.pop %v3401
        %v3403 = vadd.f32 %v3402, 1.0
        %v3404 = vrcp.pop %v3403
        %v3405 = vmul.f32 1.0, %v3404
        %v3406 = vtanh.pop %v3399
        %3408 = vrot.lane.b32.xlu0 %v3338, 32
        %v3409 = vpop.permute.xlu0 %3408
        %v3411 = vmul.f32 %v3405, %v3409
        %3413 = vrot.lane.b32.xlu0 %v3406, 64
        %v3414 = vpop.permute.xlu0 %3413
        %v3416 = vmul.f32 %v3405, %v3414
        %3418 = vrot.lane.b32.xlu0 %v3416, 32
        %v3419 = vpop.permute.xlu0 %3418
        %v3421 = vadd.f32 %v3411, %v3419
        %v3422 = vtanh.pop %v3421
        %3424 = vrot.lane.b32.xlu0 %v3422, 64
        %v3425 = vpop.permute.xlu0 %3424
        %v3427 = vmul.f32 %v3405, %v3425
        %3429 = vrot.lane.b32.xlu0 %v3337, 96
        %v3430 = vpop.permute.xlu0 %3429
        %v3432 = vsel %vm2775, %v3427, %v3430
        %v3433 = vsel %vm2775, %v3421, %v3409
        %3435 = vrot.lane.b32.xlu0 %v3432, 32
        %v3436 = vpop.permute.xlu0 %3435
        %3438 = vst.msk [vmem:[%s969] sm:$0xff] %vm433, %v3436
        %3440 = vrot.lane.b32.xlu0 %v3433, 96
        %v3441 = vpop.permute.xlu0 %3440
        %3443 = vst.msk [vmem:[%s971] sm:$0xff] %vm433, %v3441
        %3444 = vst.msk [vmem:[%s388 + $0x28] sm:$0xff] %vm433, %v3436
        %v3445 = vld [vmem:[#allocation4] sm:$0xff]
        %v3446 = vld [vmem:[%s599] sm:$0xff]
        %v3447 = vld [vmem:[%s601] sm:$0xff]
        %v3448 = vld [vmem:[%s603] sm:$0xf]
        %v3449 = vld [vmem:[%s603 + $0x4] sm:$0xf]
        %v3450 = vld [vmem:[%s603 + $0x8] sm:$0xf]
        %v3451 = vld [vmem:[%s603 + $0xc] sm:$0xf]
        %v3452 = vpack.c.bf16 %v3446, %v3446
        %v3457 = vunpack.c.l.b16 %v3448
        %v3458 = vunpack.c.l.b16 %v3449
        %v3459 = vunpack.c.l.b16 %v3450
        %v3460 = vunpack.c.l.b16 %v3451
        %v3461 = vpack.c.b16 %v3458, %v3457
        %v3462 = vpack.c.b16 %v3460, %v3459
        %v3466 = vsel %vm433, %v3452, 0
        %3468 = vmatprep.subr.bf16.mxu0 0
        %3469 = vmatpush1.bf16.msra.mxu0 %v3461
        %3470 = vmatprep.subr.bf16.mxu0 0
        %3471 = vmatpush1.bf16.msra.mxu0 %v3462
        %3472 = vmatprep.subr.bf16.mxu0 0
        %3473 = vmatpush1.bf16.msra.mxu0 0
        %3474 = vmatprep.subr.bf16.mxu0 0
        %3475 = vmatpush1.bf16.msra.mxu0 0
        %3476 = vmatprep.subr.bf16.mxu0 0
        %3477 = vmatpush1.bf16.msra.mxu0 0
        %3478 = vmatprep.subr.bf16.mxu0 0
        %3479 = vmatpush1.bf16.msra.mxu0 0
        %3480 = vmatprep.subr.bf16.mxu0 0
        %3481 = vmatpush1.bf16.msra.mxu0 0
        %3482 = vmatprep.subr.bf16.mxu0 0
        %3483 = vmatpush1.bf16.msra.mxu0 0
        %3484 = vmatprep.subr.bf16.mxu0 0
        %3485 = vmatpush1.bf16.msra.mxu0 0
        %3486 = vmatprep.subr.bf16.mxu0 0
        %3487 = vmatpush1.bf16.msra.mxu0 0
        %3488 = vmatprep.subr.bf16.mxu0 0
        %3489 = vmatpush1.bf16.msra.mxu0 0
        %3490 = vmatprep.subr.bf16.mxu0 0
        %3491 = vmatpush1.bf16.msra.mxu0 0
        %3492 = vmatprep.subr.bf16.mxu0 0
        %3493 = vmatpush1.bf16.msra.mxu0 0
        %3494 = vmatprep.subr.bf16.mxu0 0
        %3495 = vmatpush1.bf16.msra.mxu0 0
        %3496 = vmatprep.subr.bf16.mxu0 0
        %3497 = vmatpush1.bf16.msra.mxu0 0
        %3498 = vmatprep.subr.bf16.mxu0 0
        %3499 = vmatpush1.bf16.msra.mxu0 0
        %3500 = vmatprep.mubr.bf16.mxu0 0
        %3501 = vmatmul.mubr.bf16.gmra.mrb[0].mxu0 %v3466
        %v3502 = vpop.f32.mrb[0].mxu0
        %v3503 = vadd.f32 0.0, %v3502
        %v3504 = vpop.f32.mrb[0].mxu0
        %v3505 = vpop.f32.mrb[0].mxu0
        %v3506 = vpop.f32.mrb[0].mxu0
        %3507 = vdwg.mxu0
        %v3508 = vadd.f32 %v3445, %v3503
        %v3509 = vxor.u32 %v3508, 2147483648
        %v3510 = vmul.f32 %v3509, 1.442695
        %v3511 = vpow.pop %v3510
        %v3512 = vadd.f32 %v3511, 1.0
        %v3513 = vrcp.pop %v3512
        %v3514 = vmul.f32 1.0, %v3513
        %v3515 = vtanh.pop %v3508
        %3517 = vrot.lane.b32.xlu0 %v3447, 32
        %v3518 = vpop.permute.xlu0 %3517
        %v3520 = vmul.f32 %v3514, %v3518
        %3522 = vrot.lane.b32.xlu0 %v3515, 64
        %v3523 = vpop.permute.xlu0 %3522
        %v3525 = vmul.f32 %v3514, %v3523
        %3527 = vrot.lane.b32.xlu0 %v3525, 32
        %v3528 = vpop.permute.xlu0 %3527
        %v3530 = vadd.f32 %v3520, %v3528
        %v3531 = vtanh.pop %v3530
        %3533 = vrot.lane.b32.xlu0 %v3531, 64
        %v3534 = vpop.permute.xlu0 %3533
        %v3536 = vmul.f32 %v3514, %v3534
        %3538 = vrot.lane.b32.xlu0 %v3446, 96
        %v3539 = vpop.permute.xlu0 %3538
        %v3541 = vsel %vm3248, %v3536, %v3539
        %v3542 = vsel %vm3248, %v3530, %v3518
        %3544 = vrot.lane.b32.xlu0 %v3541, 32
        %v3545 = vpop.permute.xlu0 %3544
        %3547 = vst.msk [vmem:[%s599] sm:$0xff] %vm433, %v3545
        %3549 = vrot.lane.b32.xlu0 %v3542, 96
        %v3550 = vpop.permute.xlu0 %3549
        %3552 = vst.msk [vmem:[%s601] sm:$0xff] %vm433, %v3550
        %v3553 = vpack.c.bf16 %v3541, %v3541
        %v3554 = vld [vmem:[%s710] sm:$0xf]
        %v3555 = vld [vmem:[%s710 + $0x4] sm:$0xf]
        %v3556 = vld [vmem:[%s710 + $0x8] sm:$0xf]
        %v3557 = vld [vmem:[%s710 + $0xc] sm:$0xf]
        %v3558 = vld [vmem:[%s715] sm:$0x1]
        %v3560 = vlaneseq
        %v3561 = vshrl.u32 %v3560, 7
        %v3562 = vsub.s32 0, %v3561
        %v3563 = vrot.slane %v3558, %v3562
        %3566 = vrot.lane.b32.xlu0 %v3553, 32
        %v3567 = vpop.permute.xlu0 %3566
        %v3572 = vunpack.c.l.b16 %v3554
        %v3573 = vunpack.c.l.b16 %v3555
        %v3574 = vunpack.c.l.b16 %v3556
        %v3575 = vunpack.c.l.b16 %v3557
        %v3576 = vpack.c.b16 %v3573, %v3572
        %v3577 = vpack.c.b16 %v3575, %v3574
        %v3581 = vsel %vm433, %v3567, 0
        %3583 = vmatprep.subr.bf16.mxu0 0
        %3584 = vmatpush1.bf16.msra.mxu0 %v3576
        %3585 = vmatprep.subr.bf16.mxu0 0
        %3586 = vmatpush1.bf16.msra.mxu0 %v3577
        %3587 = vmatprep.subr.bf16.mxu0 0
        %3588 = vmatpush1.bf16.msra.mxu0 0
        %3589 = vmatprep.subr.bf16.mxu0 0
        %3590 = vmatpush1.bf16.msra.mxu0 0
        %3591 = vmatprep.subr.bf16.mxu0 0
        %3592 = vmatpush1.bf16.msra.mxu0 0
        %3593 = vmatprep.subr.bf16.mxu0 0
        %3594 = vmatpush1.bf16.msra.mxu0 0
        %3595 = vmatprep.subr.bf16.mxu0 0
        %3596 = vmatpush1.bf16.msra.mxu0 0
        %3597 = vmatprep.subr.bf16.mxu0 0
        %3598 = vmatpush1.bf16.msra.mxu0 0
        %3599 = vmatprep.subr.bf16.mxu0 0
        %3600 = vmatpush1.bf16.msra.mxu0 0
        %3601 = vmatprep.subr.bf16.mxu0 0
        %3602 = vmatpush1.bf16.msra.mxu0 0
        %3603 = vmatprep.subr.bf16.mxu0 0
        %3604 = vmatpush1.bf16.msra.mxu0 0
        %3605 = vmatprep.subr.bf16.mxu0 0
        %3606 = vmatpush1.bf16.msra.mxu0 0
        %3607 = vmatprep.subr.bf16.mxu0 0
        %3608 = vmatpush1.bf16.msra.mxu0 0
        %3609 = vmatprep.subr.bf16.mxu0 0
        %3610 = vmatpush1.bf16.msra.mxu0 0
        %3611 = vmatprep.subr.bf16.mxu0 0
        %3612 = vmatpush1.bf16.msra.mxu0 0
        %3613 = vmatprep.subr.bf16.mxu0 0
        %3614 = vmatpush1.bf16.msra.mxu0 0
        %3615 = vmatprep.mubr.bf16.mxu0 0
        %3616 = vmatmul.mubr.bf16.gmra.mrb[0].mxu0 %v3581
        %v3617 = vpop.f32.mrb[0].mxu0
        %v3618 = vadd.f32 %v3563, %v3617
        %v3619 = vpop.f32.mrb[0].mxu0
        %v3620 = vpop.f32.mrb[0].mxu0
        %v3621 = vpop.f32.mrb[0].mxu0
        %3622 = vdwg.mxu0
        %3623 = vst [vmem:[%s781] sm:$0xff] %v3618
        %s3624 = scalar_lea.vmem %s340, 56 [#allocation5]
        %v3625 = vld [vmem:[%s3624] sm:$0xff]
        %v3626 = vld [vmem:[#allocation2] sm:$0xff]
        %v3627 = vld [vmem:[#allocation3] sm:$0xff]
        %v3628 = vld [vmem:[#allocation10] sm:$0xf]
        %v3629 = vld [vmem:[#allocation10 + $0x4] sm:$0xf]
        %v3630 = vld [vmem:[#allocation10 + $0x8] sm:$0xf]
        %v3631 = vld [vmem:[#allocation10 + $0xc] sm:$0xf]
        %v3632 = vpack.c.bf16 %v3626, %v3626
        %v3637 = vunpack.c.l.b16 %v3628
        %v3638 = vunpack.c.l.b16 %v3629
        %v3639 = vunpack.c.l.b16 %v3630
        %v3640 = vunpack.c.l.b16 %v3631
        %v3641 = vpack.c.b16 %v3638, %v3637
        %v3642 = vpack.c.b16 %v3640, %v3639
        %v3646 = vsel %vm433, %v3632, 0
        %3648 = vmatprep.subr.bf16.mxu0 0
        %3649 = vmatpush1.bf16.msra.mxu0 %v3641
        %3650 = vmatprep.subr.bf16.mxu0 0
        %3651 = vmatpush1.bf16.msra.mxu0 %v3642
        %3652 = vmatprep.subr.bf16.mxu0 0
        %3653 = vmatpush1.bf16.msra.mxu0 0
        %3654 = vmatprep.subr.bf16.mxu0 0
        %3655 = vmatpush1.bf16.msra.mxu0 0
        %3656 = vmatprep.subr.bf16.mxu0 0
        %3657 = vmatpush1.bf16.msra.mxu0 0
        %3658 = vmatprep.subr.bf16.mxu0 0
        %3659 = vmatpush1.bf16.msra.mxu0 0
        %3660 = vmatprep.subr.bf16.mxu0 0
        %3661 = vmatpush1.bf16.msra.mxu0 0
        %3662 = vmatprep.subr.bf16.mxu0 0
        %3663 = vmatpush1.bf16.msra.mxu0 0
        %3664 = vmatprep.subr.bf16.mxu0 0
        %3665 = vmatpush1.bf16.msra.mxu0 0
        %3666 = vmatprep.subr.bf16.mxu0 0
        %3667 = vmatpush1.bf16.msra.mxu0 0
        %3668 = vmatprep.subr.bf16.mxu0 0
        %3669 = vmatpush1.bf16.msra.mxu0 0
        %3670 = vmatprep.subr.bf16.mxu0 0
        %3671 = vmatpush1.bf16.msra.mxu0 0
        %3672 = vmatprep.subr.bf16.mxu0 0
        %3673 = vmatpush1.bf16.msra.mxu0 0
        %3674 = vmatprep.subr.bf16.mxu0 0
        %3675 = vmatpush1.bf16.msra.mxu0 0
        %3676 = vmatprep.subr.bf16.mxu0 0
        %3677 = vmatpush1.bf16.msra.mxu0 0
        %3678 = vmatprep.subr.bf16.mxu0 0
        %3679 = vmatpush1.bf16.msra.mxu0 0
        %3680 = vmatprep.mubr.bf16.mxu0 0
        %3681 = vmatmul.mubr.bf16.gmra.mrb[0].mxu0 %v3646
        %v3682 = vpop.f32.mrb[0].mxu0
        %v3683 = vadd.f32 0.0, %v3682
        %v3684 = vpop.f32.mrb[0].mxu0
        %v3685 = vpop.f32.mrb[0].mxu0
        %v3686 = vpop.f32.mrb[0].mxu0
        %3687 = vdwg.mxu0
        %v3688 = vadd.f32 %v3625, %v3683
        %v3689 = vxor.u32 %v3688, 2147483648
        %v3690 = vmul.f32 %v3689, 1.442695
        %v3691 = vpow.pop %v3690
        %v3692 = vadd.f32 %v3691, 1.0
        %v3693 = vrcp.pop %v3692
        %v3694 = vmul.f32 1.0, %v3693
        %v3695 = vtanh.pop %v3688
        %3697 = vrot.lane.b32.xlu0 %v3627, 32
        %v3698 = vpop.permute.xlu0 %3697
        %v3700 = vmul.f32 %v3694, %v3698
        %3702 = vrot.lane.b32.xlu0 %v3695, 64
        %v3703 = vpop.permute.xlu0 %3702
        %v3705 = vmul.f32 %v3694, %v3703
        %3707 = vrot.lane.b32.xlu0 %v3705, 32
        %v3708 = vpop.permute.xlu0 %3707
        %v3710 = vadd.f32 %v3700, %v3708
        %v3711 = vtanh.pop %v3710
        %3713 = vrot.lane.b32.xlu0 %v3711, 64
        %v3714 = vpop.permute.xlu0 %3713
        %v3716 = vmul.f32 %v3694, %v3714
        %s3717 = sadd.s32 %s506, 7
        %p3718 = scmp.lt.s32.totalorder %s3717, 12
        %s3719 = scalar_select %p3718, 1, 0
        %v3720 = vstv %s3719
        %vm3721 = vcmp.eq.s32.totalorder %v3720, 1
        %3723 = vrot.lane.b32.xlu0 %v3626, 96
        %v3724 = vpop.permute.xlu0 %3723
        %v3726 = vsel %vm3721, %v3716, %v3724
        %v3727 = vsel %vm3721, %v3710, %v3698
        %3729 = vrot.lane.b32.xlu0 %v3726, 32
        %v3730 = vpop.permute.xlu0 %3729
        %3732 = vst.msk [vmem:[#allocation2] sm:$0xff] %vm433, %v3730
        %3734 = vrot.lane.b32.xlu0 %v3727, 96
        %v3735 = vpop.permute.xlu0 %3734
        %3737 = vst.msk [vmem:[#allocation3] sm:$0xff] %vm433, %v3735
        %v3738 = vpack.c.bf16 %v3726, %v3726
        %v3739 = vld [vmem:[#allocation8] sm:$0xf]
        %v3740 = vld [vmem:[#allocation8 + $0x4] sm:$0xf]
        %v3741 = vld [vmem:[#allocation8 + $0x8] sm:$0xf]
        %v3742 = vld [vmem:[#allocation8 + $0xc] sm:$0xf]
        %v3743 = vld [vmem:[#allocation11] sm:$0x1]
        %v3745 = vlaneseq
        %v3746 = vshrl.u32 %v3745, 7
        %v3747 = vsub.s32 0, %v3746
        %v3748 = vrot.slane %v3743, %v3747
        %3751 = vrot.lane.b32.xlu0 %v3738, 32
        %v3752 = vpop.permute.xlu0 %3751
        %v3757 = vunpack.c.l.b16 %v3739
        %v3758 = vunpack.c.l.b16 %v3740
        %v3759 = vunpack.c.l.b16 %v3741
        %v3760 = vunpack.c.l.b16 %v3742
        %v3761 = vpack.c.b16 %v3758, %v3757
        %v3762 = vpack.c.b16 %v3760, %v3759
        %v3766 = vsel %vm433, %v3752, 0
        %3768 = vmatprep.subr.bf16.mxu0 0
        %3769 = vmatpush1.bf16.msra.mxu0 %v3761
        %3770 = vmatprep.subr.bf16.mxu0 0
        %3771 = vmatpush1.bf16.msra.mxu0 %v3762
        %3772 = vmatprep.subr.bf16.mxu0 0
        %3773 = vmatpush1.bf16.msra.mxu0 0
        %3774 = vmatprep.subr.bf16.mxu0 0
        %3775 = vmatpush1.bf16.msra.mxu0 0
        %3776 = vmatprep.subr.bf16.mxu0 0
        %3777 = vmatpush1.bf16.msra.mxu0 0
        %3778 = vmatprep.subr.bf16.mxu0 0
        %3779 = vmatpush1.bf16.msra.mxu0 0
        %3780 = vmatprep.subr.bf16.mxu0 0
        %3781 = vmatpush1.bf16.msra.mxu0 0
        %3782 = vmatprep.subr.bf16.mxu0 0
        %3783 = vmatpush1.bf16.msra.mxu0 0
        %3784 = vmatprep.subr.bf16.mxu0 0
        %3785 = vmatpush1.bf16.msra.mxu0 0
        %3786 = vmatprep.subr.bf16.mxu0 0
        %3787 = vmatpush1.bf16.msra.mxu0 0
        %3788 = vmatprep.subr.bf16.mxu0 0
        %3789 = vmatpush1.bf16.msra.mxu0 0
        %3790 = vmatprep.subr.bf16.mxu0 0
        %3791 = vmatpush1.bf16.msra.mxu0 0
        %3792 = vmatprep.subr.bf16.mxu0 0
        %3793 = vmatpush1.bf16.msra.mxu0 0
        %3794 = vmatprep.subr.bf16.mxu0 0
        %3795 = vmatpush1.bf16.msra.mxu0 0
        %3796 = vmatprep.subr.bf16.mxu0 0
        %3797 = vmatpush1.bf16.msra.mxu0 0
        %3798 = vmatprep.subr.bf16.mxu0 0
        %3799 = vmatpush1.bf16.msra.mxu0 0
        %3800 = vmatprep.mubr.bf16.mxu0 0
        %3801 = vmatmul.mubr.bf16.gmra.mrb[0].mxu0 %v3766
        %v3802 = vpop.f32.mrb[0].mxu0
        %v3803 = vadd.f32 %v3748, %v3802
        %v3804 = vpop.f32.mrb[0].mxu0
        %v3805 = vpop.f32.mrb[0].mxu0
        %v3806 = vpop.f32.mrb[0].mxu0
        %3807 = vdwg.mxu0
        %3808 = vst [vmem:[#allocation4] sm:$0xff] %v3803
        %v3809 = vld [vmem:[%s781] sm:$0xff]
        %v3810 = vld [vmem:[%s969] sm:$0xff]
        %v3811 = vld [vmem:[%s971] sm:$0xff]
        %v3812 = vld [vmem:[%s973] sm:$0xf]
        %v3813 = vld [vmem:[%s973 + $0x4] sm:$0xf]
        %v3814 = vld [vmem:[%s973 + $0x8] sm:$0xf]
        %v3815 = vld [vmem:[%s973 + $0xc] sm:$0xf]
        %v3816 = vpack.c.bf16 %v3810, %v3810
        %v3821 = vunpack.c.l.b16 %v3812
        %v3822 = vunpack.c.l.b16 %v3813
        %v3823 = vunpack.c.l.b16 %v3814
        %v3824 = vunpack.c.l.b16 %v3815
        %v3825 = vpack.c.b16 %v3822, %v3821
        %v3826 = vpack.c.b16 %v3824, %v3823
        %v3830 = vsel %vm433, %v3816, 0
        %3832 = vmatprep.subr.bf16.mxu0 0
        %3833 = vmatpush1.bf16.msra.mxu0 %v3825
        %3834 = vmatprep.subr.bf16.mxu0 0
        %3835 = vmatpush1.bf16.msra.mxu0 %v3826
        %3836 = vmatprep.subr.bf16.mxu0 0
        %3837 = vmatpush1.bf16.msra.mxu0 0
        %3838 = vmatprep.subr.bf16.mxu0 0
        %3839 = vmatpush1.bf16.msra.mxu0 0
        %3840 = vmatprep.subr.bf16.mxu0 0
        %3841 = vmatpush1.bf16.msra.mxu0 0
        %3842 = vmatprep.subr.bf16.mxu0 0
        %3843 = vmatpush1.bf16.msra.mxu0 0
        %3844 = vmatprep.subr.bf16.mxu0 0
        %3845 = vmatpush1.bf16.msra.mxu0 0
        %3846 = vmatprep.subr.bf16.mxu0 0
        %3847 = vmatpush1.bf16.msra.mxu0 0
        %3848 = vmatprep.subr.bf16.mxu0 0
        %3849 = vmatpush1.bf16.msra.mxu0 0
        %3850 = vmatprep.subr.bf16.mxu0 0
        %3851 = vmatpush1.bf16.msra.mxu0 0
        %3852 = vmatprep.subr.bf16.mxu0 0
        %3853 = vmatpush1.bf16.msra.mxu0 0
        %3854 = vmatprep.subr.bf16.mxu0 0
        %3855 = vmatpush1.bf16.msra.mxu0 0
        %3856 = vmatprep.subr.bf16.mxu0 0
        %3857 = vmatpush1.bf16.msra.mxu0 0
        %3858 = vmatprep.subr.bf16.mxu0 0
        %3859 = vmatpush1.bf16.msra.mxu0 0
        %3860 = vmatprep.subr.bf16.mxu0 0
        %3861 = vmatpush1.bf16.msra.mxu0 0
        %3862 = vmatprep.subr.bf16.mxu0 0
        %3863 = vmatpush1.bf16.msra.mxu0 0
        %3864 = vmatprep.mubr.bf16.mxu0 0
        %3865 = vmatmul.mubr.bf16.gmra.mrb[0].mxu0 %v3830
        %v3866 = vpop.f32.mrb[0].mxu0
        %v3867 = vadd.f32 0.0, %v3866
        %v3868 = vpop.f32.mrb[0].mxu0
        %v3869 = vpop.f32.mrb[0].mxu0
        %v3870 = vpop.f32.mrb[0].mxu0
        %3871 = vdwg.mxu0
        %v3872 = vadd.f32 %v3809, %v3867
        %v3873 = vxor.u32 %v3872, 2147483648
        %v3874 = vmul.f32 %v3873, 1.442695
        %v3875 = vpow.pop %v3874
        %v3876 = vadd.f32 %v3875, 1.0
        %v3877 = vrcp.pop %v3876
        %v3878 = vmul.f32 1.0, %v3877
        %v3879 = vtanh.pop %v3872
        %3881 = vrot.lane.b32.xlu0 %v3811, 32
        %v3882 = vpop.permute.xlu0 %3881
        %v3884 = vmul.f32 %v3878, %v3882
        %3886 = vrot.lane.b32.xlu0 %v3879, 64
        %v3887 = vpop.permute.xlu0 %3886
        %v3889 = vmul.f32 %v3878, %v3887
        %3891 = vrot.lane.b32.xlu0 %v3889, 32
        %v3892 = vpop.permute.xlu0 %3891
        %v3894 = vadd.f32 %v3884, %v3892
        %v3895 = vtanh.pop %v3894
        %3897 = vrot.lane.b32.xlu0 %v3895, 64
        %v3898 = vpop.permute.xlu0 %3897
        %v3900 = vmul.f32 %v3878, %v3898
        %3902 = vrot.lane.b32.xlu0 %v3810, 96
        %v3903 = vpop.permute.xlu0 %3902
        %v3905 = vsel %vm3248, %v3900, %v3903
        %v3906 = vsel %vm3248, %v3894, %v3882
        %3908 = vrot.lane.b32.xlu0 %v3905, 32
        %v3909 = vpop.permute.xlu0 %3908
        %3911 = vst.msk [vmem:[%s969] sm:$0xff] %vm433, %v3909
        %3913 = vrot.lane.b32.xlu0 %v3906, 96
        %v3914 = vpop.permute.xlu0 %3913
        %3916 = vst.msk [vmem:[%s971] sm:$0xff] %vm433, %v3914
        %3917 = vst.msk [vmem:[%s388 + $0x30] sm:$0xff] %vm433, %v3909
        %v3918 = vld [vmem:[#allocation4] sm:$0xff]
        %v3919 = vld [vmem:[%s599] sm:$0xff]
        %v3920 = vld [vmem:[%s601] sm:$0xff]
        %v3921 = vld [vmem:[%s603] sm:$0xf]
        %v3922 = vld [vmem:[%s603 + $0x4] sm:$0xf]
        %v3923 = vld [vmem:[%s603 + $0x8] sm:$0xf]
        %v3924 = vld [vmem:[%s603 + $0xc] sm:$0xf]
        %v3925 = vpack.c.bf16 %v3919, %v3919
        %v3930 = vunpack.c.l.b16 %v3921
        %v3931 = vunpack.c.l.b16 %v3922
        %v3932 = vunpack.c.l.b16 %v3923
        %v3933 = vunpack.c.l.b16 %v3924
        %v3934 = vpack.c.b16 %v3931, %v3930
        %v3935 = vpack.c.b16 %v3933, %v3932
        %v3939 = vsel %vm433, %v3925, 0
        %3941 = vmatprep.subr.bf16.mxu0 0
        %3942 = vmatpush1.bf16.msra.mxu0 %v3934
        %3943 = vmatprep.subr.bf16.mxu0 0
        %3944 = vmatpush1.bf16.msra.mxu0 %v3935
        %3945 = vmatprep.subr.bf16.mxu0 0
        %3946 = vmatpush1.bf16.msra.mxu0 0
        %3947 = vmatprep.subr.bf16.mxu0 0
        %3948 = vmatpush1.bf16.msra.mxu0 0
        %3949 = vmatprep.subr.bf16.mxu0 0
        %3950 = vmatpush1.bf16.msra.mxu0 0
        %3951 = vmatprep.subr.bf16.mxu0 0
        %3952 = vmatpush1.bf16.msra.mxu0 0
        %3953 = vmatprep.subr.bf16.mxu0 0
        %3954 = vmatpush1.bf16.msra.mxu0 0
        %3955 = vmatprep.subr.bf16.mxu0 0
        %3956 = vmatpush1.bf16.msra.mxu0 0
        %3957 = vmatprep.subr.bf16.mxu0 0
        %3958 = vmatpush1.bf16.msra.mxu0 0
        %3959 = vmatprep.subr.bf16.mxu0 0
        %3960 = vmatpush1.bf16.msra.mxu0 0
        %3961 = vmatprep.subr.bf16.mxu0 0
        %3962 = vmatpush1.bf16.msra.mxu0 0
        %3963 = vmatprep.subr.bf16.mxu0 0
        %3964 = vmatpush1.bf16.msra.mxu0 0
        %3965 = vmatprep.subr.bf16.mxu0 0
        %3966 = vmatpush1.bf16.msra.mxu0 0
        %3967 = vmatprep.subr.bf16.mxu0 0
        %3968 = vmatpush1.bf16.msra.mxu0 0
        %3969 = vmatprep.subr.bf16.mxu0 0
        %3970 = vmatpush1.bf16.msra.mxu0 0
        %3971 = vmatprep.subr.bf16.mxu0 0
        %3972 = vmatpush1.bf16.msra.mxu0 0
        %3973 = vmatprep.mubr.bf16.mxu0 0
        %3974 = vmatmul.mubr.bf16.gmra.mrb[0].mxu0 %v3939
        %v3975 = vpop.f32.mrb[0].mxu0
        %v3976 = vadd.f32 0.0, %v3975
        %v3977 = vpop.f32.mrb[0].mxu0
        %v3978 = vpop.f32.mrb[0].mxu0
        %v3979 = vpop.f32.mrb[0].mxu0
        %3980 = vdwg.mxu0
        %v3981 = vadd.f32 %v3918, %v3976
        %v3982 = vxor.u32 %v3981, 2147483648
        %v3983 = vmul.f32 %v3982, 1.442695
        %v3984 = vpow.pop %v3983
        %v3985 = vadd.f32 %v3984, 1.0
        %v3986 = vrcp.pop %v3985
        %v3987 = vmul.f32 1.0, %v3986
        %v3988 = vtanh.pop %v3981
        %3990 = vrot.lane.b32.xlu0 %v3920, 32
        %v3991 = vpop.permute.xlu0 %3990
        %v3993 = vmul.f32 %v3987, %v3991
        %3995 = vrot.lane.b32.xlu0 %v3988, 64
        %v3996 = vpop.permute.xlu0 %3995
        %v3998 = vmul.f32 %v3987, %v3996
        %4000 = vrot.lane.b32.xlu0 %v3998, 32
        %v4001 = vpop.permute.xlu0 %4000
        %v4003 = vadd.f32 %v3993, %v4001
        %v4004 = vtanh.pop %v4003
        %4006 = vrot.lane.b32.xlu0 %v4004, 64
        %v4007 = vpop.permute.xlu0 %4006
        %v4009 = vmul.f32 %v3987, %v4007
        %4011 = vrot.lane.b32.xlu0 %v3919, 96
        %v4012 = vpop.permute.xlu0 %4011
        %v4014 = vsel %vm3721, %v4009, %v4012
        %v4015 = vsel %vm3721, %v4003, %v3991
        %4017 = vrot.lane.b32.xlu0 %v4014, 32
        %v4018 = vpop.permute.xlu0 %4017
        %4020 = vst.msk [vmem:[%s599] sm:$0xff] %vm433, %v4018
        %4022 = vrot.lane.b32.xlu0 %v4015, 96
        %v4023 = vpop.permute.xlu0 %4022
        %4025 = vst.msk [vmem:[%s601] sm:$0xff] %vm433, %v4023
        %v4026 = vpack.c.bf16 %v4014, %v4014
        %v4027 = vld [vmem:[%s710] sm:$0xf]
        %v4028 = vld [vmem:[%s710 + $0x4] sm:$0xf]
        %v4029 = vld [vmem:[%s710 + $0x8] sm:$0xf]
        %v4030 = vld [vmem:[%s710 + $0xc] sm:$0xf]
        %v4031 = vld [vmem:[%s715] sm:$0x1]
        %v4033 = vlaneseq
        %v4034 = vshrl.u32 %v4033, 7
        %v4035 = vsub.s32 0, %v4034
        %v4036 = vrot.slane %v4031, %v4035
        %4039 = vrot.lane.b32.xlu0 %v4026, 32
        %v4040 = vpop.permute.xlu0 %4039
        %v4045 = vunpack.c.l.b16 %v4027
        %v4046 = vunpack.c.l.b16 %v4028
        %v4047 = vunpack.c.l.b16 %v4029
        %v4048 = vunpack.c.l.b16 %v4030
        %v4049 = vpack.c.b16 %v4046, %v4045
        %v4050 = vpack.c.b16 %v4048, %v4047
        %v4054 = vsel %vm433, %v4040, 0
        %4056 = vmatprep.subr.bf16.mxu0 0
        %4057 = vmatpush1.bf16.msra.mxu0 %v4049
        %4058 = vmatprep.subr.bf16.mxu0 0
        %4059 = vmatpush1.bf16.msra.mxu0 %v4050
        %4060 = vmatprep.subr.bf16.mxu0 0
        %4061 = vmatpush1.bf16.msra.mxu0 0
        %4062 = vmatprep.subr.bf16.mxu0 0
        %4063 = vmatpush1.bf16.msra.mxu0 0
        %4064 = vmatprep.subr.bf16.mxu0 0
        %4065 = vmatpush1.bf16.msra.mxu0 0
        %4066 = vmatprep.subr.bf16.mxu0 0
        %4067 = vmatpush1.bf16.msra.mxu0 0
        %4068 = vmatprep.subr.bf16.mxu0 0
        %4069 = vmatpush1.bf16.msra.mxu0 0
        %4070 = vmatprep.subr.bf16.mxu0 0
        %4071 = vmatpush1.bf16.msra.mxu0 0
        %4072 = vmatprep.subr.bf16.mxu0 0
        %4073 = vmatpush1.bf16.msra.mxu0 0
        %4074 = vmatprep.subr.bf16.mxu0 0
        %4075 = vmatpush1.bf16.msra.mxu0 0
        %4076 = vmatprep.subr.bf16.mxu0 0
        %4077 = vmatpush1.bf16.msra.mxu0 0
        %4078 = vmatprep.subr.bf16.mxu0 0
        %4079 = vmatpush1.bf16.msra.mxu0 0
        %4080 = vmatprep.subr.bf16.mxu0 0
        %4081 = vmatpush1.bf16.msra.mxu0 0
        %4082 = vmatprep.subr.bf16.mxu0 0
        %4083 = vmatpush1.bf16.msra.mxu0 0
        %4084 = vmatprep.subr.bf16.mxu0 0
        %4085 = vmatpush1.bf16.msra.mxu0 0
        %4086 = vmatprep.subr.bf16.mxu0 0
        %4087 = vmatpush1.bf16.msra.mxu0 0
        %4088 = vmatprep.mubr.bf16.mxu0 0
        %4089 = vmatmul.mubr.bf16.gmra.mrb[0].mxu0 %v4054
        %v4090 = vpop.f32.mrb[0].mxu0
        %v4091 = vadd.f32 %v4036, %v4090
        %v4092 = vpop.f32.mrb[0].mxu0
        %v4093 = vpop.f32.mrb[0].mxu0
        %v4094 = vpop.f32.mrb[0].mxu0
        %4095 = vdwg.mxu0
        %4096 = vst [vmem:[%s781] sm:$0xff] %v4091
        %v4097 = vld [vmem:[%s781] sm:$0xff]
        %v4098 = vld [vmem:[%s969] sm:$0xff]
        %v4099 = vld [vmem:[%s971] sm:$0xff]
        %v4100 = vld [vmem:[%s973] sm:$0xf]
        %v4101 = vld [vmem:[%s973 + $0x4] sm:$0xf]
        %v4102 = vld [vmem:[%s973 + $0x8] sm:$0xf]
        %v4103 = vld [vmem:[%s973 + $0xc] sm:$0xf]
        %v4104 = vpack.c.bf16 %v4098, %v4098
        %v4109 = vunpack.c.l.b16 %v4100
        %v4110 = vunpack.c.l.b16 %v4101
        %v4111 = vunpack.c.l.b16 %v4102
        %v4112 = vunpack.c.l.b16 %v4103
        %v4113 = vpack.c.b16 %v4110, %v4109
        %v4114 = vpack.c.b16 %v4112, %v4111
        %v4118 = vsel %vm433, %v4104, 0
        %4120 = vmatprep.subr.bf16.mxu0 0
        %4121 = vmatpush1.bf16.msra.mxu0 %v4113
        %4122 = vmatprep.subr.bf16.mxu0 0
        %4123 = vmatpush1.bf16.msra.mxu0 %v4114
        %4124 = vmatprep.subr.bf16.mxu0 0
        %4125 = vmatpush1.bf16.msra.mxu0 0
        %4126 = vmatprep.subr.bf16.mxu0 0
        %4127 = vmatpush1.bf16.msra.mxu0 0
        %4128 = vmatprep.subr.bf16.mxu0 0
        %4129 = vmatpush1.bf16.msra.mxu0 0
        %4130 = vmatprep.subr.bf16.mxu0 0
        %4131 = vmatpush1.bf16.msra.mxu0 0
        %4132 = vmatprep.subr.bf16.mxu0 0
        %4133 = vmatpush1.bf16.msra.mxu0 0
        %4134 = vmatprep.subr.bf16.mxu0 0
        %4135 = vmatpush1.bf16.msra.mxu0 0
        %4136 = vmatprep.subr.bf16.mxu0 0
        %4137 = vmatpush1.bf16.msra.mxu0 0
        %4138 = vmatprep.subr.bf16.mxu0 0
        %4139 = vmatpush1.bf16.msra.mxu0 0
        %4140 = vmatprep.subr.bf16.mxu0 0
        %4141 = vmatpush1.bf16.msra.mxu0 0
        %4142 = vmatprep.subr.bf16.mxu0 0
        %4143 = vmatpush1.bf16.msra.mxu0 0
        %4144 = vmatprep.subr.bf16.mxu0 0
        %4145 = vmatpush1.bf16.msra.mxu0 0
        %4146 = vmatprep.subr.bf16.mxu0 0
        %4147 = vmatpush1.bf16.msra.mxu0 0
        %4148 = vmatprep.subr.bf16.mxu0 0
        %4149 = vmatpush1.bf16.msra.mxu0 0
        %4150 = vmatprep.subr.bf16.mxu0 0
        %4151 = vmatpush1.bf16.msra.mxu0 0
        %4152 = vmatprep.mubr.bf16.mxu0 0
        %4153 = vmatmul.mubr.bf16.gmra.mrb[0].mxu0 %v4118
        %v4154 = vpop.f32.mrb[0].mxu0
        %v4155 = vadd.f32 0.0, %v4154
        %v4156 = vpop.f32.mrb[0].mxu0
        %v4157 = vpop.f32.mrb[0].mxu0
        %v4158 = vpop.f32.mrb[0].mxu0
        %4159 = vdwg.mxu0
        %v4160 = vadd.f32 %v4097, %v4155
        %v4161 = vxor.u32 %v4160, 2147483648
        %v4162 = vmul.f32 %v4161, 1.442695
        %v4163 = vpow.pop %v4162
        %v4164 = vadd.f32 %v4163, 1.0
        %v4165 = vrcp.pop %v4164
        %v4166 = vmul.f32 1.0, %v4165
        %v4167 = vtanh.pop %v4160
        %4169 = vrot.lane.b32.xlu0 %v4099, 32
        %v4170 = vpop.permute.xlu0 %4169
        %v4172 = vmul.f32 %v4166, %v4170
        %4174 = vrot.lane.b32.xlu0 %v4167, 64
        %v4175 = vpop.permute.xlu0 %4174
        %v4177 = vmul.f32 %v4166, %v4175
        %4179 = vrot.lane.b32.xlu0 %v4177, 32
        %v4180 = vpop.permute.xlu0 %4179
        %v4182 = vadd.f32 %v4172, %v4180
        %v4183 = vtanh.pop %v4182
        %4185 = vrot.lane.b32.xlu0 %v4183, 64
        %v4186 = vpop.permute.xlu0 %4185
        %v4188 = vmul.f32 %v4166, %v4186
        %4190 = vrot.lane.b32.xlu0 %v4098, 96
        %v4191 = vpop.permute.xlu0 %4190
        %v4193 = vsel %vm3721, %v4188, %v4191
        %v4194 = vsel %vm3721, %v4182, %v4170
        %4196 = vrot.lane.b32.xlu0 %v4193, 32
        %v4197 = vpop.permute.xlu0 %4196
        %4199 = vst.msk [vmem:[%s969] sm:$0xff] %vm433, %v4197
        %4201 = vrot.lane.b32.xlu0 %v4194, 96
        %v4202 = vpop.permute.xlu0 %4201
        %4204 = vst.msk [vmem:[%s971] sm:$0xff] %vm433, %v4202
        %4205 = vst.msk [vmem:[%s388 + $0x38] sm:$0xff] %vm433, %v4197
        %p4206 = scmp.eq.s32.totalorder %s30, 1
        // Predicated region
        $region73: #{lstm_forward.1} parent=43 // pred_check
          %p4207 = pneg %p4206
        $region74: #{lstm_forward.1} parent=43 // pred_check_branch
          %4209 = sbr.rel (%p4207) target = $region76
        $region75: #{lstm_forward.1} parent=43 // pred_region
          %v4210 = vld [vmem:[#allocation2] sm:$0xff]
          %v4211 = vld [vmem:[#allocation2 + $0x8] sm:$0xff]
          %v4212 = vld [vmem:[#allocation2 + $0x10] sm:$0xff]
          %4213 = vst.msk [vmem:[#allocation17] sm:$0xff] %vm433, %v4210
          %4214 = vst.msk [vmem:[#allocation17 + $0x8] sm:$0xff] %vm433, %v4211
          %4215 = vst.msk [vmem:[#allocation17 + $0x10] sm:$0xff] %vm433, %v4212
          %v4216 = vld [vmem:[#allocation3] sm:$0xff]
          %v4217 = vld [vmem:[#allocation3 + $0x8] sm:$0xff]
          %v4218 = vld [vmem:[#allocation3 + $0x10] sm:$0xff]
          %4219 = vst.msk [vmem:[#allocation19] sm:$0xff] %vm433, %v4216
          %4220 = vst.msk [vmem:[#allocation19 + $0x8] sm:$0xff] %vm433, %v4217
          %4221 = vst.msk [vmem:[#allocation19 + $0x10] sm:$0xff] %vm433, %v4218
        $region76: #{lstm_forward.1} parent=43 // pred_fallthru
          _
        %s4222 = sand.u32 %s169, 1
        %s4223 = scalar_lea.sflag [#allocation7], %s4222
        %s4224 = sand.u32 %s169, 1
        %s4225 = smul.addr %s4224, 64
        %s4226 = scalar_lea.vmem [#allocation16], %s4225
        // Predicated region
        $region77: #{lstm_forward.1} parent=43 // pred_check
          %p4227 = pneg %p179
        $region78: #{lstm_forward.1} parent=43 // pred_check_branch
          %4229 = sbr.rel (%p4227) target = $region80
        $region79: #{lstm_forward.1} parent=43 // pred_region
          %s4230 = smul.u32 8, %s30
          %s4232 = ssub.s32 1024, 1024
          %4233 = vsyncadd %s4223, %s4232
          %s4234 = smul.addr %s4230, 128
          %s4235 = scalar_lea.hbm %s6, %s4234
          %s4236 = sshll.u32 %s4226, 4
          %s4237 = int_to_ptr.vmem [resolvable:$true] %s4236
          %4242 = dma.vmem_to_hbm [thread:$0]  %s4237, 1024, %s4235, %s4223, 128, 128, 8
        $region80: #{lstm_forward.1} parent=43 // pred_fallthru
          _
        // Predicated region
        $region81: #{lstm_forward.1} parent=43 // pred_check
          %p4243 = pneg %p200
        $region82: #{lstm_forward.1} parent=43 // pred_check_branch
          %4245 = sbr.rel (%p4243) target = $region84
        $region83: #{lstm_forward.1} parent=43 // pred_region
          %s4247 = ssub.s32 384, 384
          %4248 = vsyncadd [#allocation18], %s4247
          %s4249 = sshll.u32 [#allocation17], 4
          %s4250 = int_to_ptr.vmem [resolvable:$true] %s4249
          %4255 = dma.vmem_to_hbm [thread:$0]  %s4250, 384, %s7, [#allocation18], 128, 128, 8
        $region84: #{lstm_forward.1} parent=43 // pred_fallthru
          _
        // Predicated region
        $region85: #{lstm_forward.1} parent=43 // pred_check
          %p4256 = pneg %p221
        $region86: #{lstm_forward.1} parent=43 // pred_check_branch
          %4258 = sbr.rel (%p4256) target = $region88
        $region87: #{lstm_forward.1} parent=43 // pred_region
          %s4260 = ssub.s32 384, 384
          %4261 = vsyncadd [#allocation18], %s4260
          %s4262 = sshll.u32 [#allocation19], 4
          %s4263 = int_to_ptr.vmem [resolvable:$true] %s4262
          %4268 = dma.vmem_to_hbm [thread:$0]  %s4263, 384, %s8, [#allocation18], 128, 128, 8
        $region88: #{lstm_forward.1} parent=43 // pred_fallthru
          _
        // Predicated region
        $region89: #{lstm_forward.1} parent=43 // pred_check
          %p4269 = pneg %p200
        $region90: #{lstm_forward.1} parent=43 // pred_check_branch
          %4271 = sbr.rel (%p4269) target = $region92
        $region91: #{lstm_forward.1} parent=43 // pred_region
          %4272 = dma.done [#allocation18], 384
        $region92: #{lstm_forward.1} parent=43 // pred_fallthru
          _
        // Predicated region
        $region93: #{lstm_forward.1} parent=43 // pred_check
          %p4273 = pneg %p221
        $region94: #{lstm_forward.1} parent=43 // pred_check_branch
          %4275 = sbr.rel (%p4273) target = $region96
        $region95: #{lstm_forward.1} parent=43 // pred_region
          %4276 = dma.done [#allocation18], 384
        $region96: #{lstm_forward.1} parent=43 // pred_fallthru
          _
      $region44: #{lstm_forward.1} parent=5 // pred_fallthru
        _
      %p4277 = scmp.le.s32.totalorder 2, %s25
      // Predicated region
      $region97: #{lstm_forward.1} parent=5 // pred_check
        %p4278 = pneg %p4277
      $region98: #{lstm_forward.1} parent=5 // pred_check_branch
        %4280 = sbr.rel (%p4278) target = $region100
      $region99: #{lstm_forward.1} parent=5 // pred_region
        %s4281 = ssub.s32 %s25, 2
        // Predicated region
        $region101: #{lstm_forward.1} parent=99 // pred_check
          %p4282 = pneg %p185
        $region102: #{lstm_forward.1} parent=99 // pred_check_branch
          %4284 = sbr.rel (%p4282) target = $region104
        $region103: #{lstm_forward.1} parent=99 // pred_region
          %s4285 = sand.u32 %s170, 1
          %s4286 = scalar_lea.sflag [#allocation7], %s4285
          %s4287 = sand.u32 %s170, 1
          %s4288 = smul.addr %s4287, 64
          %s4289 = scalar_lea.vmem [#allocation16], %s4288
          %4290 = dma.done %s4286, 1024
        $region104: #{lstm_forward.1} parent=99 // pred_fallthru
          _
      $region100: #{lstm_forward.1} parent=5 // pred_fallthru
        _
    $region6: #{lstm_forward.1} parent=1 // loop_footer
      %s29 = sadd.s32 1, %s25
    $region7: #{lstm_forward.1} parent=1 // loop_footer_branch
      %24 = sbr.rel target = $region3
    $region8: #{lstm_forward.1} parent=1 // loop_exit
      _
    %4291 = vsyncpa [#allocation6], 1
    %s4292 = scalar_lea.sflag [#allocation6], 1
    %4293 = vsyncpa %s4292, 1
    %4294 = vsyncpa [#allocation9], 1
    %4295 = vsyncpa [#allocation12], 1
    %4296 = vsyncpa [#allocation15], 1
    %4297 = vsyncpa [#allocation7], 1
    %s4298 = scalar_lea.sflag [#allocation7], 1
    %4299 = vsyncpa %s4298, 1
    %4300 = vsyncpa [#allocation18], 1

</llo_original>
